<compile_context>
chip_gen: v5e
topology: v5e:2x2
jax: 0.10.0
libtpu: 0.0.40
codegen_flags: <defaults>
</compile_context>

<pallas_src>
import jax
import jax.numpy as jnp
from jax.experimental import pallas as pl
from jax.experimental.pallas import tpu as pltpu


# --------------------------------------------------------------------------
# Tile-size helpers
# --------------------------------------------------------------------------
def _pick_pixel_tile(P, max_tile=64 * 1024):
    """Largest power-of-two pixel tile (<= max_tile) dividing P, else full P."""
    for t in (65536, 32768, 16384, 8192, 4096, 2048, 1024, 512, 256, 128):
        if t <= max_tile and P % t == 0:
            return t
    return P  # block dim equal to full array dim is always legal


def _pick_row_tile(Hh, Wh, C, budget_bytes=2 << 20):
    """Largest hr row-tile (multiple of 8, dividing Hh) whose slab fits budget."""
    max_rows = max(8, budget_bytes // (C * Wh * 4))
    if Hh <= max_rows:
        return Hh
    for cand in range(min(Hh, max_rows), 7, -1):
        if Hh % cand == 0 and cand % 8 == 0:
            return cand
    return Hh  # no aligned divisor under budget; fall back to full height


# --------------------------------------------------------------------------
# Kernel A: guided_map = 1x1 conv -> AdaptiveNorm -> LeakyReLU(0.2) -> 1x1 conv(+bias)
#           Channel-major: X is (C, tileP) with pixels on the lane axis.
# --------------------------------------------------------------------------
def guided_map_kernel(x_ref, w1_ref, sc_ref, sh_ref, w2_ref, b2_ref, o_ref):
    x = x_ref[0]                                                       # (C, tileP)
    h = jnp.dot(w1_ref[...], x, preferred_element_type=jnp.float32)    # (c, tileP)
    h = h * sc_ref[...] + sh_ref[...]                                  # folded AdaptiveNorm
    h = jnp.where(h >= 0.0, h, 0.2 * h)                                # LeakyReLU(0.2)
    o_ref[0] = (jnp.dot(w2_ref[...], h, preferred_element_type=jnp.float32)
                + b2_ref[...])                                         # (C, tileP)


def guided_map(x_pix, w1, scale, shift, w2, b2, *, max_tile=64 * 1024):
    B, C, P = x_pix.shape
    c = w1.shape[0]
    tp = _pick_pixel_tile(P, max_tile)
    pix = pl.BlockSpec((1, C, tp), lambda b, t: (b, 0, t))
    full = lambda b, t: (0, 0)
    return pl.pallas_call(
        guided_map_kernel,
        out_shape=jax.ShapeDtypeStruct((B, C, P), jnp.float32),
        grid=(B, P // tp),
        in_specs=[
            pix,
            pl.BlockSpec((c, C), full),
            pl.BlockSpec((c, 1), full),
            pl.BlockSpec((c, 1), full),
            pl.BlockSpec((C, c), full),
            pl.BlockSpec((C, 1), full),
        ],
        out_specs=pix,
        compiler_params=pltpu.CompilerParams(
            dimension_semantics=("parallel", "parallel"),
            vmem_limit_bytes=32 * 1024 * 1024),
    )(x_pix, w1, scale, shift, w2, b2)


# --------------------------------------------------------------------------
# Kernel B: depthwise dilated 3x3 all-ones filter (taps at {-r,0,+r}, zero pad)
#           + guided-filter statistics.  NOTE: this is the *dilated* 3x3 box of
#           the reference Conv2d(kernel_size=3, dilation=radius), NOT a
#           (2r+1)^2 box filter.  One grid step per batch image; all C channels
#           are processed together with batched (channel-axis) matmuls.
#           1/N is precomputed on the host (constant per shape/radius).
# --------------------------------------------------------------------------
def box_stats_kernel(gx_ref, y_ref, khb_ref, kwb_ref, invn_ref,
                     mx_ref, my_ref, cov_ref, var_ref):
    gx = gx_ref[0]            # (C, H, W)
    y = y_ref[0]
    khb = khb_ref[...]        # (C, H, H)
    kwb = kwb_ref[...]        # (C, W, W) (symmetric band matrix)
    inv_n = invn_ref[...]     # (C, H, W)

    def box(v):
        t = jnp.einsum('chk,ckw->chw', khb, v,
                       preferred_element_type=jnp.float32)
        return jnp.einsum('chw,cwl->chl', t, kwb,
                          preferred_element_type=jnp.float32)

    mx = box(gx) * inv_n
    my = box(y) * inv_n
    cov = box(gx * y) * inv_n - mx * my
    var = box(gx * gx) * inv_n - mx * mx
    mx_ref[0] = mx
    my_ref[0] = my
    cov_ref[0] = cov
    var_ref[0] = var


def box_stats(gx, y, khb, kwb, invnb):
    B, C, H, W = gx.shape
    slab = pl.BlockSpec((1, C, H, W), lambda b: (b, 0, 0, 0))
    full3 = lambda b: (0, 0, 0)
    return pl.pallas_call(
        box_stats_kernel,
        out_shape=tuple(jax.ShapeDtypeStruct((B, C, H, W), jnp.float32)
                        for _ in range(4)),
        grid=(B,),
        in_specs=[
            slab, slab,
            pl.BlockSpec((C, H, H), full3),
            pl.BlockSpec((C, W, W), full3),
            pl.BlockSpec((C, H, W), full3),
        ],
        out_specs=(slab, slab, slab, slab),
        compiler_params=pltpu.CompilerParams(
            dimension_semantics=("parallel",)),
    )(gx, y, khb, kwb, invnb)


# --------------------------------------------------------------------------
# Kernel C: conv_a (1x1 conv stack, folded AdaptiveNorm + ReLU) and
#           b = mean_y - A * mean_x.  Channel-major, lane-dense, split wa1
#           (no host concat of [cov, var]).
# --------------------------------------------------------------------------
def conv_a_kernel(cov_ref, var_ref, mx_ref, my_ref,
                  w1c_ref, w1v_ref, s1_ref, t1_ref,
                  w2_ref, s2_ref, t2_ref, w3_ref,
                  a_ref, b_ref):
    z = (jnp.dot(w1c_ref[...], cov_ref[0], preferred_element_type=jnp.float32)
         + jnp.dot(w1v_ref[...], var_ref[0], preferred_element_type=jnp.float32))
    z = jnp.maximum(z * s1_ref[...] + t1_ref[...], 0.0)
    z = jnp.dot(w2_ref[...], z, preferred_element_type=jnp.float32)
    z = jnp.maximum(z * s2_ref[...] + t2_ref[...], 0.0)
    A = jnp.dot(w3_ref[...], z, preferred_element_type=jnp.float32)   # (C, tileP)
    a_ref[0] = A
    b_ref[0] = my_ref[0] - A * mx_ref[0]


def conv_a_apply(cov, var, mx, my,
                 w1c, w1v, s1, t1, w2, s2, t2, w3, *, max_tile=32 * 1024):
    B, C, P = cov.shape
    hid = w1c.shape[0]
    tp = _pick_pixel_tile(P, max_tile)
    pix = pl.BlockSpec((1, C, tp), lambda b, t: (b, 0, t))
    full = lambda b, t: (0, 0)
    return pl.pallas_call(
        conv_a_kernel,
        out_shape=(jax.ShapeDtypeStruct((B, C, P), jnp.float32),
                   jax.ShapeDtypeStruct((B, C, P), jnp.float32)),
        grid=(B, P // tp),
        in_specs=[
            pix, pix, pix, pix,
            pl.BlockSpec((hid, C), full),
            pl.BlockSpec((hid, C), full),
            pl.BlockSpec((hid, 1), full),
            pl.BlockSpec((hid, 1), full),
            pl.BlockSpec((hid, hid), full),
            pl.BlockSpec((hid, 1), full),
            pl.BlockSpec((hid, 1), full),
            pl.BlockSpec((C, hid), full),
        ],
        out_specs=(pix, pix),
        compiler_params=pltpu.CompilerParams(
            dimension_semantics=("parallel", "parallel"),
            vmem_limit_bytes=32 * 1024 * 1024),
    )(cov, var, mx, my, w1c, w1v, s1, t1, w2, s2, t2, w3)


# --------------------------------------------------------------------------
# Kernel D: bilinear (align_corners=True) upsample of A and b, then
#           out = clamp(mean_A * x_hr_guided + mean_b, 0, 1).
#           Batched over channels; hr output tiled along H (row band tH) with
#           a matching row-BlockSpec for the interpolation matrix.
# --------------------------------------------------------------------------
def upsample_apply_kernel(a_ref, b_ref, xhr_ref, uh_ref, uwT_ref, o_ref):
    uh = uh_ref[...]       # (C, tH, Hl) -- row band of the interpolation matrix
    uwT = uwT_ref[...]     # (C, Wl, Wh)

    def up(v):             # v: (C, Hl, Wl) -> (C, tH, Wh)
        t = jnp.einsum('chk,ckw->chw', uh, v,
                       preferred_element_type=jnp.float32)
        return jnp.einsum('chw,cwl->chl', t, uwT,
                          preferred_element_type=jnp.float32)

    mean_A = up(a_ref[0])
    mean_b = up(b_ref[0])
    o_ref[0] = jnp.clip(mean_A * xhr_ref[0] + mean_b, 0.0, 1.0)


def upsample_apply(A, bb, gm_hr, uhb, uwTb, *, row_budget_bytes=2 << 20):
    B, C, Hl, Wl = A.shape
    _, _, Hh, Wh = gm_hr.shape
    tH = _pick_row_tile(Hh, Wh, C, row_budget_bytes)
    lr_slab = pl.BlockSpec((1, C, Hl, Wl), lambda b, h: (b, 0, 0, 0))
    hr_slab = pl.BlockSpec((1, C, tH, Wh), lambda b, h: (b, 0, h, 0))
    return pl.pallas_call(
        upsample_apply_kernel,
        out_shape=jax.ShapeDtypeStruct((B, C, Hh, Wh), jnp.float32),
        grid=(B, Hh // tH),
        in_specs=[
            lr_slab, lr_slab, hr_slab,
            pl.BlockSpec((C, tH, Hl), lambda b, h: (0, h, 0)),
            pl.BlockSpec((C, Wl, Wh), lambda b, h: (0, 0, 0)),
        ],
        out_specs=hr_slab,
        compiler_params=pltpu.CompilerParams(
            dimension_semantics=("parallel", "parallel"),
            vmem_limit_bytes=32 * 1024 * 1024),
    )(A, bb, gm_hr, uhb, uwTb)


# --------------------------------------------------------------------------
# Host-side constants (tiny) and parameter setup.
# --------------------------------------------------------------------------
def box_matrix(n, radius):
    # Banded matrix with taps at offsets {0, +-radius}: applying it on both
    # sides reproduces the reference depthwise Conv2d(kernel_size=3,
    # dilation=radius, padding=radius, all-ones weight).
    i = jnp.arange(n)[:, None]
    j = jnp.arange(n)[None, :]
    d = jnp.abs(i - j)
    return ((d == 0) | (d == radius)).astype(jnp.float32)


def interp_matrix(out_size, in_size):
    # Separable 1-D bilinear interpolation matrix, align_corners=True.
    if out_size == 1:
        coords = jnp.zeros((1,), jnp.float32)
    else:
        coords = (jnp.arange(out_size, dtype=jnp.float32)
                  * (in_size - 1) / (out_size - 1))
    j0 = jnp.clip(jnp.floor(coords).astype(jnp.int32), 0, in_size - 1)
    j1 = jnp.clip(j0 + 1, 0, in_size - 1)
    frac = coords - j0.astype(jnp.float32)
    rows = jnp.arange(out_size)
    w = jnp.zeros((out_size, in_size), jnp.float32)
    w = w.at[rows, j0].add(1.0 - frac)
    w = w.at[rows, j1].add(frac)
    return w


def fold_adaptive_norm(key, n, eps=1e-3):
    # AdaptiveNorm(x) = w0*x + w1*BN_eval(x)  ->  scale*x + shift (per channel),
    # returned channel-major as (n, 1) columns.
    k = jax.random.split(key, 6)
    w0 = 1.0 + 0.1 * jax.random.normal(k[0], (), jnp.float32)
    w1 = 0.2 * jax.random.normal(k[1], (), jnp.float32)
    gamma = 1.0 + 0.1 * jax.random.normal(k[2], (n,), jnp.float32)
    beta = 0.1 * jax.random.normal(k[3], (n,), jnp.float32)
    r_mean = 0.1 * jax.random.normal(k[4], (n,), jnp.float32)
    r_var = 0.5 + 0.5 * jnp.abs(jax.random.normal(k[5], (n,), jnp.float32))
    inv_std = gamma / jnp.sqrt(r_var + eps)
    scale = w0 + w1 * inv_std
    shift = w1 * (beta - r_mean * inv_std)
    return scale.reshape(n, 1), shift.reshape(n, 1)


def init_params(key, channels=3, c=16, hidden=32):
    ks = jax.random.split(key, 10)
    p = {}
    # guided_map: Conv2d(C,c,1,bias=False) -> AdaptiveNorm(c) -> LeakyReLU -> Conv2d(c,C,1)
    p["gm_w1"] = 0.3 * jax.random.normal(ks[0], (c, channels), jnp.float32)
    p["gm_scale"], p["gm_shift"] = fold_adaptive_norm(ks[1], c)
    p["gm_w2"] = 0.3 * jax.random.normal(ks[2], (channels, c), jnp.float32)
    p["gm_b2"] = 0.1 * jax.random.normal(ks[3], (channels, 1), jnp.float32)
    # conv_a: Conv2d(2C,32)->AN->ReLU->Conv2d(32,32)->AN->ReLU->Conv2d(32,C), no biases.
    # First-layer weight split into the cov / var halves (cat order [cov, var]).
    p["wa1_cov"] = 0.3 * jax.random.normal(ks[4], (hidden, channels), jnp.float32)
    p["wa1_var"] = 0.3 * jax.random.normal(ks[5], (hidden, channels), jnp.float32)
    p["a_scale1"], p["a_shift1"] = fold_adaptive_norm(ks[6], hidden)
    p["wa2"] = 0.3 * jax.random.normal(ks[7], (hidden, hidden), jnp.float32)
    p["a_scale2"], p["a_shift2"] = fold_adaptive_norm(ks[8], hidden)
    p["wa3"] = 0.3 * jax.random.normal(ks[9], (channels, hidden), jnp.float32)
    return p


def dgf_forward(params, x_lr, y_lr, x_hr, radius=1):
    B, C, Hl, Wl = x_lr.shape
    _, _, Hh, Wh = x_hr.shape
    Pl, Ph = Hl * Wl, Hh * Wh

    # guided_map on low- and high-res inputs (contiguous NCHW -> (B,C,P) views).
    def gm(x, P):
        return guided_map(x.reshape(B, C, P), params["gm_w1"],
                          params["gm_scale"], params["gm_shift"],
                          params["gm_w2"], params["gm_b2"])

    gm_lr = gm(x_lr, Pl)       # (B, C, Pl)
    gm_hr = gm(x_hr, Ph)       # (B, C, Ph)

    # Host-precomputed constants: band matrices, 1/N, interpolation matrices.
    kh = box_matrix(Hl, radius)
    kw = box_matrix(Wl, radius)
    n_box = kh @ jnp.ones((Hl, Wl), jnp.float32) @ kw      # N = box(ones) >= 1
    invnb = jnp.broadcast_to(1.0 / n_box, (C, Hl, Wl))
    khb = jnp.broadcast_to(kh, (C, Hl, Hl))
    kwb = jnp.broadcast_to(kw, (C, Wl, Wl))

    mx, my, cov, var = box_stats(gm_lr.reshape(B, C, Hl, Wl), y_lr,
                                 khb, kwb, invnb)           # each (B, C, Hl, Wl)

    A_pix, b_pix = conv_a_apply(
        cov.reshape(B, C, Pl), var.reshape(B, C, Pl),
        mx.reshape(B, C, Pl), my.reshape(B, C, Pl),
        params["wa1_cov"], params["wa1_var"],
        params["a_scale1"], params["a_shift1"],
        params["wa2"], params["a_scale2"], params["a_shift2"],
        params["wa3"])                                      # (B, C, Pl) x2

    uhb = jnp.broadcast_to(interp_matrix(Hh, Hl), (C, Hh, Hl))
    uwTb = jnp.broadcast_to(interp_matrix(Wh, Wl).T, (C, Wl, Wh))
    out = upsample_apply(A_pix.reshape(B, C, Hl, Wl),
                         b_pix.reshape(B, C, Hl, Wl),
                         gm_hr.reshape(B, C, Hh, Wh),
                         uhb, uwTb)
    return out                                              # (B, C, Hh, Wh)


if __name__ == "__main__":
    key = jax.random.PRNGKey(0)
    kp, kx, ky, kz = jax.random.split(key, 4)
    B, C = 2, 3
    Hl = Wl = 16
    Hh = Wh = 64
    params = init_params(kp, channels=C, c=16, hidden=32)
    x_lr = jax.random.uniform(kx, (B, C, Hl, Wl), jnp.float32)
    y_lr = jax.random.uniform(ky, (B, C, Hl, Wl), jnp.float32)
    x_hr = jax.random.uniform(kz, (B, C, Hh, Wh), jnp.float32)

    out = jax.jit(dgf_forward)(params, x_lr, y_lr, x_hr)
    out = jax.block_until_ready(out)
    assert out.shape == (B, C, Hh, Wh)
    assert bool(jnp.all(jnp.isfinite(out)))
    assert bool(jnp.all((out >= 0.0) & (out <= 1.0)))
    print("KERNEL_OK")
</pallas_src>

<mosaic_0001>
module attributes {stable_mosaic.version = 11 : i64} {
  func.func @guided_map_kernel(%arg0: i32, %arg1: i32, %arg2: memref<1x3x256xf32, #tpu.memory_space<vmem>>, %arg3: memref<16x3xf32, #tpu.memory_space<vmem>>, %arg4: memref<16x1xf32, #tpu.memory_space<vmem>>, %arg5: memref<16x1xf32, #tpu.memory_space<vmem>>, %arg6: memref<3x16xf32, #tpu.memory_space<vmem>>, %arg7: memref<3x1xf32, #tpu.memory_space<vmem>>, %arg8: memref<1x3x256xf32, #tpu.memory_space<vmem>>) attributes {dimension_semantics = [#tpu.dimension_semantics<parallel>, #tpu.dimension_semantics<parallel>], iteration_bounds = array<i64: 2, 1>, scalar_prefetch = 0 : i64, scratch_operands = 0 : i64, tpu.core_type = #tpu.core_type<tc>, window_params = [{transform_indices = @transform_0, window_bounds = array<i64: 1, 3, 256>}, {pipeline_mode = #tpu.pipeline_mode<synchronous>, transform_indices = @transform_1, window_bounds = array<i64: 16, 3>}, {pipeline_mode = #tpu.pipeline_mode<synchronous>, transform_indices = @transform_2, window_bounds = array<i64: 16, 1>}, {pipeline_mode = #tpu.pipeline_mode<synchronous>, transform_indices = @transform_3, window_bounds = array<i64: 16, 1>}, {pipeline_mode = #tpu.pipeline_mode<synchronous>, transform_indices = @transform_4, window_bounds = array<i64: 3, 16>}, {pipeline_mode = #tpu.pipeline_mode<synchronous>, transform_indices = @transform_5, window_bounds = array<i64: 3, 1>}, {transform_indices = @transform_6, window_bounds = array<i64: 1, 3, 256>}]} {
    %c0 = arith.constant 0 : index
    %c0_0 = arith.constant 0 : index
    %c0_1 = arith.constant 0 : index
    %0 = vector.load %arg2[%c0, %c0_0, %c0_1] : memref<1x3x256xf32, #tpu.memory_space<vmem>>, vector<1x3x256xf32>
    %1 = vector.shape_cast %0 : vector<1x3x256xf32> to vector<3x256xf32>
    %c0_2 = arith.constant 0 : index
    %c0_3 = arith.constant 0 : index
    %2 = vector.load %arg3[%c0_2, %c0_3] : memref<16x3xf32, #tpu.memory_space<vmem>>, vector<16x3xf32>
    %cst = arith.constant dense<0.000000e+00> : vector<16x256xf32>
    %3 = tpu.matmul %2, %1, %cst {dimension_numbers = #tpu.dot_dimension_numbers<[1], [0], [0], [1], [0, 0, 1, 1], [], []>} : vector<16x3xf32>, vector<3x256xf32>, vector<16x256xf32> -> vector<16x256xf32>
    %c0_4 = arith.constant 0 : index
    %c0_5 = arith.constant 0 : index
    %4 = vector.load %arg4[%c0_4, %c0_5] : memref<16x1xf32, #tpu.memory_space<vmem>>, vector<16x1xf32>
    %5 = vector.broadcast %4 : vector<16x1xf32> to vector<16x256xf32>
    %6 = arith.mulf %3, %5 : vector<16x256xf32>
    %c0_6 = arith.constant 0 : index
    %c0_7 = arith.constant 0 : index
    %7 = vector.load %arg5[%c0_6, %c0_7] : memref<16x1xf32, #tpu.memory_space<vmem>>, vector<16x1xf32>
    %8 = vector.broadcast %7 : vector<16x1xf32> to vector<16x256xf32>
    %9 = arith.addf %6, %8 : vector<16x256xf32>
    %cst_8 = arith.constant 0.000000e+00 : f32
    %10 = vector.broadcast %cst_8 : f32 to vector<16x256xf32>
    %11 = arith.cmpf oge, %9, %10 : vector<16x256xf32>
    %cst_9 = arith.constant 2.000000e-01 : f32
    %12 = vector.broadcast %cst_9 : f32 to vector<16x256xf32>
    %13 = arith.mulf %12, %9 : vector<16x256xf32>
    %14 = arith.select %11, %9, %13 : vector<16x256xi1>, vector<16x256xf32>
    %c0_10 = arith.constant 0 : index
    %c0_11 = arith.constant 0 : index
    %15 = vector.load %arg6[%c0_10, %c0_11] : memref<3x16xf32, #tpu.memory_space<vmem>>, vector<3x16xf32>
    %cst_12 = arith.constant dense<0.000000e+00> : vector<3x256xf32>
    %16 = tpu.matmul %15, %14, %cst_12 {dimension_numbers = #tpu.dot_dimension_numbers<[1], [0], [0], [1], [0, 0, 1, 1], [], []>} : vector<3x16xf32>, vector<16x256xf32>, vector<3x256xf32> -> vector<3x256xf32>
    %c0_13 = arith.constant 0 : index
    %c0_14 = arith.constant 0 : index
    %17 = vector.load %arg7[%c0_13, %c0_14] : memref<3x1xf32, #tpu.memory_space<vmem>>, vector<3x1xf32>
    %18 = vector.broadcast %17 : vector<3x1xf32> to vector<3x256xf32>
    %19 = arith.addf %16, %18 : vector<3x256xf32>
    %c0_15 = arith.constant 0 : index
    %c0_16 = arith.constant 0 : index
    %c0_17 = arith.constant 0 : index
    %20 = vector.load %arg8[%c0_15, %c0_16, %c0_17] : memref<1x3x256xf32, #tpu.memory_space<vmem>>, vector<1x3x256xf32>
    %21 = vector.shape_cast %20 : vector<1x3x256xf32> to vector<3x256xf32>
    %22 = vector.shape_cast %19 : vector<3x256xf32> to vector<1x3x256xf32>
    tpu.vector_store %arg8[%c0_15, %c0_16, %c0_17], %22 {strides = array<i32>} : memref<1x3x256xf32, #tpu.memory_space<vmem>>, vector<1x3x256xf32>,
    return
  }
  func.func @transform_0(%arg0: i32, %arg1: i32) -> (i32, i32, i32) {
    %c0_i32 = arith.constant 0 : i32
    %c0_i32_0 = arith.constant 0 : i32
    return %arg0, %c0_i32, %arg1 : i32, i32, i32
  }
  func.func @transform_1(%arg0: i32, %arg1: i32) -> (i32, i32) {
    %c0_i32 = arith.constant 0 : i32
    %c0_i32_0 = arith.constant 0 : i32
    %c0_i32_1 = arith.constant 0 : i32
    return %c0_i32, %c0_i32_0 : i32, i32
  }
  func.func @transform_2(%arg0: i32, %arg1: i32) -> (i32, i32) {
    %c0_i32 = arith.constant 0 : i32
    %c0_i32_0 = arith.constant 0 : i32
    %c0_i32_1 = arith.constant 0 : i32
    return %c0_i32, %c0_i32_0 : i32, i32
  }
  func.func @transform_3(%arg0: i32, %arg1: i32) -> (i32, i32) {
    %c0_i32 = arith.constant 0 : i32
    %c0_i32_0 = arith.constant 0 : i32
    %c0_i32_1 = arith.constant 0 : i32
    return %c0_i32, %c0_i32_0 : i32, i32
  }
  func.func @transform_4(%arg0: i32, %arg1: i32) -> (i32, i32) {
    %c0_i32 = arith.constant 0 : i32
    %c0_i32_0 = arith.constant 0 : i32
    %c0_i32_1 = arith.constant 0 : i32
    return %c0_i32, %c0_i32_0 : i32, i32
  }
  func.func @transform_5(%arg0: i32, %arg1: i32) -> (i32, i32) {
    %c0_i32 = arith.constant 0 : i32
    %c0_i32_0 = arith.constant 0 : i32
    %c0_i32_1 = arith.constant 0 : i32
    return %c0_i32, %c0_i32_0 : i32, i32
  }
  func.func @transform_6(%arg0: i32, %arg1: i32) -> (i32, i32, i32) {
    %c0_i32 = arith.constant 0 : i32
    %c0_i32_0 = arith.constant 0 : i32
    return %arg0, %c0_i32, %arg1 : i32, i32, i32
  }
}

module attributes {stable_mosaic.version = 11 : i64} {
  func.func @box_stats_kernel(%arg0: i32, %arg1: memref<1x3x16x16xf32, #tpu.memory_space<vmem>>, %arg2: memref<1x3x16x16xf32, #tpu.memory_space<vmem>>, %arg3: memref<3x16x16xf32, #tpu.memory_space<vmem>>, %arg4: memref<3x16x16xf32, #tpu.memory_space<vmem>>, %arg5: memref<3x16x16xf32, #tpu.memory_space<vmem>>, %arg6: memref<1x3x16x16xf32, #tpu.memory_space<vmem>>, %arg7: memref<1x3x16x16xf32, #tpu.memory_space<vmem>>, %arg8: memref<1x3x16x16xf32, #tpu.memory_space<vmem>>, %arg9: memref<1x3x16x16xf32, #tpu.memory_space<vmem>>) attributes {dimension_semantics = [#tpu.dimension_semantics<parallel>], iteration_bounds = array<i64: 2>, scalar_prefetch = 0 : i64, scratch_operands = 0 : i64, tpu.core_type = #tpu.core_type<tc>, window_params = [{transform_indices = @transform_0, window_bounds = array<i64: 1, 3, 16, 16>}, {transform_indices = @transform_1, window_bounds = array<i64: 1, 3, 16, 16>}, {pipeline_mode = #tpu.pipeline_mode<synchronous>, transform_indices = @transform_2, window_bounds = array<i64: 3, 16, 16>}, {pipeline_mode = #tpu.pipeline_mode<synchronous>, transform_indices = @transform_3, window_bounds = array<i64: 3, 16, 16>}, {pipeline_mode = #tpu.pipeline_mode<synchronous>, transform_indices = @transform_4, window_bounds = array<i64: 3, 16, 16>}, {transform_indices = @transform_5, window_bounds = array<i64: 1, 3, 16, 16>}, {transform_indices = @transform_6, window_bounds = array<i64: 1, 3, 16, 16>}, {transform_indices = @transform_7, window_bounds = array<i64: 1, 3, 16, 16>}, {transform_indices = @transform_8, window_bounds = array<i64: 1, 3, 16, 16>}]} {
    %c0 = arith.constant 0 : index
    %c0_0 = arith.constant 0 : index
    %c0_1 = arith.constant 0 : index
    %c0_2 = arith.constant 0 : index
    %0 = vector.load %arg1[%c0, %c0_0, %c0_1, %c0_2] : memref<1x3x16x16xf32, #tpu.memory_space<vmem>>, vector<1x3x16x16xf32>
    %1 = vector.shape_cast %0 : vector<1x3x16x16xf32> to vector<3x16x16xf32>
    %c0_3 = arith.constant 0 : index
    %c0_4 = arith.constant 0 : index
    %c0_5 = arith.constant 0 : index
    %c0_6 = arith.constant 0 : index
    %2 = vector.load %arg2[%c0_3, %c0_4, %c0_5, %c0_6] : memref<1x3x16x16xf32, #tpu.memory_space<vmem>>, vector<1x3x16x16xf32>
    %3 = vector.shape_cast %2 : vector<1x3x16x16xf32> to vector<3x16x16xf32>
    %c0_7 = arith.constant 0 : index
    %c0_8 = arith.constant 0 : index
    %c0_9 = arith.constant 0 : index
    %4 = vector.load %arg3[%c0_7, %c0_8, %c0_9] : memref<3x16x16xf32, #tpu.memory_space<vmem>>, vector<3x16x16xf32>
    %c0_10 = arith.constant 0 : index
    %c0_11 = arith.constant 0 : index
    %c0_12 = arith.constant 0 : index
    %5 = vector.load %arg4[%c0_10, %c0_11, %c0_12] : memref<3x16x16xf32, #tpu.memory_space<vmem>>, vector<3x16x16xf32>
    %c0_13 = arith.constant 0 : index
    %c0_14 = arith.constant 0 : index
    %c0_15 = arith.constant 0 : index
    %6 = vector.load %arg5[%c0_13, %c0_14, %c0_15] : memref<3x16x16xf32, #tpu.memory_space<vmem>>, vector<3x16x16xf32>
    "tpu.trace_start"() <{level = 10 : i32, message = "chk,ckw->chw"}> : () -> ()
    %cst = arith.constant dense<0.000000e+00> : vector<3x16x16xf32>
    %7 = tpu.matmul %4, %1, %cst {dimension_numbers = #tpu.dot_dimension_numbers<[2], [1], [1], [2], [0, 0, 0, 1, 1, 2], [0], [0]>} : vector<3x16x16xf32>, vector<3x16x16xf32>, vector<3x16x16xf32> -> vector<3x16x16xf32>
    "tpu.trace_stop"() : () -> ()
    "tpu.trace_start"() <{level = 10 : i32, message = "chw,cwl->chl"}> : () -> ()
    %cst_16 = arith.constant dense<0.000000e+00> : vector<3x16x16xf32>
    %8 = tpu.matmul %7, %5, %cst_16 {dimension_numbers = #tpu.dot_dimension_numbers<[2], [1], [1], [2], [0, 0, 0, 1, 1, 2], [0], [0]>} : vector<3x16x16xf32>, vector<3x16x16xf32>, vector<3x16x16xf32> -> vector<3x16x16xf32>
    "tpu.trace_stop"() : () -> ()
    %9 = arith.mulf %8, %6 : vector<3x16x16xf32>
    "tpu.trace_start"() <{level = 10 : i32, message = "chk,ckw->chw"}> : () -> ()
    %cst_17 = arith.constant dense<0.000000e+00> : vector<3x16x16xf32>
    %10 = tpu.matmul %4, %3, %cst_17 {dimension_numbers = #tpu.dot_dimension_numbers<[2], [1], [1], [2], [0, 0, 0, 1, 1, 2], [0], [0]>} : vector<3x16x16xf32>, vector<3x16x16xf32>, vector<3x16x16xf32> -> vector<3x16x16xf32>
    "tpu.trace_stop"() : () -> ()
    "tpu.trace_start"() <{level = 10 : i32, message = "chw,cwl->chl"}> : () -> ()
    %cst_18 = arith.constant dense<0.000000e+00> : vector<3x16x16xf32>
    %11 = tpu.matmul %10, %5, %cst_18 {dimension_numbers = #tpu.dot_dimension_numbers<[2], [1], [1], [2], [0, 0, 0, 1, 1, 2], [0], [0]>} : vector<3x16x16xf32>, vector<3x16x16xf32>, vector<3x16x16xf32> -> vector<3x16x16xf32>
    "tpu.trace_stop"() : () -> ()
    %12 = arith.mulf %11, %6 : vector<3x16x16xf32>
    %13 = arith.mulf %1, %3 : vector<3x16x16xf32>
    "tpu.trace_start"() <{level = 10 : i32, message = "chk,ckw->chw"}> : () -> ()
    %cst_19 = arith.constant dense<0.000000e+00> : vector<3x16x16xf32>
    %14 = tpu.matmul %4, %13, %cst_19 {dimension_numbers = #tpu.dot_dimension_numbers<[2], [1], [1], [2], [0, 0, 0, 1, 1, 2], [0], [0]>} : vector<3x16x16xf32>, vector<3x16x16xf32>, vector<3x16x16xf32> -> vector<3x16x16xf32>
    "tpu.trace_stop"() : () -> ()
    "tpu.trace_start"() <{level = 10 : i32, message = "chw,cwl->chl"}> : () -> ()
    %cst_20 = arith.constant dense<0.000000e+00> : vector<3x16x16xf32>
    %15 = tpu.matmul %14, %5, %cst_20 {dimension_numbers = #tpu.dot_dimension_numbers<[2], [1], [1], [2], [0, 0, 0, 1, 1, 2], [0], [0]>} : vector<3x16x16xf32>, vector<3x16x16xf32>, vector<3x16x16xf32> -> vector<3x16x16xf32>
    "tpu.trace_stop"() : () -> ()
    %16 = arith.mulf %15, %6 : vector<3x16x16xf32>
    %17 = arith.mulf %9, %12 : vector<3x16x16xf32>
    %18 = arith.subf %16, %17 : vector<3x16x16xf32>
    %19 = arith.mulf %1, %1 : vector<3x16x16xf32>
    "tpu.trace_start"() <{level = 10 : i32, message = "chk,ckw->chw"}> : () -> ()
    %cst_21 = arith.constant dense<0.000000e+00> : vector<3x16x16xf32>
    %20 = tpu.matmul %4, %19, %cst_21 {dimension_numbers = #tpu.dot_dimension_numbers<[2], [1], [1], [2], [0, 0, 0, 1, 1, 2], [0], [0]>} : vector<3x16x16xf32>, vector<3x16x16xf32>, vector<3x16x16xf32> -> vector<3x16x16xf32>
    "tpu.trace_stop"() : () -> ()
    "tpu.trace_start"() <{level = 10 : i32, message = "chw,cwl->chl"}> : () -> ()
    %cst_22 = arith.constant dense<0.000000e+00> : vector<3x16x16xf32>
    %21 = tpu.matmul %20, %5, %cst_22 {dimension_numbers = #tpu.dot_dimension_numbers<[2], [1], [1], [2], [0, 0, 0, 1, 1, 2], [0], [0]>} : vector<3x16x16xf32>, vector<3x16x16xf32>, vector<3x16x16xf32> -> vector<3x16x16xf32>
    "tpu.trace_stop"() : () -> ()
    %22 = arith.mulf %21, %6 : vector<3x16x16xf32>
    %23 = arith.mulf %9, %9 : vector<3x16x16xf32>
    %24 = arith.subf %22, %23 : vector<3x16x16xf32>
    %c0_23 = arith.constant 0 : index
    %c0_24 = arith.constant 0 : index
    %c0_25 = arith.constant 0 : index
    %c0_26 = arith.constant 0 : index
    %25 = vector.load %arg6[%c0_23, %c0_24, %c0_25, %c0_26] : memref<1x3x16x16xf32, #tpu.memory_space<vmem>>, vector<1x3x16x16xf32>
    %26 = vector.shape_cast %25 : vector<1x3x16x16xf32> to vector<3x16x16xf32>
    %27 = vector.shape_cast %9 : vector<3x16x16xf32> to vector<1x3x16x16xf32>
    tpu.vector_store %arg6[%c0_23, %c0_24, %c0_25, %c0_26], %27 {strides = array<i32>} : memref<1x3x16x16xf32, #tpu.memory_space<vmem>>, vector<1x3x16x16xf32>,
    %c0_27 = arith.constant 0 : index
    %c0_28 = arith.constant 0 : index
    %c0_29 = arith.constant 0 : index
    %c0_30 = arith.constant 0 : index
    %28 = vector.load %arg7[%c0_27, %c0_28, %c0_29, %c0_30] : memref<1x3x16x16xf32, #tpu.memory_space<vmem>>, vector<1x3x16x16xf32>
    %29 = vector.shape_cast %28 : vector<1x3x16x16xf32> to vector<3x16x16xf32>
    %30 = vector.shape_cast %12 : vector<3x16x16xf32> to vector<1x3x16x16xf32>
    tpu.vector_store %arg7[%c0_27, %c0_28, %c0_29, %c0_30], %30 {strides = array<i32>} : memref<1x3x16x16xf32, #tpu.memory_space<vmem>>, vector<1x3x16x16xf32>,
    %c0_31 = arith.constant 0 : index
    %c0_32 = arith.constant 0 : index
    %c0_33 = arith.constant 0 : index
    %c0_34 = arith.constant 0 : index
    %31 = vector.load %arg8[%c0_31, %c0_32, %c0_33, %c0_34] : memref<1x3x16x16xf32, #tpu.memory_space<vmem>>, vector<1x3x16x16xf32>
    %32 = vector.shape_cast %31 : vector<1x3x16x16xf32> to vector<3x16x16xf32>
    %33 = vector.shape_cast %18 : vector<3x16x16xf32> to vector<1x3x16x16xf32>
    tpu.vector_store %arg8[%c0_31, %c0_32, %c0_33, %c0_34], %33 {strides = array<i32>} : memref<1x3x16x16xf32, #tpu.memory_space<vmem>>, vector<1x3x16x16xf32>,
    %c0_35 = arith.constant 0 : index
    %c0_36 = arith.constant 0 : index
    %c0_37 = arith.constant 0 : index
    %c0_38 = arith.constant 0 : index
    %34 = vector.load %arg9[%c0_35, %c0_36, %c0_37, %c0_38] : memref<1x3x16x16xf32, #tpu.memory_space<vmem>>, vector<1x3x16x16xf32>
    %35 = vector.shape_cast %34 : vector<1x3x16x16xf32> to vector<3x16x16xf32>
    %36 = vector.shape_cast %24 : vector<3x16x16xf32> to vector<1x3x16x16xf32>
    tpu.vector_store %arg9[%c0_35, %c0_36, %c0_37, %c0_38], %36 {strides = array<i32>} : memref<1x3x16x16xf32, #tpu.memory_space<vmem>>, vector<1x3x16x16xf32>,
    return
  }
  func.func @transform_0(%arg0: i32) -> (i32, i32, i32, i32) {
    %c0_i32 = arith.constant 0 : i32
    %c0_i32_0 = arith.constant 0 : i32
    %c0_i32_1 = arith.constant 0 : i32
    %c0_i32_2 = arith.constant 0 : i32
    return %arg0, %c0_i32, %c0_i32_0, %c0_i32_1 : i32, i32, i32, i32
  }
  func.func @transform_1(%arg0: i32) -> (i32, i32, i32, i32) {
    %c0_i32 = arith.constant 0 : i32
    %c0_i32_0 = arith.constant 0 : i32
    %c0_i32_1 = arith.constant 0 : i32
    %c0_i32_2 = arith.constant 0 : i32
    return %arg0, %c0_i32, %c0_i32_0, %c0_i32_1 : i32, i32, i32, i32
  }
  func.func @transform_2(%arg0: i32) -> (i32, i32, i32) {
    %c0_i32 = arith.constant 0 : i32
    %c0_i32_0 = arith.constant 0 : i32
    %c0_i32_1 = arith.constant 0 : i32
    %c0_i32_2 = arith.constant 0 : i32
    return %c0_i32, %c0_i32_0, %c0_i32_1 : i32, i32, i32
  }
  func.func @transform_3(%arg0: i32) -> (i32, i32, i32) {
    %c0_i32 = arith.constant 0 : i32
    %c0_i32_0 = arith.constant 0 : i32
    %c0_i32_1 = arith.constant 0 : i32
    %c0_i32_2 = arith.constant 0 : i32
    return %c0_i32, %c0_i32_0, %c0_i32_1 : i32, i32, i32
  }
  func.func @transform_4(%arg0: i32) -> (i32, i32, i32) {
    %c0_i32 = arith.constant 0 : i32
    %c0_i32_0 = arith.constant 0 : i32
    %c0_i32_1 = arith.constant 0 : i32
    %c0_i32_2 = arith.constant 0 : i32
    return %c0_i32, %c0_i32_0, %c0_i32_1 : i32, i32, i32
  }
  func.func @transform_5(%arg0: i32) -> (i32, i32, i32, i32) {
    %c0_i32 = arith.constant 0 : i32
    %c0_i32_0 = arith.constant 0 : i32
    %c0_i32_1 = arith.constant 0 : i32
    %c0_i32_2 = arith.constant 0 : i32
    return %arg0, %c0_i32, %c0_i32_0, %c0_i32_1 : i32, i32, i32, i32
  }
  func.func @transform_6(%arg0: i32) -> (i32, i32, i32, i32) {
    %c0_i32 = arith.constant 0 : i32
    %c0_i32_0 = arith.constant 0 : i32
    %c0_i32_1 = arith.constant 0 : i32
    %c0_i32_2 = arith.constant 0 : i32
    return %arg0, %c0_i32, %c0_i32_0, %c0_i32_1 : i32, i32, i32, i32
  }
  func.func @transform_7(%arg0: i32) -> (i32, i32, i32, i32) {
    %c0_i32 = arith.constant 0 : i32
    %c0_i32_0 = arith.constant 0 : i32
    %c0_i32_1 = arith.constant 0 : i32
    %c0_i32_2 = arith.constant 0 : i32
    return %arg0, %c0_i32, %c0_i32_0, %c0_i32_1 : i32, i32, i32, i32
  }
  func.func @transform_8(%arg0: i32) -> (i32, i32, i32, i32) {
    %c0_i32 = arith.constant 0 : i32
    %c0_i32_0 = arith.constant 0 : i32
    %c0_i32_1 = arith.constant 0 : i32
    %c0_i32_2 = arith.constant 0 : i32
    return %arg0, %c0_i32, %c0_i32_0, %c0_i32_1 : i32, i32, i32, i32
  }
}

module attributes {stable_mosaic.version = 11 : i64} {
  func.func @conv_a_kernel(%arg0: i32, %arg1: i32, %arg2: memref<1x3x256xf32, #tpu.memory_space<vmem>>, %arg3: memref<1x3x256xf32, #tpu.memory_space<vmem>>, %arg4: memref<1x3x256xf32, #tpu.memory_space<vmem>>, %arg5: memref<1x3x256xf32, #tpu.memory_space<vmem>>, %arg6: memref<32x3xf32, #tpu.memory_space<vmem>>, %arg7: memref<32x3xf32, #tpu.memory_space<vmem>>, %arg8: memref<32x1xf32, #tpu.memory_space<vmem>>, %arg9: memref<32x1xf32, #tpu.memory_space<vmem>>, %arg10: memref<32x32xf32, #tpu.memory_space<vmem>>, %arg11: memref<32x1xf32, #tpu.memory_space<vmem>>, %arg12: memref<32x1xf32, #tpu.memory_space<vmem>>, %arg13: memref<3x32xf32, #tpu.memory_space<vmem>>, %arg14: memref<1x3x256xf32, #tpu.memory_space<vmem>>, %arg15: memref<1x3x256xf32, #tpu.memory_space<vmem>>) attributes {dimension_semantics = [#tpu.dimension_semantics<parallel>, #tpu.dimension_semantics<parallel>], iteration_bounds = array<i64: 2, 1>, scalar_prefetch = 0 : i64, scratch_operands = 0 : i64, tpu.core_type = #tpu.core_type<tc>, window_params = [{transform_indices = @transform_0, window_bounds = array<i64: 1, 3, 256>}, {transform_indices = @transform_1, window_bounds = array<i64: 1, 3, 256>}, {transform_indices = @transform_2, window_bounds = array<i64: 1, 3, 256>}, {transform_indices = @transform_3, window_bounds = array<i64: 1, 3, 256>}, {pipeline_mode = #tpu.pipeline_mode<synchronous>, transform_indices = @transform_4, window_bounds = array<i64: 32, 3>}, {pipeline_mode = #tpu.pipeline_mode<synchronous>, transform_indices = @transform_5, window_bounds = array<i64: 32, 3>}, {pipeline_mode = #tpu.pipeline_mode<synchronous>, transform_indices = @transform_6, window_bounds = array<i64: 32, 1>}, {pipeline_mode = #tpu.pipeline_mode<synchronous>, transform_indices = @transform_7, window_bounds = array<i64: 32, 1>}, {pipeline_mode = #tpu.pipeline_mode<synchronous>, transform_indices = @transform_8, window_bounds = array<i64: 32, 32>}, {pipeline_mode = #tpu.pipeline_mode<synchronous>, transform_indices = @transform_9, window_bounds = array<i64: 32, 1>}, {pipeline_mode = #tpu.pipeline_mode<synchronous>, transform_indices = @transform_10, window_bounds = array<i64: 32, 1>}, {pipeline_mode = #tpu.pipeline_mode<synchronous>, transform_indices = @transform_11, window_bounds = array<i64: 3, 32>}, {transform_indices = @transform_12, window_bounds = array<i64: 1, 3, 256>}, {transform_indices = @transform_13, window_bounds = array<i64: 1, 3, 256>}]} {
    %c0 = arith.constant 0 : index
    %c0_0 = arith.constant 0 : index
    %0 = vector.load %arg6[%c0, %c0_0] : memref<32x3xf32, #tpu.memory_space<vmem>>, vector<32x3xf32>
    %c0_1 = arith.constant 0 : index
    %c0_2 = arith.constant 0 : index
    %c0_3 = arith.constant 0 : index
    %1 = vector.load %arg2[%c0_1, %c0_2, %c0_3] : memref<1x3x256xf32, #tpu.memory_space<vmem>>, vector<1x3x256xf32>
    %2 = vector.shape_cast %1 : vector<1x3x256xf32> to vector<3x256xf32>
    %cst = arith.constant dense<0.000000e+00> : vector<32x256xf32>
    %3 = tpu.matmul %0, %2, %cst {dimension_numbers = #tpu.dot_dimension_numbers<[1], [0], [0], [1], [0, 0, 1, 1], [], []>} : vector<32x3xf32>, vector<3x256xf32>, vector<32x256xf32> -> vector<32x256xf32>
    %c0_4 = arith.constant 0 : index
    %c0_5 = arith.constant 0 : index
    %4 = vector.load %arg7[%c0_4, %c0_5] : memref<32x3xf32, #tpu.memory_space<vmem>>, vector<32x3xf32>
    %c0_6 = arith.constant 0 : index
    %c0_7 = arith.constant 0 : index
    %c0_8 = arith.constant 0 : index
    %5 = vector.load %arg3[%c0_6, %c0_7, %c0_8] : memref<1x3x256xf32, #tpu.memory_space<vmem>>, vector<1x3x256xf32>
    %6 = vector.shape_cast %5 : vector<1x3x256xf32> to vector<3x256xf32>
    %cst_9 = arith.constant dense<0.000000e+00> : vector<32x256xf32>
    %7 = tpu.matmul %4, %6, %cst_9 {dimension_numbers = #tpu.dot_dimension_numbers<[1], [0], [0], [1], [0, 0, 1, 1], [], []>} : vector<32x3xf32>, vector<3x256xf32>, vector<32x256xf32> -> vector<32x256xf32>
    %8 = arith.addf %3, %7 : vector<32x256xf32>
    %c0_10 = arith.constant 0 : index
    %c0_11 = arith.constant 0 : index
    %9 = vector.load %arg8[%c0_10, %c0_11] : memref<32x1xf32, #tpu.memory_space<vmem>>, vector<32x1xf32>
    %10 = vector.broadcast %9 : vector<32x1xf32> to vector<32x256xf32>
    %11 = arith.mulf %8, %10 : vector<32x256xf32>
    %c0_12 = arith.constant 0 : index
    %c0_13 = arith.constant 0 : index
    %12 = vector.load %arg9[%c0_12, %c0_13] : memref<32x1xf32, #tpu.memory_space<vmem>>, vector<32x1xf32>
    %13 = vector.broadcast %12 : vector<32x1xf32> to vector<32x256xf32>
    %14 = arith.addf %11, %13 : vector<32x256xf32>
    %cst_14 = arith.constant 0.000000e+00 : f32
    %15 = vector.broadcast %cst_14 : f32 to vector<32x256xf32>
    %16 = arith.maximumf %14, %15 : vector<32x256xf32>
    %c0_15 = arith.constant 0 : index
    %c0_16 = arith.constant 0 : index
    %17 = vector.load %arg10[%c0_15, %c0_16] : memref<32x32xf32, #tpu.memory_space<vmem>>, vector<32x32xf32>
    %cst_17 = arith.constant dense<0.000000e+00> : vector<32x256xf32>
    %18 = tpu.matmul %17, %16, %cst_17 {dimension_numbers = #tpu.dot_dimension_numbers<[1], [0], [0], [1], [0, 0, 1, 1], [], []>} : vector<32x32xf32>, vector<32x256xf32>, vector<32x256xf32> -> vector<32x256xf32>
    %c0_18 = arith.constant 0 : index
    %c0_19 = arith.constant 0 : index
    %19 = vector.load %arg11[%c0_18, %c0_19] : memref<32x1xf32, #tpu.memory_space<vmem>>, vector<32x1xf32>
    %20 = vector.broadcast %19 : vector<32x1xf32> to vector<32x256xf32>
    %21 = arith.mulf %18, %20 : vector<32x256xf32>
    %c0_20 = arith.constant 0 : index
    %c0_21 = arith.constant 0 : index
    %22 = vector.load %arg12[%c0_20, %c0_21] : memref<32x1xf32, #tpu.memory_space<vmem>>, vector<32x1xf32>
    %23 = vector.broadcast %22 : vector<32x1xf32> to vector<32x256xf32>
    %24 = arith.addf %21, %23 : vector<32x256xf32>
    %cst_22 = arith.constant 0.000000e+00 : f32
    %25 = vector.broadcast %cst_22 : f32 to vector<32x256xf32>
    %26 = arith.maximumf %24, %25 : vector<32x256xf32>
    %c0_23 = arith.constant 0 : index
    %c0_24 = arith.constant 0 : index
    %27 = vector.load %arg13[%c0_23, %c0_24] : memref<3x32xf32, #tpu.memory_space<vmem>>, vector<3x32xf32>
    %cst_25 = arith.constant dense<0.000000e+00> : vector<3x256xf32>
    %28 = tpu.matmul %27, %26, %cst_25 {dimension_numbers = #tpu.dot_dimension_numbers<[1], [0], [0], [1], [0, 0, 1, 1], [], []>} : vector<3x32xf32>, vector<32x256xf32>, vector<3x256xf32> -> vector<3x256xf32>
    %c0_26 = arith.constant 0 : index
    %c0_27 = arith.constant 0 : index
    %c0_28 = arith.constant 0 : index
    %29 = vector.load %arg14[%c0_26, %c0_27, %c0_28] : memref<1x3x256xf32, #tpu.memory_space<vmem>>, vector<1x3x256xf32>
    %30 = vector.shape_cast %29 : vector<1x3x256xf32> to vector<3x256xf32>
    %31 = vector.shape_cast %28 : vector<3x256xf32> to vector<1x3x256xf32>
    tpu.vector_store %arg14[%c0_26, %c0_27, %c0_28], %31 {strides = array<i32>} : memref<1x3x256xf32, #tpu.memory_space<vmem>>, vector<1x3x256xf32>,
    %c0_29 = arith.constant 0 : index
    %c0_30 = arith.constant 0 : index
    %c0_31 = arith.constant 0 : index
    %32 = vector.load %arg5[%c0_29, %c0_30, %c0_31] : memref<1x3x256xf32, #tpu.memory_space<vmem>>, vector<1x3x256xf32>
    %33 = vector.shape_cast %32 : vector<1x3x256xf32> to vector<3x256xf32>
    %c0_32 = arith.constant 0 : index
    %c0_33 = arith.constant 0 : index
    %c0_34 = arith.constant 0 : index
    %34 = vector.load %arg4[%c0_32, %c0_33, %c0_34] : memref<1x3x256xf32, #tpu.memory_space<vmem>>, vector<1x3x256xf32>
    %35 = vector.shape_cast %34 : vector<1x3x256xf32> to vector<3x256xf32>
    %36 = arith.mulf %28, %35 : vector<3x256xf32>
    %37 = arith.subf %33, %36 : vector<3x256xf32>
    %c0_35 = arith.constant 0 : index
    %c0_36 = arith.constant 0 : index
    %c0_37 = arith.constant 0 : index
    %38 = vector.load %arg15[%c0_35, %c0_36, %c0_37] : memref<1x3x256xf32, #tpu.memory_space<vmem>>, vector<1x3x256xf32>
    %39 = vector.shape_cast %38 : vector<1x3x256xf32> to vector<3x256xf32>
    %40 = vector.shape_cast %37 : vector<3x256xf32> to vector<1x3x256xf32>
    tpu.vector_store %arg15[%c0_35, %c0_36, %c0_37], %40 {strides = array<i32>} : memref<1x3x256xf32, #tpu.memory_space<vmem>>, vector<1x3x256xf32>,
    return
  }
  func.func @transform_0(%arg0: i32, %arg1: i32) -> (i32, i32, i32) {
    %c0_i32 = arith.constant 0 : i32
    %c0_i32_0 = arith.constant 0 : i32
    return %arg0, %c0_i32, %arg1 : i32, i32, i32
  }
  func.func @transform_1(%arg0: i32, %arg1: i32) -> (i32, i32, i32) {
    %c0_i32 = arith.constant 0 : i32
    %c0_i32_0 = arith.constant 0 : i32
    return %arg0, %c0_i32, %arg1 : i32, i32, i32
  }
  func.func @transform_2(%arg0: i32, %arg1: i32) -> (i32, i32, i32) {
    %c0_i32 = arith.constant 0 : i32
    %c0_i32_0 = arith.constant 0 : i32
    return %arg0, %c0_i32, %arg1 : i32, i32, i32
  }
  func.func @transform_3(%arg0: i32, %arg1: i32) -> (i32, i32, i32) {
    %c0_i32 = arith.constant 0 : i32
    %c0_i32_0 = arith.constant 0 : i32
    return %arg0, %c0_i32, %arg1 : i32, i32, i32
  }
  func.func @transform_4(%arg0: i32, %arg1: i32) -> (i32, i32) {
    %c0_i32 = arith.constant 0 : i32
    %c0_i32_0 = arith.constant 0 : i32
    %c0_i32_1 = arith.constant 0 : i32
    return %c0_i32, %c0_i32_0 : i32, i32
  }
  func.func @transform_5(%arg0: i32, %arg1: i32) -> (i32, i32) {
    %c0_i32 = arith.constant 0 : i32
    %c0_i32_0 = arith.constant 0 : i32
    %c0_i32_1 = arith.constant 0 : i32
    return %c0_i32, %c0_i32_0 : i32, i32
  }
  func.func @transform_6(%arg0: i32, %arg1: i32) -> (i32, i32) {
    %c0_i32 = arith.constant 0 : i32
    %c0_i32_0 = arith.constant 0 : i32
    %c0_i32_1 = arith.constant 0 : i32
    return %c0_i32, %c0_i32_0 : i32, i32
  }
  func.func @transform_7(%arg0: i32, %arg1: i32) -> (i32, i32) {
    %c0_i32 = arith.constant 0 : i32
    %c0_i32_0 = arith.constant 0 : i32
    %c0_i32_1 = arith.constant 0 : i32
    return %c0_i32, %c0_i32_0 : i32, i32
  }
  func.func @transform_8(%arg0: i32, %arg1: i32) -> (i32, i32) {
    %c0_i32 = arith.constant 0 : i32
    %c0_i32_0 = arith.constant 0 : i32
    %c0_i32_1 = arith.constant 0 : i32
    return %c0_i32, %c0_i32_0 : i32, i32
  }
  func.func @transform_9(%arg0: i32, %arg1: i32) -> (i32, i32) {
    %c0_i32 = arith.constant 0 : i32
    %c0_i32_0 = arith.constant 0 : i32
    %c0_i32_1 = arith.constant 0 : i32
    return %c0_i32, %c0_i32_0 : i32, i32
  }
  func.func @transform_10(%arg0: i32, %arg1: i32) -> (i32, i32) {
    %c0_i32 = arith.constant 0 : i32
    %c0_i32_0 = arith.constant 0 : i32
    %c0_i32_1 = arith.constant 0 : i32
    return %c0_i32, %c0_i32_0 : i32, i32
  }
  func.func @transform_11(%arg0: i32, %arg1: i32) -> (i32, i32) {
    %c0_i32 = arith.constant 0 : i32
    %c0_i32_0 = arith.constant 0 : i32
    %c0_i32_1 = arith.constant 0 : i32
    return %c0_i32, %c0_i32_0 : i32, i32
  }
  func.func @transform_12(%arg0: i32, %arg1: i32) -> (i32, i32, i32) {
    %c0_i32 = arith.constant 0 : i32
    %c0_i32_0 = arith.constant 0 : i32
    return %arg0, %c0_i32, %arg1 : i32, i32, i32
  }
  func.func @transform_13(%arg0: i32, %arg1: i32) -> (i32, i32, i32) {
    %c0_i32 = arith.constant 0 : i32
    %c0_i32_0 = arith.constant 0 : i32
    return %arg0, %c0_i32, %arg1 : i32, i32, i32
  }
}

module attributes {stable_mosaic.version = 11 : i64} {
  func.func @guided_map_kernel(%arg0: i32, %arg1: i32, %arg2: memref<1x3x4096xf32, #tpu.memory_space<vmem>>, %arg3: memref<16x3xf32, #tpu.memory_space<vmem>>, %arg4: memref<16x1xf32, #tpu.memory_space<vmem>>, %arg5: memref<16x1xf32, #tpu.memory_space<vmem>>, %arg6: memref<3x16xf32, #tpu.memory_space<vmem>>, %arg7: memref<3x1xf32, #tpu.memory_space<vmem>>, %arg8: memref<1x3x4096xf32, #tpu.memory_space<vmem>>) attributes {dimension_semantics = [#tpu.dimension_semantics<parallel>, #tpu.dimension_semantics<parallel>], iteration_bounds = array<i64: 2, 1>, scalar_prefetch = 0 : i64, scratch_operands = 0 : i64, tpu.core_type = #tpu.core_type<tc>, window_params = [{transform_indices = @transform_0, window_bounds = array<i64: 1, 3, 4096>}, {pipeline_mode = #tpu.pipeline_mode<synchronous>, transform_indices = @transform_1, window_bounds = array<i64: 16, 3>}, {pipeline_mode = #tpu.pipeline_mode<synchronous>, transform_indices = @transform_2, window_bounds = array<i64: 16, 1>}, {pipeline_mode = #tpu.pipeline_mode<synchronous>, transform_indices = @transform_3, window_bounds = array<i64: 16, 1>}, {pipeline_mode = #tpu.pipeline_mode<synchronous>, transform_indices = @transform_4, window_bounds = array<i64: 3, 16>}, {pipeline_mode = #tpu.pipeline_mode<synchronous>, transform_indices = @transform_5, window_bounds = array<i64: 3, 1>}, {transform_indices = @transform_6, window_bounds = array<i64: 1, 3, 4096>}]} {
    %c0 = arith.constant 0 : index
    %c0_0 = arith.constant 0 : index
    %c0_1 = arith.constant 0 : index
    %0 = vector.load %arg2[%c0, %c0_0, %c0_1] : memref<1x3x4096xf32, #tpu.memory_space<vmem>>, vector<1x3x4096xf32>
    %1 = vector.shape_cast %0 : vector<1x3x4096xf32> to vector<3x4096xf32>
    %c0_2 = arith.constant 0 : index
    %c0_3 = arith.constant 0 : index
    %2 = vector.load %arg3[%c0_2, %c0_3] : memref<16x3xf32, #tpu.memory_space<vmem>>, vector<16x3xf32>
    %cst = arith.constant dense<0.000000e+00> : vector<16x4096xf32>
    %3 = tpu.matmul %2, %1, %cst {dimension_numbers = #tpu.dot_dimension_numbers<[1], [0], [0], [1], [0, 0, 1, 1], [], []>} : vector<16x3xf32>, vector<3x4096xf32>, vector<16x4096xf32> -> vector<16x4096xf32>
    %c0_4 = arith.constant 0 : index
    %c0_5 = arith.constant 0 : index
    %4 = vector.load %arg4[%c0_4, %c0_5] : memref<16x1xf32, #tpu.memory_space<vmem>>, vector<16x1xf32>
    %5 = vector.broadcast %4 : vector<16x1xf32> to vector<16x4096xf32>
    %6 = arith.mulf %3, %5 : vector<16x4096xf32>
    %c0_6 = arith.constant 0 : index
    %c0_7 = arith.constant 0 : index
    %7 = vector.load %arg5[%c0_6, %c0_7] : memref<16x1xf32, #tpu.memory_space<vmem>>, vector<16x1xf32>
    %8 = vector.broadcast %7 : vector<16x1xf32> to vector<16x4096xf32>
    %9 = arith.addf %6, %8 : vector<16x4096xf32>
    %cst_8 = arith.constant 0.000000e+00 : f32
    %10 = vector.broadcast %cst_8 : f32 to vector<16x4096xf32>
    %11 = arith.cmpf oge, %9, %10 : vector<16x4096xf32>
    %cst_9 = arith.constant 2.000000e-01 : f32
    %12 = vector.broadcast %cst_9 : f32 to vector<16x4096xf32>
    %13 = arith.mulf %12, %9 : vector<16x4096xf32>
    %14 = arith.select %11, %9, %13 : vector<16x4096xi1>, vector<16x4096xf32>
    %c0_10 = arith.constant 0 : index
    %c0_11 = arith.constant 0 : index
    %15 = vector.load %arg6[%c0_10, %c0_11] : memref<3x16xf32, #tpu.memory_space<vmem>>, vector<3x16xf32>
    %cst_12 = arith.constant dense<0.000000e+00> : vector<3x4096xf32>
    %16 = tpu.matmul %15, %14, %cst_12 {dimension_numbers = #tpu.dot_dimension_numbers<[1], [0], [0], [1], [0, 0, 1, 1], [], []>} : vector<3x16xf32>, vector<16x4096xf32>, vector<3x4096xf32> -> vector<3x4096xf32>
    %c0_13 = arith.constant 0 : index
    %c0_14 = arith.constant 0 : index
    %17 = vector.load %arg7[%c0_13, %c0_14] : memref<3x1xf32, #tpu.memory_space<vmem>>, vector<3x1xf32>
    %18 = vector.broadcast %17 : vector<3x1xf32> to vector<3x4096xf32>
    %19 = arith.addf %16, %18 : vector<3x4096xf32>
    %c0_15 = arith.constant 0 : index
    %c0_16 = arith.constant 0 : index
    %c0_17 = arith.constant 0 : index
    %20 = vector.load %arg8[%c0_15, %c0_16, %c0_17] : memref<1x3x4096xf32, #tpu.memory_space<vmem>>, vector<1x3x4096xf32>
    %21 = vector.shape_cast %20 : vector<1x3x4096xf32> to vector<3x4096xf32>
    %22 = vector.shape_cast %19 : vector<3x4096xf32> to vector<1x3x4096xf32>
    tpu.vector_store %arg8[%c0_15, %c0_16, %c0_17], %22 {strides = array<i32>} : memref<1x3x4096xf32, #tpu.memory_space<vmem>>, vector<1x3x4096xf32>,
    return
  }
  func.func @transform_0(%arg0: i32, %arg1: i32) -> (i32, i32, i32) {
    %c0_i32 = arith.constant 0 : i32
    %c0_i32_0 = arith.constant 0 : i32
    return %arg0, %c0_i32, %arg1 : i32, i32, i32
  }
  func.func @transform_1(%arg0: i32, %arg1: i32) -> (i32, i32) {
    %c0_i32 = arith.constant 0 : i32
    %c0_i32_0 = arith.constant 0 : i32
    %c0_i32_1 = arith.constant 0 : i32
    return %c0_i32, %c0_i32_0 : i32, i32
  }
  func.func @transform_2(%arg0: i32, %arg1: i32) -> (i32, i32) {
    %c0_i32 = arith.constant 0 : i32
    %c0_i32_0 = arith.constant 0 : i32
    %c0_i32_1 = arith.constant 0 : i32
    return %c0_i32, %c0_i32_0 : i32, i32
  }
  func.func @transform_3(%arg0: i32, %arg1: i32) -> (i32, i32) {
    %c0_i32 = arith.constant 0 : i32
    %c0_i32_0 = arith.constant 0 : i32
    %c0_i32_1 = arith.constant 0 : i32
    return %c0_i32, %c0_i32_0 : i32, i32
  }
  func.func @transform_4(%arg0: i32, %arg1: i32) -> (i32, i32) {
    %c0_i32 = arith.constant 0 : i32
    %c0_i32_0 = arith.constant 0 : i32
    %c0_i32_1 = arith.constant 0 : i32
    return %c0_i32, %c0_i32_0 : i32, i32
  }
  func.func @transform_5(%arg0: i32, %arg1: i32) -> (i32, i32) {
    %c0_i32 = arith.constant 0 : i32
    %c0_i32_0 = arith.constant 0 : i32
    %c0_i32_1 = arith.constant 0 : i32
    return %c0_i32, %c0_i32_0 : i32, i32
  }
  func.func @transform_6(%arg0: i32, %arg1: i32) -> (i32, i32, i32) {
    %c0_i32 = arith.constant 0 : i32
    %c0_i32_0 = arith.constant 0 : i32
    return %arg0, %c0_i32, %arg1 : i32, i32, i32
  }
}

module attributes {stable_mosaic.version = 11 : i64} {
  func.func @upsample_apply_kernel(%arg0: i32, %arg1: i32, %arg2: memref<1x3x16x16xf32, #tpu.memory_space<vmem>>, %arg3: memref<1x3x16x16xf32, #tpu.memory_space<vmem>>, %arg4: memref<1x3x64x64xf32, #tpu.memory_space<vmem>>, %arg5: memref<3x64x16xf32, #tpu.memory_space<vmem>>, %arg6: memref<3x16x64xf32, #tpu.memory_space<vmem>>, %arg7: memref<1x3x64x64xf32, #tpu.memory_space<vmem>>) attributes {dimension_semantics = [#tpu.dimension_semantics<parallel>, #tpu.dimension_semantics<parallel>], iteration_bounds = array<i64: 2, 1>, scalar_prefetch = 0 : i64, scratch_operands = 0 : i64, tpu.core_type = #tpu.core_type<tc>, window_params = [{transform_indices = @transform_0, window_bounds = array<i64: 1, 3, 16, 16>}, {transform_indices = @transform_1, window_bounds = array<i64: 1, 3, 16, 16>}, {transform_indices = @transform_2, window_bounds = array<i64: 1, 3, 64, 64>}, {transform_indices = @transform_3, window_bounds = array<i64: 3, 64, 16>}, {pipeline_mode = #tpu.pipeline_mode<synchronous>, transform_indices = @transform_4, window_bounds = array<i64: 3, 16, 64>}, {transform_indices = @transform_5, window_bounds = array<i64: 1, 3, 64, 64>}]} {
    %c0 = arith.constant 0 : index
    %c0_0 = arith.constant 0 : index
    %c0_1 = arith.constant 0 : index
    %0 = vector.load %arg5[%c0, %c0_0, %c0_1] : memref<3x64x16xf32, #tpu.memory_space<vmem>>, vector<3x64x16xf32>
    %c0_2 = arith.constant 0 : index
    %c0_3 = arith.constant 0 : index
    %c0_4 = arith.constant 0 : index
    %1 = vector.load %arg6[%c0_2, %c0_3, %c0_4] : memref<3x16x64xf32, #tpu.memory_space<vmem>>, vector<3x16x64xf32>
    %c0_5 = arith.constant 0 : index
    %c0_6 = arith.constant 0 : index
    %c0_7 = arith.constant 0 : index
    %c0_8 = arith.constant 0 : index
    %2 = vector.load %arg2[%c0_5, %c0_6, %c0_7, %c0_8] : memref<1x3x16x16xf32, #tpu.memory_space<vmem>>, vector<1x3x16x16xf32>
    %3 = vector.shape_cast %2 : vector<1x3x16x16xf32> to vector<3x16x16xf32>
    "tpu.trace_start"() <{level = 10 : i32, message = "chk,ckw->chw"}> : () -> ()
    %cst = arith.constant dense<0.000000e+00> : vector<3x64x16xf32>
    %4 = tpu.matmul %0, %3, %cst {dimension_numbers = #tpu.dot_dimension_numbers<[2], [1], [1], [2], [0, 0, 0, 1, 1, 2], [0], [0]>} : vector<3x64x16xf32>, vector<3x16x16xf32>, vector<3x64x16xf32> -> vector<3x64x16xf32>
    "tpu.trace_stop"() : () -> ()
    "tpu.trace_start"() <{level = 10 : i32, message = "chw,cwl->chl"}> : () -> ()
    %cst_9 = arith.constant dense<0.000000e+00> : vector<3x64x64xf32>
    %5 = tpu.matmul %4, %1, %cst_9 {dimension_numbers = #tpu.dot_dimension_numbers<[2], [1], [1], [2], [0, 0, 0, 1, 1, 2], [0], [0]>} : vector<3x64x16xf32>, vector<3x16x64xf32>, vector<3x64x64xf32> -> vector<3x64x64xf32>
    "tpu.trace_stop"() : () -> ()
    %c0_10 = arith.constant 0 : index
    %c0_11 = arith.constant 0 : index
    %c0_12 = arith.constant 0 : index
    %c0_13 = arith.constant 0 : index
    %6 = vector.load %arg3[%c0_10, %c0_11, %c0_12, %c0_13] : memref<1x3x16x16xf32, #tpu.memory_space<vmem>>, vector<1x3x16x16xf32>
    %7 = vector.shape_cast %6 : vector<1x3x16x16xf32> to vector<3x16x16xf32>
    "tpu.trace_start"() <{level = 10 : i32, message = "chk,ckw->chw"}> : () -> ()
    %cst_14 = arith.constant dense<0.000000e+00> : vector<3x64x16xf32>
    %8 = tpu.matmul %0, %7, %cst_14 {dimension_numbers = #tpu.dot_dimension_numbers<[2], [1], [1], [2], [0, 0, 0, 1, 1, 2], [0], [0]>} : vector<3x64x16xf32>, vector<3x16x16xf32>, vector<3x64x16xf32> -> vector<3x64x16xf32>
    "tpu.trace_stop"() : () -> ()
    "tpu.trace_start"() <{level = 10 : i32, message = "chw,cwl->chl"}> : () -> ()
    %cst_15 = arith.constant dense<0.000000e+00> : vector<3x64x64xf32>
    %9 = tpu.matmul %8, %1, %cst_15 {dimension_numbers = #tpu.dot_dimension_numbers<[2], [1], [1], [2], [0, 0, 0, 1, 1, 2], [0], [0]>} : vector<3x64x16xf32>, vector<3x16x64xf32>, vector<3x64x64xf32> -> vector<3x64x64xf32>
    "tpu.trace_stop"() : () -> ()
    %c0_16 = arith.constant 0 : index
    %c0_17 = arith.constant 0 : index
    %c0_18 = arith.constant 0 : index
    %c0_19 = arith.constant 0 : index
    %10 = vector.load %arg4[%c0_16, %c0_17, %c0_18, %c0_19] : memref<1x3x64x64xf32, #tpu.memory_space<vmem>>, vector<1x3x64x64xf32>
    %11 = vector.shape_cast %10 : vector<1x3x64x64xf32> to vector<3x64x64xf32>
    %12 = arith.mulf %5, %11 : vector<3x64x64xf32>
    %13 = arith.addf %12, %9 : vector<3x64x64xf32>
    %cst_20 = arith.constant 0.000000e+00 : f32
    %cst_21 = arith.constant 1.000000e+00 : f32
    %14 = vector.broadcast %cst_20 : f32 to vector<3x64x64xf32>
    %15 = arith.maximumf %14, %13 : vector<3x64x64xf32>
    %16 = vector.broadcast %cst_21 : f32 to vector<3x64x64xf32>
    %17 = arith.minimumf %16, %15 : vector<3x64x64xf32>
    %c0_22 = arith.constant 0 : index
    %c0_23 = arith.constant 0 : index
    %c0_24 = arith.constant 0 : index
    %c0_25 = arith.constant 0 : index
    %18 = vector.load %arg7[%c0_22, %c0_23, %c0_24, %c0_25] : memref<1x3x64x64xf32, #tpu.memory_space<vmem>>, vector<1x3x64x64xf32>
    %19 = vector.shape_cast %18 : vector<1x3x64x64xf32> to vector<3x64x64xf32>
    %20 = vector.shape_cast %17 : vector<3x64x64xf32> to vector<1x3x64x64xf32>
    tpu.vector_store %arg7[%c0_22, %c0_23, %c0_24, %c0_25], %20 {strides = array<i32>} : memref<1x3x64x64xf32, #tpu.memory_space<vmem>>, vector<1x3x64x64xf32>,
    return
  }
  func.func @transform_0(%arg0: i32, %arg1: i32) -> (i32, i32, i32, i32) {
    %c0_i32 = arith.constant 0 : i32
    %c0_i32_0 = arith.constant 0 : i32
    %c0_i32_1 = arith.constant 0 : i32
    %c0_i32_2 = arith.constant 0 : i32
    return %arg0, %c0_i32, %c0_i32_0, %c0_i32_1 : i32, i32, i32, i32
  }
  func.func @transform_1(%arg0: i32, %arg1: i32) -> (i32, i32, i32, i32) {
    %c0_i32 = arith.constant 0 : i32
    %c0_i32_0 = arith.constant 0 : i32
    %c0_i32_1 = arith.constant 0 : i32
    %c0_i32_2 = arith.constant 0 : i32
    return %arg0, %c0_i32, %c0_i32_0, %c0_i32_1 : i32, i32, i32, i32
  }
  func.func @transform_2(%arg0: i32, %arg1: i32) -> (i32, i32, i32, i32) {
    %c0_i32 = arith.constant 0 : i32
    %c0_i32_0 = arith.constant 0 : i32
    %c0_i32_1 = arith.constant 0 : i32
    return %arg0, %c0_i32, %arg1, %c0_i32_0 : i32, i32, i32, i32
  }
  func.func @transform_3(%arg0: i32, %arg1: i32) -> (i32, i32, i32) {
    %c0_i32 = arith.constant 0 : i32
    %c0_i32_0 = arith.constant 0 : i32
    %c0_i32_1 = arith.constant 0 : i32
    return %c0_i32, %arg1, %c0_i32_0 : i32, i32, i32
  }
  func.func @transform_4(%arg0: i32, %arg1: i32) -> (i32, i32, i32) {
    %c0_i32 = arith.constant 0 : i32
    %c0_i32_0 = arith.constant 0 : i32
    %c0_i32_1 = arith.constant 0 : i32
    %c0_i32_2 = arith.constant 0 : i32
    return %c0_i32, %c0_i32_0, %c0_i32_1 : i32, i32, i32
  }
  func.func @transform_5(%arg0: i32, %arg1: i32) -> (i32, i32, i32, i32) {
    %c0_i32 = arith.constant 0 : i32
    %c0_i32_0 = arith.constant 0 : i32
    %c0_i32_1 = arith.constant 0 : i32
    return %arg0, %c0_i32, %arg1, %c0_i32_0 : i32, i32, i32, i32
  }
}

</mosaic_0001>

<llo_original>
// kernel: dgf_forward.5
$region0: #{dgf_forward.5}
  #allocation0 [shape = 'u32[]', space=smem, size = 0x4, offset = 0x4, fixed_abs, tag = 'smem constant byte address 0x4 - core index']
  #allocation1 [shape = 'u32[72,128]{1,0:T(1,128)}', space=vmem, size = 0x9000, scoped, tag = 'internal scratch']
  %s0 = inlined_call_operand.vmem [shape: f32[2,3,256], index: 0, kind: input, shape index: {}]
  %s1 = inlined_call_operand.vmem [shape: f32[16,3], index: 1, kind: input, shape index: {}]
  %s2 = inlined_call_operand.vmem [shape: f32[16,1], index: 2, kind: input, shape index: {}]
  %s3 = inlined_call_operand.vmem [shape: f32[16,1], index: 3, kind: input, shape index: {}]
  %s4 = inlined_call_operand.vmem [shape: f32[3,16], index: 4, kind: input, shape index: {}]
  %s5 = inlined_call_operand.vmem [shape: f32[3,1], index: 5, kind: input, shape index: {}]
  %s6 = inlined_call_operand.vmem [shape: f32[2,3,256], index: 6, kind: output, shape index: {}]
  %s7 = sld [smem:[#allocation0]]
  $region57: #{dgf_forward.5} parent=0
    _
  %s9 = ssub.s32 1, %s7
  %s10 = scalar_select 0, %s9, %s7
  loop: start=0, step=1, limit=4
  $region2: #{dgf_forward.5} parent=0 // loop_pre_header
    _
  $region3: #{dgf_forward.5} parent=0 // loop_header
    %s12 = sphi 0, %s16
    %p13 = scmp.ge.s32.totalorder %s12, 4
    %s19 = sphi 0, %s31
    %s20 = sphi 0, %s27
    %s21 = sphi 0, %s19
    %s22 = sphi 0, %s20
    %s23 = sphi 0, %s21
    %s24 = sphi 0, %s22
    %s36 = sphi 0, %s38
    %s39 = sphi 0, %s36
    %s40 = sphi 0, %s39
    %s56 = sphi 0, %s40
    %s60 = sphi 0, %s60
    %s62 = sphi 0, %s60
    %s63 = sphi 0, %s62
    %s77 = sphi 0, %s63
    %s81 = sphi 0, %s81
    %s83 = sphi 0, %s81
    %s84 = sphi 0, %s83
    %s98 = sphi 0, %s84
    %s102 = sphi 0, %s102
    %s104 = sphi 0, %s102
    %s105 = sphi 0, %s104
    %s119 = sphi 0, %s105
    %s123 = sphi 0, %s123
    %s125 = sphi 0, %s123
    %s126 = sphi 0, %s125
    %s140 = sphi 0, %s126
    %s144 = sphi 0, %s144
    %s146 = sphi 0, %s144
    %s147 = sphi 0, %s146
    %s161 = sphi 0, %s147
    %s169 = sphi 0, %s171
    %s172 = sphi 0, %s169
    %s173 = sphi 0, %s172
    %s189 = sphi 0, %s173
  $region4: #{dgf_forward.5} parent=0 // loop_header_branch
    %15 = sbr.rel (%p13) target = $region8
  $region5: #{dgf_forward.5} parent=0 // loop_body
    %s17 = ssub.s32 %s12, 1
    %s18 = ssub.s32 %s12, 2
    %s25 = sadd.s32 1, %s20
    %p26 = scmp.ge.s32.totalorder %s25, 1
    %s27 = scalar_select %p26, 0, %s25
    %s28 = sadd.s32 1, %s19
    %s29 = scalar_select %p26, %s28, %s19
    %p30 = scmp.ge.s32.totalorder %s29, 2
    %s31 = scalar_select %p30, 0, %s29
    %s32 = ssub.s32 %s19, %s31
    %s33 = ssub.s32 %s20, %s27
    %s34 = sor.u32 %s32, %s33
    %p35 = scmp.eq.s32.totalorder %s34, 0
    %s37 = sadd.s32 %s36, 1
    %s38 = scalar_select %p35, %s36, %s37
    %p41 = pneg %p35
    %p42 = scmp.eq.s32.totalorder %s12, 1
    %p43 = por %p41, %p42
    %p44 = scmp.ne.s32.totalorder %s36, %s39
    %p45 = scmp.eq.s32.totalorder %s12, 0
    %p46 = por %p44, %p45
    %p47 = scmp.ne.s32.totalorder %s36, %s39
    %p48 = scmp.eq.s32.totalorder %s17, 1
    %p49 = por %p47, %p48
    %p50 = scmp.ne.s32.totalorder %s39, %s40
    %p51 = scmp.eq.s32.totalorder %s17, 0
    %p52 = por %p50, %p51
    %p53 = scmp.ne.s32.totalorder %s39, %s40
    %p54 = scmp.eq.s32.totalorder %s18, 1
    %p55 = por %p53, %p54
    %p57 = scmp.ne.s32.totalorder %s40, %s56
    %p58 = scmp.eq.s32.totalorder %s18, 0
    %p59 = por %p57, %p58
    %s61 = sadd.s32 %s60, 1
    %p64 = scmp.eq.s32.totalorder %s12, 1
    %p65 = scmp.ne.s32.totalorder %s60, %s62
    %p66 = scmp.eq.s32.totalorder %s12, 0
    %p67 = por %p65, %p66
    %p68 = scmp.ne.s32.totalorder %s60, %s62
    %p69 = scmp.eq.s32.totalorder %s17, 1
    %p70 = por %p68, %p69
    %p71 = scmp.ne.s32.totalorder %s62, %s63
    %p72 = scmp.eq.s32.totalorder %s17, 0
    %p73 = por %p71, %p72
    %p74 = scmp.ne.s32.totalorder %s62, %s63
    %p75 = scmp.eq.s32.totalorder %s18, 1
    %p76 = por %p74, %p75
    %p78 = scmp.ne.s32.totalorder %s63, %s77
    %p79 = scmp.eq.s32.totalorder %s18, 0
    %p80 = por %p78, %p79
    %s82 = sadd.s32 %s81, 1
    %p85 = scmp.eq.s32.totalorder %s12, 1
    %p86 = scmp.ne.s32.totalorder %s81, %s83
    %p87 = scmp.eq.s32.totalorder %s12, 0
    %p88 = por %p86, %p87
    %p89 = scmp.ne.s32.totalorder %s81, %s83
    %p90 = scmp.eq.s32.totalorder %s17, 1
    %p91 = por %p89, %p90
    %p92 = scmp.ne.s32.totalorder %s83, %s84
    %p93 = scmp.eq.s32.totalorder %s17, 0
    %p94 = por %p92, %p93
    %p95 = scmp.ne.s32.totalorder %s83, %s84
    %p96 = scmp.eq.s32.totalorder %s18, 1
    %p97 = por %p95, %p96
    %p99 = scmp.ne.s32.totalorder %s84, %s98
    %p100 = scmp.eq.s32.totalorder %s18, 0
    %p101 = por %p99, %p100
    %s103 = sadd.s32 %s102, 1
    %p106 = scmp.eq.s32.totalorder %s12, 1
    %p107 = scmp.ne.s32.totalorder %s102, %s104
    %p108 = scmp.eq.s32.totalorder %s12, 0
    %p109 = por %p107, %p108
    %p110 = scmp.ne.s32.totalorder %s102, %s104
    %p111 = scmp.eq.s32.totalorder %s17, 1
    %p112 = por %p110, %p111
    %p113 = scmp.ne.s32.totalorder %s104, %s105
    %p114 = scmp.eq.s32.totalorder %s17, 0
    %p115 = por %p113, %p114
    %p116 = scmp.ne.s32.totalorder %s104, %s105
    %p117 = scmp.eq.s32.totalorder %s18, 1
    %p118 = por %p116, %p117
    %p120 = scmp.ne.s32.totalorder %s105, %s119
    %p121 = scmp.eq.s32.totalorder %s18, 0
    %p122 = por %p120, %p121
    %s124 = sadd.s32 %s123, 1
    %p127 = scmp.eq.s32.totalorder %s12, 1
    %p128 = scmp.ne.s32.totalorder %s123, %s125
    %p129 = scmp.eq.s32.totalorder %s12, 0
    %p130 = por %p128, %p129
    %p131 = scmp.ne.s32.totalorder %s123, %s125
    %p132 = scmp.eq.s32.totalorder %s17, 1
    %p133 = por %p131, %p132
    %p134 = scmp.ne.s32.totalorder %s125, %s126
    %p135 = scmp.eq.s32.totalorder %s17, 0
    %p136 = por %p134, %p135
    %p137 = scmp.ne.s32.totalorder %s125, %s126
    %p138 = scmp.eq.s32.totalorder %s18, 1
    %p139 = por %p137, %p138
    %p141 = scmp.ne.s32.totalorder %s126, %s140
    %p142 = scmp.eq.s32.totalorder %s18, 0
    %p143 = por %p141, %p142
    %s145 = sadd.s32 %s144, 1
    %p148 = scmp.eq.s32.totalorder %s12, 1
    %p149 = scmp.ne.s32.totalorder %s144, %s146
    %p150 = scmp.eq.s32.totalorder %s12, 0
    %p151 = por %p149, %p150
    %p152 = scmp.ne.s32.totalorder %s144, %s146
    %p153 = scmp.eq.s32.totalorder %s17, 1
    %p154 = por %p152, %p153
    %p155 = scmp.ne.s32.totalorder %s146, %s147
    %p156 = scmp.eq.s32.totalorder %s17, 0
    %p157 = por %p155, %p156
    %p158 = scmp.ne.s32.totalorder %s146, %s147
    %p159 = scmp.eq.s32.totalorder %s18, 1
    %p160 = por %p158, %p159
    %p162 = scmp.ne.s32.totalorder %s147, %s161
    %p163 = scmp.eq.s32.totalorder %s18, 0
    %p164 = por %p162, %p163
    %s165 = ssub.s32 %s19, %s31
    %s166 = ssub.s32 %s20, %s27
    %s167 = sor.u32 %s165, %s166
    %p168 = scmp.eq.s32.totalorder %s167, 0
    %s170 = sadd.s32 %s169, 1
    %s171 = scalar_select %p168, %s169, %s170
    %p174 = pneg %p168
    %p175 = scmp.eq.s32.totalorder %s12, 1
    %p176 = por %p174, %p175
    %p177 = scmp.ne.s32.totalorder %s169, %s172
    %p178 = scmp.eq.s32.totalorder %s12, 0
    %p179 = por %p177, %p178
    %p180 = scmp.ne.s32.totalorder %s169, %s172
    %p181 = scmp.eq.s32.totalorder %s17, 1
    %p182 = por %p180, %p181
    %p183 = scmp.ne.s32.totalorder %s172, %s173
    %p184 = scmp.eq.s32.totalorder %s17, 0
    %p185 = por %p183, %p184
    %p186 = scmp.ne.s32.totalorder %s172, %s173
    %p187 = scmp.eq.s32.totalorder %s18, 1
    %p188 = por %p186, %p187
    %p190 = scmp.ne.s32.totalorder %s173, %s189
    %p191 = scmp.eq.s32.totalorder %s18, 0
    %p192 = por %p190, %p191
    %p193 = scmp.le.s32.totalorder 1, %s12
    %p194 = scmp.lt.s32.totalorder %s12, 3
    %p195 = pnand %p193, %p194
    %p196 = pneg %p195
    // Predicated region
    $region9: #{dgf_forward.5} parent=5 // pred_check
      _
    $region10: #{dgf_forward.5} parent=5 // pred_check_branch
      %198 = sbr.rel (%p195) target = $region12
    $region11: #{dgf_forward.5} parent=5 // pred_region
      %s199 = ssub.s32 %s12, 1
      // Predicated region
      $region13: #{dgf_forward.5} parent=11 // pred_check
        %p200 = pneg %p73
      $region14: #{dgf_forward.5} parent=11 // pred_check_branch
        %202 = sbr.rel (%p200) target = $region16
      $region15: #{dgf_forward.5} parent=11 // pred_region
        _
      $region16: #{dgf_forward.5} parent=11 // pred_fallthru
        _
      // Predicated region
      $region17: #{dgf_forward.5} parent=11 // pred_check
        %p203 = pneg %p94
      $region18: #{dgf_forward.5} parent=11 // pred_check_branch
        %205 = sbr.rel (%p203) target = $region20
      $region19: #{dgf_forward.5} parent=11 // pred_region
        _
      $region20: #{dgf_forward.5} parent=11 // pred_fallthru
        _
      // Predicated region
      $region21: #{dgf_forward.5} parent=11 // pred_check
        %p206 = pneg %p115
      $region22: #{dgf_forward.5} parent=11 // pred_check_branch
        %208 = sbr.rel (%p206) target = $region24
      $region23: #{dgf_forward.5} parent=11 // pred_region
        _
      $region24: #{dgf_forward.5} parent=11 // pred_fallthru
        _
      // Predicated region
      $region25: #{dgf_forward.5} parent=11 // pred_check
        %p209 = pneg %p136
      $region26: #{dgf_forward.5} parent=11 // pred_check_branch
        %211 = sbr.rel (%p209) target = $region28
      $region27: #{dgf_forward.5} parent=11 // pred_region
        _
      $region28: #{dgf_forward.5} parent=11 // pred_fallthru
        _
      // Predicated region
      $region29: #{dgf_forward.5} parent=11 // pred_check
        %p212 = pneg %p157
      $region30: #{dgf_forward.5} parent=11 // pred_check_branch
        %214 = sbr.rel (%p212) target = $region32
      $region31: #{dgf_forward.5} parent=11 // pred_region
        _
      $region32: #{dgf_forward.5} parent=11 // pred_fallthru
        _
    $region12: #{dgf_forward.5} parent=5 // pred_fallthru
      _
    %p215 = scmp.lt.s32.totalorder %s12, 2
    // Predicated region
    $region33: #{dgf_forward.5} parent=5 // pred_check
      %p216 = pneg %p215
    $region34: #{dgf_forward.5} parent=5 // pred_check_branch
      %218 = sbr.rel (%p216) target = $region36
    $region35: #{dgf_forward.5} parent=5 // pred_region
      // Predicated region
      $region37: #{dgf_forward.5} parent=35 // pred_check
        %p219 = pneg %p46
      $region38: #{dgf_forward.5} parent=35 // pred_check_branch
        %221 = sbr.rel (%p219) target = $region40
      $region39: #{dgf_forward.5} parent=35 // pred_region
        %s222 = smul.u32 2, %s20
        %p223 = scmp.lt.s32.totalorder %s19, 1
        %s224 = scalar_select %p223, %s19, 1
        %p225 = scmp.lt.s32.totalorder %s222, 1
        %s226 = scalar_select %p225, %s222, 1
        %s227 = smul.addr %s224, 2
        %s228 = sadd.s32 %s226, %s227
        %s229 = smul.addr %s228, 4
        %s230 = scalar_lea.vmem %s0, %s229
        %s231 = smul.u32 2, %s20
      $region40: #{dgf_forward.5} parent=35 // pred_fallthru
        _
    $region36: #{dgf_forward.5} parent=5 // pred_fallthru
      _
    %p232 = scmp.le.s32.totalorder 1, %s12
    %p233 = scmp.lt.s32.totalorder %s12, 3
    %p234 = pnand %p232, %p233
    %p235 = pneg %p234
    // Predicated region
    $region41: #{dgf_forward.5} parent=5 // pred_check
      _
    $region42: #{dgf_forward.5} parent=5 // pred_check_branch
      %237 = sbr.rel (%p234) target = $region44
    $region43: #{dgf_forward.5} parent=5 // pred_region
      %s238 = ssub.s32 %s12, 1
      %s239 = smul.u32 2, %s22
      %p240 = scmp.lt.s32.totalorder %s21, 1
      %s241 = scalar_select %p240, %s21, 1
      %p242 = scmp.lt.s32.totalorder %s239, 1
      %s243 = scalar_select %p242, %s239, 1
      %s244 = smul.addr %s241, 2
      %s245 = sadd.s32 %s243, %s244
      %s246 = smul.addr %s245, 4
      %s247 = scalar_lea.vmem %s0, %s246
      %p248 = pneg %p52
      %p249 = pneg %p49
      %p250 = pneg %p73
      %p251 = pneg %p70
      %p252 = pneg %p94
      %p253 = pneg %p91
      %p254 = pneg %p115
      %p255 = pneg %p112
      %p256 = pneg %p136
      %p257 = pneg %p133
      %p258 = pneg %p157
      %p259 = pneg %p154
      %p260 = pneg %p185
      %p261 = pneg %p182
      %s262 = smul.u32 2, %s22
      %p263 = scmp.lt.s32.totalorder %s21, 1
      %s264 = scalar_select %p263, %s21, 1
      %p265 = scmp.lt.s32.totalorder %s262, 1
      %s266 = scalar_select %p265, %s262, 1
      %s267 = smul.addr %s264, 2
      %s268 = sadd.s32 %s266, %s267
      %s269 = smul.addr %s268, 4
      %s270 = scalar_lea.vmem %s6, %s269
      %s271 = smul.u32 2, %s22
      %p272 = scmp.lt.s32.totalorder %s21, 1
      %s273 = scalar_select %p272, %s21, 1
      %p274 = scmp.lt.s32.totalorder %s271, 1
      %s275 = scalar_select %p274, %s271, 1
      %s276 = smul.addr %s273, 2
      %s277 = sadd.s32 %s275, %s276
      %s278 = smul.addr %s277, 4
      %s279 = scalar_lea.vmem %s0, %s278
      %s280 = smul.u32 2, %s22
      %s281 = smul.u32 2, %s22
      %p282 = scmp.lt.s32.totalorder %s21, 1
      %s283 = scalar_select %p282, %s21, 1
      %p284 = scmp.lt.s32.totalorder %s281, 1
      %s285 = scalar_select %p284, %s281, 1
      %s286 = smul.addr %s283, 2
      %s287 = sadd.s32 %s285, %s286
      %s288 = smul.addr %s287, 4
      %s289 = scalar_lea.vmem %s6, %s288
      %s290 = smul.u32 2, %s22
      %v291 = vld [vmem:[%s279] sm:$0x77]
      %v292 = vld [vmem:[%s1] sm:$0xff]
      %v293 = vld [vmem:[%s1 + $0x8] sm:$0xff]
      %295 = vst [vmem:[#allocation1] ss:$2 sm:$0xff] %v291
      %v296 = vld.sshfl [vmem:[#allocation1] sm:$0xff pattern:$0x75316420]
      %v297 = vld.sshfl [vmem:[#allocation1 + $0x8] sm:$0xff pattern:$0x75316420]
      %vm298 = vcmask 23552
      %v300 = vsel %vm298, %v292, 0
      %v303 = vsel %vm298, %v293, 0
      %vm305 = vcmask 1042432
      %v306 = vsel %vm305, %v296, 0
      %v308 = vsel %vm305, %v297, 0
      %310 = vmatpush.msra.mxu0 0.0
      %311 = vmatpush.msra.mxu0 0.0
      %312 = vmatpush.msra.mxu0 0.0
      %313 = vmatpush.msra.mxu0 0.0
      %314 = vmatpush.msra.mxu0 0.0
      %315 = vmatpush.msra.mxu0 0.0
      %316 = vmatpush.msra.mxu0 0.0
      %317 = vmatpush.msra.mxu0 0.0
      %318 = vmatpush.msra.mxu0 0.0
      %319 = vmatpush.msra.mxu0 0.0
      %320 = vmatpush.msra.mxu0 0.0
      %321 = vmatpush.msra.mxu0 0.0
      %322 = vmatpush.msra.mxu0 0.0
      %323 = vmatpush.msra.mxu0 0.0
      %324 = vmatpush.msra.mxu0 0.0
      %325 = vmatpush.msra.mxu0 %v306
      %326 = vmatmul.f32.gmra.mxu0 %v300
      %v327 = vpop.f32.mrf.mxu0
      %v328 = vadd.f32 0.0, %v327
      %329 = vmatmul.f32.gmra.mxu0 %v303
      %v330 = vpop.f32.mrf.mxu0
      %v331 = vadd.f32 0.0, %v330
      %332 = vdwg.mxu0
      %333 = vmatpush.msra.mxu0 0.0
      %334 = vmatpush.msra.mxu0 0.0
      %335 = vmatpush.msra.mxu0 0.0
      %336 = vmatpush.msra.mxu0 0.0
      %337 = vmatpush.msra.mxu0 0.0
      %338 = vmatpush.msra.mxu0 0.0
      %339 = vmatpush.msra.mxu0 0.0
      %340 = vmatpush.msra.mxu0 0.0
      %341 = vmatpush.msra.mxu0 0.0
      %342 = vmatpush.msra.mxu0 0.0
      %343 = vmatpush.msra.mxu0 0.0
      %344 = vmatpush.msra.mxu0 0.0
      %345 = vmatpush.msra.mxu0 0.0
      %346 = vmatpush.msra.mxu0 0.0
      %347 = vmatpush.msra.mxu0 0.0
      %348 = vmatpush.msra.mxu0 %v308
      %349 = vmatmul.f32.gmra.mxu0 %v300
      %v350 = vpop.f32.mrf.mxu0
      %v351 = vadd.f32 0.0, %v350
      %352 = vmatmul.f32.gmra.mxu0 %v303
      %v353 = vpop.f32.mrf.mxu0
      %v354 = vadd.f32 0.0, %v353
      %355 = vdwg.mxu0
      %v356 = vld [vmem:[%s2] sm:$0xff]
      %v357 = vld [vmem:[%s2 + $0x8] sm:$0xff]
      %359 = vset.pattern.permute.xlu0 0
      %360 = vperm.xlu0 %359, %v356
      %v361 = vpop.permute.xlu0 %360
      %364 = vset.pattern.permute.xlu0 0
      %365 = vperm.xlu0 %364, %v357
      %v366 = vpop.permute.xlu0 %365
      %v368 = vmul.f32 %v328, %v361
      %v369 = vmul.f32 %v351, %v361
      %v370 = vmul.f32 %v331, %v366
      %v371 = vmul.f32 %v354, %v366
      %v372 = vld [vmem:[%s3] sm:$0xff]
      %v373 = vld [vmem:[%s3 + $0x8] sm:$0xff]
      %375 = vset.pattern.permute.xlu0 0
      %376 = vperm.xlu0 %375, %v372
      %v377 = vpop.permute.xlu0 %376
      %380 = vset.pattern.permute.xlu0 0
      %381 = vperm.xlu0 %380, %v373
      %v382 = vpop.permute.xlu0 %381
      %v384 = vadd.f32 %v368, %v377
      %v385 = vadd.f32 %v369, %v377
      %v386 = vadd.f32 %v370, %v382
      %v387 = vadd.f32 %v371, %v382
      %vm388 = vcmp.ge.f32.partialorder %v384, 0.0
      %vm389 = vcmp.ge.f32.partialorder %v385, 0.0
      %vm390 = vcmp.ge.f32.partialorder %v386, 0.0
      %vm391 = vcmp.ge.f32.partialorder %v387, 0.0
      %v392 = vmul.f32 %v384, 0.2
      %v393 = vmul.f32 %v385, 0.2
      %v394 = vmul.f32 %v386, 0.2
      %v395 = vmul.f32 %v387, 0.2
      %v396 = vsel %vm388, %v384, %v392
      %v397 = vsel %vm389, %v385, %v393
      %v398 = vsel %vm390, %v386, %v394
      %v399 = vsel %vm391, %v387, %v395
      %v400 = vld [vmem:[%s4] sm:$0x7]
      %v401 = vld [vmem:[%s5] sm:$0x7]
      %403 = vset.pattern.permute.xlu0 0
      %404 = vperm.xlu0 %403, %v401
      %v405 = vpop.permute.xlu0 %404
      %vm407 = vcmask 130048
      %v409 = vsel %vm407, %v400, 0
      %411 = vmatpush.msra.mxu0 0.0
      %412 = vmatpush.msra.mxu0 0.0
      %413 = vmatpush.msra.mxu0 0.0
      %414 = vmatpush.msra.mxu0 0.0
      %415 = vmatpush.msra.mxu0 0.0
      %416 = vmatpush.msra.mxu0 0.0
      %417 = vmatpush.msra.mxu0 0.0
      %418 = vmatpush.msra.mxu0 0.0
      %419 = vmatpush.msra.mxu0 0.0
      %420 = vmatpush.msra.mxu0 0.0
      %421 = vmatpush.msra.mxu0 0.0
      %422 = vmatpush.msra.mxu0 0.0
      %423 = vmatpush.msra.mxu0 0.0
      %424 = vmatpush.msra.mxu0 0.0
      %425 = vmatpush.msra.mxu0 %v398
      %426 = vmatpush.msra.mxu0 %v396
      %427 = vmatmul.f32.gmra.mxu0 %v409
      %v428 = vpop.f32.mrf.mxu0
      %v429 = vadd.f32 %v405, %v428
      %430 = vdwg.mxu0
      %431 = vmatpush.msra.mxu0 0.0
      %432 = vmatpush.msra.mxu0 0.0
      %433 = vmatpush.msra.mxu0 0.0
      %434 = vmatpush.msra.mxu0 0.0
      %435 = vmatpush.msra.mxu0 0.0
      %436 = vmatpush.msra.mxu0 0.0
      %437 = vmatpush.msra.mxu0 0.0
      %438 = vmatpush.msra.mxu0 0.0
      %439 = vmatpush.msra.mxu0 0.0
      %440 = vmatpush.msra.mxu0 0.0
      %441 = vmatpush.msra.mxu0 0.0
      %442 = vmatpush.msra.mxu0 0.0
      %443 = vmatpush.msra.mxu0 0.0
      %444 = vmatpush.msra.mxu0 0.0
      %445 = vmatpush.msra.mxu0 %v399
      %446 = vmatpush.msra.mxu0 %v397
      %447 = vmatmul.f32.gmra.mxu0 %v409
      %v448 = vpop.f32.mrf.mxu0
      %v449 = vadd.f32 %v405, %v448
      %450 = vdwg.mxu0
      %v453 = vrot.slane %v449, 4
      %vm454 = vcmask 1043456
      %v455 = vsel %vm454, %v429, %v453
      %457 = vst [vmem:[%s289] sm:$0x77] %v455
      %s458 = smul.u32 2, %s22
      %p459 = scmp.lt.s32.totalorder %s21, 1
      %s460 = scalar_select %p459, %s21, 1
      %p461 = scmp.lt.s32.totalorder %s458, 1
      %s462 = scalar_select %p461, %s458, 1
      %s463 = smul.addr %s460, 2
      %s464 = sadd.s32 %s462, %s463
      %s465 = smul.addr %s464, 4
      %s466 = scalar_lea.vmem %s6, %s465
      // Predicated region
      $region45: #{dgf_forward.5} parent=43 // pred_check
        %p467 = pneg %p182
      $region46: #{dgf_forward.5} parent=43 // pred_check_branch
        %469 = sbr.rel (%p467) target = $region48
      $region47: #{dgf_forward.5} parent=43 // pred_region
        %s470 = smul.u32 2, %s22
      $region48: #{dgf_forward.5} parent=43 // pred_fallthru
        _
    $region44: #{dgf_forward.5} parent=5 // pred_fallthru
      _
    %p471 = scmp.le.s32.totalorder 2, %s12
    // Predicated region
    $region49: #{dgf_forward.5} parent=5 // pred_check
      %p472 = pneg %p471
    $region50: #{dgf_forward.5} parent=5 // pred_check_branch
      %474 = sbr.rel (%p472) target = $region52
    $region51: #{dgf_forward.5} parent=5 // pred_region
      %s475 = ssub.s32 %s12, 2
      // Predicated region
      $region53: #{dgf_forward.5} parent=51 // pred_check
        %p476 = pneg %p188
      $region54: #{dgf_forward.5} parent=51 // pred_check_branch
        %478 = sbr.rel (%p476) target = $region56
      $region55: #{dgf_forward.5} parent=51 // pred_region
        %s479 = smul.u32 2, %s24
        %p480 = scmp.lt.s32.totalorder %s23, 1
        %s481 = scalar_select %p480, %s23, 1
        %p482 = scmp.lt.s32.totalorder %s479, 1
        %s483 = scalar_select %p482, %s479, 1
        %s484 = smul.addr %s481, 2
        %s485 = sadd.s32 %s483, %s484
        %s486 = smul.addr %s485, 4
        %s487 = scalar_lea.vmem %s6, %s486
      $region56: #{dgf_forward.5} parent=51 // pred_fallthru
        _
    $region52: #{dgf_forward.5} parent=5 // pred_fallthru
      _
  $region6: #{dgf_forward.5} parent=0 // loop_footer
    %s16 = sadd.s32 1, %s12
  $region7: #{dgf_forward.5} parent=0 // loop_footer_branch
    %11 = sbr.rel target = $region3
  $region8: #{dgf_forward.5} parent=0 // loop_exit
    _

// kernel: dgf_forward.7
$region0: #{dgf_forward.7}
  #allocation0 [shape = 'u32[]', space=smem, size = 0x4, offset = 0x4, fixed_abs, tag = 'smem constant byte address 0x4 - core index']
  #allocation1 [shape = 'u32[72,128]{1,0:T(1,128)}', space=vmem, size = 0x9000, scoped, tag = 'internal scratch']
  %s0 = inlined_call_operand.vmem [shape: f32[2,3,16,16], index: 0, kind: input, shape index: {}]
  %s1 = inlined_call_operand.vmem [shape: f32[2,3,16,16], index: 1, kind: input, shape index: {}]
  %s2 = inlined_call_operand.vmem [shape: f32[3,16,16], index: 2, kind: input, shape index: {}, may-alias: {2,3}]
  %s3 = inlined_call_operand.vmem [shape: f32[3,16,16], index: 3, kind: input, shape index: {}, may-alias: {2,3}]
  %s4 = inlined_call_operand.vmem [shape: f32[3,16,16], index: 4, kind: input, shape index: {}]
  %s5 = inlined_call_operand.vmem [shape: f32[2,3,16,16], index: 5, kind: output, shape index: {0}]
  %s6 = inlined_call_operand.vmem [shape: f32[2,3,16,16], index: 6, kind: output, shape index: {1}]
  %s7 = inlined_call_operand.vmem [shape: f32[2,3,16,16], index: 7, kind: output, shape index: {2}]
  %s8 = inlined_call_operand.vmem [shape: f32[2,3,16,16], index: 8, kind: output, shape index: {3}]
  %9 = xla_tuple %s5, %s6, %s7, %s8
  %s10 = sld [smem:[#allocation0]]
  $region77: #{dgf_forward.7} parent=0
    _
  %s12 = ssub.s32 1, %s10
  %s13 = scalar_select 0, %s12, %s10
  loop: start=0, step=1, limit=4
  $region2: #{dgf_forward.7} parent=0 // loop_pre_header
    _
  $region3: #{dgf_forward.7} parent=0 // loop_header
    %s15 = sphi 0, %s19
    %p16 = scmp.ge.s32.totalorder %s15, 4
    %s25 = sphi 0, %s27
    %s28 = sphi 0, %s25
    %s29 = sphi 0, %s28
    %s45 = sphi 0, %s29
    %s51 = sphi 0, %s53
    %s54 = sphi 0, %s51
    %s55 = sphi 0, %s54
    %s71 = sphi 0, %s55
    %s75 = sphi 0, %s75
    %s77 = sphi 0, %s75
    %s78 = sphi 0, %s77
    %s92 = sphi 0, %s78
    %s96 = sphi 0, %s96
    %s98 = sphi 0, %s96
    %s99 = sphi 0, %s98
    %s113 = sphi 0, %s99
    %s117 = sphi 0, %s117
    %s119 = sphi 0, %s117
    %s120 = sphi 0, %s119
    %s134 = sphi 0, %s120
    %s140 = sphi 0, %s142
    %s143 = sphi 0, %s140
    %s144 = sphi 0, %s143
    %s160 = sphi 0, %s144
    %s166 = sphi 0, %s168
    %s169 = sphi 0, %s166
    %s170 = sphi 0, %s169
    %s186 = sphi 0, %s170
    %s192 = sphi 0, %s194
    %s195 = sphi 0, %s192
    %s196 = sphi 0, %s195
    %s212 = sphi 0, %s196
    %s218 = sphi 0, %s220
    %s221 = sphi 0, %s218
    %s222 = sphi 0, %s221
    %s238 = sphi 0, %s222
  $region4: #{dgf_forward.7} parent=0 // loop_header_branch
    %18 = sbr.rel (%p16) target = $region8
  $region5: #{dgf_forward.7} parent=0 // loop_body
    %s20 = ssub.s32 %s15, 1
    %s21 = ssub.s32 %s15, 2
    %s22 = sadd.s32 %s15, 1
    %s23 = ssub.s32 %s15, %s22
    %p24 = scmp.eq.s32.totalorder %s23, 0
    %s26 = sadd.s32 %s25, 1
    %s27 = scalar_select %p24, %s25, %s26
    %p30 = pneg %p24
    %p31 = scmp.eq.s32.totalorder %s15, 1
    %p32 = por %p30, %p31
    %p33 = scmp.ne.s32.totalorder %s25, %s28
    %p34 = scmp.eq.s32.totalorder %s15, 0
    %p35 = por %p33, %p34
    %p36 = scmp.ne.s32.totalorder %s25, %s28
    %p37 = scmp.eq.s32.totalorder %s20, 1
    %p38 = por %p36, %p37
    %p39 = scmp.ne.s32.totalorder %s28, %s29
    %p40 = scmp.eq.s32.totalorder %s20, 0
    %p41 = por %p39, %p40
    %p42 = scmp.ne.s32.totalorder %s28, %s29
    %p43 = scmp.eq.s32.totalorder %s21, 1
    %p44 = por %p42, %p43
    %p46 = scmp.ne.s32.totalorder %s29, %s45
    %p47 = scmp.eq.s32.totalorder %s21, 0
    %p48 = por %p46, %p47
    %s49 = ssub.s32 %s15, %s22
    %p50 = scmp.eq.s32.totalorder %s49, 0
    %s52 = sadd.s32 %s51, 1
    %s53 = scalar_select %p50, %s51, %s52
    %p56 = pneg %p50
    %p57 = scmp.eq.s32.totalorder %s15, 1
    %p58 = por %p56, %p57
    %p59 = scmp.ne.s32.totalorder %s51, %s54
    %p60 = scmp.eq.s32.totalorder %s15, 0
    %p61 = por %p59, %p60
    %p62 = scmp.ne.s32.totalorder %s51, %s54
    %p63 = scmp.eq.s32.totalorder %s20, 1
    %p64 = por %p62, %p63
    %p65 = scmp.ne.s32.totalorder %s54, %s55
    %p66 = scmp.eq.s32.totalorder %s20, 0
    %p67 = por %p65, %p66
    %p68 = scmp.ne.s32.totalorder %s54, %s55
    %p69 = scmp.eq.s32.totalorder %s21, 1
    %p70 = por %p68, %p69
    %p72 = scmp.ne.s32.totalorder %s55, %s71
    %p73 = scmp.eq.s32.totalorder %s21, 0
    %p74 = por %p72, %p73
    %s76 = sadd.s32 %s75, 1
    %p79 = scmp.eq.s32.totalorder %s15, 1
    %p80 = scmp.ne.s32.totalorder %s75, %s77
    %p81 = scmp.eq.s32.totalorder %s15, 0
    %p82 = por %p80, %p81
    %p83 = scmp.ne.s32.totalorder %s75, %s77
    %p84 = scmp.eq.s32.totalorder %s20, 1
    %p85 = por %p83, %p84
    %p86 = scmp.ne.s32.totalorder %s77, %s78
    %p87 = scmp.eq.s32.totalorder %s20, 0
    %p88 = por %p86, %p87
    %p89 = scmp.ne.s32.totalorder %s77, %s78
    %p90 = scmp.eq.s32.totalorder %s21, 1
    %p91 = por %p89, %p90
    %p93 = scmp.ne.s32.totalorder %s78, %s92
    %p94 = scmp.eq.s32.totalorder %s21, 0
    %p95 = por %p93, %p94
    %s97 = sadd.s32 %s96, 1
    %p100 = scmp.eq.s32.totalorder %s15, 1
    %p101 = scmp.ne.s32.totalorder %s96, %s98
    %p102 = scmp.eq.s32.totalorder %s15, 0
    %p103 = por %p101, %p102
    %p104 = scmp.ne.s32.totalorder %s96, %s98
    %p105 = scmp.eq.s32.totalorder %s20, 1
    %p106 = por %p104, %p105
    %p107 = scmp.ne.s32.totalorder %s98, %s99
    %p108 = scmp.eq.s32.totalorder %s20, 0
    %p109 = por %p107, %p108
    %p110 = scmp.ne.s32.totalorder %s98, %s99
    %p111 = scmp.eq.s32.totalorder %s21, 1
    %p112 = por %p110, %p111
    %p114 = scmp.ne.s32.totalorder %s99, %s113
    %p115 = scmp.eq.s32.totalorder %s21, 0
    %p116 = por %p114, %p115
    %s118 = sadd.s32 %s117, 1
    %p121 = scmp.eq.s32.totalorder %s15, 1
    %p122 = scmp.ne.s32.totalorder %s117, %s119
    %p123 = scmp.eq.s32.totalorder %s15, 0
    %p124 = por %p122, %p123
    %p125 = scmp.ne.s32.totalorder %s117, %s119
    %p126 = scmp.eq.s32.totalorder %s20, 1
    %p127 = por %p125, %p126
    %p128 = scmp.ne.s32.totalorder %s119, %s120
    %p129 = scmp.eq.s32.totalorder %s20, 0
    %p130 = por %p128, %p129
    %p131 = scmp.ne.s32.totalorder %s119, %s120
    %p132 = scmp.eq.s32.totalorder %s21, 1
    %p133 = por %p131, %p132
    %p135 = scmp.ne.s32.totalorder %s120, %s134
    %p136 = scmp.eq.s32.totalorder %s21, 0
    %p137 = por %p135, %p136
    %s138 = ssub.s32 %s15, %s22
    %p139 = scmp.eq.s32.totalorder %s138, 0
    %s141 = sadd.s32 %s140, 1
    %s142 = scalar_select %p139, %s140, %s141
    %p145 = pneg %p139
    %p146 = scmp.eq.s32.totalorder %s15, 1
    %p147 = por %p145, %p146
    %p148 = scmp.ne.s32.totalorder %s140, %s143
    %p149 = scmp.eq.s32.totalorder %s15, 0
    %p150 = por %p148, %p149
    %p151 = scmp.ne.s32.totalorder %s140, %s143
    %p152 = scmp.eq.s32.totalorder %s20, 1
    %p153 = por %p151, %p152
    %p154 = scmp.ne.s32.totalorder %s143, %s144
    %p155 = scmp.eq.s32.totalorder %s20, 0
    %p156 = por %p154, %p155
    %p157 = scmp.ne.s32.totalorder %s143, %s144
    %p158 = scmp.eq.s32.totalorder %s21, 1
    %p159 = por %p157, %p158
    %p161 = scmp.ne.s32.totalorder %s144, %s160
    %p162 = scmp.eq.s32.totalorder %s21, 0
    %p163 = por %p161, %p162
    %s164 = ssub.s32 %s15, %s22
    %p165 = scmp.eq.s32.totalorder %s164, 0
    %s167 = sadd.s32 %s166, 1
    %s168 = scalar_select %p165, %s166, %s167
    %p171 = pneg %p165
    %p172 = scmp.eq.s32.totalorder %s15, 1
    %p173 = por %p171, %p172
    %p174 = scmp.ne.s32.totalorder %s166, %s169
    %p175 = scmp.eq.s32.totalorder %s15, 0
    %p176 = por %p174, %p175
    %p177 = scmp.ne.s32.totalorder %s166, %s169
    %p178 = scmp.eq.s32.totalorder %s20, 1
    %p179 = por %p177, %p178
    %p180 = scmp.ne.s32.totalorder %s169, %s170
    %p181 = scmp.eq.s32.totalorder %s20, 0
    %p182 = por %p180, %p181
    %p183 = scmp.ne.s32.totalorder %s169, %s170
    %p184 = scmp.eq.s32.totalorder %s21, 1
    %p185 = por %p183, %p184
    %p187 = scmp.ne.s32.totalorder %s170, %s186
    %p188 = scmp.eq.s32.totalorder %s21, 0
    %p189 = por %p187, %p188
    %s190 = ssub.s32 %s15, %s22
    %p191 = scmp.eq.s32.totalorder %s190, 0
    %s193 = sadd.s32 %s192, 1
    %s194 = scalar_select %p191, %s192, %s193
    %p197 = pneg %p191
    %p198 = scmp.eq.s32.totalorder %s15, 1
    %p199 = por %p197, %p198
    %p200 = scmp.ne.s32.totalorder %s192, %s195
    %p201 = scmp.eq.s32.totalorder %s15, 0
    %p202 = por %p200, %p201
    %p203 = scmp.ne.s32.totalorder %s192, %s195
    %p204 = scmp.eq.s32.totalorder %s20, 1
    %p205 = por %p203, %p204
    %p206 = scmp.ne.s32.totalorder %s195, %s196
    %p207 = scmp.eq.s32.totalorder %s20, 0
    %p208 = por %p206, %p207
    %p209 = scmp.ne.s32.totalorder %s195, %s196
    %p210 = scmp.eq.s32.totalorder %s21, 1
    %p211 = por %p209, %p210
    %p213 = scmp.ne.s32.totalorder %s196, %s212
    %p214 = scmp.eq.s32.totalorder %s21, 0
    %p215 = por %p213, %p214
    %s216 = ssub.s32 %s15, %s22
    %p217 = scmp.eq.s32.totalorder %s216, 0
    %s219 = sadd.s32 %s218, 1
    %s220 = scalar_select %p217, %s218, %s219
    %p223 = pneg %p217
    %p224 = scmp.eq.s32.totalorder %s15, 1
    %p225 = por %p223, %p224
    %p226 = scmp.ne.s32.totalorder %s218, %s221
    %p227 = scmp.eq.s32.totalorder %s15, 0
    %p228 = por %p226, %p227
    %p229 = scmp.ne.s32.totalorder %s218, %s221
    %p230 = scmp.eq.s32.totalorder %s20, 1
    %p231 = por %p229, %p230
    %p232 = scmp.ne.s32.totalorder %s221, %s222
    %p233 = scmp.eq.s32.totalorder %s20, 0
    %p234 = por %p232, %p233
    %p235 = scmp.ne.s32.totalorder %s221, %s222
    %p236 = scmp.eq.s32.totalorder %s21, 1
    %p237 = por %p235, %p236
    %p239 = scmp.ne.s32.totalorder %s222, %s238
    %p240 = scmp.eq.s32.totalorder %s21, 0
    %p241 = por %p239, %p240
    %p242 = scmp.le.s32.totalorder 1, %s15
    %p243 = scmp.lt.s32.totalorder %s15, 3
    %p244 = pnand %p242, %p243
    %p245 = pneg %p244
    // Predicated region
    $region9: #{dgf_forward.7} parent=5 // pred_check
      _
    $region10: #{dgf_forward.7} parent=5 // pred_check_branch
      %247 = sbr.rel (%p244) target = $region12
    $region11: #{dgf_forward.7} parent=5 // pred_region
      %s248 = ssub.s32 %s15, 1
      // Predicated region
      $region13: #{dgf_forward.7} parent=11 // pred_check
        %p249 = pneg %p88
      $region14: #{dgf_forward.7} parent=11 // pred_check_branch
        %251 = sbr.rel (%p249) target = $region16
      $region15: #{dgf_forward.7} parent=11 // pred_region
        _
      $region16: #{dgf_forward.7} parent=11 // pred_fallthru
        _
      // Predicated region
      $region17: #{dgf_forward.7} parent=11 // pred_check
        %p252 = pneg %p109
      $region18: #{dgf_forward.7} parent=11 // pred_check_branch
        %254 = sbr.rel (%p252) target = $region20
      $region19: #{dgf_forward.7} parent=11 // pred_region
        _
      $region20: #{dgf_forward.7} parent=11 // pred_fallthru
        _
      // Predicated region
      $region21: #{dgf_forward.7} parent=11 // pred_check
        %p255 = pneg %p130
      $region22: #{dgf_forward.7} parent=11 // pred_check_branch
        %257 = sbr.rel (%p255) target = $region24
      $region23: #{dgf_forward.7} parent=11 // pred_region
        _
      $region24: #{dgf_forward.7} parent=11 // pred_fallthru
        _
    $region12: #{dgf_forward.7} parent=5 // pred_fallthru
      _
    %p258 = scmp.lt.s32.totalorder %s15, 2
    // Predicated region
    $region25: #{dgf_forward.7} parent=5 // pred_check
      %p259 = pneg %p258
    $region26: #{dgf_forward.7} parent=5 // pred_check_branch
      %261 = sbr.rel (%p259) target = $region28
    $region27: #{dgf_forward.7} parent=5 // pred_region
      // Predicated region
      $region29: #{dgf_forward.7} parent=27 // pred_check
        %p262 = pneg %p35
      $region30: #{dgf_forward.7} parent=27 // pred_check_branch
        %264 = sbr.rel (%p262) target = $region32
      $region31: #{dgf_forward.7} parent=27 // pred_region
        %p265 = scmp.lt.s32.totalorder %s15, 1
        %s266 = scalar_select %p265, %s15, 1
        %s267 = smul.addr %s266, 6
        %s268 = smul.addr %s267, 8
        %s269 = scalar_lea.vmem %s0, %s268
      $region32: #{dgf_forward.7} parent=27 // pred_fallthru
        _
      // Predicated region
      $region33: #{dgf_forward.7} parent=27 // pred_check
        %p270 = pneg %p61
      $region34: #{dgf_forward.7} parent=27 // pred_check_branch
        %272 = sbr.rel (%p270) target = $region36
      $region35: #{dgf_forward.7} parent=27 // pred_region
        %p273 = scmp.lt.s32.totalorder %s15, 1
        %s274 = scalar_select %p273, %s15, 1
        %s275 = smul.addr %s274, 6
        %s276 = smul.addr %s275, 8
        %s277 = scalar_lea.vmem %s1, %s276
      $region36: #{dgf_forward.7} parent=27 // pred_fallthru
        _
    $region28: #{dgf_forward.7} parent=5 // pred_fallthru
      _
    %p278 = scmp.le.s32.totalorder 1, %s15
    %p279 = scmp.lt.s32.totalorder %s15, 3
    %p280 = pnand %p278, %p279
    %p281 = pneg %p280
    // Predicated region
    $region37: #{dgf_forward.7} parent=5 // pred_check
      _
    $region38: #{dgf_forward.7} parent=5 // pred_check_branch
      %283 = sbr.rel (%p280) target = $region40
    $region39: #{dgf_forward.7} parent=5 // pred_region
      %s284 = ssub.s32 %s15, 1
      %p285 = scmp.lt.s32.totalorder %s20, 1
      %s286 = scalar_select %p285, %s20, 1
      %s287 = smul.addr %s286, 6
      %s288 = smul.addr %s287, 8
      %s289 = scalar_lea.vmem %s0, %s288
      %p290 = pneg %p41
      %p291 = pneg %p38
      %p292 = scmp.lt.s32.totalorder %s20, 1
      %s293 = scalar_select %p292, %s20, 1
      %s294 = smul.addr %s293, 6
      %s295 = smul.addr %s294, 8
      %s296 = scalar_lea.vmem %s1, %s295
      %p297 = pneg %p67
      %p298 = pneg %p64
      %p299 = pneg %p88
      %p300 = pneg %p85
      %p301 = pneg %p109
      %p302 = pneg %p106
      %p303 = pneg %p130
      %p304 = pneg %p127
      %p305 = pneg %p156
      %p306 = pneg %p153
      %p307 = scmp.lt.s32.totalorder %s20, 1
      %s308 = scalar_select %p307, %s20, 1
      %s309 = smul.addr %s308, 6
      %s310 = smul.addr %s309, 8
      %s311 = scalar_lea.vmem %s5, %s310
      %p312 = pneg %p182
      %p313 = pneg %p179
      %p314 = scmp.lt.s32.totalorder %s20, 1
      %s315 = scalar_select %p314, %s20, 1
      %s316 = smul.addr %s315, 6
      %s317 = smul.addr %s316, 8
      %s318 = scalar_lea.vmem %s6, %s317
      %p319 = pneg %p208
      %p320 = pneg %p205
      %p321 = scmp.lt.s32.totalorder %s20, 1
      %s322 = scalar_select %p321, %s20, 1
      %s323 = smul.addr %s322, 6
      %s324 = smul.addr %s323, 8
      %s325 = scalar_lea.vmem %s7, %s324
      %p326 = pneg %p234
      %p327 = pneg %p231
      %p328 = scmp.lt.s32.totalorder %s20, 1
      %s329 = scalar_select %p328, %s20, 1
      %s330 = smul.addr %s329, 6
      %s331 = smul.addr %s330, 8
      %s332 = scalar_lea.vmem %s8, %s331
      %p333 = scmp.lt.s32.totalorder %s20, 1
      %s334 = scalar_select %p333, %s20, 1
      %s335 = smul.addr %s334, 6
      %s336 = smul.addr %s335, 8
      %s337 = scalar_lea.vmem %s0, %s336
      %p338 = scmp.lt.s32.totalorder %s20, 1
      %s339 = scalar_select %p338, %s20, 1
      %s340 = smul.addr %s339, 6
      %s341 = smul.addr %s340, 8
      %s342 = scalar_lea.vmem %s1, %s341
      %p343 = scmp.lt.s32.totalorder %s20, 1
      %s344 = scalar_select %p343, %s20, 1
      %s345 = smul.addr %s344, 6
      %s346 = smul.addr %s345, 8
      %s347 = scalar_lea.vmem %s5, %s346
      %p348 = scmp.lt.s32.totalorder %s20, 1
      %s349 = scalar_select %p348, %s20, 1
      %s350 = smul.addr %s349, 6
      %s351 = smul.addr %s350, 8
      %s352 = scalar_lea.vmem %s6, %s351
      %p353 = scmp.lt.s32.totalorder %s20, 1
      %s354 = scalar_select %p353, %s20, 1
      %s355 = smul.addr %s354, 6
      %s356 = smul.addr %s355, 8
      %s357 = scalar_lea.vmem %s7, %s356
      %p358 = scmp.lt.s32.totalorder %s20, 1
      %s359 = scalar_select %p358, %s20, 1
      %s360 = smul.addr %s359, 6
      %s361 = smul.addr %s360, 8
      %s362 = scalar_lea.vmem %s8, %s361
      %v363 = vld [vmem:[%s337] sm:$0xff]
      %v364 = vld [vmem:[%s337 + $0x8] sm:$0xff]
      %v365 = vld [vmem:[%s337 + $0x10] sm:$0xff]
      %v366 = vld [vmem:[%s337 + $0x18] sm:$0xff]
      %v367 = vld [vmem:[%s337 + $0x20] sm:$0xff]
      %v368 = vld [vmem:[%s337 + $0x28] sm:$0xff]
      %v369 = vld [vmem:[%s342] sm:$0xff]
      %v370 = vld [vmem:[%s342 + $0x8] sm:$0xff]
      %v371 = vld [vmem:[%s342 + $0x10] sm:$0xff]
      %v372 = vld [vmem:[%s342 + $0x18] sm:$0xff]
      %v373 = vld [vmem:[%s342 + $0x20] sm:$0xff]
      %v374 = vld [vmem:[%s342 + $0x28] sm:$0xff]
      %v375 = vld [vmem:[%s2] sm:$0xff]
      %v376 = vld [vmem:[%s2 + $0x8] sm:$0xff]
      %v377 = vld [vmem:[%s2 + $0x10] sm:$0xff]
      %v378 = vld [vmem:[%s2 + $0x18] sm:$0xff]
      %v379 = vld [vmem:[%s2 + $0x20] sm:$0xff]
      %v380 = vld [vmem:[%s2 + $0x28] sm:$0xff]
      %v381 = vld [vmem:[%s3] sm:$0xff]
      %v382 = vld [vmem:[%s3 + $0x8] sm:$0xff]
      %v383 = vld [vmem:[%s3 + $0x10] sm:$0xff]
      %v384 = vld [vmem:[%s3 + $0x18] sm:$0xff]
      %v385 = vld [vmem:[%s3 + $0x20] sm:$0xff]
      %v386 = vld [vmem:[%s3 + $0x28] sm:$0xff]
      %v387 = vld [vmem:[%s4] sm:$0xff]
      %v388 = vld [vmem:[%s4 + $0x8] sm:$0xff]
      %v389 = vld [vmem:[%s4 + $0x10] sm:$0xff]
      %v390 = vld [vmem:[%s4 + $0x18] sm:$0xff]
      %v391 = vld [vmem:[%s4 + $0x20] sm:$0xff]
      %v392 = vld [vmem:[%s4 + $0x28] sm:$0xff]
      %vm393 = vcmask 130048
      %v395 = vsel %vm393, %v375, 0
      %v398 = vsel %vm393, %v376, 0
      %400 = vmatpush.msra.mxu0 0.0
      %401 = vmatpush.msra.mxu0 0.0
      %402 = vmatpush.msra.mxu0 0.0
      %403 = vmatpush.msra.mxu0 0.0
      %404 = vmatpush.msra.mxu0 0.0
      %405 = vmatpush.msra.mxu0 0.0
      %406 = vmatpush.msra.mxu0 0.0
      %407 = vmatpush.msra.mxu0 0.0
      %408 = vmatpush.msra.mxu0 0.0
      %409 = vmatpush.msra.mxu0 0.0
      %410 = vmatpush.msra.mxu0 0.0
      %411 = vmatpush.msra.mxu0 0.0
      %412 = vmatpush.msra.mxu0 0.0
      %413 = vmatpush.msra.mxu0 0.0
      %414 = vmatpush.msra.mxu0 %v364
      %415 = vmatpush.msra.mxu0 %v363
      %416 = vmatmul.f32.gmra.mxu0 %v395
      %v417 = vpop.f32.mrf.mxu0
      %v418 = vadd.f32 0.0, %v417
      %419 = vmatmul.f32.gmra.mxu0 %v398
      %v420 = vpop.f32.mrf.mxu0
      %v421 = vadd.f32 0.0, %v420
      %422 = vdwg.mxu0
      %v424 = vsel %vm393, %v377, 0
      %v427 = vsel %vm393, %v378, 0
      %429 = vmatpush.msra.mxu0 0.0
      %430 = vmatpush.msra.mxu0 0.0
      %431 = vmatpush.msra.mxu0 0.0
      %432 = vmatpush.msra.mxu0 0.0
      %433 = vmatpush.msra.mxu0 0.0
      %434 = vmatpush.msra.mxu0 0.0
      %435 = vmatpush.msra.mxu0 0.0
      %436 = vmatpush.msra.mxu0 0.0
      %437 = vmatpush.msra.mxu0 0.0
      %438 = vmatpush.msra.mxu0 0.0
      %439 = vmatpush.msra.mxu0 0.0
      %440 = vmatpush.msra.mxu0 0.0
      %441 = vmatpush.msra.mxu0 0.0
      %442 = vmatpush.msra.mxu0 0.0
      %443 = vmatpush.msra.mxu0 %v366
      %444 = vmatpush.msra.mxu0 %v365
      %445 = vmatmul.f32.gmra.mxu0 %v424
      %v446 = vpop.f32.mrf.mxu0
      %v447 = vadd.f32 0.0, %v446
      %448 = vmatmul.f32.gmra.mxu0 %v427
      %v449 = vpop.f32.mrf.mxu0
      %v450 = vadd.f32 0.0, %v449
      %451 = vdwg.mxu0
      %v453 = vsel %vm393, %v379, 0
      %v456 = vsel %vm393, %v380, 0
      %458 = vmatpush.msra.mxu0 0.0
      %459 = vmatpush.msra.mxu0 0.0
      %460 = vmatpush.msra.mxu0 0.0
      %461 = vmatpush.msra.mxu0 0.0
      %462 = vmatpush.msra.mxu0 0.0
      %463 = vmatpush.msra.mxu0 0.0
      %464 = vmatpush.msra.mxu0 0.0
      %465 = vmatpush.msra.mxu0 0.0
      %466 = vmatpush.msra.mxu0 0.0
      %467 = vmatpush.msra.mxu0 0.0
      %468 = vmatpush.msra.mxu0 0.0
      %469 = vmatpush.msra.mxu0 0.0
      %470 = vmatpush.msra.mxu0 0.0
      %471 = vmatpush.msra.mxu0 0.0
      %472 = vmatpush.msra.mxu0 %v368
      %473 = vmatpush.msra.mxu0 %v367
      %474 = vmatmul.f32.gmra.mxu0 %v453
      %v475 = vpop.f32.mrf.mxu0
      %v476 = vadd.f32 0.0, %v475
      %477 = vmatmul.f32.gmra.mxu0 %v456
      %v478 = vpop.f32.mrf.mxu0
      %v479 = vadd.f32 0.0, %v478
      %480 = vdwg.mxu0
      %v482 = vsel %vm393, %v418, 0
      %v485 = vsel %vm393, %v421, 0
      %487 = vmatpush.msra.mxu0 0.0
      %488 = vmatpush.msra.mxu0 0.0
      %489 = vmatpush.msra.mxu0 0.0
      %490 = vmatpush.msra.mxu0 0.0
      %491 = vmatpush.msra.mxu0 0.0
      %492 = vmatpush.msra.mxu0 0.0
      %493 = vmatpush.msra.mxu0 0.0
      %494 = vmatpush.msra.mxu0 0.0
      %495 = vmatpush.msra.mxu0 0.0
      %496 = vmatpush.msra.mxu0 0.0
      %497 = vmatpush.msra.mxu0 0.0
      %498 = vmatpush.msra.mxu0 0.0
      %499 = vmatpush.msra.mxu0 0.0
      %500 = vmatpush.msra.mxu0 0.0
      %501 = vmatpush.msra.mxu0 %v382
      %502 = vmatpush.msra.mxu0 %v381
      %503 = vmatmul.f32.gmra.mxu0 %v482
      %v504 = vpop.f32.mrf.mxu0
      %v505 = vadd.f32 0.0, %v504
      %506 = vmatmul.f32.gmra.mxu0 %v485
      %v507 = vpop.f32.mrf.mxu0
      %v508 = vadd.f32 0.0, %v507
      %509 = vdwg.mxu0
      %v511 = vsel %vm393, %v447, 0
      %v514 = vsel %vm393, %v450, 0
      %516 = vmatpush.msra.mxu0 0.0
      %517 = vmatpush.msra.mxu0 0.0
      %518 = vmatpush.msra.mxu0 0.0
      %519 = vmatpush.msra.mxu0 0.0
      %520 = vmatpush.msra.mxu0 0.0
      %521 = vmatpush.msra.mxu0 0.0
      %522 = vmatpush.msra.mxu0 0.0
      %523 = vmatpush.msra.mxu0 0.0
      %524 = vmatpush.msra.mxu0 0.0
      %525 = vmatpush.msra.mxu0 0.0
      %526 = vmatpush.msra.mxu0 0.0
      %527 = vmatpush.msra.mxu0 0.0
      %528 = vmatpush.msra.mxu0 0.0
      %529 = vmatpush.msra.mxu0 0.0
      %530 = vmatpush.msra.mxu0 %v384
      %531 = vmatpush.msra.mxu0 %v383
      %532 = vmatmul.f32.gmra.mxu0 %v511
      %v533 = vpop.f32.mrf.mxu0
      %v534 = vadd.f32 0.0, %v533
      %535 = vmatmul.f32.gmra.mxu0 %v514
      %v536 = vpop.f32.mrf.mxu0
      %v537 = vadd.f32 0.0, %v536
      %538 = vdwg.mxu0
      %v540 = vsel %vm393, %v476, 0
      %v543 = vsel %vm393, %v479, 0
      %545 = vmatpush.msra.mxu0 0.0
      %546 = vmatpush.msra.mxu0 0.0
      %547 = vmatpush.msra.mxu0 0.0
      %548 = vmatpush.msra.mxu0 0.0
      %549 = vmatpush.msra.mxu0 0.0
      %550 = vmatpush.msra.mxu0 0.0
      %551 = vmatpush.msra.mxu0 0.0
      %552 = vmatpush.msra.mxu0 0.0
      %553 = vmatpush.msra.mxu0 0.0
      %554 = vmatpush.msra.mxu0 0.0
      %555 = vmatpush.msra.mxu0 0.0
      %556 = vmatpush.msra.mxu0 0.0
      %557 = vmatpush.msra.mxu0 0.0
      %558 = vmatpush.msra.mxu0 0.0
      %559 = vmatpush.msra.mxu0 %v386
      %560 = vmatpush.msra.mxu0 %v385
      %561 = vmatmul.f32.gmra.mxu0 %v540
      %v562 = vpop.f32.mrf.mxu0
      %v563 = vadd.f32 0.0, %v562
      %564 = vmatmul.f32.gmra.mxu0 %v543
      %v565 = vpop.f32.mrf.mxu0
      %v566 = vadd.f32 0.0, %v565
      %567 = vdwg.mxu0
      %v568 = vmul.f32 %v505, %v387
      %v569 = vmul.f32 %v508, %v388
      %v570 = vmul.f32 %v534, %v389
      %v571 = vmul.f32 %v537, %v390
      %v572 = vmul.f32 %v563, %v391
      %v573 = vmul.f32 %v566, %v392
      %574 = vmatpush.msra.mxu0 0.0
      %575 = vmatpush.msra.mxu0 0.0
      %576 = vmatpush.msra.mxu0 0.0
      %577 = vmatpush.msra.mxu0 0.0
      %578 = vmatpush.msra.mxu0 0.0
      %579 = vmatpush.msra.mxu0 0.0
      %580 = vmatpush.msra.mxu0 0.0
      %581 = vmatpush.msra.mxu0 0.0
      %582 = vmatpush.msra.mxu0 0.0
      %583 = vmatpush.msra.mxu0 0.0
      %584 = vmatpush.msra.mxu0 0.0
      %585 = vmatpush.msra.mxu0 0.0
      %586 = vmatpush.msra.mxu0 0.0
      %587 = vmatpush.msra.mxu0 0.0
      %588 = vmatpush.msra.mxu0 %v370
      %589 = vmatpush.msra.mxu0 %v369
      %590 = vmatmul.f32.gmra.mxu0 %v395
      %v591 = vpop.f32.mrf.mxu0
      %v592 = vadd.f32 0.0, %v591
      %593 = vmatmul.f32.gmra.mxu0 %v398
      %v594 = vpop.f32.mrf.mxu0
      %v595 = vadd.f32 0.0, %v594
      %596 = vdwg.mxu0
      %597 = vmatpush.msra.mxu0 0.0
      %598 = vmatpush.msra.mxu0 0.0
      %599 = vmatpush.msra.mxu0 0.0
      %600 = vmatpush.msra.mxu0 0.0
      %601 = vmatpush.msra.mxu0 0.0
      %602 = vmatpush.msra.mxu0 0.0
      %603 = vmatpush.msra.mxu0 0.0
      %604 = vmatpush.msra.mxu0 0.0
      %605 = vmatpush.msra.mxu0 0.0
      %606 = vmatpush.msra.mxu0 0.0
      %607 = vmatpush.msra.mxu0 0.0
      %608 = vmatpush.msra.mxu0 0.0
      %609 = vmatpush.msra.mxu0 0.0
      %610 = vmatpush.msra.mxu0 0.0
      %611 = vmatpush.msra.mxu0 %v372
      %612 = vmatpush.msra.mxu0 %v371
      %613 = vmatmul.f32.gmra.mxu0 %v424
      %v614 = vpop.f32.mrf.mxu0
      %v615 = vadd.f32 0.0, %v614
      %616 = vmatmul.f32.gmra.mxu0 %v427
      %v617 = vpop.f32.mrf.mxu0
      %v618 = vadd.f32 0.0, %v617
      %619 = vdwg.mxu0
      %620 = vmatpush.msra.mxu0 0.0
      %621 = vmatpush.msra.mxu0 0.0
      %622 = vmatpush.msra.mxu0 0.0
      %623 = vmatpush.msra.mxu0 0.0
      %624 = vmatpush.msra.mxu0 0.0
      %625 = vmatpush.msra.mxu0 0.0
      %626 = vmatpush.msra.mxu0 0.0
      %627 = vmatpush.msra.mxu0 0.0
      %628 = vmatpush.msra.mxu0 0.0
      %629 = vmatpush.msra.mxu0 0.0
      %630 = vmatpush.msra.mxu0 0.0
      %631 = vmatpush.msra.mxu0 0.0
      %632 = vmatpush.msra.mxu0 0.0
      %633 = vmatpush.msra.mxu0 0.0
      %634 = vmatpush.msra.mxu0 %v374
      %635 = vmatpush.msra.mxu0 %v373
      %636 = vmatmul.f32.gmra.mxu0 %v453
      %v637 = vpop.f32.mrf.mxu0
      %v638 = vadd.f32 0.0, %v637
      %639 = vmatmul.f32.gmra.mxu0 %v456
      %v640 = vpop.f32.mrf.mxu0
      %v641 = vadd.f32 0.0, %v640
      %642 = vdwg.mxu0
      %v644 = vsel %vm393, %v592, 0
      %v647 = vsel %vm393, %v595, 0
      %649 = vmatpush.msra.mxu0 0.0
      %650 = vmatpush.msra.mxu0 0.0
      %651 = vmatpush.msra.mxu0 0.0
      %652 = vmatpush.msra.mxu0 0.0
      %653 = vmatpush.msra.mxu0 0.0
      %654 = vmatpush.msra.mxu0 0.0
      %655 = vmatpush.msra.mxu0 0.0
      %656 = vmatpush.msra.mxu0 0.0
      %657 = vmatpush.msra.mxu0 0.0
      %658 = vmatpush.msra.mxu0 0.0
      %659 = vmatpush.msra.mxu0 0.0
      %660 = vmatpush.msra.mxu0 0.0
      %661 = vmatpush.msra.mxu0 0.0
      %662 = vmatpush.msra.mxu0 0.0
      %663 = vmatpush.msra.mxu0 %v382
      %664 = vmatpush.msra.mxu0 %v381
      %665 = vmatmul.f32.gmra.mxu0 %v644
      %v666 = vpop.f32.mrf.mxu0
      %v667 = vadd.f32 0.0, %v666
      %668 = vmatmul.f32.gmra.mxu0 %v647
      %v669 = vpop.f32.mrf.mxu0
      %v670 = vadd.f32 0.0, %v669
      %671 = vdwg.mxu0
      %v673 = vsel %vm393, %v615, 0
      %v676 = vsel %vm393, %v618, 0
      %678 = vmatpush.msra.mxu0 0.0
      %679 = vmatpush.msra.mxu0 0.0
      %680 = vmatpush.msra.mxu0 0.0
      %681 = vmatpush.msra.mxu0 0.0
      %682 = vmatpush.msra.mxu0 0.0
      %683 = vmatpush.msra.mxu0 0.0
      %684 = vmatpush.msra.mxu0 0.0
      %685 = vmatpush.msra.mxu0 0.0
      %686 = vmatpush.msra.mxu0 0.0
      %687 = vmatpush.msra.mxu0 0.0
      %688 = vmatpush.msra.mxu0 0.0
      %689 = vmatpush.msra.mxu0 0.0
      %690 = vmatpush.msra.mxu0 0.0
      %691 = vmatpush.msra.mxu0 0.0
      %692 = vmatpush.msra.mxu0 %v384
      %693 = vmatpush.msra.mxu0 %v383
      %694 = vmatmul.f32.gmra.mxu0 %v673
      %v695 = vpop.f32.mrf.mxu0
      %v696 = vadd.f32 0.0, %v695
      %697 = vmatmul.f32.gmra.mxu0 %v676
      %v698 = vpop.f32.mrf.mxu0
      %v699 = vadd.f32 0.0, %v698
      %700 = vdwg.mxu0
      %v702 = vsel %vm393, %v638, 0
      %v705 = vsel %vm393, %v641, 0
      %707 = vmatpush.msra.mxu0 0.0
      %708 = vmatpush.msra.mxu0 0.0
      %709 = vmatpush.msra.mxu0 0.0
      %710 = vmatpush.msra.mxu0 0.0
      %711 = vmatpush.msra.mxu0 0.0
      %712 = vmatpush.msra.mxu0 0.0
      %713 = vmatpush.msra.mxu0 0.0
      %714 = vmatpush.msra.mxu0 0.0
      %715 = vmatpush.msra.mxu0 0.0
      %716 = vmatpush.msra.mxu0 0.0
      %717 = vmatpush.msra.mxu0 0.0
      %718 = vmatpush.msra.mxu0 0.0
      %719 = vmatpush.msra.mxu0 0.0
      %720 = vmatpush.msra.mxu0 0.0
      %721 = vmatpush.msra.mxu0 %v386
      %722 = vmatpush.msra.mxu0 %v385
      %723 = vmatmul.f32.gmra.mxu0 %v702
      %v724 = vpop.f32.mrf.mxu0
      %v725 = vadd.f32 0.0, %v724
      %726 = vmatmul.f32.gmra.mxu0 %v705
      %v727 = vpop.f32.mrf.mxu0
      %v728 = vadd.f32 0.0, %v727
      %729 = vdwg.mxu0
      %v730 = vmul.f32 %v667, %v387
      %v731 = vmul.f32 %v670, %v388
      %v732 = vmul.f32 %v696, %v389
      %v733 = vmul.f32 %v699, %v390
      %v734 = vmul.f32 %v725, %v391
      %v735 = vmul.f32 %v728, %v392
      %v736 = vmul.f32 %v363, %v369
      %v737 = vmul.f32 %v364, %v370
      %v738 = vmul.f32 %v365, %v371
      %v739 = vmul.f32 %v366, %v372
      %v740 = vmul.f32 %v367, %v373
      %v741 = vmul.f32 %v368, %v374
      %742 = vmatpush.msra.mxu0 0.0
      %743 = vmatpush.msra.mxu0 0.0
      %744 = vmatpush.msra.mxu0 0.0
      %745 = vmatpush.msra.mxu0 0.0
      %746 = vmatpush.msra.mxu0 0.0
      %747 = vmatpush.msra.mxu0 0.0
      %748 = vmatpush.msra.mxu0 0.0
      %749 = vmatpush.msra.mxu0 0.0
      %750 = vmatpush.msra.mxu0 0.0
      %751 = vmatpush.msra.mxu0 0.0
      %752 = vmatpush.msra.mxu0 0.0
      %753 = vmatpush.msra.mxu0 0.0
      %754 = vmatpush.msra.mxu0 0.0
      %755 = vmatpush.msra.mxu0 0.0
      %756 = vmatpush.msra.mxu0 %v737
      %757 = vmatpush.msra.mxu0 %v736
      %758 = vmatmul.f32.gmra.mxu0 %v395
      %v759 = vpop.f32.mrf.mxu0
      %v760 = vadd.f32 0.0, %v759
      %761 = vmatmul.f32.gmra.mxu0 %v398
      %v762 = vpop.f32.mrf.mxu0
      %v763 = vadd.f32 0.0, %v762
      %764 = vdwg.mxu0
      %765 = vmatpush.msra.mxu0 0.0
      %766 = vmatpush.msra.mxu0 0.0
      %767 = vmatpush.msra.mxu0 0.0
      %768 = vmatpush.msra.mxu0 0.0
      %769 = vmatpush.msra.mxu0 0.0
      %770 = vmatpush.msra.mxu0 0.0
      %771 = vmatpush.msra.mxu0 0.0
      %772 = vmatpush.msra.mxu0 0.0
      %773 = vmatpush.msra.mxu0 0.0
      %774 = vmatpush.msra.mxu0 0.0
      %775 = vmatpush.msra.mxu0 0.0
      %776 = vmatpush.msra.mxu0 0.0
      %777 = vmatpush.msra.mxu0 0.0
      %778 = vmatpush.msra.mxu0 0.0
      %779 = vmatpush.msra.mxu0 %v739
      %780 = vmatpush.msra.mxu0 %v738
      %781 = vmatmul.f32.gmra.mxu0 %v424
      %v782 = vpop.f32.mrf.mxu0
      %v783 = vadd.f32 0.0, %v782
      %784 = vmatmul.f32.gmra.mxu0 %v427
      %v785 = vpop.f32.mrf.mxu0
      %v786 = vadd.f32 0.0, %v785
      %787 = vdwg.mxu0
      %788 = vmatpush.msra.mxu0 0.0
      %789 = vmatpush.msra.mxu0 0.0
      %790 = vmatpush.msra.mxu0 0.0
      %791 = vmatpush.msra.mxu0 0.0
      %792 = vmatpush.msra.mxu0 0.0
      %793 = vmatpush.msra.mxu0 0.0
      %794 = vmatpush.msra.mxu0 0.0
      %795 = vmatpush.msra.mxu0 0.0
      %796 = vmatpush.msra.mxu0 0.0
      %797 = vmatpush.msra.mxu0 0.0
      %798 = vmatpush.msra.mxu0 0.0
      %799 = vmatpush.msra.mxu0 0.0
      %800 = vmatpush.msra.mxu0 0.0
      %801 = vmatpush.msra.mxu0 0.0
      %802 = vmatpush.msra.mxu0 %v741
      %803 = vmatpush.msra.mxu0 %v740
      %804 = vmatmul.f32.gmra.mxu0 %v453
      %v805 = vpop.f32.mrf.mxu0
      %v806 = vadd.f32 0.0, %v805
      %807 = vmatmul.f32.gmra.mxu0 %v456
      %v808 = vpop.f32.mrf.mxu0
      %v809 = vadd.f32 0.0, %v808
      %810 = vdwg.mxu0
      %v812 = vsel %vm393, %v760, 0
      %v815 = vsel %vm393, %v763, 0
      %817 = vmatpush.msra.mxu0 0.0
      %818 = vmatpush.msra.mxu0 0.0
      %819 = vmatpush.msra.mxu0 0.0
      %820 = vmatpush.msra.mxu0 0.0
      %821 = vmatpush.msra.mxu0 0.0
      %822 = vmatpush.msra.mxu0 0.0
      %823 = vmatpush.msra.mxu0 0.0
      %824 = vmatpush.msra.mxu0 0.0
      %825 = vmatpush.msra.mxu0 0.0
      %826 = vmatpush.msra.mxu0 0.0
      %827 = vmatpush.msra.mxu0 0.0
      %828 = vmatpush.msra.mxu0 0.0
      %829 = vmatpush.msra.mxu0 0.0
      %830 = vmatpush.msra.mxu0 0.0
      %831 = vmatpush.msra.mxu0 %v382
      %832 = vmatpush.msra.mxu0 %v381
      %833 = vmatmul.f32.gmra.mxu0 %v812
      %v834 = vpop.f32.mrf.mxu0
      %v835 = vadd.f32 0.0, %v834
      %836 = vmatmul.f32.gmra.mxu0 %v815
      %v837 = vpop.f32.mrf.mxu0
      %v838 = vadd.f32 0.0, %v837
      %839 = vdwg.mxu0
      %v841 = vsel %vm393, %v783, 0
      %v844 = vsel %vm393, %v786, 0
      %846 = vmatpush.msra.mxu0 0.0
      %847 = vmatpush.msra.mxu0 0.0
      %848 = vmatpush.msra.mxu0 0.0
      %849 = vmatpush.msra.mxu0 0.0
      %850 = vmatpush.msra.mxu0 0.0
      %851 = vmatpush.msra.mxu0 0.0
      %852 = vmatpush.msra.mxu0 0.0
      %853 = vmatpush.msra.mxu0 0.0
      %854 = vmatpush.msra.mxu0 0.0
      %855 = vmatpush.msra.mxu0 0.0
      %856 = vmatpush.msra.mxu0 0.0
      %857 = vmatpush.msra.mxu0 0.0
      %858 = vmatpush.msra.mxu0 0.0
      %859 = vmatpush.msra.mxu0 0.0
      %860 = vmatpush.msra.mxu0 %v384
      %861 = vmatpush.msra.mxu0 %v383
      %862 = vmatmul.f32.gmra.mxu0 %v841
      %v863 = vpop.f32.mrf.mxu0
      %v864 = vadd.f32 0.0, %v863
      %865 = vmatmul.f32.gmra.mxu0 %v844
      %v866 = vpop.f32.mrf.mxu0
      %v867 = vadd.f32 0.0, %v866
      %868 = vdwg.mxu0
      %v870 = vsel %vm393, %v806, 0
      %v873 = vsel %vm393, %v809, 0
      %875 = vmatpush.msra.mxu0 0.0
      %876 = vmatpush.msra.mxu0 0.0
      %877 = vmatpush.msra.mxu0 0.0
      %878 = vmatpush.msra.mxu0 0.0
      %879 = vmatpush.msra.mxu0 0.0
      %880 = vmatpush.msra.mxu0 0.0
      %881 = vmatpush.msra.mxu0 0.0
      %882 = vmatpush.msra.mxu0 0.0
      %883 = vmatpush.msra.mxu0 0.0
      %884 = vmatpush.msra.mxu0 0.0
      %885 = vmatpush.msra.mxu0 0.0
      %886 = vmatpush.msra.mxu0 0.0
      %887 = vmatpush.msra.mxu0 0.0
      %888 = vmatpush.msra.mxu0 0.0
      %889 = vmatpush.msra.mxu0 %v386
      %890 = vmatpush.msra.mxu0 %v385
      %891 = vmatmul.f32.gmra.mxu0 %v870
      %v892 = vpop.f32.mrf.mxu0
      %v893 = vadd.f32 0.0, %v892
      %894 = vmatmul.f32.gmra.mxu0 %v873
      %v895 = vpop.f32.mrf.mxu0
      %v896 = vadd.f32 0.0, %v895
      %897 = vdwg.mxu0
      %v898 = vmul.f32 %v835, %v387
      %v899 = vmul.f32 %v838, %v388
      %v900 = vmul.f32 %v864, %v389
      %v901 = vmul.f32 %v867, %v390
      %v902 = vmul.f32 %v893, %v391
      %v903 = vmul.f32 %v896, %v392
      %v904 = vmul.f32 %v568, %v730
      %v905 = vmul.f32 %v569, %v731
      %v906 = vmul.f32 %v570, %v732
      %v907 = vmul.f32 %v571, %v733
      %v908 = vmul.f32 %v572, %v734
      %v909 = vmul.f32 %v573, %v735
      %v910 = vsub.f32 %v898, %v904
      %v911 = vsub.f32 %v899, %v905
      %v912 = vsub.f32 %v900, %v906
      %v913 = vsub.f32 %v901, %v907
      %v914 = vsub.f32 %v902, %v908
      %v915 = vsub.f32 %v903, %v909
      %v916 = vmul.f32 %v363, %v363
      %v917 = vmul.f32 %v364, %v364
      %v918 = vmul.f32 %v365, %v365
      %v919 = vmul.f32 %v366, %v366
      %v920 = vmul.f32 %v367, %v367
      %v921 = vmul.f32 %v368, %v368
      %922 = vmatpush.msra.mxu0 0.0
      %923 = vmatpush.msra.mxu0 0.0
      %924 = vmatpush.msra.mxu0 0.0
      %925 = vmatpush.msra.mxu0 0.0
      %926 = vmatpush.msra.mxu0 0.0
      %927 = vmatpush.msra.mxu0 0.0
      %928 = vmatpush.msra.mxu0 0.0
      %929 = vmatpush.msra.mxu0 0.0
      %930 = vmatpush.msra.mxu0 0.0
      %931 = vmatpush.msra.mxu0 0.0
      %932 = vmatpush.msra.mxu0 0.0
      %933 = vmatpush.msra.mxu0 0.0
      %934 = vmatpush.msra.mxu0 0.0
      %935 = vmatpush.msra.mxu0 0.0
      %936 = vmatpush.msra.mxu0 %v917
      %937 = vmatpush.msra.mxu0 %v916
      %938 = vmatmul.f32.gmra.mxu0 %v395
      %v939 = vpop.f32.mrf.mxu0
      %v940 = vadd.f32 0.0, %v939
      %941 = vmatmul.f32.gmra.mxu0 %v398
      %v942 = vpop.f32.mrf.mxu0
      %v943 = vadd.f32 0.0, %v942
      %944 = vdwg.mxu0
      %945 = vmatpush.msra.mxu0 0.0
      %946 = vmatpush.msra.mxu0 0.0
      %947 = vmatpush.msra.mxu0 0.0
      %948 = vmatpush.msra.mxu0 0.0
      %949 = vmatpush.msra.mxu0 0.0
      %950 = vmatpush.msra.mxu0 0.0
      %951 = vmatpush.msra.mxu0 0.0
      %952 = vmatpush.msra.mxu0 0.0
      %953 = vmatpush.msra.mxu0 0.0
      %954 = vmatpush.msra.mxu0 0.0
      %955 = vmatpush.msra.mxu0 0.0
      %956 = vmatpush.msra.mxu0 0.0
      %957 = vmatpush.msra.mxu0 0.0
      %958 = vmatpush.msra.mxu0 0.0
      %959 = vmatpush.msra.mxu0 %v919
      %960 = vmatpush.msra.mxu0 %v918
      %961 = vmatmul.f32.gmra.mxu0 %v424
      %v962 = vpop.f32.mrf.mxu0
      %v963 = vadd.f32 0.0, %v962
      %964 = vmatmul.f32.gmra.mxu0 %v427
      %v965 = vpop.f32.mrf.mxu0
      %v966 = vadd.f32 0.0, %v965
      %967 = vdwg.mxu0
      %968 = vmatpush.msra.mxu0 0.0
      %969 = vmatpush.msra.mxu0 0.0
      %970 = vmatpush.msra.mxu0 0.0
      %971 = vmatpush.msra.mxu0 0.0
      %972 = vmatpush.msra.mxu0 0.0
      %973 = vmatpush.msra.mxu0 0.0
      %974 = vmatpush.msra.mxu0 0.0
      %975 = vmatpush.msra.mxu0 0.0
      %976 = vmatpush.msra.mxu0 0.0
      %977 = vmatpush.msra.mxu0 0.0
      %978 = vmatpush.msra.mxu0 0.0
      %979 = vmatpush.msra.mxu0 0.0
      %980 = vmatpush.msra.mxu0 0.0
      %981 = vmatpush.msra.mxu0 0.0
      %982 = vmatpush.msra.mxu0 %v921
      %983 = vmatpush.msra.mxu0 %v920
      %984 = vmatmul.f32.gmra.mxu0 %v453
      %v985 = vpop.f32.mrf.mxu0
      %v986 = vadd.f32 0.0, %v985
      %987 = vmatmul.f32.gmra.mxu0 %v456
      %v988 = vpop.f32.mrf.mxu0
      %v989 = vadd.f32 0.0, %v988
      %990 = vdwg.mxu0
      %v992 = vsel %vm393, %v940, 0
      %v995 = vsel %vm393, %v943, 0
      %997 = vmatpush.msra.mxu0 0.0
      %998 = vmatpush.msra.mxu0 0.0
      %999 = vmatpush.msra.mxu0 0.0
      %1000 = vmatpush.msra.mxu0 0.0
      %1001 = vmatpush.msra.mxu0 0.0
      %1002 = vmatpush.msra.mxu0 0.0
      %1003 = vmatpush.msra.mxu0 0.0
      %1004 = vmatpush.msra.mxu0 0.0
      %1005 = vmatpush.msra.mxu0 0.0
      %1006 = vmatpush.msra.mxu0 0.0
      %1007 = vmatpush.msra.mxu0 0.0
      %1008 = vmatpush.msra.mxu0 0.0
      %1009 = vmatpush.msra.mxu0 0.0
      %1010 = vmatpush.msra.mxu0 0.0
      %1011 = vmatpush.msra.mxu0 %v382
      %1012 = vmatpush.msra.mxu0 %v381
      %1013 = vmatmul.f32.gmra.mxu0 %v992
      %v1014 = vpop.f32.mrf.mxu0
      %v1015 = vadd.f32 0.0, %v1014
      %1016 = vmatmul.f32.gmra.mxu0 %v995
      %v1017 = vpop.f32.mrf.mxu0
      %v1018 = vadd.f32 0.0, %v1017
      %1019 = vdwg.mxu0
      %v1021 = vsel %vm393, %v963, 0
      %v1024 = vsel %vm393, %v966, 0
      %1026 = vmatpush.msra.mxu0 0.0
      %1027 = vmatpush.msra.mxu0 0.0
      %1028 = vmatpush.msra.mxu0 0.0
      %1029 = vmatpush.msra.mxu0 0.0
      %1030 = vmatpush.msra.mxu0 0.0
      %1031 = vmatpush.msra.mxu0 0.0
      %1032 = vmatpush.msra.mxu0 0.0
      %1033 = vmatpush.msra.mxu0 0.0
      %1034 = vmatpush.msra.mxu0 0.0
      %1035 = vmatpush.msra.mxu0 0.0
      %1036 = vmatpush.msra.mxu0 0.0
      %1037 = vmatpush.msra.mxu0 0.0
      %1038 = vmatpush.msra.mxu0 0.0
      %1039 = vmatpush.msra.mxu0 0.0
      %1040 = vmatpush.msra.mxu0 %v384
      %1041 = vmatpush.msra.mxu0 %v383
      %1042 = vmatmul.f32.gmra.mxu0 %v1021
      %v1043 = vpop.f32.mrf.mxu0
      %v1044 = vadd.f32 0.0, %v1043
      %1045 = vmatmul.f32.gmra.mxu0 %v1024
      %v1046 = vpop.f32.mrf.mxu0
      %v1047 = vadd.f32 0.0, %v1046
      %1048 = vdwg.mxu0
      %v1050 = vsel %vm393, %v986, 0
      %v1053 = vsel %vm393, %v989, 0
      %1055 = vmatpush.msra.mxu0 0.0
      %1056 = vmatpush.msra.mxu0 0.0
      %1057 = vmatpush.msra.mxu0 0.0
      %1058 = vmatpush.msra.mxu0 0.0
      %1059 = vmatpush.msra.mxu0 0.0
      %1060 = vmatpush.msra.mxu0 0.0
      %1061 = vmatpush.msra.mxu0 0.0
      %1062 = vmatpush.msra.mxu0 0.0
      %1063 = vmatpush.msra.mxu0 0.0
      %1064 = vmatpush.msra.mxu0 0.0
      %1065 = vmatpush.msra.mxu0 0.0
      %1066 = vmatpush.msra.mxu0 0.0
      %1067 = vmatpush.msra.mxu0 0.0
      %1068 = vmatpush.msra.mxu0 0.0
      %1069 = vmatpush.msra.mxu0 %v386
      %1070 = vmatpush.msra.mxu0 %v385
      %1071 = vmatmul.f32.gmra.mxu0 %v1050
      %v1072 = vpop.f32.mrf.mxu0
      %v1073 = vadd.f32 0.0, %v1072
      %1074 = vmatmul.f32.gmra.mxu0 %v1053
      %v1075 = vpop.f32.mrf.mxu0
      %v1076 = vadd.f32 0.0, %v1075
      %1077 = vdwg.mxu0
      %v1078 = vmul.f32 %v1015, %v387
      %v1079 = vmul.f32 %v1018, %v388
      %v1080 = vmul.f32 %v1044, %v389
      %v1081 = vmul.f32 %v1047, %v390
      %v1082 = vmul.f32 %v1073, %v391
      %v1083 = vmul.f32 %v1076, %v392
      %v1084 = vmul.f32 %v568, %v568
      %v1085 = vmul.f32 %v569, %v569
      %v1086 = vmul.f32 %v570, %v570
      %v1087 = vmul.f32 %v571, %v571
      %v1088 = vmul.f32 %v572, %v572
      %v1089 = vmul.f32 %v573, %v573
      %v1090 = vsub.f32 %v1078, %v1084
      %v1091 = vsub.f32 %v1079, %v1085
      %v1092 = vsub.f32 %v1080, %v1086
      %v1093 = vsub.f32 %v1081, %v1087
      %v1094 = vsub.f32 %v1082, %v1088
      %v1095 = vsub.f32 %v1083, %v1089
      %1096 = vst.msk [vmem:[%s347] sm:$0xff] %vm393, %v568
      %1097 = vst.msk [vmem:[%s347 + $0x8] sm:$0xff] %vm393, %v569
      %1098 = vst.msk [vmem:[%s347 + $0x10] sm:$0xff] %vm393, %v570
      %1099 = vst.msk [vmem:[%s347 + $0x18] sm:$0xff] %vm393, %v571
      %1100 = vst.msk [vmem:[%s347 + $0x20] sm:$0xff] %vm393, %v572
      %1101 = vst.msk [vmem:[%s347 + $0x28] sm:$0xff] %vm393, %v573
      %1102 = vst.msk [vmem:[%s352] sm:$0xff] %vm393, %v730
      %1103 = vst.msk [vmem:[%s352 + $0x8] sm:$0xff] %vm393, %v731
      %1104 = vst.msk [vmem:[%s352 + $0x10] sm:$0xff] %vm393, %v732
      %1105 = vst.msk [vmem:[%s352 + $0x18] sm:$0xff] %vm393, %v733
      %1106 = vst.msk [vmem:[%s352 + $0x20] sm:$0xff] %vm393, %v734
      %1107 = vst.msk [vmem:[%s352 + $0x28] sm:$0xff] %vm393, %v735
      %1108 = vst.msk [vmem:[%s357] sm:$0xff] %vm393, %v910
      %1109 = vst.msk [vmem:[%s357 + $0x8] sm:$0xff] %vm393, %v911
      %1110 = vst.msk [vmem:[%s357 + $0x10] sm:$0xff] %vm393, %v912
      %1111 = vst.msk [vmem:[%s357 + $0x18] sm:$0xff] %vm393, %v913
      %1112 = vst.msk [vmem:[%s357 + $0x20] sm:$0xff] %vm393, %v914
      %1113 = vst.msk [vmem:[%s357 + $0x28] sm:$0xff] %vm393, %v915
      %1114 = vst.msk [vmem:[%s362] sm:$0xff] %vm393, %v1090
      %1115 = vst.msk [vmem:[%s362 + $0x8] sm:$0xff] %vm393, %v1091
      %1116 = vst.msk [vmem:[%s362 + $0x10] sm:$0xff] %vm393, %v1092
      %1117 = vst.msk [vmem:[%s362 + $0x18] sm:$0xff] %vm393, %v1093
      %1118 = vst.msk [vmem:[%s362 + $0x20] sm:$0xff] %vm393, %v1094
      %1119 = vst.msk [vmem:[%s362 + $0x28] sm:$0xff] %vm393, %v1095
      %p1120 = scmp.lt.s32.totalorder %s20, 1
      %s1121 = scalar_select %p1120, %s20, 1
      %s1122 = smul.addr %s1121, 6
      %s1123 = smul.addr %s1122, 8
      %s1124 = scalar_lea.vmem %s5, %s1123
      %p1125 = scmp.lt.s32.totalorder %s20, 1
      %s1126 = scalar_select %p1125, %s20, 1
      %s1127 = smul.addr %s1126, 6
      %s1128 = smul.addr %s1127, 8
      %s1129 = scalar_lea.vmem %s6, %s1128
      %p1130 = scmp.lt.s32.totalorder %s20, 1
      %s1131 = scalar_select %p1130, %s20, 1
      %s1132 = smul.addr %s1131, 6
      %s1133 = smul.addr %s1132, 8
      %s1134 = scalar_lea.vmem %s7, %s1133
      %p1135 = scmp.lt.s32.totalorder %s20, 1
      %s1136 = scalar_select %p1135, %s20, 1
      %s1137 = smul.addr %s1136, 6
      %s1138 = smul.addr %s1137, 8
      %s1139 = scalar_lea.vmem %s8, %s1138
      // Predicated region
      $region41: #{dgf_forward.7} parent=39 // pred_check
        %p1140 = pneg %p153
      $region42: #{dgf_forward.7} parent=39 // pred_check_branch
        %1142 = sbr.rel (%p1140) target = $region44
      $region43: #{dgf_forward.7} parent=39 // pred_region
        _
      $region44: #{dgf_forward.7} parent=39 // pred_fallthru
        _
      // Predicated region
      $region45: #{dgf_forward.7} parent=39 // pred_check
        %p1143 = pneg %p179
      $region46: #{dgf_forward.7} parent=39 // pred_check_branch
        %1145 = sbr.rel (%p1143) target = $region48
      $region47: #{dgf_forward.7} parent=39 // pred_region
        _
      $region48: #{dgf_forward.7} parent=39 // pred_fallthru
        _
      // Predicated region
      $region49: #{dgf_forward.7} parent=39 // pred_check
        %p1146 = pneg %p205
      $region50: #{dgf_forward.7} parent=39 // pred_check_branch
        %1148 = sbr.rel (%p1146) target = $region52
      $region51: #{dgf_forward.7} parent=39 // pred_region
        _
      $region52: #{dgf_forward.7} parent=39 // pred_fallthru
        _
      // Predicated region
      $region53: #{dgf_forward.7} parent=39 // pred_check
        %p1149 = pneg %p231
      $region54: #{dgf_forward.7} parent=39 // pred_check_branch
        %1151 = sbr.rel (%p1149) target = $region56
      $region55: #{dgf_forward.7} parent=39 // pred_region
        _
      $region56: #{dgf_forward.7} parent=39 // pred_fallthru
        _
    $region40: #{dgf_forward.7} parent=5 // pred_fallthru
      _
    %p1152 = scmp.le.s32.totalorder 2, %s15
    // Predicated region
    $region57: #{dgf_forward.7} parent=5 // pred_check
      %p1153 = pneg %p1152
    $region58: #{dgf_forward.7} parent=5 // pred_check_branch
      %1155 = sbr.rel (%p1153) target = $region60
    $region59: #{dgf_forward.7} parent=5 // pred_region
      %s1156 = ssub.s32 %s15, 2
      // Predicated region
      $region61: #{dgf_forward.7} parent=59 // pred_check
        %p1157 = pneg %p159
      $region62: #{dgf_forward.7} parent=59 // pred_check_branch
        %1159 = sbr.rel (%p1157) target = $region64
      $region63: #{dgf_forward.7} parent=59 // pred_region
        %p1160 = scmp.lt.s32.totalorder %s21, 1
        %s1161 = scalar_select %p1160, %s21, 1
        %s1162 = smul.addr %s1161, 6
        %s1163 = smul.addr %s1162, 8
        %s1164 = scalar_lea.vmem %s5, %s1163
      $region64: #{dgf_forward.7} parent=59 // pred_fallthru
        _
      // Predicated region
      $region65: #{dgf_forward.7} parent=59 // pred_check
        %p1165 = pneg %p185
      $region66: #{dgf_forward.7} parent=59 // pred_check_branch
        %1167 = sbr.rel (%p1165) target = $region68
      $region67: #{dgf_forward.7} parent=59 // pred_region
        %p1168 = scmp.lt.s32.totalorder %s21, 1
        %s1169 = scalar_select %p1168, %s21, 1
        %s1170 = smul.addr %s1169, 6
        %s1171 = smul.addr %s1170, 8
        %s1172 = scalar_lea.vmem %s6, %s1171
      $region68: #{dgf_forward.7} parent=59 // pred_fallthru
        _
      // Predicated region
      $region69: #{dgf_forward.7} parent=59 // pred_check
        %p1173 = pneg %p211
      $region70: #{dgf_forward.7} parent=59 // pred_check_branch
        %1175 = sbr.rel (%p1173) target = $region72
      $region71: #{dgf_forward.7} parent=59 // pred_region
        %p1176 = scmp.lt.s32.totalorder %s21, 1
        %s1177 = scalar_select %p1176, %s21, 1
        %s1178 = smul.addr %s1177, 6
        %s1179 = smul.addr %s1178, 8
        %s1180 = scalar_lea.vmem %s7, %s1179
      $region72: #{dgf_forward.7} parent=59 // pred_fallthru
        _
      // Predicated region
      $region73: #{dgf_forward.7} parent=59 // pred_check
        %p1181 = pneg %p237
      $region74: #{dgf_forward.7} parent=59 // pred_check_branch
        %1183 = sbr.rel (%p1181) target = $region76
      $region75: #{dgf_forward.7} parent=59 // pred_region
        %p1184 = scmp.lt.s32.totalorder %s21, 1
        %s1185 = scalar_select %p1184, %s21, 1
        %s1186 = smul.addr %s1185, 6
        %s1187 = smul.addr %s1186, 8
        %s1188 = scalar_lea.vmem %s8, %s1187
      $region76: #{dgf_forward.7} parent=59 // pred_fallthru
        _
    $region60: #{dgf_forward.7} parent=5 // pred_fallthru
      _
  $region6: #{dgf_forward.7} parent=0 // loop_footer
    %s19 = sadd.s32 1, %s15
  $region7: #{dgf_forward.7} parent=0 // loop_footer_branch
    %14 = sbr.rel target = $region3
  $region8: #{dgf_forward.7} parent=0 // loop_exit
    _

// kernel: dgf_forward.8
$region0: #{dgf_forward.8}
  #allocation0 [shape = 'u32[]', space=smem, size = 0x4, offset = 0x4, fixed_abs, tag = 'smem constant byte address 0x4 - core index']
  #allocation1 [shape = 'u32[72,128]{1,0:T(1,128)}', space=vmem, size = 0x9000, scoped, tag = 'internal scratch']
  %s0 = inlined_call_operand.vmem [shape: f32[2,3,256], index: 0, kind: input, shape index: {}]
  %s1 = inlined_call_operand.vmem [shape: f32[2,3,256], index: 1, kind: input, shape index: {}]
  %s2 = inlined_call_operand.vmem [shape: f32[2,3,256], index: 2, kind: input, shape index: {}]
  %s3 = inlined_call_operand.vmem [shape: f32[2,3,256], index: 3, kind: input, shape index: {}]
  %s4 = inlined_call_operand.vmem [shape: f32[32,3], index: 4, kind: input, shape index: {}]
  %s5 = inlined_call_operand.vmem [shape: f32[32,3], index: 5, kind: input, shape index: {}]
  %s6 = inlined_call_operand.vmem [shape: f32[32,1], index: 6, kind: input, shape index: {}]
  %s7 = inlined_call_operand.vmem [shape: f32[32,1], index: 7, kind: input, shape index: {}]
  %s8 = inlined_call_operand.vmem [shape: f32[32,32], index: 8, kind: input, shape index: {}]
  %s9 = inlined_call_operand.vmem [shape: f32[32,1], index: 9, kind: input, shape index: {}]
  %s10 = inlined_call_operand.vmem [shape: f32[32,1], index: 10, kind: input, shape index: {}]
  %s11 = inlined_call_operand.vmem [shape: f32[3,32], index: 11, kind: input, shape index: {}]
  %s12 = inlined_call_operand.vmem [shape: f32[2,3,256], index: 12, kind: output, shape index: {0}]
  %s13 = inlined_call_operand.vmem [shape: f32[2,3,256], index: 13, kind: output, shape index: {1}]
  %14 = xla_tuple %s12, %s13
  %s15 = sld [smem:[#allocation0]]
  $region89: #{dgf_forward.8} parent=0
    _
  %s17 = ssub.s32 1, %s15
  %s18 = scalar_select 0, %s17, %s15
  loop: start=0, step=1, limit=4
  $region2: #{dgf_forward.8} parent=0 // loop_pre_header
    _
  $region3: #{dgf_forward.8} parent=0 // loop_header
    %s20 = sphi 0, %s24
    %p21 = scmp.ge.s32.totalorder %s20, 4
    %s27 = sphi 0, %s39
    %s28 = sphi 0, %s35
    %s29 = sphi 0, %s27
    %s30 = sphi 0, %s28
    %s31 = sphi 0, %s29
    %s32 = sphi 0, %s30
    %s44 = sphi 0, %s46
    %s47 = sphi 0, %s44
    %s48 = sphi 0, %s47
    %s64 = sphi 0, %s48
    %s72 = sphi 0, %s74
    %s75 = sphi 0, %s72
    %s76 = sphi 0, %s75
    %s92 = sphi 0, %s76
    %s100 = sphi 0, %s102
    %s103 = sphi 0, %s100
    %s104 = sphi 0, %s103
    %s120 = sphi 0, %s104
    %s128 = sphi 0, %s130
    %s131 = sphi 0, %s128
    %s132 = sphi 0, %s131
    %s148 = sphi 0, %s132
    %s152 = sphi 0, %s152
    %s154 = sphi 0, %s152
    %s155 = sphi 0, %s154
    %s169 = sphi 0, %s155
    %s173 = sphi 0, %s173
    %s175 = sphi 0, %s173
    %s176 = sphi 0, %s175
    %s190 = sphi 0, %s176
    %s194 = sphi 0, %s194
    %s196 = sphi 0, %s194
    %s197 = sphi 0, %s196
    %s211 = sphi 0, %s197
    %s215 = sphi 0, %s215
    %s217 = sphi 0, %s215
    %s218 = sphi 0, %s217
    %s232 = sphi 0, %s218
    %s236 = sphi 0, %s236
    %s238 = sphi 0, %s236
    %s239 = sphi 0, %s238
    %s253 = sphi 0, %s239
    %s257 = sphi 0, %s257
    %s259 = sphi 0, %s257
    %s260 = sphi 0, %s259
    %s274 = sphi 0, %s260
    %s278 = sphi 0, %s278
    %s280 = sphi 0, %s278
    %s281 = sphi 0, %s280
    %s295 = sphi 0, %s281
    %s299 = sphi 0, %s299
    %s301 = sphi 0, %s299
    %s302 = sphi 0, %s301
    %s316 = sphi 0, %s302
    %s324 = sphi 0, %s326
    %s327 = sphi 0, %s324
    %s328 = sphi 0, %s327
    %s344 = sphi 0, %s328
    %s352 = sphi 0, %s354
    %s355 = sphi 0, %s352
    %s356 = sphi 0, %s355
    %s372 = sphi 0, %s356
  $region4: #{dgf_forward.8} parent=0 // loop_header_branch
    %23 = sbr.rel (%p21) target = $region8
  $region5: #{dgf_forward.8} parent=0 // loop_body
    %s25 = ssub.s32 %s20, 1
    %s26 = ssub.s32 %s20, 2
    %s33 = sadd.s32 1, %s28
    %p34 = scmp.ge.s32.totalorder %s33, 1
    %s35 = scalar_select %p34, 0, %s33
    %s36 = sadd.s32 1, %s27
    %s37 = scalar_select %p34, %s36, %s27
    %p38 = scmp.ge.s32.totalorder %s37, 2
    %s39 = scalar_select %p38, 0, %s37
    %s40 = ssub.s32 %s27, %s39
    %s41 = ssub.s32 %s28, %s35
    %s42 = sor.u32 %s40, %s41
    %p43 = scmp.eq.s32.totalorder %s42, 0
    %s45 = sadd.s32 %s44, 1
    %s46 = scalar_select %p43, %s44, %s45
    %p49 = pneg %p43
    %p50 = scmp.eq.s32.totalorder %s20, 1
    %p51 = por %p49, %p50
    %p52 = scmp.ne.s32.totalorder %s44, %s47
    %p53 = scmp.eq.s32.totalorder %s20, 0
    %p54 = por %p52, %p53
    %p55 = scmp.ne.s32.totalorder %s44, %s47
    %p56 = scmp.eq.s32.totalorder %s25, 1
    %p57 = por %p55, %p56
    %p58 = scmp.ne.s32.totalorder %s47, %s48
    %p59 = scmp.eq.s32.totalorder %s25, 0
    %p60 = por %p58, %p59
    %p61 = scmp.ne.s32.totalorder %s47, %s48
    %p62 = scmp.eq.s32.totalorder %s26, 1
    %p63 = por %p61, %p62
    %p65 = scmp.ne.s32.totalorder %s48, %s64
    %p66 = scmp.eq.s32.totalorder %s26, 0
    %p67 = por %p65, %p66
    %s68 = ssub.s32 %s27, %s39
    %s69 = ssub.s32 %s28, %s35
    %s70 = sor.u32 %s68, %s69
    %p71 = scmp.eq.s32.totalorder %s70, 0
    %s73 = sadd.s32 %s72, 1
    %s74 = scalar_select %p71, %s72, %s73
    %p77 = pneg %p71
    %p78 = scmp.eq.s32.totalorder %s20, 1
    %p79 = por %p77, %p78
    %p80 = scmp.ne.s32.totalorder %s72, %s75
    %p81 = scmp.eq.s32.totalorder %s20, 0
    %p82 = por %p80, %p81
    %p83 = scmp.ne.s32.totalorder %s72, %s75
    %p84 = scmp.eq.s32.totalorder %s25, 1
    %p85 = por %p83, %p84
    %p86 = scmp.ne.s32.totalorder %s75, %s76
    %p87 = scmp.eq.s32.totalorder %s25, 0
    %p88 = por %p86, %p87
    %p89 = scmp.ne.s32.totalorder %s75, %s76
    %p90 = scmp.eq.s32.totalorder %s26, 1
    %p91 = por %p89, %p90
    %p93 = scmp.ne.s32.totalorder %s76, %s92
    %p94 = scmp.eq.s32.totalorder %s26, 0
    %p95 = por %p93, %p94
    %s96 = ssub.s32 %s27, %s39
    %s97 = ssub.s32 %s28, %s35
    %s98 = sor.u32 %s96, %s97
    %p99 = scmp.eq.s32.totalorder %s98, 0
    %s101 = sadd.s32 %s100, 1
    %s102 = scalar_select %p99, %s100, %s101
    %p105 = pneg %p99
    %p106 = scmp.eq.s32.totalorder %s20, 1
    %p107 = por %p105, %p106
    %p108 = scmp.ne.s32.totalorder %s100, %s103
    %p109 = scmp.eq.s32.totalorder %s20, 0
    %p110 = por %p108, %p109
    %p111 = scmp.ne.s32.totalorder %s100, %s103
    %p112 = scmp.eq.s32.totalorder %s25, 1
    %p113 = por %p111, %p112
    %p114 = scmp.ne.s32.totalorder %s103, %s104
    %p115 = scmp.eq.s32.totalorder %s25, 0
    %p116 = por %p114, %p115
    %p117 = scmp.ne.s32.totalorder %s103, %s104
    %p118 = scmp.eq.s32.totalorder %s26, 1
    %p119 = por %p117, %p118
    %p121 = scmp.ne.s32.totalorder %s104, %s120
    %p122 = scmp.eq.s32.totalorder %s26, 0
    %p123 = por %p121, %p122
    %s124 = ssub.s32 %s27, %s39
    %s125 = ssub.s32 %s28, %s35
    %s126 = sor.u32 %s124, %s125
    %p127 = scmp.eq.s32.totalorder %s126, 0
    %s129 = sadd.s32 %s128, 1
    %s130 = scalar_select %p127, %s128, %s129
    %p133 = pneg %p127
    %p134 = scmp.eq.s32.totalorder %s20, 1
    %p135 = por %p133, %p134
    %p136 = scmp.ne.s32.totalorder %s128, %s131
    %p137 = scmp.eq.s32.totalorder %s20, 0
    %p138 = por %p136, %p137
    %p139 = scmp.ne.s32.totalorder %s128, %s131
    %p140 = scmp.eq.s32.totalorder %s25, 1
    %p141 = por %p139, %p140
    %p142 = scmp.ne.s32.totalorder %s131, %s132
    %p143 = scmp.eq.s32.totalorder %s25, 0
    %p144 = por %p142, %p143
    %p145 = scmp.ne.s32.totalorder %s131, %s132
    %p146 = scmp.eq.s32.totalorder %s26, 1
    %p147 = por %p145, %p146
    %p149 = scmp.ne.s32.totalorder %s132, %s148
    %p150 = scmp.eq.s32.totalorder %s26, 0
    %p151 = por %p149, %p150
    %s153 = sadd.s32 %s152, 1
    %p156 = scmp.eq.s32.totalorder %s20, 1
    %p157 = scmp.ne.s32.totalorder %s152, %s154
    %p158 = scmp.eq.s32.totalorder %s20, 0
    %p159 = por %p157, %p158
    %p160 = scmp.ne.s32.totalorder %s152, %s154
    %p161 = scmp.eq.s32.totalorder %s25, 1
    %p162 = por %p160, %p161
    %p163 = scmp.ne.s32.totalorder %s154, %s155
    %p164 = scmp.eq.s32.totalorder %s25, 0
    %p165 = por %p163, %p164
    %p166 = scmp.ne.s32.totalorder %s154, %s155
    %p167 = scmp.eq.s32.totalorder %s26, 1
    %p168 = por %p166, %p167
    %p170 = scmp.ne.s32.totalorder %s155, %s169
    %p171 = scmp.eq.s32.totalorder %s26, 0
    %p172 = por %p170, %p171
    %s174 = sadd.s32 %s173, 1
    %p177 = scmp.eq.s32.totalorder %s20, 1
    %p178 = scmp.ne.s32.totalorder %s173, %s175
    %p179 = scmp.eq.s32.totalorder %s20, 0
    %p180 = por %p178, %p179
    %p181 = scmp.ne.s32.totalorder %s173, %s175
    %p182 = scmp.eq.s32.totalorder %s25, 1
    %p183 = por %p181, %p182
    %p184 = scmp.ne.s32.totalorder %s175, %s176
    %p185 = scmp.eq.s32.totalorder %s25, 0
    %p186 = por %p184, %p185
    %p187 = scmp.ne.s32.totalorder %s175, %s176
    %p188 = scmp.eq.s32.totalorder %s26, 1
    %p189 = por %p187, %p188
    %p191 = scmp.ne.s32.totalorder %s176, %s190
    %p192 = scmp.eq.s32.totalorder %s26, 0
    %p193 = por %p191, %p192
    %s195 = sadd.s32 %s194, 1
    %p198 = scmp.eq.s32.totalorder %s20, 1
    %p199 = scmp.ne.s32.totalorder %s194, %s196
    %p200 = scmp.eq.s32.totalorder %s20, 0
    %p201 = por %p199, %p200
    %p202 = scmp.ne.s32.totalorder %s194, %s196
    %p203 = scmp.eq.s32.totalorder %s25, 1
    %p204 = por %p202, %p203
    %p205 = scmp.ne.s32.totalorder %s196, %s197
    %p206 = scmp.eq.s32.totalorder %s25, 0
    %p207 = por %p205, %p206
    %p208 = scmp.ne.s32.totalorder %s196, %s197
    %p209 = scmp.eq.s32.totalorder %s26, 1
    %p210 = por %p208, %p209
    %p212 = scmp.ne.s32.totalorder %s197, %s211
    %p213 = scmp.eq.s32.totalorder %s26, 0
    %p214 = por %p212, %p213
    %s216 = sadd.s32 %s215, 1
    %p219 = scmp.eq.s32.totalorder %s20, 1
    %p220 = scmp.ne.s32.totalorder %s215, %s217
    %p221 = scmp.eq.s32.totalorder %s20, 0
    %p222 = por %p220, %p221
    %p223 = scmp.ne.s32.totalorder %s215, %s217
    %p224 = scmp.eq.s32.totalorder %s25, 1
    %p225 = por %p223, %p224
    %p226 = scmp.ne.s32.totalorder %s217, %s218
    %p227 = scmp.eq.s32.totalorder %s25, 0
    %p228 = por %p226, %p227
    %p229 = scmp.ne.s32.totalorder %s217, %s218
    %p230 = scmp.eq.s32.totalorder %s26, 1
    %p231 = por %p229, %p230
    %p233 = scmp.ne.s32.totalorder %s218, %s232
    %p234 = scmp.eq.s32.totalorder %s26, 0
    %p235 = por %p233, %p234
    %s237 = sadd.s32 %s236, 1
    %p240 = scmp.eq.s32.totalorder %s20, 1
    %p241 = scmp.ne.s32.totalorder %s236, %s238
    %p242 = scmp.eq.s32.totalorder %s20, 0
    %p243 = por %p241, %p242
    %p244 = scmp.ne.s32.totalorder %s236, %s238
    %p245 = scmp.eq.s32.totalorder %s25, 1
    %p246 = por %p244, %p245
    %p247 = scmp.ne.s32.totalorder %s238, %s239
    %p248 = scmp.eq.s32.totalorder %s25, 0
    %p249 = por %p247, %p248
    %p250 = scmp.ne.s32.totalorder %s238, %s239
    %p251 = scmp.eq.s32.totalorder %s26, 1
    %p252 = por %p250, %p251
    %p254 = scmp.ne.s32.totalorder %s239, %s253
    %p255 = scmp.eq.s32.totalorder %s26, 0
    %p256 = por %p254, %p255
    %s258 = sadd.s32 %s257, 1
    %p261 = scmp.eq.s32.totalorder %s20, 1
    %p262 = scmp.ne.s32.totalorder %s257, %s259
    %p263 = scmp.eq.s32.totalorder %s20, 0
    %p264 = por %p262, %p263
    %p265 = scmp.ne.s32.totalorder %s257, %s259
    %p266 = scmp.eq.s32.totalorder %s25, 1
    %p267 = por %p265, %p266
    %p268 = scmp.ne.s32.totalorder %s259, %s260
    %p269 = scmp.eq.s32.totalorder %s25, 0
    %p270 = por %p268, %p269
    %p271 = scmp.ne.s32.totalorder %s259, %s260
    %p272 = scmp.eq.s32.totalorder %s26, 1
    %p273 = por %p271, %p272
    %p275 = scmp.ne.s32.totalorder %s260, %s274
    %p276 = scmp.eq.s32.totalorder %s26, 0
    %p277 = por %p275, %p276
    %s279 = sadd.s32 %s278, 1
    %p282 = scmp.eq.s32.totalorder %s20, 1
    %p283 = scmp.ne.s32.totalorder %s278, %s280
    %p284 = scmp.eq.s32.totalorder %s20, 0
    %p285 = por %p283, %p284
    %p286 = scmp.ne.s32.totalorder %s278, %s280
    %p287 = scmp.eq.s32.totalorder %s25, 1
    %p288 = por %p286, %p287
    %p289 = scmp.ne.s32.totalorder %s280, %s281
    %p290 = scmp.eq.s32.totalorder %s25, 0
    %p291 = por %p289, %p290
    %p292 = scmp.ne.s32.totalorder %s280, %s281
    %p293 = scmp.eq.s32.totalorder %s26, 1
    %p294 = por %p292, %p293
    %p296 = scmp.ne.s32.totalorder %s281, %s295
    %p297 = scmp.eq.s32.totalorder %s26, 0
    %p298 = por %p296, %p297
    %s300 = sadd.s32 %s299, 1
    %p303 = scmp.eq.s32.totalorder %s20, 1
    %p304 = scmp.ne.s32.totalorder %s299, %s301
    %p305 = scmp.eq.s32.totalorder %s20, 0
    %p306 = por %p304, %p305
    %p307 = scmp.ne.s32.totalorder %s299, %s301
    %p308 = scmp.eq.s32.totalorder %s25, 1
    %p309 = por %p307, %p308
    %p310 = scmp.ne.s32.totalorder %s301, %s302
    %p311 = scmp.eq.s32.totalorder %s25, 0
    %p312 = por %p310, %p311
    %p313 = scmp.ne.s32.totalorder %s301, %s302
    %p314 = scmp.eq.s32.totalorder %s26, 1
    %p315 = por %p313, %p314
    %p317 = scmp.ne.s32.totalorder %s302, %s316
    %p318 = scmp.eq.s32.totalorder %s26, 0
    %p319 = por %p317, %p318
    %s320 = ssub.s32 %s27, %s39
    %s321 = ssub.s32 %s28, %s35
    %s322 = sor.u32 %s320, %s321
    %p323 = scmp.eq.s32.totalorder %s322, 0
    %s325 = sadd.s32 %s324, 1
    %s326 = scalar_select %p323, %s324, %s325
    %p329 = pneg %p323
    %p330 = scmp.eq.s32.totalorder %s20, 1
    %p331 = por %p329, %p330
    %p332 = scmp.ne.s32.totalorder %s324, %s327
    %p333 = scmp.eq.s32.totalorder %s20, 0
    %p334 = por %p332, %p333
    %p335 = scmp.ne.s32.totalorder %s324, %s327
    %p336 = scmp.eq.s32.totalorder %s25, 1
    %p337 = por %p335, %p336
    %p338 = scmp.ne.s32.totalorder %s327, %s328
    %p339 = scmp.eq.s32.totalorder %s25, 0
    %p340 = por %p338, %p339
    %p341 = scmp.ne.s32.totalorder %s327, %s328
    %p342 = scmp.eq.s32.totalorder %s26, 1
    %p343 = por %p341, %p342
    %p345 = scmp.ne.s32.totalorder %s328, %s344
    %p346 = scmp.eq.s32.totalorder %s26, 0
    %p347 = por %p345, %p346
    %s348 = ssub.s32 %s27, %s39
    %s349 = ssub.s32 %s28, %s35
    %s350 = sor.u32 %s348, %s349
    %p351 = scmp.eq.s32.totalorder %s350, 0
    %s353 = sadd.s32 %s352, 1
    %s354 = scalar_select %p351, %s352, %s353
    %p357 = pneg %p351
    %p358 = scmp.eq.s32.totalorder %s20, 1
    %p359 = por %p357, %p358
    %p360 = scmp.ne.s32.totalorder %s352, %s355
    %p361 = scmp.eq.s32.totalorder %s20, 0
    %p362 = por %p360, %p361
    %p363 = scmp.ne.s32.totalorder %s352, %s355
    %p364 = scmp.eq.s32.totalorder %s25, 1
    %p365 = por %p363, %p364
    %p366 = scmp.ne.s32.totalorder %s355, %s356
    %p367 = scmp.eq.s32.totalorder %s25, 0
    %p368 = por %p366, %p367
    %p369 = scmp.ne.s32.totalorder %s355, %s356
    %p370 = scmp.eq.s32.totalorder %s26, 1
    %p371 = por %p369, %p370
    %p373 = scmp.ne.s32.totalorder %s356, %s372
    %p374 = scmp.eq.s32.totalorder %s26, 0
    %p375 = por %p373, %p374
    %p376 = scmp.le.s32.totalorder 1, %s20
    %p377 = scmp.lt.s32.totalorder %s20, 3
    %p378 = pnand %p376, %p377
    %p379 = pneg %p378
    // Predicated region
    $region9: #{dgf_forward.8} parent=5 // pred_check
      _
    $region10: #{dgf_forward.8} parent=5 // pred_check_branch
      %381 = sbr.rel (%p378) target = $region12
    $region11: #{dgf_forward.8} parent=5 // pred_region
      %s382 = ssub.s32 %s20, 1
      // Predicated region
      $region13: #{dgf_forward.8} parent=11 // pred_check
        %p383 = pneg %p165
      $region14: #{dgf_forward.8} parent=11 // pred_check_branch
        %385 = sbr.rel (%p383) target = $region16
      $region15: #{dgf_forward.8} parent=11 // pred_region
        _
      $region16: #{dgf_forward.8} parent=11 // pred_fallthru
        _
      // Predicated region
      $region17: #{dgf_forward.8} parent=11 // pred_check
        %p386 = pneg %p186
      $region18: #{dgf_forward.8} parent=11 // pred_check_branch
        %388 = sbr.rel (%p386) target = $region20
      $region19: #{dgf_forward.8} parent=11 // pred_region
        _
      $region20: #{dgf_forward.8} parent=11 // pred_fallthru
        _
      // Predicated region
      $region21: #{dgf_forward.8} parent=11 // pred_check
        %p389 = pneg %p207
      $region22: #{dgf_forward.8} parent=11 // pred_check_branch
        %391 = sbr.rel (%p389) target = $region24
      $region23: #{dgf_forward.8} parent=11 // pred_region
        _
      $region24: #{dgf_forward.8} parent=11 // pred_fallthru
        _
      // Predicated region
      $region25: #{dgf_forward.8} parent=11 // pred_check
        %p392 = pneg %p228
      $region26: #{dgf_forward.8} parent=11 // pred_check_branch
        %394 = sbr.rel (%p392) target = $region28
      $region27: #{dgf_forward.8} parent=11 // pred_region
        _
      $region28: #{dgf_forward.8} parent=11 // pred_fallthru
        _
      // Predicated region
      $region29: #{dgf_forward.8} parent=11 // pred_check
        %p395 = pneg %p249
      $region30: #{dgf_forward.8} parent=11 // pred_check_branch
        %397 = sbr.rel (%p395) target = $region32
      $region31: #{dgf_forward.8} parent=11 // pred_region
        _
      $region32: #{dgf_forward.8} parent=11 // pred_fallthru
        _
      // Predicated region
      $region33: #{dgf_forward.8} parent=11 // pred_check
        %p398 = pneg %p270
      $region34: #{dgf_forward.8} parent=11 // pred_check_branch
        %400 = sbr.rel (%p398) target = $region36
      $region35: #{dgf_forward.8} parent=11 // pred_region
        _
      $region36: #{dgf_forward.8} parent=11 // pred_fallthru
        _
      // Predicated region
      $region37: #{dgf_forward.8} parent=11 // pred_check
        %p401 = pneg %p291
      $region38: #{dgf_forward.8} parent=11 // pred_check_branch
        %403 = sbr.rel (%p401) target = $region40
      $region39: #{dgf_forward.8} parent=11 // pred_region
        _
      $region40: #{dgf_forward.8} parent=11 // pred_fallthru
        _
      // Predicated region
      $region41: #{dgf_forward.8} parent=11 // pred_check
        %p404 = pneg %p312
      $region42: #{dgf_forward.8} parent=11 // pred_check_branch
        %406 = sbr.rel (%p404) target = $region44
      $region43: #{dgf_forward.8} parent=11 // pred_region
        _
      $region44: #{dgf_forward.8} parent=11 // pred_fallthru
        _
    $region12: #{dgf_forward.8} parent=5 // pred_fallthru
      _
    %p407 = scmp.lt.s32.totalorder %s20, 2
    // Predicated region
    $region45: #{dgf_forward.8} parent=5 // pred_check
      %p408 = pneg %p407
    $region46: #{dgf_forward.8} parent=5 // pred_check_branch
      %410 = sbr.rel (%p408) target = $region48
    $region47: #{dgf_forward.8} parent=5 // pred_region
      // Predicated region
      $region49: #{dgf_forward.8} parent=47 // pred_check
        %p411 = pneg %p54
      $region50: #{dgf_forward.8} parent=47 // pred_check_branch
        %413 = sbr.rel (%p411) target = $region52
      $region51: #{dgf_forward.8} parent=47 // pred_region
        %s414 = smul.u32 2, %s28
        %p415 = scmp.lt.s32.totalorder %s27, 1
        %s416 = scalar_select %p415, %s27, 1
        %p417 = scmp.lt.s32.totalorder %s414, 1
        %s418 = scalar_select %p417, %s414, 1
        %s419 = smul.addr %s416, 2
        %s420 = sadd.s32 %s418, %s419
        %s421 = smul.addr %s420, 4
        %s422 = scalar_lea.vmem %s0, %s421
        %s423 = smul.u32 2, %s28
      $region52: #{dgf_forward.8} parent=47 // pred_fallthru
        _
      // Predicated region
      $region53: #{dgf_forward.8} parent=47 // pred_check
        %p424 = pneg %p82
      $region54: #{dgf_forward.8} parent=47 // pred_check_branch
        %426 = sbr.rel (%p424) target = $region56
      $region55: #{dgf_forward.8} parent=47 // pred_region
        %s427 = smul.u32 2, %s28
        %p428 = scmp.lt.s32.totalorder %s27, 1
        %s429 = scalar_select %p428, %s27, 1
        %p430 = scmp.lt.s32.totalorder %s427, 1
        %s431 = scalar_select %p430, %s427, 1
        %s432 = smul.addr %s429, 2
        %s433 = sadd.s32 %s431, %s432
        %s434 = smul.addr %s433, 4
        %s435 = scalar_lea.vmem %s1, %s434
        %s436 = smul.u32 2, %s28
      $region56: #{dgf_forward.8} parent=47 // pred_fallthru
        _
      // Predicated region
      $region57: #{dgf_forward.8} parent=47 // pred_check
        %p437 = pneg %p110
      $region58: #{dgf_forward.8} parent=47 // pred_check_branch
        %439 = sbr.rel (%p437) target = $region60
      $region59: #{dgf_forward.8} parent=47 // pred_region
        %s440 = smul.u32 2, %s28
        %p441 = scmp.lt.s32.totalorder %s27, 1
        %s442 = scalar_select %p441, %s27, 1
        %p443 = scmp.lt.s32.totalorder %s440, 1
        %s444 = scalar_select %p443, %s440, 1
        %s445 = smul.addr %s442, 2
        %s446 = sadd.s32 %s444, %s445
        %s447 = smul.addr %s446, 4
        %s448 = scalar_lea.vmem %s2, %s447
        %s449 = smul.u32 2, %s28
      $region60: #{dgf_forward.8} parent=47 // pred_fallthru
        _
      // Predicated region
      $region61: #{dgf_forward.8} parent=47 // pred_check
        %p450 = pneg %p138
      $region62: #{dgf_forward.8} parent=47 // pred_check_branch
        %452 = sbr.rel (%p450) target = $region64
      $region63: #{dgf_forward.8} parent=47 // pred_region
        %s453 = smul.u32 2, %s28
        %p454 = scmp.lt.s32.totalorder %s27, 1
        %s455 = scalar_select %p454, %s27, 1
        %p456 = scmp.lt.s32.totalorder %s453, 1
        %s457 = scalar_select %p456, %s453, 1
        %s458 = smul.addr %s455, 2
        %s459 = sadd.s32 %s457, %s458
        %s460 = smul.addr %s459, 4
        %s461 = scalar_lea.vmem %s3, %s460
        %s462 = smul.u32 2, %s28
      $region64: #{dgf_forward.8} parent=47 // pred_fallthru
        _
    $region48: #{dgf_forward.8} parent=5 // pred_fallthru
      _
    %p463 = scmp.le.s32.totalorder 1, %s20
    %p464 = scmp.lt.s32.totalorder %s20, 3
    %p465 = pnand %p463, %p464
    %p466 = pneg %p465
    // Predicated region
    $region65: #{dgf_forward.8} parent=5 // pred_check
      _
    $region66: #{dgf_forward.8} parent=5 // pred_check_branch
      %468 = sbr.rel (%p465) target = $region68
    $region67: #{dgf_forward.8} parent=5 // pred_region
      %s469 = ssub.s32 %s20, 1
      %s470 = smul.u32 2, %s30
      %p471 = scmp.lt.s32.totalorder %s29, 1
      %s472 = scalar_select %p471, %s29, 1
      %p473 = scmp.lt.s32.totalorder %s470, 1
      %s474 = scalar_select %p473, %s470, 1
      %s475 = smul.addr %s472, 2
      %s476 = sadd.s32 %s474, %s475
      %s477 = smul.addr %s476, 4
      %s478 = scalar_lea.vmem %s0, %s477
      %p479 = pneg %p60
      %p480 = pneg %p57
      %s481 = smul.u32 2, %s30
      %p482 = scmp.lt.s32.totalorder %s29, 1
      %s483 = scalar_select %p482, %s29, 1
      %p484 = scmp.lt.s32.totalorder %s481, 1
      %s485 = scalar_select %p484, %s481, 1
      %s486 = smul.addr %s483, 2
      %s487 = sadd.s32 %s485, %s486
      %s488 = smul.addr %s487, 4
      %s489 = scalar_lea.vmem %s1, %s488
      %p490 = pneg %p88
      %p491 = pneg %p85
      %s492 = smul.u32 2, %s30
      %p493 = scmp.lt.s32.totalorder %s29, 1
      %s494 = scalar_select %p493, %s29, 1
      %p495 = scmp.lt.s32.totalorder %s492, 1
      %s496 = scalar_select %p495, %s492, 1
      %s497 = smul.addr %s494, 2
      %s498 = sadd.s32 %s496, %s497
      %s499 = smul.addr %s498, 4
      %s500 = scalar_lea.vmem %s2, %s499
      %p501 = pneg %p116
      %p502 = pneg %p113
      %s503 = smul.u32 2, %s30
      %p504 = scmp.lt.s32.totalorder %s29, 1
      %s505 = scalar_select %p504, %s29, 1
      %p506 = scmp.lt.s32.totalorder %s503, 1
      %s507 = scalar_select %p506, %s503, 1
      %s508 = smul.addr %s505, 2
      %s509 = sadd.s32 %s507, %s508
      %s510 = smul.addr %s509, 4
      %s511 = scalar_lea.vmem %s3, %s510
      %p512 = pneg %p144
      %p513 = pneg %p141
      %p514 = pneg %p165
      %p515 = pneg %p162
      %p516 = pneg %p186
      %p517 = pneg %p183
      %p518 = pneg %p207
      %p519 = pneg %p204
      %p520 = pneg %p228
      %p521 = pneg %p225
      %p522 = pneg %p249
      %p523 = pneg %p246
      %p524 = pneg %p270
      %p525 = pneg %p267
      %p526 = pneg %p291
      %p527 = pneg %p288
      %p528 = pneg %p312
      %p529 = pneg %p309
      %p530 = pneg %p340
      %p531 = pneg %p337
      %s532 = smul.u32 2, %s30
      %p533 = scmp.lt.s32.totalorder %s29, 1
      %s534 = scalar_select %p533, %s29, 1
      %p535 = scmp.lt.s32.totalorder %s532, 1
      %s536 = scalar_select %p535, %s532, 1
      %s537 = smul.addr %s534, 2
      %s538 = sadd.s32 %s536, %s537
      %s539 = smul.addr %s538, 4
      %s540 = scalar_lea.vmem %s12, %s539
      %p541 = pneg %p368
      %p542 = pneg %p365
      %s543 = smul.u32 2, %s30
      %p544 = scmp.lt.s32.totalorder %s29, 1
      %s545 = scalar_select %p544, %s29, 1
      %p546 = scmp.lt.s32.totalorder %s543, 1
      %s547 = scalar_select %p546, %s543, 1
      %s548 = smul.addr %s545, 2
      %s549 = sadd.s32 %s547, %s548
      %s550 = smul.addr %s549, 4
      %s551 = scalar_lea.vmem %s13, %s550
      %s552 = smul.u32 2, %s30
      %p553 = scmp.lt.s32.totalorder %s29, 1
      %s554 = scalar_select %p553, %s29, 1
      %p555 = scmp.lt.s32.totalorder %s552, 1
      %s556 = scalar_select %p555, %s552, 1
      %s557 = smul.addr %s554, 2
      %s558 = sadd.s32 %s556, %s557
      %s559 = smul.addr %s558, 4
      %s560 = scalar_lea.vmem %s0, %s559
      %s561 = smul.u32 2, %s30
      %s562 = smul.u32 2, %s30
      %p563 = scmp.lt.s32.totalorder %s29, 1
      %s564 = scalar_select %p563, %s29, 1
      %p565 = scmp.lt.s32.totalorder %s562, 1
      %s566 = scalar_select %p565, %s562, 1
      %s567 = smul.addr %s564, 2
      %s568 = sadd.s32 %s566, %s567
      %s569 = smul.addr %s568, 4
      %s570 = scalar_lea.vmem %s1, %s569
      %s571 = smul.u32 2, %s30
      %s572 = smul.u32 2, %s30
      %p573 = scmp.lt.s32.totalorder %s29, 1
      %s574 = scalar_select %p573, %s29, 1
      %p575 = scmp.lt.s32.totalorder %s572, 1
      %s576 = scalar_select %p575, %s572, 1
      %s577 = smul.addr %s574, 2
      %s578 = sadd.s32 %s576, %s577
      %s579 = smul.addr %s578, 4
      %s580 = scalar_lea.vmem %s2, %s579
      %s581 = smul.u32 2, %s30
      %s582 = smul.u32 2, %s30
      %p583 = scmp.lt.s32.totalorder %s29, 1
      %s584 = scalar_select %p583, %s29, 1
      %p585 = scmp.lt.s32.totalorder %s582, 1
      %s586 = scalar_select %p585, %s582, 1
      %s587 = smul.addr %s584, 2
      %s588 = sadd.s32 %s586, %s587
      %s589 = smul.addr %s588, 4
      %s590 = scalar_lea.vmem %s3, %s589
      %s591 = smul.u32 2, %s30
      %s592 = smul.u32 2, %s30
      %p593 = scmp.lt.s32.totalorder %s29, 1
      %s594 = scalar_select %p593, %s29, 1
      %p595 = scmp.lt.s32.totalorder %s592, 1
      %s596 = scalar_select %p595, %s592, 1
      %s597 = smul.addr %s594, 2
      %s598 = sadd.s32 %s596, %s597
      %s599 = smul.addr %s598, 4
      %s600 = scalar_lea.vmem %s12, %s599
      %s601 = smul.u32 2, %s30
      %s602 = smul.u32 2, %s30
      %p603 = scmp.lt.s32.totalorder %s29, 1
      %s604 = scalar_select %p603, %s29, 1
      %p605 = scmp.lt.s32.totalorder %s602, 1
      %s606 = scalar_select %p605, %s602, 1
      %s607 = smul.addr %s604, 2
      %s608 = sadd.s32 %s606, %s607
      %s609 = smul.addr %s608, 4
      %s610 = scalar_lea.vmem %s13, %s609
      %s611 = smul.u32 2, %s30
      %v612 = vld [vmem:[%s4] sm:$0xff]
      %v613 = vld [vmem:[%s4 + $0x8] sm:$0xff]
      %v614 = vld [vmem:[%s4 + $0x10] sm:$0xff]
      %v615 = vld [vmem:[%s4 + $0x18] sm:$0xff]
      %v616 = vld [vmem:[%s560] sm:$0x77]
      %v617 = vld [vmem:[%s5] sm:$0xff]
      %v618 = vld [vmem:[%s5 + $0x8] sm:$0xff]
      %v619 = vld [vmem:[%s5 + $0x10] sm:$0xff]
      %v620 = vld [vmem:[%s5 + $0x18] sm:$0xff]
      %v621 = vld [vmem:[%s570] sm:$0x77]
      %623 = vst [vmem:[#allocation1] ss:$2 sm:$0xff] %v621
      %v624 = vld.sshfl [vmem:[#allocation1] sm:$0xff pattern:$0x75316420]
      %v625 = vld.sshfl [vmem:[#allocation1 + $0x8] sm:$0xff pattern:$0x75316420]
      %vm626 = vcmask 23552
      %v628 = vsel %vm626, %v617, 0
      %v631 = vsel %vm626, %v618, 0
      %v634 = vsel %vm626, %v619, 0
      %v637 = vsel %vm626, %v620, 0
      %vm639 = vcmask 1042432
      %v640 = vsel %vm639, %v624, 0
      %v642 = vsel %vm639, %v625, 0
      %644 = vmatpush.msra.mxu0 0.0
      %645 = vmatpush.msra.mxu0 0.0
      %646 = vmatpush.msra.mxu0 0.0
      %647 = vmatpush.msra.mxu0 0.0
      %648 = vmatpush.msra.mxu0 0.0
      %649 = vmatpush.msra.mxu0 0.0
      %650 = vmatpush.msra.mxu0 0.0
      %651 = vmatpush.msra.mxu0 0.0
      %652 = vmatpush.msra.mxu0 0.0
      %653 = vmatpush.msra.mxu0 0.0
      %654 = vmatpush.msra.mxu0 0.0
      %655 = vmatpush.msra.mxu0 0.0
      %656 = vmatpush.msra.mxu0 0.0
      %657 = vmatpush.msra.mxu0 0.0
      %658 = vmatpush.msra.mxu0 0.0
      %659 = vmatpush.msra.mxu0 %v640
      %660 = vmatmul.f32.gmra.mxu0 %v628
      %v661 = vpop.f32.mrf.mxu0
      %v662 = vadd.f32 0.0, %v661
      %663 = vmatmul.f32.gmra.mxu0 %v631
      %v664 = vpop.f32.mrf.mxu0
      %v665 = vadd.f32 0.0, %v664
      %666 = vmatmul.f32.gmra.mxu0 %v634
      %v667 = vpop.f32.mrf.mxu0
      %v668 = vadd.f32 0.0, %v667
      %669 = vmatmul.f32.gmra.mxu0 %v637
      %v670 = vpop.f32.mrf.mxu0
      %v671 = vadd.f32 0.0, %v670
      %672 = vdwg.mxu0
      %673 = vmatpush.msra.mxu0 0.0
      %674 = vmatpush.msra.mxu0 0.0
      %675 = vmatpush.msra.mxu0 0.0
      %676 = vmatpush.msra.mxu0 0.0
      %677 = vmatpush.msra.mxu0 0.0
      %678 = vmatpush.msra.mxu0 0.0
      %679 = vmatpush.msra.mxu0 0.0
      %680 = vmatpush.msra.mxu0 0.0
      %681 = vmatpush.msra.mxu0 0.0
      %682 = vmatpush.msra.mxu0 0.0
      %683 = vmatpush.msra.mxu0 0.0
      %684 = vmatpush.msra.mxu0 0.0
      %685 = vmatpush.msra.mxu0 0.0
      %686 = vmatpush.msra.mxu0 0.0
      %687 = vmatpush.msra.mxu0 0.0
      %688 = vmatpush.msra.mxu0 %v642
      %689 = vmatmul.f32.gmra.mxu0 %v628
      %v690 = vpop.f32.mrf.mxu0
      %v691 = vadd.f32 0.0, %v690
      %692 = vmatmul.f32.gmra.mxu0 %v631
      %v693 = vpop.f32.mrf.mxu0
      %v694 = vadd.f32 0.0, %v693
      %695 = vmatmul.f32.gmra.mxu0 %v634
      %v696 = vpop.f32.mrf.mxu0
      %v697 = vadd.f32 0.0, %v696
      %698 = vmatmul.f32.gmra.mxu0 %v637
      %v699 = vpop.f32.mrf.mxu0
      %v700 = vadd.f32 0.0, %v699
      %701 = vdwg.mxu0
      %703 = vst [vmem:[#allocation1] ss:$2 sm:$0xff] %v616
      %v704 = vld.sshfl [vmem:[#allocation1] sm:$0xff pattern:$0x75316420]
      %v705 = vld.sshfl [vmem:[#allocation1 + $0x8] sm:$0xff pattern:$0x75316420]
      %v707 = vsel %vm626, %v612, 0
      %v710 = vsel %vm626, %v613, 0
      %v713 = vsel %vm626, %v614, 0
      %v716 = vsel %vm626, %v615, 0
      %v718 = vsel %vm639, %v704, 0
      %v720 = vsel %vm639, %v705, 0
      %722 = vmatpush.msra.mxu0 0.0
      %723 = vmatpush.msra.mxu0 0.0
      %724 = vmatpush.msra.mxu0 0.0
      %725 = vmatpush.msra.mxu0 0.0
      %726 = vmatpush.msra.mxu0 0.0
      %727 = vmatpush.msra.mxu0 0.0
      %728 = vmatpush.msra.mxu0 0.0
      %729 = vmatpush.msra.mxu0 0.0
      %730 = vmatpush.msra.mxu0 0.0
      %731 = vmatpush.msra.mxu0 0.0
      %732 = vmatpush.msra.mxu0 0.0
      %733 = vmatpush.msra.mxu0 0.0
      %734 = vmatpush.msra.mxu0 0.0
      %735 = vmatpush.msra.mxu0 0.0
      %736 = vmatpush.msra.mxu0 0.0
      %737 = vmatpush.msra.mxu0 %v718
      %738 = vmatmul.f32.gmra.mxu0 %v707
      %v739 = vpop.f32.mrf.mxu0
      %v740 = vadd.f32 %v662, %v739
      %741 = vmatmul.f32.gmra.mxu0 %v710
      %v742 = vpop.f32.mrf.mxu0
      %v743 = vadd.f32 %v665, %v742
      %744 = vmatmul.f32.gmra.mxu0 %v713
      %v745 = vpop.f32.mrf.mxu0
      %v746 = vadd.f32 %v668, %v745
      %747 = vmatmul.f32.gmra.mxu0 %v716
      %v748 = vpop.f32.mrf.mxu0
      %v749 = vadd.f32 %v671, %v748
      %750 = vdwg.mxu0
      %751 = vmatpush.msra.mxu0 0.0
      %752 = vmatpush.msra.mxu0 0.0
      %753 = vmatpush.msra.mxu0 0.0
      %754 = vmatpush.msra.mxu0 0.0
      %755 = vmatpush.msra.mxu0 0.0
      %756 = vmatpush.msra.mxu0 0.0
      %757 = vmatpush.msra.mxu0 0.0
      %758 = vmatpush.msra.mxu0 0.0
      %759 = vmatpush.msra.mxu0 0.0
      %760 = vmatpush.msra.mxu0 0.0
      %761 = vmatpush.msra.mxu0 0.0
      %762 = vmatpush.msra.mxu0 0.0
      %763 = vmatpush.msra.mxu0 0.0
      %764 = vmatpush.msra.mxu0 0.0
      %765 = vmatpush.msra.mxu0 0.0
      %766 = vmatpush.msra.mxu0 %v720
      %767 = vmatmul.f32.gmra.mxu0 %v707
      %v768 = vpop.f32.mrf.mxu0
      %v769 = vadd.f32 %v691, %v768
      %770 = vmatmul.f32.gmra.mxu0 %v710
      %v771 = vpop.f32.mrf.mxu0
      %v772 = vadd.f32 %v694, %v771
      %773 = vmatmul.f32.gmra.mxu0 %v713
      %v774 = vpop.f32.mrf.mxu0
      %v775 = vadd.f32 %v697, %v774
      %776 = vmatmul.f32.gmra.mxu0 %v716
      %v777 = vpop.f32.mrf.mxu0
      %v778 = vadd.f32 %v700, %v777
      %779 = vdwg.mxu0
      %v780 = vld [vmem:[%s6] sm:$0xff]
      %v781 = vld [vmem:[%s6 + $0x8] sm:$0xff]
      %v782 = vld [vmem:[%s6 + $0x10] sm:$0xff]
      %v783 = vld [vmem:[%s6 + $0x18] sm:$0xff]
      %785 = vset.pattern.permute.xlu0 0
      %786 = vperm.xlu0 %785, %v780
      %v787 = vpop.permute.xlu0 %786
      %790 = vset.pattern.permute.xlu0 0
      %791 = vperm.xlu0 %790, %v781
      %v792 = vpop.permute.xlu0 %791
      %795 = vset.pattern.permute.xlu0 0
      %796 = vperm.xlu0 %795, %v782
      %v797 = vpop.permute.xlu0 %796
      %800 = vset.pattern.permute.xlu0 0
      %801 = vperm.xlu0 %800, %v783
      %v802 = vpop.permute.xlu0 %801
      %v804 = vmul.f32 %v740, %v787
      %v805 = vmul.f32 %v769, %v787
      %v806 = vmul.f32 %v743, %v792
      %v807 = vmul.f32 %v772, %v792
      %v808 = vmul.f32 %v746, %v797
      %v809 = vmul.f32 %v775, %v797
      %v810 = vmul.f32 %v749, %v802
      %v811 = vmul.f32 %v778, %v802
      %v812 = vld [vmem:[%s7] sm:$0xff]
      %v813 = vld [vmem:[%s7 + $0x8] sm:$0xff]
      %v814 = vld [vmem:[%s7 + $0x10] sm:$0xff]
      %v815 = vld [vmem:[%s7 + $0x18] sm:$0xff]
      %817 = vset.pattern.permute.xlu0 0
      %818 = vperm.xlu0 %817, %v812
      %v819 = vpop.permute.xlu0 %818
      %822 = vset.pattern.permute.xlu0 0
      %823 = vperm.xlu0 %822, %v813
      %v824 = vpop.permute.xlu0 %823
      %827 = vset.pattern.permute.xlu0 0
      %828 = vperm.xlu0 %827, %v814
      %v829 = vpop.permute.xlu0 %828
      %832 = vset.pattern.permute.xlu0 0
      %833 = vperm.xlu0 %832, %v815
      %v834 = vpop.permute.xlu0 %833
      %v836 = vadd.f32 %v804, %v819
      %v837 = vadd.f32 %v805, %v819
      %v838 = vadd.f32 %v806, %v824
      %v839 = vadd.f32 %v807, %v824
      %v840 = vadd.f32 %v808, %v829
      %v841 = vadd.f32 %v809, %v829
      %v842 = vadd.f32 %v810, %v834
      %v843 = vadd.f32 %v811, %v834
      %v844 = vmax.f32 %v836, 0.0
      %v845 = vmax.f32 %v837, 0.0
      %v846 = vmax.f32 %v838, 0.0
      %v847 = vmax.f32 %v839, 0.0
      %v848 = vmax.f32 %v840, 0.0
      %v849 = vmax.f32 %v841, 0.0
      %v850 = vmax.f32 %v842, 0.0
      %v851 = vmax.f32 %v843, 0.0
      %v852 = vld [vmem:[%s8] sm:$0xff]
      %v853 = vld [vmem:[%s8 + $0x8] sm:$0xff]
      %v854 = vld [vmem:[%s8 + $0x10] sm:$0xff]
      %v855 = vld [vmem:[%s8 + $0x18] sm:$0xff]
      %vm856 = vcmask 261120
      %v858 = vsel %vm856, %v852, 0
      %v861 = vsel %vm856, %v853, 0
      %v864 = vsel %vm856, %v854, 0
      %v867 = vsel %vm856, %v855, 0
      %869 = vmatpush.msra.mxu0 0.0
      %870 = vmatpush.msra.mxu0 0.0
      %871 = vmatpush.msra.mxu0 0.0
      %872 = vmatpush.msra.mxu0 0.0
      %873 = vmatpush.msra.mxu0 0.0
      %874 = vmatpush.msra.mxu0 0.0
      %875 = vmatpush.msra.mxu0 0.0
      %876 = vmatpush.msra.mxu0 0.0
      %877 = vmatpush.msra.mxu0 0.0
      %878 = vmatpush.msra.mxu0 0.0
      %879 = vmatpush.msra.mxu0 0.0
      %880 = vmatpush.msra.mxu0 0.0
      %881 = vmatpush.msra.mxu0 %v850
      %882 = vmatpush.msra.mxu0 %v848
      %883 = vmatpush.msra.mxu0 %v846
      %884 = vmatpush.msra.mxu0 %v844
      %885 = vmatmul.f32.gmra.mxu0 %v858
      %v886 = vpop.f32.mrf.mxu0
      %v887 = vadd.f32 0.0, %v886
      %888 = vmatmul.f32.gmra.mxu0 %v861
      %v889 = vpop.f32.mrf.mxu0
      %v890 = vadd.f32 0.0, %v889
      %891 = vmatmul.f32.gmra.mxu0 %v864
      %v892 = vpop.f32.mrf.mxu0
      %v893 = vadd.f32 0.0, %v892
      %894 = vmatmul.f32.gmra.mxu0 %v867
      %v895 = vpop.f32.mrf.mxu0
      %v896 = vadd.f32 0.0, %v895
      %897 = vdwg.mxu0
      %898 = vmatpush.msra.mxu0 0.0
      %899 = vmatpush.msra.mxu0 0.0
      %900 = vmatpush.msra.mxu0 0.0
      %901 = vmatpush.msra.mxu0 0.0
      %902 = vmatpush.msra.mxu0 0.0
      %903 = vmatpush.msra.mxu0 0.0
      %904 = vmatpush.msra.mxu0 0.0
      %905 = vmatpush.msra.mxu0 0.0
      %906 = vmatpush.msra.mxu0 0.0
      %907 = vmatpush.msra.mxu0 0.0
      %908 = vmatpush.msra.mxu0 0.0
      %909 = vmatpush.msra.mxu0 0.0
      %910 = vmatpush.msra.mxu0 %v851
      %911 = vmatpush.msra.mxu0 %v849
      %912 = vmatpush.msra.mxu0 %v847
      %913 = vmatpush.msra.mxu0 %v845
      %914 = vmatmul.f32.gmra.mxu0 %v858
      %v915 = vpop.f32.mrf.mxu0
      %v916 = vadd.f32 0.0, %v915
      %917 = vmatmul.f32.gmra.mxu0 %v861
      %v918 = vpop.f32.mrf.mxu0
      %v919 = vadd.f32 0.0, %v918
      %920 = vmatmul.f32.gmra.mxu0 %v864
      %v921 = vpop.f32.mrf.mxu0
      %v922 = vadd.f32 0.0, %v921
      %923 = vmatmul.f32.gmra.mxu0 %v867
      %v924 = vpop.f32.mrf.mxu0
      %v925 = vadd.f32 0.0, %v924
      %926 = vdwg.mxu0
      %v927 = vld [vmem:[%s9] sm:$0xff]
      %v928 = vld [vmem:[%s9 + $0x8] sm:$0xff]
      %v929 = vld [vmem:[%s9 + $0x10] sm:$0xff]
      %v930 = vld [vmem:[%s9 + $0x18] sm:$0xff]
      %932 = vset.pattern.permute.xlu0 0
      %933 = vperm.xlu0 %932, %v927
      %v934 = vpop.permute.xlu0 %933
      %937 = vset.pattern.permute.xlu0 0
      %938 = vperm.xlu0 %937, %v928
      %v939 = vpop.permute.xlu0 %938
      %942 = vset.pattern.permute.xlu0 0
      %943 = vperm.xlu0 %942, %v929
      %v944 = vpop.permute.xlu0 %943
      %947 = vset.pattern.permute.xlu0 0
      %948 = vperm.xlu0 %947, %v930
      %v949 = vpop.permute.xlu0 %948
      %v951 = vmul.f32 %v887, %v934
      %v952 = vmul.f32 %v916, %v934
      %v953 = vmul.f32 %v890, %v939
      %v954 = vmul.f32 %v919, %v939
      %v955 = vmul.f32 %v893, %v944
      %v956 = vmul.f32 %v922, %v944
      %v957 = vmul.f32 %v896, %v949
      %v958 = vmul.f32 %v925, %v949
      %v959 = vld [vmem:[%s10] sm:$0xff]
      %v960 = vld [vmem:[%s10 + $0x8] sm:$0xff]
      %v961 = vld [vmem:[%s10 + $0x10] sm:$0xff]
      %v962 = vld [vmem:[%s10 + $0x18] sm:$0xff]
      %964 = vset.pattern.permute.xlu0 0
      %965 = vperm.xlu0 %964, %v959
      %v966 = vpop.permute.xlu0 %965
      %969 = vset.pattern.permute.xlu0 0
      %970 = vperm.xlu0 %969, %v960
      %v971 = vpop.permute.xlu0 %970
      %974 = vset.pattern.permute.xlu0 0
      %975 = vperm.xlu0 %974, %v961
      %v976 = vpop.permute.xlu0 %975
      %979 = vset.pattern.permute.xlu0 0
      %980 = vperm.xlu0 %979, %v962
      %v981 = vpop.permute.xlu0 %980
      %v983 = vadd.f32 %v951, %v966
      %v984 = vadd.f32 %v952, %v966
      %v985 = vadd.f32 %v953, %v971
      %v986 = vadd.f32 %v954, %v971
      %v987 = vadd.f32 %v955, %v976
      %v988 = vadd.f32 %v956, %v976
      %v989 = vadd.f32 %v957, %v981
      %v990 = vadd.f32 %v958, %v981
      %v991 = vmax.f32 %v983, 0.0
      %v992 = vmax.f32 %v984, 0.0
      %v993 = vmax.f32 %v985, 0.0
      %v994 = vmax.f32 %v986, 0.0
      %v995 = vmax.f32 %v987, 0.0
      %v996 = vmax.f32 %v988, 0.0
      %v997 = vmax.f32 %v989, 0.0
      %v998 = vmax.f32 %v990, 0.0
      %v999 = vld [vmem:[%s11] sm:$0x7]
      %v1001 = vsel %vm856, %v999, 0
      %1003 = vmatpush.msra.mxu0 0.0
      %1004 = vmatpush.msra.mxu0 0.0
      %1005 = vmatpush.msra.mxu0 0.0
      %1006 = vmatpush.msra.mxu0 0.0
      %1007 = vmatpush.msra.mxu0 0.0
      %1008 = vmatpush.msra.mxu0 0.0
      %1009 = vmatpush.msra.mxu0 0.0
      %1010 = vmatpush.msra.mxu0 0.0
      %1011 = vmatpush.msra.mxu0 0.0
      %1012 = vmatpush.msra.mxu0 0.0
      %1013 = vmatpush.msra.mxu0 0.0
      %1014 = vmatpush.msra.mxu0 0.0
      %1015 = vmatpush.msra.mxu0 %v997
      %1016 = vmatpush.msra.mxu0 %v995
      %1017 = vmatpush.msra.mxu0 %v993
      %1018 = vmatpush.msra.mxu0 %v991
      %1019 = vmatmul.f32.gmra.mxu0 %v1001
      %v1020 = vpop.f32.mrf.mxu0
      %v1021 = vadd.f32 0.0, %v1020
      %1022 = vdwg.mxu0
      %1023 = vmatpush.msra.mxu0 0.0
      %1024 = vmatpush.msra.mxu0 0.0
      %1025 = vmatpush.msra.mxu0 0.0
      %1026 = vmatpush.msra.mxu0 0.0
      %1027 = vmatpush.msra.mxu0 0.0
      %1028 = vmatpush.msra.mxu0 0.0
      %1029 = vmatpush.msra.mxu0 0.0
      %1030 = vmatpush.msra.mxu0 0.0
      %1031 = vmatpush.msra.mxu0 0.0
      %1032 = vmatpush.msra.mxu0 0.0
      %1033 = vmatpush.msra.mxu0 0.0
      %1034 = vmatpush.msra.mxu0 0.0
      %1035 = vmatpush.msra.mxu0 %v998
      %1036 = vmatpush.msra.mxu0 %v996
      %1037 = vmatpush.msra.mxu0 %v994
      %1038 = vmatpush.msra.mxu0 %v992
      %1039 = vmatmul.f32.gmra.mxu0 %v1001
      %v1040 = vpop.f32.mrf.mxu0
      %v1041 = vadd.f32 0.0, %v1040
      %1042 = vdwg.mxu0
      %v1045 = vrot.slane %v1041, 4
      %vm1046 = vcmask 1043456
      %v1047 = vsel %vm1046, %v1021, %v1045
      %1049 = vst [vmem:[%s600] sm:$0x77] %v1047
      %v1050 = vld [vmem:[%s590] sm:$0x77]
      %v1051 = vld [vmem:[%s580] sm:$0x77]
      %1053 = vst [vmem:[#allocation1] ss:$2 sm:$0xff] %v1051
      %v1054 = vld.sshfl [vmem:[#allocation1] sm:$0xff pattern:$0x75316420]
      %v1055 = vld.sshfl [vmem:[#allocation1 + $0x8] sm:$0xff pattern:$0x75316420]
      %v1058 = vmul.f32 %v1021, %v1054
      %v1059 = vmul.f32 %v1041, %v1055
      %v1062 = vrot.slane %v1059, 4
      %v1063 = vsel %vm1046, %v1058, %v1062
      %v1065 = vsub.f32 %v1050, %v1063
      %1066 = vst [vmem:[%s610] sm:$0x77] %v1065
      %s1067 = smul.u32 2, %s30
      %p1068 = scmp.lt.s32.totalorder %s29, 1
      %s1069 = scalar_select %p1068, %s29, 1
      %p1070 = scmp.lt.s32.totalorder %s1067, 1
      %s1071 = scalar_select %p1070, %s1067, 1
      %s1072 = smul.addr %s1069, 2
      %s1073 = sadd.s32 %s1071, %s1072
      %s1074 = smul.addr %s1073, 4
      %s1075 = scalar_lea.vmem %s12, %s1074
      %s1076 = smul.u32 2, %s30
      %p1077 = scmp.lt.s32.totalorder %s29, 1
      %s1078 = scalar_select %p1077, %s29, 1
      %p1079 = scmp.lt.s32.totalorder %s1076, 1
      %s1080 = scalar_select %p1079, %s1076, 1
      %s1081 = smul.addr %s1078, 2
      %s1082 = sadd.s32 %s1080, %s1081
      %s1083 = smul.addr %s1082, 4
      %s1084 = scalar_lea.vmem %s13, %s1083
      // Predicated region
      $region69: #{dgf_forward.8} parent=67 // pred_check
        %p1085 = pneg %p337
      $region70: #{dgf_forward.8} parent=67 // pred_check_branch
        %1087 = sbr.rel (%p1085) target = $region72
      $region71: #{dgf_forward.8} parent=67 // pred_region
        %s1088 = smul.u32 2, %s30
      $region72: #{dgf_forward.8} parent=67 // pred_fallthru
        _
      // Predicated region
      $region73: #{dgf_forward.8} parent=67 // pred_check
        %p1089 = pneg %p365
      $region74: #{dgf_forward.8} parent=67 // pred_check_branch
        %1091 = sbr.rel (%p1089) target = $region76
      $region75: #{dgf_forward.8} parent=67 // pred_region
        %s1092 = smul.u32 2, %s30
      $region76: #{dgf_forward.8} parent=67 // pred_fallthru
        _
    $region68: #{dgf_forward.8} parent=5 // pred_fallthru
      _
    %p1093 = scmp.le.s32.totalorder 2, %s20
    // Predicated region
    $region77: #{dgf_forward.8} parent=5 // pred_check
      %p1094 = pneg %p1093
    $region78: #{dgf_forward.8} parent=5 // pred_check_branch
      %1096 = sbr.rel (%p1094) target = $region80
    $region79: #{dgf_forward.8} parent=5 // pred_region
      %s1097 = ssub.s32 %s20, 2
      // Predicated region
      $region81: #{dgf_forward.8} parent=79 // pred_check
        %p1098 = pneg %p343
      $region82: #{dgf_forward.8} parent=79 // pred_check_branch
        %1100 = sbr.rel (%p1098) target = $region84
      $region83: #{dgf_forward.8} parent=79 // pred_region
        %s1101 = smul.u32 2, %s32
        %p1102 = scmp.lt.s32.totalorder %s31, 1
        %s1103 = scalar_select %p1102, %s31, 1
        %p1104 = scmp.lt.s32.totalorder %s1101, 1
        %s1105 = scalar_select %p1104, %s1101, 1
        %s1106 = smul.addr %s1103, 2
        %s1107 = sadd.s32 %s1105, %s1106
        %s1108 = smul.addr %s1107, 4
        %s1109 = scalar_lea.vmem %s12, %s1108
      $region84: #{dgf_forward.8} parent=79 // pred_fallthru
        _
      // Predicated region
      $region85: #{dgf_forward.8} parent=79 // pred_check
        %p1110 = pneg %p371
      $region86: #{dgf_forward.8} parent=79 // pred_check_branch
        %1112 = sbr.rel (%p1110) target = $region88
      $region87: #{dgf_forward.8} parent=79 // pred_region
        %s1113 = smul.u32 2, %s32
        %p1114 = scmp.lt.s32.totalorder %s31, 1
        %s1115 = scalar_select %p1114, %s31, 1
        %p1116 = scmp.lt.s32.totalorder %s1113, 1
        %s1117 = scalar_select %p1116, %s1113, 1
        %s1118 = smul.addr %s1115, 2
        %s1119 = sadd.s32 %s1117, %s1118
        %s1120 = smul.addr %s1119, 4
        %s1121 = scalar_lea.vmem %s13, %s1120
      $region88: #{dgf_forward.8} parent=79 // pred_fallthru
        _
    $region80: #{dgf_forward.8} parent=5 // pred_fallthru
      _
  $region6: #{dgf_forward.8} parent=0 // loop_footer
    %s24 = sadd.s32 1, %s20
  $region7: #{dgf_forward.8} parent=0 // loop_footer_branch
    %19 = sbr.rel target = $region3
  $region8: #{dgf_forward.8} parent=0 // loop_exit
    _

// kernel: dgf_forward.9
$region0: #{dgf_forward.9}
  #allocation0 [shape = 'u32[]', space=smem, size = 0x4, offset = 0x4, fixed_abs, tag = 'smem constant byte address 0x4 - core index']
  #allocation1 [shape = 'u32[72,128]{1,0:T(1,128)}', space=vmem, size = 0x9000, scoped, tag = 'internal scratch']
  %s0 = inlined_call_operand.vmem [shape: f32[2,3,16,16], index: 0, kind: input, shape index: {}]
  %s1 = inlined_call_operand.vmem [shape: f32[2,3,16,16], index: 1, kind: input, shape index: {}]
  %s2 = inlined_call_operand.vmem [shape: f32[2,3,64,64], index: 2, kind: input, shape index: {}]
  %s3 = inlined_call_operand.vmem [shape: f32[3,64,16], index: 3, kind: input, shape index: {}]
  %s4 = inlined_call_operand.vmem [shape: f32[3,16,64], index: 4, kind: input, shape index: {}]
  %s5 = inlined_call_operand.hbm [shape: f32[2,3,64,64], index: 5, kind: output, shape index: {}]
  %s6 = sld [smem:[#allocation0]]
  $region53: #{dgf_forward.9} parent=0
    _
  %s8 = ssub.s32 1, %s6
  %s9 = scalar_select 0, %s8, %s6
  $region1: #{dgf_forward.9} parent=0
    #allocation2 [shape = 'u8[196608]{0}', space=vmem, size = 0x30000, scoped, tag = 'output window, operand 0']
    #allocation3 [shape = 's32[2]{0}', space=sflag, size = 0x8, scoped, tag = 'scoped memory for dgf_forward.9']
    %10 = vsyncpa [#allocation3], 0
    %s11 = scalar_lea.sflag [#allocation3], 1
    %12 = vsyncpa %s11, 0
    loop: start=0, step=1, limit=4
    $region2: #{dgf_forward.9} parent=1 // loop_pre_header
      _
    $region3: #{dgf_forward.9} parent=1 // loop_header
      %s14 = sphi 0, %s18
      %p15 = scmp.ge.s32.totalorder %s14, 4
      %s21 = sphi 0, %s33
      %s22 = sphi 0, %s29
      %s23 = sphi 0, %s21
      %s24 = sphi 0, %s22
      %s25 = sphi 0, %s23
      %s26 = sphi 0, %s24
      %s36 = sphi 0, %s38
      %s39 = sphi 0, %s36
      %s40 = sphi 0, %s39
      %s56 = sphi 0, %s40
      %s62 = sphi 0, %s64
      %s65 = sphi 0, %s62
      %s66 = sphi 0, %s65
      %s82 = sphi 0, %s66
      %s90 = sphi 0, %s92
      %s93 = sphi 0, %s90
      %s94 = sphi 0, %s93
      %s110 = sphi 0, %s94
      %s116 = sphi 0, %s118
      %s119 = sphi 0, %s116
      %s120 = sphi 0, %s119
      %s136 = sphi 0, %s120
      %s140 = sphi 0, %s140
      %s142 = sphi 0, %s140
      %s143 = sphi 0, %s142
      %s157 = sphi 0, %s143
      %s165 = sphi 0, %s167
      %s168 = sphi 0, %s165
      %s169 = sphi 0, %s168
      %s185 = sphi 0, %s169
    $region4: #{dgf_forward.9} parent=1 // loop_header_branch
      %17 = sbr.rel (%p15) target = $region8
    $region5: #{dgf_forward.9} parent=1 // loop_body
      %s19 = ssub.s32 %s14, 1
      %s20 = ssub.s32 %s14, 2
      %s27 = sadd.s32 1, %s22
      %p28 = scmp.ge.s32.totalorder %s27, 1
      %s29 = scalar_select %p28, 0, %s27
      %s30 = sadd.s32 1, %s21
      %s31 = scalar_select %p28, %s30, %s21
      %p32 = scmp.ge.s32.totalorder %s31, 2
      %s33 = scalar_select %p32, 0, %s31
      %s34 = ssub.s32 %s21, %s33
      %p35 = scmp.eq.s32.totalorder %s34, 0
      %s37 = sadd.s32 %s36, 1
      %s38 = scalar_select %p35, %s36, %s37
      %p41 = pneg %p35
      %p42 = scmp.eq.s32.totalorder %s14, 1
      %p43 = por %p41, %p42
      %p44 = scmp.ne.s32.totalorder %s36, %s39
      %p45 = scmp.eq.s32.totalorder %s14, 0
      %p46 = por %p44, %p45
      %p47 = scmp.ne.s32.totalorder %s36, %s39
      %p48 = scmp.eq.s32.totalorder %s19, 1
      %p49 = por %p47, %p48
      %p50 = scmp.ne.s32.totalorder %s39, %s40
      %p51 = scmp.eq.s32.totalorder %s19, 0
      %p52 = por %p50, %p51
      %p53 = scmp.ne.s32.totalorder %s39, %s40
      %p54 = scmp.eq.s32.totalorder %s20, 1
      %p55 = por %p53, %p54
      %p57 = scmp.ne.s32.totalorder %s40, %s56
      %p58 = scmp.eq.s32.totalorder %s20, 0
      %p59 = por %p57, %p58
      %s60 = ssub.s32 %s21, %s33
      %p61 = scmp.eq.s32.totalorder %s60, 0
      %s63 = sadd.s32 %s62, 1
      %s64 = scalar_select %p61, %s62, %s63
      %p67 = pneg %p61
      %p68 = scmp.eq.s32.totalorder %s14, 1
      %p69 = por %p67, %p68
      %p70 = scmp.ne.s32.totalorder %s62, %s65
      %p71 = scmp.eq.s32.totalorder %s14, 0
      %p72 = por %p70, %p71
      %p73 = scmp.ne.s32.totalorder %s62, %s65
      %p74 = scmp.eq.s32.totalorder %s19, 1
      %p75 = por %p73, %p74
      %p76 = scmp.ne.s32.totalorder %s65, %s66
      %p77 = scmp.eq.s32.totalorder %s19, 0
      %p78 = por %p76, %p77
      %p79 = scmp.ne.s32.totalorder %s65, %s66
      %p80 = scmp.eq.s32.totalorder %s20, 1
      %p81 = por %p79, %p80
      %p83 = scmp.ne.s32.totalorder %s66, %s82
      %p84 = scmp.eq.s32.totalorder %s20, 0
      %p85 = por %p83, %p84
      %s86 = ssub.s32 %s21, %s33
      %s87 = ssub.s32 %s22, %s29
      %s88 = sor.u32 %s86, %s87
      %p89 = scmp.eq.s32.totalorder %s88, 0
      %s91 = sadd.s32 %s90, 1
      %s92 = scalar_select %p89, %s90, %s91
      %p95 = pneg %p89
      %p96 = scmp.eq.s32.totalorder %s14, 1
      %p97 = por %p95, %p96
      %p98 = scmp.ne.s32.totalorder %s90, %s93
      %p99 = scmp.eq.s32.totalorder %s14, 0
      %p100 = por %p98, %p99
      %p101 = scmp.ne.s32.totalorder %s90, %s93
      %p102 = scmp.eq.s32.totalorder %s19, 1
      %p103 = por %p101, %p102
      %p104 = scmp.ne.s32.totalorder %s93, %s94
      %p105 = scmp.eq.s32.totalorder %s19, 0
      %p106 = por %p104, %p105
      %p107 = scmp.ne.s32.totalorder %s93, %s94
      %p108 = scmp.eq.s32.totalorder %s20, 1
      %p109 = por %p107, %p108
      %p111 = scmp.ne.s32.totalorder %s94, %s110
      %p112 = scmp.eq.s32.totalorder %s20, 0
      %p113 = por %p111, %p112
      %s114 = ssub.s32 %s22, %s29
      %p115 = scmp.eq.s32.totalorder %s114, 0
      %s117 = sadd.s32 %s116, 1
      %s118 = scalar_select %p115, %s116, %s117
      %p121 = pneg %p115
      %p122 = scmp.eq.s32.totalorder %s14, 1
      %p123 = por %p121, %p122
      %p124 = scmp.ne.s32.totalorder %s116, %s119
      %p125 = scmp.eq.s32.totalorder %s14, 0
      %p126 = por %p124, %p125
      %p127 = scmp.ne.s32.totalorder %s116, %s119
      %p128 = scmp.eq.s32.totalorder %s19, 1
      %p129 = por %p127, %p128
      %p130 = scmp.ne.s32.totalorder %s119, %s120
      %p131 = scmp.eq.s32.totalorder %s19, 0
      %p132 = por %p130, %p131
      %p133 = scmp.ne.s32.totalorder %s119, %s120
      %p134 = scmp.eq.s32.totalorder %s20, 1
      %p135 = por %p133, %p134
      %p137 = scmp.ne.s32.totalorder %s120, %s136
      %p138 = scmp.eq.s32.totalorder %s20, 0
      %p139 = por %p137, %p138
      %s141 = sadd.s32 %s140, 1
      %p144 = scmp.eq.s32.totalorder %s14, 1
      %p145 = scmp.ne.s32.totalorder %s140, %s142
      %p146 = scmp.eq.s32.totalorder %s14, 0
      %p147 = por %p145, %p146
      %p148 = scmp.ne.s32.totalorder %s140, %s142
      %p149 = scmp.eq.s32.totalorder %s19, 1
      %p150 = por %p148, %p149
      %p151 = scmp.ne.s32.totalorder %s142, %s143
      %p152 = scmp.eq.s32.totalorder %s19, 0
      %p153 = por %p151, %p152
      %p154 = scmp.ne.s32.totalorder %s142, %s143
      %p155 = scmp.eq.s32.totalorder %s20, 1
      %p156 = por %p154, %p155
      %p158 = scmp.ne.s32.totalorder %s143, %s157
      %p159 = scmp.eq.s32.totalorder %s20, 0
      %p160 = por %p158, %p159
      %s161 = ssub.s32 %s21, %s33
      %s162 = ssub.s32 %s22, %s29
      %s163 = sor.u32 %s161, %s162
      %p164 = scmp.eq.s32.totalorder %s163, 0
      %s166 = sadd.s32 %s165, 1
      %s167 = scalar_select %p164, %s165, %s166
      %p170 = pneg %p164
      %p171 = scmp.eq.s32.totalorder %s14, 1
      %p172 = por %p170, %p171
      %p173 = scmp.ne.s32.totalorder %s165, %s168
      %p174 = scmp.eq.s32.totalorder %s14, 0
      %p175 = por %p173, %p174
      %p176 = scmp.ne.s32.totalorder %s165, %s168
      %p177 = scmp.eq.s32.totalorder %s19, 1
      %p178 = por %p176, %p177
      %p179 = scmp.ne.s32.totalorder %s168, %s169
      %p180 = scmp.eq.s32.totalorder %s19, 0
      %p181 = por %p179, %p180
      %p182 = scmp.ne.s32.totalorder %s168, %s169
      %p183 = scmp.eq.s32.totalorder %s20, 1
      %p184 = por %p182, %p183
      %p186 = scmp.ne.s32.totalorder %s169, %s185
      %p187 = scmp.eq.s32.totalorder %s20, 0
      %p188 = por %p186, %p187
      %p189 = scmp.le.s32.totalorder 1, %s14
      %p190 = scmp.lt.s32.totalorder %s14, 3
      %p191 = pnand %p189, %p190
      %p192 = pneg %p191
      // Predicated region
      $region9: #{dgf_forward.9} parent=5 // pred_check
        _
      $region10: #{dgf_forward.9} parent=5 // pred_check_branch
        %194 = sbr.rel (%p191) target = $region12
      $region11: #{dgf_forward.9} parent=5 // pred_region
        %s195 = ssub.s32 %s14, 1
        // Predicated region
        $region13: #{dgf_forward.9} parent=11 // pred_check
          %p196 = pneg %p132
        $region14: #{dgf_forward.9} parent=11 // pred_check_branch
          %198 = sbr.rel (%p196) target = $region16
        $region15: #{dgf_forward.9} parent=11 // pred_region
          %s199 = smul.u32 8, %s24
          %p200 = scmp.lt.s32.totalorder %s199, 7
          %s201 = scalar_select %p200, %s199, 7
          %s202 = smul.addr %s201, 8
          %s203 = scalar_lea.vmem %s3, %s202
          %s204 = smul.u32 8, %s24
        $region16: #{dgf_forward.9} parent=11 // pred_fallthru
          _
        // Predicated region
        $region17: #{dgf_forward.9} parent=11 // pred_check
          %p205 = pneg %p153
        $region18: #{dgf_forward.9} parent=11 // pred_check_branch
          %207 = sbr.rel (%p205) target = $region20
        $region19: #{dgf_forward.9} parent=11 // pred_region
          _
        $region20: #{dgf_forward.9} parent=11 // pred_fallthru
          _
      $region12: #{dgf_forward.9} parent=5 // pred_fallthru
        _
      %p208 = scmp.lt.s32.totalorder %s14, 2
      // Predicated region
      $region21: #{dgf_forward.9} parent=5 // pred_check
        %p209 = pneg %p208
      $region22: #{dgf_forward.9} parent=5 // pred_check_branch
        %211 = sbr.rel (%p209) target = $region24
      $region23: #{dgf_forward.9} parent=5 // pred_region
        // Predicated region
        $region25: #{dgf_forward.9} parent=23 // pred_check
          %p212 = pneg %p46
        $region26: #{dgf_forward.9} parent=23 // pred_check_branch
          %214 = sbr.rel (%p212) target = $region28
        $region27: #{dgf_forward.9} parent=23 // pred_region
          %p215 = scmp.lt.s32.totalorder %s21, 1
          %s216 = scalar_select %p215, %s21, 1
          %s217 = smul.addr %s216, 6
          %s218 = smul.addr %s217, 8
          %s219 = scalar_lea.vmem %s0, %s218
        $region28: #{dgf_forward.9} parent=23 // pred_fallthru
          _
        // Predicated region
        $region29: #{dgf_forward.9} parent=23 // pred_check
          %p220 = pneg %p72
        $region30: #{dgf_forward.9} parent=23 // pred_check_branch
          %222 = sbr.rel (%p220) target = $region32
        $region31: #{dgf_forward.9} parent=23 // pred_region
          %p223 = scmp.lt.s32.totalorder %s21, 1
          %s224 = scalar_select %p223, %s21, 1
          %s225 = smul.addr %s224, 6
          %s226 = smul.addr %s225, 8
          %s227 = scalar_lea.vmem %s1, %s226
        $region32: #{dgf_forward.9} parent=23 // pred_fallthru
          _
        // Predicated region
        $region33: #{dgf_forward.9} parent=23 // pred_check
          %p228 = pneg %p100
        $region34: #{dgf_forward.9} parent=23 // pred_check_branch
          %230 = sbr.rel (%p228) target = $region36
        $region35: #{dgf_forward.9} parent=23 // pred_region
          %s231 = smul.u32 8, %s22
          %p232 = scmp.lt.s32.totalorder %s21, 1
          %s233 = scalar_select %p232, %s21, 1
          %p234 = scmp.lt.s32.totalorder %s231, 7
          %s235 = scalar_select %p234, %s231, 7
          %s236 = smul.addr %s233, 24
          %s237 = sadd.s32 %s235, %s236
          %s238 = smul.addr %s237, 8
          %s239 = scalar_lea.vmem %s2, %s238
          %s240 = smul.u32 8, %s22
        $region36: #{dgf_forward.9} parent=23 // pred_fallthru
          _
      $region24: #{dgf_forward.9} parent=5 // pred_fallthru
        _
      %p241 = scmp.le.s32.totalorder 1, %s14
      %p242 = scmp.lt.s32.totalorder %s14, 3
      %p243 = pnand %p241, %p242
      %p244 = pneg %p243
      // Predicated region
      $region37: #{dgf_forward.9} parent=5 // pred_check
        _
      $region38: #{dgf_forward.9} parent=5 // pred_check_branch
        %246 = sbr.rel (%p243) target = $region40
      $region39: #{dgf_forward.9} parent=5 // pred_region
        %s247 = ssub.s32 %s14, 1
        %p248 = scmp.lt.s32.totalorder %s23, 1
        %s249 = scalar_select %p248, %s23, 1
        %s250 = smul.addr %s249, 6
        %s251 = smul.addr %s250, 8
        %s252 = scalar_lea.vmem %s0, %s251
        %p253 = pneg %p52
        %p254 = pneg %p49
        %p255 = scmp.lt.s32.totalorder %s23, 1
        %s256 = scalar_select %p255, %s23, 1
        %s257 = smul.addr %s256, 6
        %s258 = smul.addr %s257, 8
        %s259 = scalar_lea.vmem %s1, %s258
        %p260 = pneg %p78
        %p261 = pneg %p75
        %s262 = smul.u32 8, %s24
        %p263 = scmp.lt.s32.totalorder %s23, 1
        %s264 = scalar_select %p263, %s23, 1
        %p265 = scmp.lt.s32.totalorder %s262, 7
        %s266 = scalar_select %p265, %s262, 7
        %s267 = smul.addr %s264, 24
        %s268 = sadd.s32 %s266, %s267
        %s269 = smul.addr %s268, 8
        %s270 = scalar_lea.vmem %s2, %s269
        %p271 = pneg %p106
        %p272 = pneg %p103
        %s273 = smul.u32 8, %s24
        %p274 = scmp.lt.s32.totalorder %s273, 7
        %s275 = scalar_select %p274, %s273, 7
        %s276 = smul.addr %s275, 8
        %s277 = scalar_lea.vmem %s3, %s276
        %p278 = pneg %p132
        %p279 = pneg %p129
        %p280 = pneg %p153
        %p281 = pneg %p150
        %p282 = pneg %p181
        %p283 = pneg %p178
        %s284 = sand.u32 %s168, 1
        %s285 = scalar_lea.sflag [#allocation3], %s284
        %s286 = sand.u32 %s168, 1
        %s287 = smul.addr %s286, 192
        %s288 = scalar_lea.vmem [#allocation2], %s287
        %p289 = scmp.lt.s32.totalorder %s23, 1
        %s290 = scalar_select %p289, %s23, 1
        %s291 = smul.addr %s290, 6
        %s292 = smul.addr %s291, 8
        %s293 = scalar_lea.vmem %s0, %s292
        %p294 = scmp.lt.s32.totalorder %s23, 1
        %s295 = scalar_select %p294, %s23, 1
        %s296 = smul.addr %s295, 6
        %s297 = smul.addr %s296, 8
        %s298 = scalar_lea.vmem %s1, %s297
        %s299 = smul.u32 8, %s24
        %p300 = scmp.lt.s32.totalorder %s23, 1
        %s301 = scalar_select %p300, %s23, 1
        %p302 = scmp.lt.s32.totalorder %s299, 7
        %s303 = scalar_select %p302, %s299, 7
        %s304 = smul.addr %s301, 24
        %s305 = sadd.s32 %s303, %s304
        %s306 = smul.addr %s305, 8
        %s307 = scalar_lea.vmem %s2, %s306
        %s308 = smul.u32 8, %s24
        %s309 = smul.u32 8, %s24
        %p310 = scmp.lt.s32.totalorder %s309, 7
        %s311 = scalar_select %p310, %s309, 7
        %s312 = smul.addr %s311, 8
        %s313 = scalar_lea.vmem %s3, %s312
        %s314 = smul.u32 8, %s24
        %s315 = smul.u32 8, %s24
        %v316 = vld [vmem:[%s313] sm:$0xff]
        %v317 = vld [vmem:[%s313 + $0x8] sm:$0xff]
        %v318 = vld [vmem:[%s313 + $0x10] sm:$0xff]
        %v319 = vld [vmem:[%s313 + $0x18] sm:$0xff]
        %v320 = vld [vmem:[%s313 + $0x20] sm:$0xff]
        %v321 = vld [vmem:[%s313 + $0x28] sm:$0xff]
        %v322 = vld [vmem:[%s313 + $0x30] sm:$0xff]
        %v323 = vld [vmem:[%s313 + $0x38] sm:$0xff]
        %v324 = vld [vmem:[%s313 + $0x40] sm:$0xff]
        %v325 = vld [vmem:[%s313 + $0x48] sm:$0xff]
        %v326 = vld [vmem:[%s313 + $0x50] sm:$0xff]
        %v327 = vld [vmem:[%s313 + $0x58] sm:$0xff]
        %v328 = vld [vmem:[%s313 + $0x60] sm:$0xff]
        %v329 = vld [vmem:[%s313 + $0x68] sm:$0xff]
        %v330 = vld [vmem:[%s313 + $0x70] sm:$0xff]
        %v331 = vld [vmem:[%s313 + $0x78] sm:$0xff]
        %v332 = vld [vmem:[%s313 + $0x80] sm:$0xff]
        %v333 = vld [vmem:[%s313 + $0x88] sm:$0xff]
        %v334 = vld [vmem:[%s313 + $0x90] sm:$0xff]
        %v335 = vld [vmem:[%s313 + $0x98] sm:$0xff]
        %v336 = vld [vmem:[%s313 + $0xa0] sm:$0xff]
        %v337 = vld [vmem:[%s313 + $0xa8] sm:$0xff]
        %v338 = vld [vmem:[%s313 + $0xb0] sm:$0xff]
        %v339 = vld [vmem:[%s313 + $0xb8] sm:$0xff]
        %v340 = vld [vmem:[%s4] sm:$0xff]
        %v341 = vld [vmem:[%s4 + $0x8] sm:$0xff]
        %v342 = vld [vmem:[%s4 + $0x10] sm:$0xff]
        %v343 = vld [vmem:[%s4 + $0x18] sm:$0xff]
        %v344 = vld [vmem:[%s4 + $0x20] sm:$0xff]
        %v345 = vld [vmem:[%s4 + $0x28] sm:$0xff]
        %v346 = vld [vmem:[%s293] sm:$0xff]
        %v347 = vld [vmem:[%s293 + $0x8] sm:$0xff]
        %v348 = vld [vmem:[%s293 + $0x10] sm:$0xff]
        %v349 = vld [vmem:[%s293 + $0x18] sm:$0xff]
        %v350 = vld [vmem:[%s293 + $0x20] sm:$0xff]
        %v351 = vld [vmem:[%s293 + $0x28] sm:$0xff]
        %vm352 = vcmask 130048
        %v354 = vsel %vm352, %v316, 0
        %v357 = vsel %vm352, %v317, 0
        %v360 = vsel %vm352, %v318, 0
        %v363 = vsel %vm352, %v319, 0
        %v366 = vsel %vm352, %v320, 0
        %v369 = vsel %vm352, %v321, 0
        %v372 = vsel %vm352, %v322, 0
        %v375 = vsel %vm352, %v323, 0
        %377 = vmatpush.msra.mxu0 0.0
        %378 = vmatpush.msra.mxu0 0.0
        %379 = vmatpush.msra.mxu0 0.0
        %380 = vmatpush.msra.mxu0 0.0
        %381 = vmatpush.msra.mxu0 0.0
        %382 = vmatpush.msra.mxu0 0.0
        %383 = vmatpush.msra.mxu0 0.0
        %384 = vmatpush.msra.mxu0 0.0
        %385 = vmatpush.msra.mxu0 0.0
        %386 = vmatpush.msra.mxu0 0.0
        %387 = vmatpush.msra.mxu0 0.0
        %388 = vmatpush.msra.mxu0 0.0
        %389 = vmatpush.msra.mxu0 0.0
        %390 = vmatpush.msra.mxu0 0.0
        %391 = vmatpush.msra.mxu0 %v347
        %392 = vmatpush.msra.mxu0 %v346
        %393 = vmatmul.f32.gmra.mxu0 %v354
        %v394 = vpop.f32.mrf.mxu0
        %v395 = vadd.f32 0.0, %v394
        %396 = vmatmul.f32.gmra.mxu0 %v357
        %v397 = vpop.f32.mrf.mxu0
        %v398 = vadd.f32 0.0, %v397
        %399 = vmatmul.f32.gmra.mxu0 %v360
        %v400 = vpop.f32.mrf.mxu0
        %v401 = vadd.f32 0.0, %v400
        %402 = vmatmul.f32.gmra.mxu0 %v363
        %v403 = vpop.f32.mrf.mxu0
        %v404 = vadd.f32 0.0, %v403
        %405 = vmatmul.f32.gmra.mxu0 %v366
        %v406 = vpop.f32.mrf.mxu0
        %v407 = vadd.f32 0.0, %v406
        %408 = vmatmul.f32.gmra.mxu0 %v369
        %v409 = vpop.f32.mrf.mxu0
        %v410 = vadd.f32 0.0, %v409
        %411 = vmatmul.f32.gmra.mxu0 %v372
        %v412 = vpop.f32.mrf.mxu0
        %v413 = vadd.f32 0.0, %v412
        %414 = vmatmul.f32.gmra.mxu0 %v375
        %v415 = vpop.f32.mrf.mxu0
        %v416 = vadd.f32 0.0, %v415
        %417 = vdwg.mxu0
        %v419 = vsel %vm352, %v324, 0
        %v422 = vsel %vm352, %v325, 0
        %v425 = vsel %vm352, %v326, 0
        %v428 = vsel %vm352, %v327, 0
        %v431 = vsel %vm352, %v328, 0
        %v434 = vsel %vm352, %v329, 0
        %v437 = vsel %vm352, %v330, 0
        %v440 = vsel %vm352, %v331, 0
        %442 = vmatpush.msra.mxu0 0.0
        %443 = vmatpush.msra.mxu0 0.0
        %444 = vmatpush.msra.mxu0 0.0
        %445 = vmatpush.msra.mxu0 0.0
        %446 = vmatpush.msra.mxu0 0.0
        %447 = vmatpush.msra.mxu0 0.0
        %448 = vmatpush.msra.mxu0 0.0
        %449 = vmatpush.msra.mxu0 0.0
        %450 = vmatpush.msra.mxu0 0.0
        %451 = vmatpush.msra.mxu0 0.0
        %452 = vmatpush.msra.mxu0 0.0
        %453 = vmatpush.msra.mxu0 0.0
        %454 = vmatpush.msra.mxu0 0.0
        %455 = vmatpush.msra.mxu0 0.0
        %456 = vmatpush.msra.mxu0 %v349
        %457 = vmatpush.msra.mxu0 %v348
        %458 = vmatmul.f32.gmra.mxu0 %v419
        %v459 = vpop.f32.mrf.mxu0
        %v460 = vadd.f32 0.0, %v459
        %461 = vmatmul.f32.gmra.mxu0 %v422
        %v462 = vpop.f32.mrf.mxu0
        %v463 = vadd.f32 0.0, %v462
        %464 = vmatmul.f32.gmra.mxu0 %v425
        %v465 = vpop.f32.mrf.mxu0
        %v466 = vadd.f32 0.0, %v465
        %467 = vmatmul.f32.gmra.mxu0 %v428
        %v468 = vpop.f32.mrf.mxu0
        %v469 = vadd.f32 0.0, %v468
        %470 = vmatmul.f32.gmra.mxu0 %v431
        %v471 = vpop.f32.mrf.mxu0
        %v472 = vadd.f32 0.0, %v471
        %473 = vmatmul.f32.gmra.mxu0 %v434
        %v474 = vpop.f32.mrf.mxu0
        %v475 = vadd.f32 0.0, %v474
        %476 = vmatmul.f32.gmra.mxu0 %v437
        %v477 = vpop.f32.mrf.mxu0
        %v478 = vadd.f32 0.0, %v477
        %479 = vmatmul.f32.gmra.mxu0 %v440
        %v480 = vpop.f32.mrf.mxu0
        %v481 = vadd.f32 0.0, %v480
        %482 = vdwg.mxu0
        %v484 = vsel %vm352, %v332, 0
        %v487 = vsel %vm352, %v333, 0
        %v490 = vsel %vm352, %v334, 0
        %v493 = vsel %vm352, %v335, 0
        %v496 = vsel %vm352, %v336, 0
        %v499 = vsel %vm352, %v337, 0
        %v502 = vsel %vm352, %v338, 0
        %v505 = vsel %vm352, %v339, 0
        %507 = vmatpush.msra.mxu0 0.0
        %508 = vmatpush.msra.mxu0 0.0
        %509 = vmatpush.msra.mxu0 0.0
        %510 = vmatpush.msra.mxu0 0.0
        %511 = vmatpush.msra.mxu0 0.0
        %512 = vmatpush.msra.mxu0 0.0
        %513 = vmatpush.msra.mxu0 0.0
        %514 = vmatpush.msra.mxu0 0.0
        %515 = vmatpush.msra.mxu0 0.0
        %516 = vmatpush.msra.mxu0 0.0
        %517 = vmatpush.msra.mxu0 0.0
        %518 = vmatpush.msra.mxu0 0.0
        %519 = vmatpush.msra.mxu0 0.0
        %520 = vmatpush.msra.mxu0 0.0
        %521 = vmatpush.msra.mxu0 %v351
        %522 = vmatpush.msra.mxu0 %v350
        %523 = vmatmul.f32.gmra.mxu0 %v484
        %v524 = vpop.f32.mrf.mxu0
        %v525 = vadd.f32 0.0, %v524
        %526 = vmatmul.f32.gmra.mxu0 %v487
        %v527 = vpop.f32.mrf.mxu0
        %v528 = vadd.f32 0.0, %v527
        %529 = vmatmul.f32.gmra.mxu0 %v490
        %v530 = vpop.f32.mrf.mxu0
        %v531 = vadd.f32 0.0, %v530
        %532 = vmatmul.f32.gmra.mxu0 %v493
        %v533 = vpop.f32.mrf.mxu0
        %v534 = vadd.f32 0.0, %v533
        %535 = vmatmul.f32.gmra.mxu0 %v496
        %v536 = vpop.f32.mrf.mxu0
        %v537 = vadd.f32 0.0, %v536
        %538 = vmatmul.f32.gmra.mxu0 %v499
        %v539 = vpop.f32.mrf.mxu0
        %v540 = vadd.f32 0.0, %v539
        %541 = vmatmul.f32.gmra.mxu0 %v502
        %v542 = vpop.f32.mrf.mxu0
        %v543 = vadd.f32 0.0, %v542
        %544 = vmatmul.f32.gmra.mxu0 %v505
        %v545 = vpop.f32.mrf.mxu0
        %v546 = vadd.f32 0.0, %v545
        %547 = vdwg.mxu0
        %v549 = vsel %vm352, %v395, 0
        %v552 = vsel %vm352, %v398, 0
        %v555 = vsel %vm352, %v401, 0
        %v558 = vsel %vm352, %v404, 0
        %v561 = vsel %vm352, %v407, 0
        %v564 = vsel %vm352, %v410, 0
        %v567 = vsel %vm352, %v413, 0
        %v570 = vsel %vm352, %v416, 0
        %572 = vmatpush.msra.mxu0 0.0
        %573 = vmatpush.msra.mxu0 0.0
        %574 = vmatpush.msra.mxu0 0.0
        %575 = vmatpush.msra.mxu0 0.0
        %576 = vmatpush.msra.mxu0 0.0
        %577 = vmatpush.msra.mxu0 0.0
        %578 = vmatpush.msra.mxu0 0.0
        %579 = vmatpush.msra.mxu0 0.0
        %580 = vmatpush.msra.mxu0 0.0
        %581 = vmatpush.msra.mxu0 0.0
        %582 = vmatpush.msra.mxu0 0.0
        %583 = vmatpush.msra.mxu0 0.0
        %584 = vmatpush.msra.mxu0 0.0
        %585 = vmatpush.msra.mxu0 0.0
        %586 = vmatpush.msra.mxu0 %v341
        %587 = vmatpush.msra.mxu0 %v340
        %588 = vmatmul.f32.gmra.mxu0 %v549
        %v589 = vpop.f32.mrf.mxu0
        %v590 = vadd.f32 0.0, %v589
        %591 = vmatmul.f32.gmra.mxu0 %v552
        %v592 = vpop.f32.mrf.mxu0
        %v593 = vadd.f32 0.0, %v592
        %594 = vmatmul.f32.gmra.mxu0 %v555
        %v595 = vpop.f32.mrf.mxu0
        %v596 = vadd.f32 0.0, %v595
        %597 = vmatmul.f32.gmra.mxu0 %v558
        %v598 = vpop.f32.mrf.mxu0
        %v599 = vadd.f32 0.0, %v598
        %600 = vmatmul.f32.gmra.mxu0 %v561
        %v601 = vpop.f32.mrf.mxu0
        %v602 = vadd.f32 0.0, %v601
        %603 = vmatmul.f32.gmra.mxu0 %v564
        %v604 = vpop.f32.mrf.mxu0
        %v605 = vadd.f32 0.0, %v604
        %606 = vmatmul.f32.gmra.mxu0 %v567
        %v607 = vpop.f32.mrf.mxu0
        %v608 = vadd.f32 0.0, %v607
        %609 = vmatmul.f32.gmra.mxu0 %v570
        %v610 = vpop.f32.mrf.mxu0
        %v611 = vadd.f32 0.0, %v610
        %612 = vdwg.mxu0
        %v614 = vsel %vm352, %v460, 0
        %v617 = vsel %vm352, %v463, 0
        %v620 = vsel %vm352, %v466, 0
        %v623 = vsel %vm352, %v469, 0
        %v626 = vsel %vm352, %v472, 0
        %v629 = vsel %vm352, %v475, 0
        %v632 = vsel %vm352, %v478, 0
        %v635 = vsel %vm352, %v481, 0
        %637 = vmatpush.msra.mxu0 0.0
        %638 = vmatpush.msra.mxu0 0.0
        %639 = vmatpush.msra.mxu0 0.0
        %640 = vmatpush.msra.mxu0 0.0
        %641 = vmatpush.msra.mxu0 0.0
        %642 = vmatpush.msra.mxu0 0.0
        %643 = vmatpush.msra.mxu0 0.0
        %644 = vmatpush.msra.mxu0 0.0
        %645 = vmatpush.msra.mxu0 0.0
        %646 = vmatpush.msra.mxu0 0.0
        %647 = vmatpush.msra.mxu0 0.0
        %648 = vmatpush.msra.mxu0 0.0
        %649 = vmatpush.msra.mxu0 0.0
        %650 = vmatpush.msra.mxu0 0.0
        %651 = vmatpush.msra.mxu0 %v343
        %652 = vmatpush.msra.mxu0 %v342
        %653 = vmatmul.f32.gmra.mxu0 %v614
        %v654 = vpop.f32.mrf.mxu0
        %v655 = vadd.f32 0.0, %v654
        %656 = vmatmul.f32.gmra.mxu0 %v617
        %v657 = vpop.f32.mrf.mxu0
        %v658 = vadd.f32 0.0, %v657
        %659 = vmatmul.f32.gmra.mxu0 %v620
        %v660 = vpop.f32.mrf.mxu0
        %v661 = vadd.f32 0.0, %v660
        %662 = vmatmul.f32.gmra.mxu0 %v623
        %v663 = vpop.f32.mrf.mxu0
        %v664 = vadd.f32 0.0, %v663
        %665 = vmatmul.f32.gmra.mxu0 %v626
        %v666 = vpop.f32.mrf.mxu0
        %v667 = vadd.f32 0.0, %v666
        %668 = vmatmul.f32.gmra.mxu0 %v629
        %v669 = vpop.f32.mrf.mxu0
        %v670 = vadd.f32 0.0, %v669
        %671 = vmatmul.f32.gmra.mxu0 %v632
        %v672 = vpop.f32.mrf.mxu0
        %v673 = vadd.f32 0.0, %v672
        %674 = vmatmul.f32.gmra.mxu0 %v635
        %v675 = vpop.f32.mrf.mxu0
        %v676 = vadd.f32 0.0, %v675
        %677 = vdwg.mxu0
        %v679 = vsel %vm352, %v525, 0
        %v682 = vsel %vm352, %v528, 0
        %v685 = vsel %vm352, %v531, 0
        %v688 = vsel %vm352, %v534, 0
        %v691 = vsel %vm352, %v537, 0
        %v694 = vsel %vm352, %v540, 0
        %v697 = vsel %vm352, %v543, 0
        %v700 = vsel %vm352, %v546, 0
        %702 = vmatpush.msra.mxu0 0.0
        %703 = vmatpush.msra.mxu0 0.0
        %704 = vmatpush.msra.mxu0 0.0
        %705 = vmatpush.msra.mxu0 0.0
        %706 = vmatpush.msra.mxu0 0.0
        %707 = vmatpush.msra.mxu0 0.0
        %708 = vmatpush.msra.mxu0 0.0
        %709 = vmatpush.msra.mxu0 0.0
        %710 = vmatpush.msra.mxu0 0.0
        %711 = vmatpush.msra.mxu0 0.0
        %712 = vmatpush.msra.mxu0 0.0
        %713 = vmatpush.msra.mxu0 0.0
        %714 = vmatpush.msra.mxu0 0.0
        %715 = vmatpush.msra.mxu0 0.0
        %716 = vmatpush.msra.mxu0 %v345
        %717 = vmatpush.msra.mxu0 %v344
        %718 = vmatmul.f32.gmra.mxu0 %v679
        %v719 = vpop.f32.mrf.mxu0
        %v720 = vadd.f32 0.0, %v719
        %721 = vmatmul.f32.gmra.mxu0 %v682
        %v722 = vpop.f32.mrf.mxu0
        %v723 = vadd.f32 0.0, %v722
        %724 = vmatmul.f32.gmra.mxu0 %v685
        %v725 = vpop.f32.mrf.mxu0
        %v726 = vadd.f32 0.0, %v725
        %727 = vmatmul.f32.gmra.mxu0 %v688
        %v728 = vpop.f32.mrf.mxu0
        %v729 = vadd.f32 0.0, %v728
        %730 = vmatmul.f32.gmra.mxu0 %v691
        %v731 = vpop.f32.mrf.mxu0
        %v732 = vadd.f32 0.0, %v731
        %733 = vmatmul.f32.gmra.mxu0 %v694
        %v734 = vpop.f32.mrf.mxu0
        %v735 = vadd.f32 0.0, %v734
        %736 = vmatmul.f32.gmra.mxu0 %v697
        %v737 = vpop.f32.mrf.mxu0
        %v738 = vadd.f32 0.0, %v737
        %739 = vmatmul.f32.gmra.mxu0 %v700
        %v740 = vpop.f32.mrf.mxu0
        %v741 = vadd.f32 0.0, %v740
        %742 = vdwg.mxu0
        %v743 = vld [vmem:[%s298] sm:$0xff]
        %v744 = vld [vmem:[%s298 + $0x8] sm:$0xff]
        %v745 = vld [vmem:[%s298 + $0x10] sm:$0xff]
        %v746 = vld [vmem:[%s298 + $0x18] sm:$0xff]
        %v747 = vld [vmem:[%s298 + $0x20] sm:$0xff]
        %v748 = vld [vmem:[%s298 + $0x28] sm:$0xff]
        %749 = vmatpush.msra.mxu0 0.0
        %750 = vmatpush.msra.mxu0 0.0
        %751 = vmatpush.msra.mxu0 0.0
        %752 = vmatpush.msra.mxu0 0.0
        %753 = vmatpush.msra.mxu0 0.0
        %754 = vmatpush.msra.mxu0 0.0
        %755 = vmatpush.msra.mxu0 0.0
        %756 = vmatpush.msra.mxu0 0.0
        %757 = vmatpush.msra.mxu0 0.0
        %758 = vmatpush.msra.mxu0 0.0
        %759 = vmatpush.msra.mxu0 0.0
        %760 = vmatpush.msra.mxu0 0.0
        %761 = vmatpush.msra.mxu0 0.0
        %762 = vmatpush.msra.mxu0 0.0
        %763 = vmatpush.msra.mxu0 %v744
        %764 = vmatpush.msra.mxu0 %v743
        %765 = vmatmul.f32.gmra.mxu0 %v354
        %v766 = vpop.f32.mrf.mxu0
        %v767 = vadd.f32 0.0, %v766
        %768 = vmatmul.f32.gmra.mxu0 %v357
        %v769 = vpop.f32.mrf.mxu0
        %v770 = vadd.f32 0.0, %v769
        %771 = vmatmul.f32.gmra.mxu0 %v360
        %v772 = vpop.f32.mrf.mxu0
        %v773 = vadd.f32 0.0, %v772
        %774 = vmatmul.f32.gmra.mxu0 %v363
        %v775 = vpop.f32.mrf.mxu0
        %v776 = vadd.f32 0.0, %v775
        %777 = vmatmul.f32.gmra.mxu0 %v366
        %v778 = vpop.f32.mrf.mxu0
        %v779 = vadd.f32 0.0, %v778
        %780 = vmatmul.f32.gmra.mxu0 %v369
        %v781 = vpop.f32.mrf.mxu0
        %v782 = vadd.f32 0.0, %v781
        %783 = vmatmul.f32.gmra.mxu0 %v372
        %v784 = vpop.f32.mrf.mxu0
        %v785 = vadd.f32 0.0, %v784
        %786 = vmatmul.f32.gmra.mxu0 %v375
        %v787 = vpop.f32.mrf.mxu0
        %v788 = vadd.f32 0.0, %v787
        %789 = vdwg.mxu0
        %790 = vmatpush.msra.mxu0 0.0
        %791 = vmatpush.msra.mxu0 0.0
        %792 = vmatpush.msra.mxu0 0.0
        %793 = vmatpush.msra.mxu0 0.0
        %794 = vmatpush.msra.mxu0 0.0
        %795 = vmatpush.msra.mxu0 0.0
        %796 = vmatpush.msra.mxu0 0.0
        %797 = vmatpush.msra.mxu0 0.0
        %798 = vmatpush.msra.mxu0 0.0
        %799 = vmatpush.msra.mxu0 0.0
        %800 = vmatpush.msra.mxu0 0.0
        %801 = vmatpush.msra.mxu0 0.0
        %802 = vmatpush.msra.mxu0 0.0
        %803 = vmatpush.msra.mxu0 0.0
        %804 = vmatpush.msra.mxu0 %v746
        %805 = vmatpush.msra.mxu0 %v745
        %806 = vmatmul.f32.gmra.mxu0 %v419
        %v807 = vpop.f32.mrf.mxu0
        %v808 = vadd.f32 0.0, %v807
        %809 = vmatmul.f32.gmra.mxu0 %v422
        %v810 = vpop.f32.mrf.mxu0
        %v811 = vadd.f32 0.0, %v810
        %812 = vmatmul.f32.gmra.mxu0 %v425
        %v813 = vpop.f32.mrf.mxu0
        %v814 = vadd.f32 0.0, %v813
        %815 = vmatmul.f32.gmra.mxu0 %v428
        %v816 = vpop.f32.mrf.mxu0
        %v817 = vadd.f32 0.0, %v816
        %818 = vmatmul.f32.gmra.mxu0 %v431
        %v819 = vpop.f32.mrf.mxu0
        %v820 = vadd.f32 0.0, %v819
        %821 = vmatmul.f32.gmra.mxu0 %v434
        %v822 = vpop.f32.mrf.mxu0
        %v823 = vadd.f32 0.0, %v822
        %824 = vmatmul.f32.gmra.mxu0 %v437
        %v825 = vpop.f32.mrf.mxu0
        %v826 = vadd.f32 0.0, %v825
        %827 = vmatmul.f32.gmra.mxu0 %v440
        %v828 = vpop.f32.mrf.mxu0
        %v829 = vadd.f32 0.0, %v828
        %830 = vdwg.mxu0
        %831 = vmatpush.msra.mxu0 0.0
        %832 = vmatpush.msra.mxu0 0.0
        %833 = vmatpush.msra.mxu0 0.0
        %834 = vmatpush.msra.mxu0 0.0
        %835 = vmatpush.msra.mxu0 0.0
        %836 = vmatpush.msra.mxu0 0.0
        %837 = vmatpush.msra.mxu0 0.0
        %838 = vmatpush.msra.mxu0 0.0
        %839 = vmatpush.msra.mxu0 0.0
        %840 = vmatpush.msra.mxu0 0.0
        %841 = vmatpush.msra.mxu0 0.0
        %842 = vmatpush.msra.mxu0 0.0
        %843 = vmatpush.msra.mxu0 0.0
        %844 = vmatpush.msra.mxu0 0.0
        %845 = vmatpush.msra.mxu0 %v748
        %846 = vmatpush.msra.mxu0 %v747
        %847 = vmatmul.f32.gmra.mxu0 %v484
        %v848 = vpop.f32.mrf.mxu0
        %v849 = vadd.f32 0.0, %v848
        %850 = vmatmul.f32.gmra.mxu0 %v487
        %v851 = vpop.f32.mrf.mxu0
        %v852 = vadd.f32 0.0, %v851
        %853 = vmatmul.f32.gmra.mxu0 %v490
        %v854 = vpop.f32.mrf.mxu0
        %v855 = vadd.f32 0.0, %v854
        %856 = vmatmul.f32.gmra.mxu0 %v493
        %v857 = vpop.f32.mrf.mxu0
        %v858 = vadd.f32 0.0, %v857
        %859 = vmatmul.f32.gmra.mxu0 %v496
        %v860 = vpop.f32.mrf.mxu0
        %v861 = vadd.f32 0.0, %v860
        %862 = vmatmul.f32.gmra.mxu0 %v499
        %v863 = vpop.f32.mrf.mxu0
        %v864 = vadd.f32 0.0, %v863
        %865 = vmatmul.f32.gmra.mxu0 %v502
        %v866 = vpop.f32.mrf.mxu0
        %v867 = vadd.f32 0.0, %v866
        %868 = vmatmul.f32.gmra.mxu0 %v505
        %v869 = vpop.f32.mrf.mxu0
        %v870 = vadd.f32 0.0, %v869
        %871 = vdwg.mxu0
        %v873 = vsel %vm352, %v767, 0
        %v876 = vsel %vm352, %v770, 0
        %v879 = vsel %vm352, %v773, 0
        %v882 = vsel %vm352, %v776, 0
        %v885 = vsel %vm352, %v779, 0
        %v888 = vsel %vm352, %v782, 0
        %v891 = vsel %vm352, %v785, 0
        %v894 = vsel %vm352, %v788, 0
        %896 = vmatpush.msra.mxu0 0.0
        %897 = vmatpush.msra.mxu0 0.0
        %898 = vmatpush.msra.mxu0 0.0
        %899 = vmatpush.msra.mxu0 0.0
        %900 = vmatpush.msra.mxu0 0.0
        %901 = vmatpush.msra.mxu0 0.0
        %902 = vmatpush.msra.mxu0 0.0
        %903 = vmatpush.msra.mxu0 0.0
        %904 = vmatpush.msra.mxu0 0.0
        %905 = vmatpush.msra.mxu0 0.0
        %906 = vmatpush.msra.mxu0 0.0
        %907 = vmatpush.msra.mxu0 0.0
        %908 = vmatpush.msra.mxu0 0.0
        %909 = vmatpush.msra.mxu0 0.0
        %910 = vmatpush.msra.mxu0 %v341
        %911 = vmatpush.msra.mxu0 %v340
        %912 = vmatmul.f32.gmra.mxu0 %v873
        %v913 = vpop.f32.mrf.mxu0
        %v914 = vadd.f32 0.0, %v913
        %915 = vmatmul.f32.gmra.mxu0 %v876
        %v916 = vpop.f32.mrf.mxu0
        %v917 = vadd.f32 0.0, %v916
        %918 = vmatmul.f32.gmra.mxu0 %v879
        %v919 = vpop.f32.mrf.mxu0
        %v920 = vadd.f32 0.0, %v919
        %921 = vmatmul.f32.gmra.mxu0 %v882
        %v922 = vpop.f32.mrf.mxu0
        %v923 = vadd.f32 0.0, %v922
        %924 = vmatmul.f32.gmra.mxu0 %v885
        %v925 = vpop.f32.mrf.mxu0
        %v926 = vadd.f32 0.0, %v925
        %927 = vmatmul.f32.gmra.mxu0 %v888
        %v928 = vpop.f32.mrf.mxu0
        %v929 = vadd.f32 0.0, %v928
        %930 = vmatmul.f32.gmra.mxu0 %v891
        %v931 = vpop.f32.mrf.mxu0
        %v932 = vadd.f32 0.0, %v931
        %933 = vmatmul.f32.gmra.mxu0 %v894
        %v934 = vpop.f32.mrf.mxu0
        %v935 = vadd.f32 0.0, %v934
        %936 = vdwg.mxu0
        %v938 = vsel %vm352, %v808, 0
        %v941 = vsel %vm352, %v811, 0
        %v944 = vsel %vm352, %v814, 0
        %v947 = vsel %vm352, %v817, 0
        %v950 = vsel %vm352, %v820, 0
        %v953 = vsel %vm352, %v823, 0
        %v956 = vsel %vm352, %v826, 0
        %v959 = vsel %vm352, %v829, 0
        %961 = vmatpush.msra.mxu0 0.0
        %962 = vmatpush.msra.mxu0 0.0
        %963 = vmatpush.msra.mxu0 0.0
        %964 = vmatpush.msra.mxu0 0.0
        %965 = vmatpush.msra.mxu0 0.0
        %966 = vmatpush.msra.mxu0 0.0
        %967 = vmatpush.msra.mxu0 0.0
        %968 = vmatpush.msra.mxu0 0.0
        %969 = vmatpush.msra.mxu0 0.0
        %970 = vmatpush.msra.mxu0 0.0
        %971 = vmatpush.msra.mxu0 0.0
        %972 = vmatpush.msra.mxu0 0.0
        %973 = vmatpush.msra.mxu0 0.0
        %974 = vmatpush.msra.mxu0 0.0
        %975 = vmatpush.msra.mxu0 %v343
        %976 = vmatpush.msra.mxu0 %v342
        %977 = vmatmul.f32.gmra.mxu0 %v938
        %v978 = vpop.f32.mrf.mxu0
        %v979 = vadd.f32 0.0, %v978
        %980 = vmatmul.f32.gmra.mxu0 %v941
        %v981 = vpop.f32.mrf.mxu0
        %v982 = vadd.f32 0.0, %v981
        %983 = vmatmul.f32.gmra.mxu0 %v944
        %v984 = vpop.f32.mrf.mxu0
        %v985 = vadd.f32 0.0, %v984
        %986 = vmatmul.f32.gmra.mxu0 %v947
        %v987 = vpop.f32.mrf.mxu0
        %v988 = vadd.f32 0.0, %v987
        %989 = vmatmul.f32.gmra.mxu0 %v950
        %v990 = vpop.f32.mrf.mxu0
        %v991 = vadd.f32 0.0, %v990
        %992 = vmatmul.f32.gmra.mxu0 %v953
        %v993 = vpop.f32.mrf.mxu0
        %v994 = vadd.f32 0.0, %v993
        %995 = vmatmul.f32.gmra.mxu0 %v956
        %v996 = vpop.f32.mrf.mxu0
        %v997 = vadd.f32 0.0, %v996
        %998 = vmatmul.f32.gmra.mxu0 %v959
        %v999 = vpop.f32.mrf.mxu0
        %v1000 = vadd.f32 0.0, %v999
        %1001 = vdwg.mxu0
        %v1003 = vsel %vm352, %v849, 0
        %v1006 = vsel %vm352, %v852, 0
        %v1009 = vsel %vm352, %v855, 0
        %v1012 = vsel %vm352, %v858, 0
        %v1015 = vsel %vm352, %v861, 0
        %v1018 = vsel %vm352, %v864, 0
        %v1021 = vsel %vm352, %v867, 0
        %v1024 = vsel %vm352, %v870, 0
        %1026 = vmatpush.msra.mxu0 0.0
        %1027 = vmatpush.msra.mxu0 0.0
        %1028 = vmatpush.msra.mxu0 0.0
        %1029 = vmatpush.msra.mxu0 0.0
        %1030 = vmatpush.msra.mxu0 0.0
        %1031 = vmatpush.msra.mxu0 0.0
        %1032 = vmatpush.msra.mxu0 0.0
        %1033 = vmatpush.msra.mxu0 0.0
        %1034 = vmatpush.msra.mxu0 0.0
        %1035 = vmatpush.msra.mxu0 0.0
        %1036 = vmatpush.msra.mxu0 0.0
        %1037 = vmatpush.msra.mxu0 0.0
        %1038 = vmatpush.msra.mxu0 0.0
        %1039 = vmatpush.msra.mxu0 0.0
        %1040 = vmatpush.msra.mxu0 %v345
        %1041 = vmatpush.msra.mxu0 %v344
        %1042 = vmatmul.f32.gmra.mxu0 %v1003
        %v1043 = vpop.f32.mrf.mxu0
        %v1044 = vadd.f32 0.0, %v1043
        %1045 = vmatmul.f32.gmra.mxu0 %v1006
        %v1046 = vpop.f32.mrf.mxu0
        %v1047 = vadd.f32 0.0, %v1046
        %1048 = vmatmul.f32.gmra.mxu0 %v1009
        %v1049 = vpop.f32.mrf.mxu0
        %v1050 = vadd.f32 0.0, %v1049
        %1051 = vmatmul.f32.gmra.mxu0 %v1012
        %v1052 = vpop.f32.mrf.mxu0
        %v1053 = vadd.f32 0.0, %v1052
        %1054 = vmatmul.f32.gmra.mxu0 %v1015
        %v1055 = vpop.f32.mrf.mxu0
        %v1056 = vadd.f32 0.0, %v1055
        %1057 = vmatmul.f32.gmra.mxu0 %v1018
        %v1058 = vpop.f32.mrf.mxu0
        %v1059 = vadd.f32 0.0, %v1058
        %1060 = vmatmul.f32.gmra.mxu0 %v1021
        %v1061 = vpop.f32.mrf.mxu0
        %v1062 = vadd.f32 0.0, %v1061
        %1063 = vmatmul.f32.gmra.mxu0 %v1024
        %v1064 = vpop.f32.mrf.mxu0
        %v1065 = vadd.f32 0.0, %v1064
        %1066 = vdwg.mxu0
        %v1067 = vld [vmem:[%s307] sm:$0xff]
        %v1068 = vld [vmem:[%s307 + $0x8] sm:$0xff]
        %v1069 = vld [vmem:[%s307 + $0x10] sm:$0xff]
        %v1070 = vld [vmem:[%s307 + $0x18] sm:$0xff]
        %v1071 = vld [vmem:[%s307 + $0x20] sm:$0xff]
        %v1072 = vld [vmem:[%s307 + $0x28] sm:$0xff]
        %v1073 = vld [vmem:[%s307 + $0x30] sm:$0xff]
        %v1074 = vld [vmem:[%s307 + $0x38] sm:$0xff]
        %v1075 = vld [vmem:[%s307 + $0x40] sm:$0xff]
        %v1076 = vld [vmem:[%s307 + $0x48] sm:$0xff]
        %v1077 = vld [vmem:[%s307 + $0x50] sm:$0xff]
        %v1078 = vld [vmem:[%s307 + $0x58] sm:$0xff]
        %v1079 = vld [vmem:[%s307 + $0x60] sm:$0xff]
        %v1080 = vld [vmem:[%s307 + $0x68] sm:$0xff]
        %v1081 = vld [vmem:[%s307 + $0x70] sm:$0xff]
        %v1082 = vld [vmem:[%s307 + $0x78] sm:$0xff]
        %v1083 = vld [vmem:[%s307 + $0x80] sm:$0xff]
        %v1084 = vld [vmem:[%s307 + $0x88] sm:$0xff]
        %v1085 = vld [vmem:[%s307 + $0x90] sm:$0xff]
        %v1086 = vld [vmem:[%s307 + $0x98] sm:$0xff]
        %v1087 = vld [vmem:[%s307 + $0xa0] sm:$0xff]
        %v1088 = vld [vmem:[%s307 + $0xa8] sm:$0xff]
        %v1089 = vld [vmem:[%s307 + $0xb0] sm:$0xff]
        %v1090 = vld [vmem:[%s307 + $0xb8] sm:$0xff]
        %v1091 = vmul.f32 %v590, %v1067
        %v1092 = vmul.f32 %v593, %v1068
        %v1093 = vmul.f32 %v596, %v1069
        %v1094 = vmul.f32 %v599, %v1070
        %v1095 = vmul.f32 %v602, %v1071
        %v1096 = vmul.f32 %v605, %v1072
        %v1097 = vmul.f32 %v608, %v1073
        %v1098 = vmul.f32 %v611, %v1074
        %v1099 = vmul.f32 %v655, %v1075
        %v1100 = vmul.f32 %v658, %v1076
        %v1101 = vmul.f32 %v661, %v1077
        %v1102 = vmul.f32 %v664, %v1078
        %v1103 = vmul.f32 %v667, %v1079
        %v1104 = vmul.f32 %v670, %v1080
        %v1105 = vmul.f32 %v673, %v1081
        %v1106 = vmul.f32 %v676, %v1082
        %v1107 = vmul.f32 %v720, %v1083
        %v1108 = vmul.f32 %v723, %v1084
        %v1109 = vmul.f32 %v726, %v1085
        %v1110 = vmul.f32 %v729, %v1086
        %v1111 = vmul.f32 %v732, %v1087
        %v1112 = vmul.f32 %v735, %v1088
        %v1113 = vmul.f32 %v738, %v1089
        %v1114 = vmul.f32 %v741, %v1090
        %v1115 = vadd.f32 %v1091, %v914
        %v1116 = vadd.f32 %v1092, %v917
        %v1117 = vadd.f32 %v1093, %v920
        %v1118 = vadd.f32 %v1094, %v923
        %v1119 = vadd.f32 %v1095, %v926
        %v1120 = vadd.f32 %v1096, %v929
        %v1121 = vadd.f32 %v1097, %v932
        %v1122 = vadd.f32 %v1098, %v935
        %v1123 = vadd.f32 %v1099, %v979
        %v1124 = vadd.f32 %v1100, %v982
        %v1125 = vadd.f32 %v1101, %v985
        %v1126 = vadd.f32 %v1102, %v988
        %v1127 = vadd.f32 %v1103, %v991
        %v1128 = vadd.f32 %v1104, %v994
        %v1129 = vadd.f32 %v1105, %v997
        %v1130 = vadd.f32 %v1106, %v1000
        %v1131 = vadd.f32 %v1107, %v1044
        %v1132 = vadd.f32 %v1108, %v1047
        %v1133 = vadd.f32 %v1109, %v1050
        %v1134 = vadd.f32 %v1110, %v1053
        %v1135 = vadd.f32 %v1111, %v1056
        %v1136 = vadd.f32 %v1112, %v1059
        %v1137 = vadd.f32 %v1113, %v1062
        %v1138 = vadd.f32 %v1114, %v1065
        %v1139 = vmax.f32 %v1115, 0.0
        %v1140 = vmax.f32 %v1116, 0.0
        %v1141 = vmax.f32 %v1117, 0.0
        %v1142 = vmax.f32 %v1118, 0.0
        %v1143 = vmax.f32 %v1119, 0.0
        %v1144 = vmax.f32 %v1120, 0.0
        %v1145 = vmax.f32 %v1121, 0.0
        %v1146 = vmax.f32 %v1122, 0.0
        %v1147 = vmax.f32 %v1123, 0.0
        %v1148 = vmax.f32 %v1124, 0.0
        %v1149 = vmax.f32 %v1125, 0.0
        %v1150 = vmax.f32 %v1126, 0.0
        %v1151 = vmax.f32 %v1127, 0.0
        %v1152 = vmax.f32 %v1128, 0.0
        %v1153 = vmax.f32 %v1129, 0.0
        %v1154 = vmax.f32 %v1130, 0.0
        %v1155 = vmax.f32 %v1131, 0.0
        %v1156 = vmax.f32 %v1132, 0.0
        %v1157 = vmax.f32 %v1133, 0.0
        %v1158 = vmax.f32 %v1134, 0.0
        %v1159 = vmax.f32 %v1135, 0.0
        %v1160 = vmax.f32 %v1136, 0.0
        %v1161 = vmax.f32 %v1137, 0.0
        %v1162 = vmax.f32 %v1138, 0.0
        %v1163 = vmin.f32 %v1139, 1.0
        %v1164 = vmin.f32 %v1140, 1.0
        %v1165 = vmin.f32 %v1141, 1.0
        %v1166 = vmin.f32 %v1142, 1.0
        %v1167 = vmin.f32 %v1143, 1.0
        %v1168 = vmin.f32 %v1144, 1.0
        %v1169 = vmin.f32 %v1145, 1.0
        %v1170 = vmin.f32 %v1146, 1.0
        %v1171 = vmin.f32 %v1147, 1.0
        %v1172 = vmin.f32 %v1148, 1.0
        %v1173 = vmin.f32 %v1149, 1.0
        %v1174 = vmin.f32 %v1150, 1.0
        %v1175 = vmin.f32 %v1151, 1.0
        %v1176 = vmin.f32 %v1152, 1.0
        %v1177 = vmin.f32 %v1153, 1.0
        %v1178 = vmin.f32 %v1154, 1.0
        %v1179 = vmin.f32 %v1155, 1.0
        %v1180 = vmin.f32 %v1156, 1.0
        %v1181 = vmin.f32 %v1157, 1.0
        %v1182 = vmin.f32 %v1158, 1.0
        %v1183 = vmin.f32 %v1159, 1.0
        %v1184 = vmin.f32 %v1160, 1.0
        %v1185 = vmin.f32 %v1161, 1.0
        %v1186 = vmin.f32 %v1162, 1.0
        %vm1187 = vcmask 523264
        %1188 = vst.msk [vmem:[%s288] sm:$0xff] %vm1187, %v1163
        %1189 = vst.msk [vmem:[%s288 + $0x8] sm:$0xff] %vm1187, %v1164
        %1190 = vst.msk [vmem:[%s288 + $0x10] sm:$0xff] %vm1187, %v1165
        %1191 = vst.msk [vmem:[%s288 + $0x18] sm:$0xff] %vm1187, %v1166
        %1192 = vst.msk [vmem:[%s288 + $0x20] sm:$0xff] %vm1187, %v1167
        %1193 = vst.msk [vmem:[%s288 + $0x28] sm:$0xff] %vm1187, %v1168
        %1194 = vst.msk [vmem:[%s288 + $0x30] sm:$0xff] %vm1187, %v1169
        %1195 = vst.msk [vmem:[%s288 + $0x38] sm:$0xff] %vm1187, %v1170
        %1196 = vst.msk [vmem:[%s288 + $0x40] sm:$0xff] %vm1187, %v1171
        %1197 = vst.msk [vmem:[%s288 + $0x48] sm:$0xff] %vm1187, %v1172
        %1198 = vst.msk [vmem:[%s288 + $0x50] sm:$0xff] %vm1187, %v1173
        %1199 = vst.msk [vmem:[%s288 + $0x58] sm:$0xff] %vm1187, %v1174
        %1200 = vst.msk [vmem:[%s288 + $0x60] sm:$0xff] %vm1187, %v1175
        %1201 = vst.msk [vmem:[%s288 + $0x68] sm:$0xff] %vm1187, %v1176
        %1202 = vst.msk [vmem:[%s288 + $0x70] sm:$0xff] %vm1187, %v1177
        %1203 = vst.msk [vmem:[%s288 + $0x78] sm:$0xff] %vm1187, %v1178
        %1204 = vst.msk [vmem:[%s288 + $0x80] sm:$0xff] %vm1187, %v1179
        %1205 = vst.msk [vmem:[%s288 + $0x88] sm:$0xff] %vm1187, %v1180
        %1206 = vst.msk [vmem:[%s288 + $0x90] sm:$0xff] %vm1187, %v1181
        %1207 = vst.msk [vmem:[%s288 + $0x98] sm:$0xff] %vm1187, %v1182
        %1208 = vst.msk [vmem:[%s288 + $0xa0] sm:$0xff] %vm1187, %v1183
        %1209 = vst.msk [vmem:[%s288 + $0xa8] sm:$0xff] %vm1187, %v1184
        %1210 = vst.msk [vmem:[%s288 + $0xb0] sm:$0xff] %vm1187, %v1185
        %1211 = vst.msk [vmem:[%s288 + $0xb8] sm:$0xff] %vm1187, %v1186
        %s1212 = sand.u32 %s168, 1
        %s1213 = scalar_lea.sflag [#allocation3], %s1212
        %s1214 = sand.u32 %s168, 1
        %s1215 = smul.addr %s1214, 192
        %s1216 = scalar_lea.vmem [#allocation2], %s1215
        // Predicated region
        $region41: #{dgf_forward.9} parent=39 // pred_check
          %p1217 = pneg %p178
        $region42: #{dgf_forward.9} parent=39 // pred_check_branch
          %1219 = sbr.rel (%p1217) target = $region44
        $region43: #{dgf_forward.9} parent=39 // pred_region
          %s1220 = smul.u32 8, %s24
          %1222 = vsyncadd %s1213, 0
          %s1223 = smul.addr %s23, 24
          %s1224 = sadd.s32 %s1220, %s1223
          %s1225 = smul.addr %s1224, 8
          %s1226 = scalar_lea.hbm %s5, %s1225
          %s1227 = sshll.u32 %s1216, 4
          %s1228 = int_to_ptr.vmem [resolvable:$true] %s1227
          %s1229 = sshll.u32 %s1226, 4
          %s1230 = int_to_ptr.hbm [resolvable:$true] %s1229
          %1235 = dma.vmem_to_hbm [thread:$0]  %s1228, 3072, %s1230, %s1213, 128, 128, 8
        $region44: #{dgf_forward.9} parent=39 // pred_fallthru
          _
      $region40: #{dgf_forward.9} parent=5 // pred_fallthru
        _
      %p1236 = scmp.le.s32.totalorder 2, %s14
      // Predicated region
      $region45: #{dgf_forward.9} parent=5 // pred_check
        %p1237 = pneg %p1236
      $region46: #{dgf_forward.9} parent=5 // pred_check_branch
        %1239 = sbr.rel (%p1237) target = $region48
      $region47: #{dgf_forward.9} parent=5 // pred_region
        %s1240 = ssub.s32 %s14, 2
        // Predicated region
        $region49: #{dgf_forward.9} parent=47 // pred_check
          %p1241 = pneg %p184
        $region50: #{dgf_forward.9} parent=47 // pred_check_branch
          %1243 = sbr.rel (%p1241) target = $region52
        $region51: #{dgf_forward.9} parent=47 // pred_region
          %s1244 = sand.u32 %s169, 1
          %s1245 = scalar_lea.sflag [#allocation3], %s1244
          %s1246 = sand.u32 %s169, 1
          %s1247 = smul.addr %s1246, 192
          %s1248 = scalar_lea.vmem [#allocation2], %s1247
          %1250 = dma.done %s1245, 3072
        $region52: #{dgf_forward.9} parent=47 // pred_fallthru
          _
      $region48: #{dgf_forward.9} parent=5 // pred_fallthru
        _
    $region6: #{dgf_forward.9} parent=1 // loop_footer
      %s18 = sadd.s32 1, %s14
    $region7: #{dgf_forward.9} parent=1 // loop_footer_branch
      %13 = sbr.rel target = $region3
    $region8: #{dgf_forward.9} parent=1 // loop_exit
      _
    %1251 = vsyncpa [#allocation3], 1
    %s1252 = scalar_lea.sflag [#allocation3], 1
    %1253 = vsyncpa %s1252, 1

// kernel: dgf_forward.6
$region0: #{dgf_forward.6}
  #allocation0 [shape = 'u32[]', space=smem, size = 0x4, offset = 0x4, fixed_abs, tag = 'smem constant byte address 0x4 - core index']
  #allocation1 [shape = 'u32[72,128]{1,0:T(1,128)}', space=vmem, size = 0x9000, scoped, tag = 'internal scratch']
  %s0 = inlined_call_operand.vmem [shape: f32[2,3,4096], index: 0, kind: input, shape index: {}]
  %s1 = inlined_call_operand.vmem [shape: f32[16,3], index: 1, kind: input, shape index: {}]
  %s2 = inlined_call_operand.vmem [shape: f32[16,1], index: 2, kind: input, shape index: {}]
  %s3 = inlined_call_operand.vmem [shape: f32[16,1], index: 3, kind: input, shape index: {}]
  %s4 = inlined_call_operand.vmem [shape: f32[3,16], index: 4, kind: input, shape index: {}]
  %s5 = inlined_call_operand.vmem [shape: f32[3,1], index: 5, kind: input, shape index: {}]
  %s6 = inlined_call_operand.vmem [shape: f32[2,3,4096], index: 6, kind: output, shape index: {}]
  %s7 = sld [smem:[#allocation0]]
  $region57: #{dgf_forward.6} parent=0
    _
  %s9 = ssub.s32 1, %s7
  %s10 = scalar_select 0, %s9, %s7
  loop: start=0, step=1, limit=4
  $region2: #{dgf_forward.6} parent=0 // loop_pre_header
    _
  $region3: #{dgf_forward.6} parent=0 // loop_header
    %s12 = sphi 0, %s16
    %p13 = scmp.ge.s32.totalorder %s12, 4
    %s19 = sphi 0, %s31
    %s20 = sphi 0, %s27
    %s21 = sphi 0, %s19
    %s22 = sphi 0, %s20
    %s23 = sphi 0, %s21
    %s24 = sphi 0, %s22
    %s36 = sphi 0, %s38
    %s39 = sphi 0, %s36
    %s40 = sphi 0, %s39
    %s56 = sphi 0, %s40
    %s60 = sphi 0, %s60
    %s62 = sphi 0, %s60
    %s63 = sphi 0, %s62
    %s77 = sphi 0, %s63
    %s81 = sphi 0, %s81
    %s83 = sphi 0, %s81
    %s84 = sphi 0, %s83
    %s98 = sphi 0, %s84
    %s102 = sphi 0, %s102
    %s104 = sphi 0, %s102
    %s105 = sphi 0, %s104
    %s119 = sphi 0, %s105
    %s123 = sphi 0, %s123
    %s125 = sphi 0, %s123
    %s126 = sphi 0, %s125
    %s140 = sphi 0, %s126
    %s144 = sphi 0, %s144
    %s146 = sphi 0, %s144
    %s147 = sphi 0, %s146
    %s161 = sphi 0, %s147
    %s169 = sphi 0, %s171
    %s172 = sphi 0, %s169
    %s173 = sphi 0, %s172
    %s189 = sphi 0, %s173
  $region4: #{dgf_forward.6} parent=0 // loop_header_branch
    %15 = sbr.rel (%p13) target = $region8
  $region5: #{dgf_forward.6} parent=0 // loop_body
    %s17 = ssub.s32 %s12, 1
    %s18 = ssub.s32 %s12, 2
    %s25 = sadd.s32 1, %s20
    %p26 = scmp.ge.s32.totalorder %s25, 1
    %s27 = scalar_select %p26, 0, %s25
    %s28 = sadd.s32 1, %s19
    %s29 = scalar_select %p26, %s28, %s19
    %p30 = scmp.ge.s32.totalorder %s29, 2
    %s31 = scalar_select %p30, 0, %s29
    %s32 = ssub.s32 %s19, %s31
    %s33 = ssub.s32 %s20, %s27
    %s34 = sor.u32 %s32, %s33
    %p35 = scmp.eq.s32.totalorder %s34, 0
    %s37 = sadd.s32 %s36, 1
    %s38 = scalar_select %p35, %s36, %s37
    %p41 = pneg %p35
    %p42 = scmp.eq.s32.totalorder %s12, 1
    %p43 = por %p41, %p42
    %p44 = scmp.ne.s32.totalorder %s36, %s39
    %p45 = scmp.eq.s32.totalorder %s12, 0
    %p46 = por %p44, %p45
    %p47 = scmp.ne.s32.totalorder %s36, %s39
    %p48 = scmp.eq.s32.totalorder %s17, 1
    %p49 = por %p47, %p48
    %p50 = scmp.ne.s32.totalorder %s39, %s40
    %p51 = scmp.eq.s32.totalorder %s17, 0
    %p52 = por %p50, %p51
    %p53 = scmp.ne.s32.totalorder %s39, %s40
    %p54 = scmp.eq.s32.totalorder %s18, 1
    %p55 = por %p53, %p54
    %p57 = scmp.ne.s32.totalorder %s40, %s56
    %p58 = scmp.eq.s32.totalorder %s18, 0
    %p59 = por %p57, %p58
    %s61 = sadd.s32 %s60, 1
    %p64 = scmp.eq.s32.totalorder %s12, 1
    %p65 = scmp.ne.s32.totalorder %s60, %s62
    %p66 = scmp.eq.s32.totalorder %s12, 0
    %p67 = por %p65, %p66
    %p68 = scmp.ne.s32.totalorder %s60, %s62
    %p69 = scmp.eq.s32.totalorder %s17, 1
    %p70 = por %p68, %p69
    %p71 = scmp.ne.s32.totalorder %s62, %s63
    %p72 = scmp.eq.s32.totalorder %s17, 0
    %p73 = por %p71, %p72
    %p74 = scmp.ne.s32.totalorder %s62, %s63
    %p75 = scmp.eq.s32.totalorder %s18, 1
    %p76 = por %p74, %p75
    %p78 = scmp.ne.s32.totalorder %s63, %s77
    %p79 = scmp.eq.s32.totalorder %s18, 0
    %p80 = por %p78, %p79
    %s82 = sadd.s32 %s81, 1
    %p85 = scmp.eq.s32.totalorder %s12, 1
    %p86 = scmp.ne.s32.totalorder %s81, %s83
    %p87 = scmp.eq.s32.totalorder %s12, 0
    %p88 = por %p86, %p87
    %p89 = scmp.ne.s32.totalorder %s81, %s83
    %p90 = scmp.eq.s32.totalorder %s17, 1
    %p91 = por %p89, %p90
    %p92 = scmp.ne.s32.totalorder %s83, %s84
    %p93 = scmp.eq.s32.totalorder %s17, 0
    %p94 = por %p92, %p93
    %p95 = scmp.ne.s32.totalorder %s83, %s84
    %p96 = scmp.eq.s32.totalorder %s18, 1
    %p97 = por %p95, %p96
    %p99 = scmp.ne.s32.totalorder %s84, %s98
    %p100 = scmp.eq.s32.totalorder %s18, 0
    %p101 = por %p99, %p100
    %s103 = sadd.s32 %s102, 1
    %p106 = scmp.eq.s32.totalorder %s12, 1
    %p107 = scmp.ne.s32.totalorder %s102, %s104
    %p108 = scmp.eq.s32.totalorder %s12, 0
    %p109 = por %p107, %p108
    %p110 = scmp.ne.s32.totalorder %s102, %s104
    %p111 = scmp.eq.s32.totalorder %s17, 1
    %p112 = por %p110, %p111
    %p113 = scmp.ne.s32.totalorder %s104, %s105
    %p114 = scmp.eq.s32.totalorder %s17, 0
    %p115 = por %p113, %p114
    %p116 = scmp.ne.s32.totalorder %s104, %s105
    %p117 = scmp.eq.s32.totalorder %s18, 1
    %p118 = por %p116, %p117
    %p120 = scmp.ne.s32.totalorder %s105, %s119
    %p121 = scmp.eq.s32.totalorder %s18, 0
    %p122 = por %p120, %p121
    %s124 = sadd.s32 %s123, 1
    %p127 = scmp.eq.s32.totalorder %s12, 1
    %p128 = scmp.ne.s32.totalorder %s123, %s125
    %p129 = scmp.eq.s32.totalorder %s12, 0
    %p130 = por %p128, %p129
    %p131 = scmp.ne.s32.totalorder %s123, %s125
    %p132 = scmp.eq.s32.totalorder %s17, 1
    %p133 = por %p131, %p132
    %p134 = scmp.ne.s32.totalorder %s125, %s126
    %p135 = scmp.eq.s32.totalorder %s17, 0
    %p136 = por %p134, %p135
    %p137 = scmp.ne.s32.totalorder %s125, %s126
    %p138 = scmp.eq.s32.totalorder %s18, 1
    %p139 = por %p137, %p138
    %p141 = scmp.ne.s32.totalorder %s126, %s140
    %p142 = scmp.eq.s32.totalorder %s18, 0
    %p143 = por %p141, %p142
    %s145 = sadd.s32 %s144, 1
    %p148 = scmp.eq.s32.totalorder %s12, 1
    %p149 = scmp.ne.s32.totalorder %s144, %s146
    %p150 = scmp.eq.s32.totalorder %s12, 0
    %p151 = por %p149, %p150
    %p152 = scmp.ne.s32.totalorder %s144, %s146
    %p153 = scmp.eq.s32.totalorder %s17, 1
    %p154 = por %p152, %p153
    %p155 = scmp.ne.s32.totalorder %s146, %s147
    %p156 = scmp.eq.s32.totalorder %s17, 0
    %p157 = por %p155, %p156
    %p158 = scmp.ne.s32.totalorder %s146, %s147
    %p159 = scmp.eq.s32.totalorder %s18, 1
    %p160 = por %p158, %p159
    %p162 = scmp.ne.s32.totalorder %s147, %s161
    %p163 = scmp.eq.s32.totalorder %s18, 0
    %p164 = por %p162, %p163
    %s165 = ssub.s32 %s19, %s31
    %s166 = ssub.s32 %s20, %s27
    %s167 = sor.u32 %s165, %s166
    %p168 = scmp.eq.s32.totalorder %s167, 0
    %s170 = sadd.s32 %s169, 1
    %s171 = scalar_select %p168, %s169, %s170
    %p174 = pneg %p168
    %p175 = scmp.eq.s32.totalorder %s12, 1
    %p176 = por %p174, %p175
    %p177 = scmp.ne.s32.totalorder %s169, %s172
    %p178 = scmp.eq.s32.totalorder %s12, 0
    %p179 = por %p177, %p178
    %p180 = scmp.ne.s32.totalorder %s169, %s172
    %p181 = scmp.eq.s32.totalorder %s17, 1
    %p182 = por %p180, %p181
    %p183 = scmp.ne.s32.totalorder %s172, %s173
    %p184 = scmp.eq.s32.totalorder %s17, 0
    %p185 = por %p183, %p184
    %p186 = scmp.ne.s32.totalorder %s172, %s173
    %p187 = scmp.eq.s32.totalorder %s18, 1
    %p188 = por %p186, %p187
    %p190 = scmp.ne.s32.totalorder %s173, %s189
    %p191 = scmp.eq.s32.totalorder %s18, 0
    %p192 = por %p190, %p191
    %p193 = scmp.le.s32.totalorder 1, %s12
    %p194 = scmp.lt.s32.totalorder %s12, 3
    %p195 = pnand %p193, %p194
    %p196 = pneg %p195
    // Predicated region
    $region9: #{dgf_forward.6} parent=5 // pred_check
      _
    $region10: #{dgf_forward.6} parent=5 // pred_check_branch
      %198 = sbr.rel (%p195) target = $region12
    $region11: #{dgf_forward.6} parent=5 // pred_region
      %s199 = ssub.s32 %s12, 1
      // Predicated region
      $region13: #{dgf_forward.6} parent=11 // pred_check
        %p200 = pneg %p73
      $region14: #{dgf_forward.6} parent=11 // pred_check_branch
        %202 = sbr.rel (%p200) target = $region16
      $region15: #{dgf_forward.6} parent=11 // pred_region
        _
      $region16: #{dgf_forward.6} parent=11 // pred_fallthru
        _
      // Predicated region
      $region17: #{dgf_forward.6} parent=11 // pred_check
        %p203 = pneg %p94
      $region18: #{dgf_forward.6} parent=11 // pred_check_branch
        %205 = sbr.rel (%p203) target = $region20
      $region19: #{dgf_forward.6} parent=11 // pred_region
        _
      $region20: #{dgf_forward.6} parent=11 // pred_fallthru
        _
      // Predicated region
      $region21: #{dgf_forward.6} parent=11 // pred_check
        %p206 = pneg %p115
      $region22: #{dgf_forward.6} parent=11 // pred_check_branch
        %208 = sbr.rel (%p206) target = $region24
      $region23: #{dgf_forward.6} parent=11 // pred_region
        _
      $region24: #{dgf_forward.6} parent=11 // pred_fallthru
        _
      // Predicated region
      $region25: #{dgf_forward.6} parent=11 // pred_check
        %p209 = pneg %p136
      $region26: #{dgf_forward.6} parent=11 // pred_check_branch
        %211 = sbr.rel (%p209) target = $region28
      $region27: #{dgf_forward.6} parent=11 // pred_region
        _
      $region28: #{dgf_forward.6} parent=11 // pred_fallthru
        _
      // Predicated region
      $region29: #{dgf_forward.6} parent=11 // pred_check
        %p212 = pneg %p157
      $region30: #{dgf_forward.6} parent=11 // pred_check_branch
        %214 = sbr.rel (%p212) target = $region32
      $region31: #{dgf_forward.6} parent=11 // pred_region
        _
      $region32: #{dgf_forward.6} parent=11 // pred_fallthru
        _
    $region12: #{dgf_forward.6} parent=5 // pred_fallthru
      _
    %p215 = scmp.lt.s32.totalorder %s12, 2
    // Predicated region
    $region33: #{dgf_forward.6} parent=5 // pred_check
      %p216 = pneg %p215
    $region34: #{dgf_forward.6} parent=5 // pred_check_branch
      %218 = sbr.rel (%p216) target = $region36
    $region35: #{dgf_forward.6} parent=5 // pred_region
      // Predicated region
      $region37: #{dgf_forward.6} parent=35 // pred_check
        %p219 = pneg %p46
      $region38: #{dgf_forward.6} parent=35 // pred_check_branch
        %221 = sbr.rel (%p219) target = $region40
      $region39: #{dgf_forward.6} parent=35 // pred_region
        %s222 = smul.u32 32, %s20
        %p223 = scmp.lt.s32.totalorder %s19, 1
        %s224 = scalar_select %p223, %s19, 1
        %p225 = scmp.lt.s32.totalorder %s222, 31
        %s226 = scalar_select %p225, %s222, 31
        %s227 = smul.addr %s224, 32
        %s228 = sadd.s32 %s226, %s227
        %s229 = smul.addr %s228, 4
        %s230 = scalar_lea.vmem %s0, %s229
        %s231 = smul.u32 32, %s20
      $region40: #{dgf_forward.6} parent=35 // pred_fallthru
        _
    $region36: #{dgf_forward.6} parent=5 // pred_fallthru
      _
    %p232 = scmp.le.s32.totalorder 1, %s12
    %p233 = scmp.lt.s32.totalorder %s12, 3
    %p234 = pnand %p232, %p233
    %p235 = pneg %p234
    // Predicated region
    $region41: #{dgf_forward.6} parent=5 // pred_check
      _
    $region42: #{dgf_forward.6} parent=5 // pred_check_branch
      %237 = sbr.rel (%p234) target = $region44
    $region43: #{dgf_forward.6} parent=5 // pred_region
      %s238 = ssub.s32 %s12, 1
      %s239 = smul.u32 32, %s22
      %p240 = scmp.lt.s32.totalorder %s21, 1
      %s241 = scalar_select %p240, %s21, 1
      %p242 = scmp.lt.s32.totalorder %s239, 31
      %s243 = scalar_select %p242, %s239, 31
      %s244 = smul.addr %s241, 32
      %s245 = sadd.s32 %s243, %s244
      %s246 = smul.addr %s245, 4
      %s247 = scalar_lea.vmem %s0, %s246
      %p248 = pneg %p52
      %p249 = pneg %p49
      %p250 = pneg %p73
      %p251 = pneg %p70
      %p252 = pneg %p94
      %p253 = pneg %p91
      %p254 = pneg %p115
      %p255 = pneg %p112
      %p256 = pneg %p136
      %p257 = pneg %p133
      %p258 = pneg %p157
      %p259 = pneg %p154
      %p260 = pneg %p185
      %p261 = pneg %p182
      %s262 = smul.u32 32, %s22
      %p263 = scmp.lt.s32.totalorder %s21, 1
      %s264 = scalar_select %p263, %s21, 1
      %p265 = scmp.lt.s32.totalorder %s262, 31
      %s266 = scalar_select %p265, %s262, 31
      %s267 = smul.addr %s264, 32
      %s268 = sadd.s32 %s266, %s267
      %s269 = smul.addr %s268, 4
      %s270 = scalar_lea.vmem %s6, %s269
      %s271 = smul.u32 32, %s22
      %p272 = scmp.lt.s32.totalorder %s21, 1
      %s273 = scalar_select %p272, %s21, 1
      %p274 = scmp.lt.s32.totalorder %s271, 31
      %s275 = scalar_select %p274, %s271, 31
      %s276 = smul.addr %s273, 32
      %s277 = sadd.s32 %s275, %s276
      %s278 = smul.addr %s277, 4
      %s279 = scalar_lea.vmem %s0, %s278
      %s280 = smul.u32 32, %s22
      %s281 = smul.u32 32, %s22
      %p282 = scmp.lt.s32.totalorder %s21, 1
      %s283 = scalar_select %p282, %s21, 1
      %p284 = scmp.lt.s32.totalorder %s281, 31
      %s285 = scalar_select %p284, %s281, 31
      %s286 = smul.addr %s283, 32
      %s287 = sadd.s32 %s285, %s286
      %s288 = smul.addr %s287, 4
      %s289 = scalar_lea.vmem %s6, %s288
      %s290 = smul.u32 32, %s22
      %v291 = vld [vmem:[%s279] sm:$0x77]
      %v292 = vld [vmem:[%s279 + $0x8] sm:$0x77]
      %v293 = vld [vmem:[%s279 + $0x10] sm:$0x77]
      %v294 = vld [vmem:[%s279 + $0x18] sm:$0x77]
      %v295 = vld [vmem:[%s279 + $0x20] sm:$0x77]
      %v296 = vld [vmem:[%s279 + $0x28] sm:$0x77]
      %v297 = vld [vmem:[%s279 + $0x30] sm:$0x77]
      %v298 = vld [vmem:[%s279 + $0x38] sm:$0x77]
      %v299 = vld [vmem:[%s279 + $0x40] sm:$0x77]
      %v300 = vld [vmem:[%s279 + $0x48] sm:$0x77]
      %v301 = vld [vmem:[%s279 + $0x50] sm:$0x77]
      %v302 = vld [vmem:[%s279 + $0x58] sm:$0x77]
      %v303 = vld [vmem:[%s279 + $0x60] sm:$0x77]
      %v304 = vld [vmem:[%s279 + $0x68] sm:$0x77]
      %v305 = vld [vmem:[%s279 + $0x70] sm:$0x77]
      %v306 = vld [vmem:[%s279 + $0x78] sm:$0x77]
      %v307 = vld [vmem:[%s1] sm:$0xff]
      %v308 = vld [vmem:[%s1 + $0x8] sm:$0xff]
      %325 = vst [vmem:[#allocation1] ss:$2 sm:$0xff] %v291
      %s326 = scalar_lea.vmem [#allocation1], 16
      %327 = vst [vmem:[%s326] ss:$2 sm:$0xff] %v292
      %s328 = scalar_lea.vmem [#allocation1], 32
      %329 = vst [vmem:[%s328] ss:$2 sm:$0xff] %v293
      %s330 = scalar_lea.vmem [#allocation1], 48
      %331 = vst [vmem:[%s330] ss:$2 sm:$0xff] %v294
      %v332 = vld.sshfl [vmem:[#allocation1] sm:$0xff pattern:$0x75316420]
      %v333 = vld.sshfl [vmem:[#allocation1 + $0x8] sm:$0xff pattern:$0x75316420]
      %v334 = vld.sshfl [vmem:[#allocation1 + $0x10] sm:$0xff pattern:$0x75316420]
      %v335 = vld.sshfl [vmem:[#allocation1 + $0x18] sm:$0xff pattern:$0x75316420]
      %v336 = vld.sshfl [vmem:[#allocation1 + $0x20] sm:$0xff pattern:$0x75316420]
      %v337 = vld.sshfl [vmem:[#allocation1 + $0x28] sm:$0xff pattern:$0x75316420]
      %v338 = vld.sshfl [vmem:[#allocation1 + $0x30] sm:$0xff pattern:$0x75316420]
      %v339 = vld.sshfl [vmem:[#allocation1 + $0x38] sm:$0xff pattern:$0x75316420]
      %340 = vst [vmem:[#allocation1] ss:$2 sm:$0xff] %v295
      %341 = vst [vmem:[%s326] ss:$2 sm:$0xff] %v296
      %342 = vst [vmem:[%s328] ss:$2 sm:$0xff] %v297
      %343 = vst [vmem:[%s330] ss:$2 sm:$0xff] %v298
      %v344 = vld.sshfl [vmem:[#allocation1] sm:$0xff pattern:$0x75316420]
      %v345 = vld.sshfl [vmem:[#allocation1 + $0x8] sm:$0xff pattern:$0x75316420]
      %v346 = vld.sshfl [vmem:[#allocation1 + $0x10] sm:$0xff pattern:$0x75316420]
      %v347 = vld.sshfl [vmem:[#allocation1 + $0x18] sm:$0xff pattern:$0x75316420]
      %v348 = vld.sshfl [vmem:[#allocation1 + $0x20] sm:$0xff pattern:$0x75316420]
      %v349 = vld.sshfl [vmem:[#allocation1 + $0x28] sm:$0xff pattern:$0x75316420]
      %v350 = vld.sshfl [vmem:[#allocation1 + $0x30] sm:$0xff pattern:$0x75316420]
      %v351 = vld.sshfl [vmem:[#allocation1 + $0x38] sm:$0xff pattern:$0x75316420]
      %352 = vst [vmem:[#allocation1] ss:$2 sm:$0xff] %v299
      %353 = vst [vmem:[%s326] ss:$2 sm:$0xff] %v300
      %354 = vst [vmem:[%s328] ss:$2 sm:$0xff] %v301
      %355 = vst [vmem:[%s330] ss:$2 sm:$0xff] %v302
      %v356 = vld.sshfl [vmem:[#allocation1] sm:$0xff pattern:$0x75316420]
      %v357 = vld.sshfl [vmem:[#allocation1 + $0x8] sm:$0xff pattern:$0x75316420]
      %v358 = vld.sshfl [vmem:[#allocation1 + $0x10] sm:$0xff pattern:$0x75316420]
      %v359 = vld.sshfl [vmem:[#allocation1 + $0x18] sm:$0xff pattern:$0x75316420]
      %v360 = vld.sshfl [vmem:[#allocation1 + $0x20] sm:$0xff pattern:$0x75316420]
      %v361 = vld.sshfl [vmem:[#allocation1 + $0x28] sm:$0xff pattern:$0x75316420]
      %v362 = vld.sshfl [vmem:[#allocation1 + $0x30] sm:$0xff pattern:$0x75316420]
      %v363 = vld.sshfl [vmem:[#allocation1 + $0x38] sm:$0xff pattern:$0x75316420]
      %364 = vst [vmem:[#allocation1] ss:$2 sm:$0xff] %v303
      %365 = vst [vmem:[%s326] ss:$2 sm:$0xff] %v304
      %366 = vst [vmem:[%s328] ss:$2 sm:$0xff] %v305
      %367 = vst [vmem:[%s330] ss:$2 sm:$0xff] %v306
      %v368 = vld.sshfl [vmem:[#allocation1] sm:$0xff pattern:$0x75316420]
      %v369 = vld.sshfl [vmem:[#allocation1 + $0x8] sm:$0xff pattern:$0x75316420]
      %v370 = vld.sshfl [vmem:[#allocation1 + $0x10] sm:$0xff pattern:$0x75316420]
      %v371 = vld.sshfl [vmem:[#allocation1 + $0x18] sm:$0xff pattern:$0x75316420]
      %v372 = vld.sshfl [vmem:[#allocation1 + $0x20] sm:$0xff pattern:$0x75316420]
      %v373 = vld.sshfl [vmem:[#allocation1 + $0x28] sm:$0xff pattern:$0x75316420]
      %v374 = vld.sshfl [vmem:[#allocation1 + $0x30] sm:$0xff pattern:$0x75316420]
      %v375 = vld.sshfl [vmem:[#allocation1 + $0x38] sm:$0xff pattern:$0x75316420]
      %vm376 = vcmask 23552
      %v378 = vsel %vm376, %v307, 0
      %v381 = vsel %vm376, %v308, 0
      %vm383 = vcmask 1042432
      %v384 = vsel %vm383, %v332, 0
      %v386 = vsel %vm383, %v333, 0
      %v388 = vsel %vm383, %v334, 0
      %v390 = vsel %vm383, %v335, 0
      %v392 = vsel %vm383, %v336, 0
      %v394 = vsel %vm383, %v337, 0
      %v396 = vsel %vm383, %v338, 0
      %v398 = vsel %vm383, %v339, 0
      %v400 = vsel %vm383, %v344, 0
      %v402 = vsel %vm383, %v345, 0
      %v404 = vsel %vm383, %v346, 0
      %v406 = vsel %vm383, %v347, 0
      %v408 = vsel %vm383, %v348, 0
      %v410 = vsel %vm383, %v349, 0
      %v412 = vsel %vm383, %v350, 0
      %v414 = vsel %vm383, %v351, 0
      %v416 = vsel %vm383, %v356, 0
      %v418 = vsel %vm383, %v357, 0
      %v420 = vsel %vm383, %v358, 0
      %v422 = vsel %vm383, %v359, 0
      %v424 = vsel %vm383, %v360, 0
      %v426 = vsel %vm383, %v361, 0
      %v428 = vsel %vm383, %v362, 0
      %v430 = vsel %vm383, %v363, 0
      %v432 = vsel %vm383, %v368, 0
      %v434 = vsel %vm383, %v369, 0
      %v436 = vsel %vm383, %v370, 0
      %v438 = vsel %vm383, %v371, 0
      %v440 = vsel %vm383, %v372, 0
      %v442 = vsel %vm383, %v373, 0
      %v444 = vsel %vm383, %v374, 0
      %v446 = vsel %vm383, %v375, 0
      %448 = vmatpush.msra.mxu0 0.0
      %449 = vmatpush.msra.mxu0 0.0
      %450 = vmatpush.msra.mxu0 0.0
      %451 = vmatpush.msra.mxu0 0.0
      %452 = vmatpush.msra.mxu0 0.0
      %453 = vmatpush.msra.mxu0 0.0
      %454 = vmatpush.msra.mxu0 0.0
      %455 = vmatpush.msra.mxu0 0.0
      %456 = vmatpush.msra.mxu0 0.0
      %457 = vmatpush.msra.mxu0 0.0
      %458 = vmatpush.msra.mxu0 0.0
      %459 = vmatpush.msra.mxu0 0.0
      %460 = vmatpush.msra.mxu0 0.0
      %461 = vmatpush.msra.mxu0 0.0
      %462 = vmatpush.msra.mxu0 0.0
      %463 = vmatpush.msra.mxu0 %v384
      %464 = vmatmul.f32.gmra.mxu0 %v378
      %v465 = vpop.f32.mrf.mxu0
      %v466 = vadd.f32 0.0, %v465
      %467 = vmatmul.f32.gmra.mxu0 %v381
      %v468 = vpop.f32.mrf.mxu0
      %v469 = vadd.f32 0.0, %v468
      %470 = vdwg.mxu0
      %471 = vmatpush.msra.mxu0 0.0
      %472 = vmatpush.msra.mxu0 0.0
      %473 = vmatpush.msra.mxu0 0.0
      %474 = vmatpush.msra.mxu0 0.0
      %475 = vmatpush.msra.mxu0 0.0
      %476 = vmatpush.msra.mxu0 0.0
      %477 = vmatpush.msra.mxu0 0.0
      %478 = vmatpush.msra.mxu0 0.0
      %479 = vmatpush.msra.mxu0 0.0
      %480 = vmatpush.msra.mxu0 0.0
      %481 = vmatpush.msra.mxu0 0.0
      %482 = vmatpush.msra.mxu0 0.0
      %483 = vmatpush.msra.mxu0 0.0
      %484 = vmatpush.msra.mxu0 0.0
      %485 = vmatpush.msra.mxu0 0.0
      %486 = vmatpush.msra.mxu0 %v386
      %487 = vmatmul.f32.gmra.mxu0 %v378
      %v488 = vpop.f32.mrf.mxu0
      %v489 = vadd.f32 0.0, %v488
      %490 = vmatmul.f32.gmra.mxu0 %v381
      %v491 = vpop.f32.mrf.mxu0
      %v492 = vadd.f32 0.0, %v491
      %493 = vdwg.mxu0
      %494 = vmatpush.msra.mxu0 0.0
      %495 = vmatpush.msra.mxu0 0.0
      %496 = vmatpush.msra.mxu0 0.0
      %497 = vmatpush.msra.mxu0 0.0
      %498 = vmatpush.msra.mxu0 0.0
      %499 = vmatpush.msra.mxu0 0.0
      %500 = vmatpush.msra.mxu0 0.0
      %501 = vmatpush.msra.mxu0 0.0
      %502 = vmatpush.msra.mxu0 0.0
      %503 = vmatpush.msra.mxu0 0.0
      %504 = vmatpush.msra.mxu0 0.0
      %505 = vmatpush.msra.mxu0 0.0
      %506 = vmatpush.msra.mxu0 0.0
      %507 = vmatpush.msra.mxu0 0.0
      %508 = vmatpush.msra.mxu0 0.0
      %509 = vmatpush.msra.mxu0 %v388
      %510 = vmatmul.f32.gmra.mxu0 %v378
      %v511 = vpop.f32.mrf.mxu0
      %v512 = vadd.f32 0.0, %v511
      %513 = vmatmul.f32.gmra.mxu0 %v381
      %v514 = vpop.f32.mrf.mxu0
      %v515 = vadd.f32 0.0, %v514
      %516 = vdwg.mxu0
      %517 = vmatpush.msra.mxu0 0.0
      %518 = vmatpush.msra.mxu0 0.0
      %519 = vmatpush.msra.mxu0 0.0
      %520 = vmatpush.msra.mxu0 0.0
      %521 = vmatpush.msra.mxu0 0.0
      %522 = vmatpush.msra.mxu0 0.0
      %523 = vmatpush.msra.mxu0 0.0
      %524 = vmatpush.msra.mxu0 0.0
      %525 = vmatpush.msra.mxu0 0.0
      %526 = vmatpush.msra.mxu0 0.0
      %527 = vmatpush.msra.mxu0 0.0
      %528 = vmatpush.msra.mxu0 0.0
      %529 = vmatpush.msra.mxu0 0.0
      %530 = vmatpush.msra.mxu0 0.0
      %531 = vmatpush.msra.mxu0 0.0
      %532 = vmatpush.msra.mxu0 %v390
      %533 = vmatmul.f32.gmra.mxu0 %v378
      %v534 = vpop.f32.mrf.mxu0
      %v535 = vadd.f32 0.0, %v534
      %536 = vmatmul.f32.gmra.mxu0 %v381
      %v537 = vpop.f32.mrf.mxu0
      %v538 = vadd.f32 0.0, %v537
      %539 = vdwg.mxu0
      %540 = vmatpush.msra.mxu0 0.0
      %541 = vmatpush.msra.mxu0 0.0
      %542 = vmatpush.msra.mxu0 0.0
      %543 = vmatpush.msra.mxu0 0.0
      %544 = vmatpush.msra.mxu0 0.0
      %545 = vmatpush.msra.mxu0 0.0
      %546 = vmatpush.msra.mxu0 0.0
      %547 = vmatpush.msra.mxu0 0.0
      %548 = vmatpush.msra.mxu0 0.0
      %549 = vmatpush.msra.mxu0 0.0
      %550 = vmatpush.msra.mxu0 0.0
      %551 = vmatpush.msra.mxu0 0.0
      %552 = vmatpush.msra.mxu0 0.0
      %553 = vmatpush.msra.mxu0 0.0
      %554 = vmatpush.msra.mxu0 0.0
      %555 = vmatpush.msra.mxu0 %v392
      %556 = vmatmul.f32.gmra.mxu0 %v378
      %v557 = vpop.f32.mrf.mxu0
      %v558 = vadd.f32 0.0, %v557
      %559 = vmatmul.f32.gmra.mxu0 %v381
      %v560 = vpop.f32.mrf.mxu0
      %v561 = vadd.f32 0.0, %v560
      %562 = vdwg.mxu0
      %563 = vmatpush.msra.mxu0 0.0
      %564 = vmatpush.msra.mxu0 0.0
      %565 = vmatpush.msra.mxu0 0.0
      %566 = vmatpush.msra.mxu0 0.0
      %567 = vmatpush.msra.mxu0 0.0
      %568 = vmatpush.msra.mxu0 0.0
      %569 = vmatpush.msra.mxu0 0.0
      %570 = vmatpush.msra.mxu0 0.0
      %571 = vmatpush.msra.mxu0 0.0
      %572 = vmatpush.msra.mxu0 0.0
      %573 = vmatpush.msra.mxu0 0.0
      %574 = vmatpush.msra.mxu0 0.0
      %575 = vmatpush.msra.mxu0 0.0
      %576 = vmatpush.msra.mxu0 0.0
      %577 = vmatpush.msra.mxu0 0.0
      %578 = vmatpush.msra.mxu0 %v394
      %579 = vmatmul.f32.gmra.mxu0 %v378
      %v580 = vpop.f32.mrf.mxu0
      %v581 = vadd.f32 0.0, %v580
      %582 = vmatmul.f32.gmra.mxu0 %v381
      %v583 = vpop.f32.mrf.mxu0
      %v584 = vadd.f32 0.0, %v583
      %585 = vdwg.mxu0
      %586 = vmatpush.msra.mxu0 0.0
      %587 = vmatpush.msra.mxu0 0.0
      %588 = vmatpush.msra.mxu0 0.0
      %589 = vmatpush.msra.mxu0 0.0
      %590 = vmatpush.msra.mxu0 0.0
      %591 = vmatpush.msra.mxu0 0.0
      %592 = vmatpush.msra.mxu0 0.0
      %593 = vmatpush.msra.mxu0 0.0
      %594 = vmatpush.msra.mxu0 0.0
      %595 = vmatpush.msra.mxu0 0.0
      %596 = vmatpush.msra.mxu0 0.0
      %597 = vmatpush.msra.mxu0 0.0
      %598 = vmatpush.msra.mxu0 0.0
      %599 = vmatpush.msra.mxu0 0.0
      %600 = vmatpush.msra.mxu0 0.0
      %601 = vmatpush.msra.mxu0 %v396
      %602 = vmatmul.f32.gmra.mxu0 %v378
      %v603 = vpop.f32.mrf.mxu0
      %v604 = vadd.f32 0.0, %v603
      %605 = vmatmul.f32.gmra.mxu0 %v381
      %v606 = vpop.f32.mrf.mxu0
      %v607 = vadd.f32 0.0, %v606
      %608 = vdwg.mxu0
      %609 = vmatpush.msra.mxu0 0.0
      %610 = vmatpush.msra.mxu0 0.0
      %611 = vmatpush.msra.mxu0 0.0
      %612 = vmatpush.msra.mxu0 0.0
      %613 = vmatpush.msra.mxu0 0.0
      %614 = vmatpush.msra.mxu0 0.0
      %615 = vmatpush.msra.mxu0 0.0
      %616 = vmatpush.msra.mxu0 0.0
      %617 = vmatpush.msra.mxu0 0.0
      %618 = vmatpush.msra.mxu0 0.0
      %619 = vmatpush.msra.mxu0 0.0
      %620 = vmatpush.msra.mxu0 0.0
      %621 = vmatpush.msra.mxu0 0.0
      %622 = vmatpush.msra.mxu0 0.0
      %623 = vmatpush.msra.mxu0 0.0
      %624 = vmatpush.msra.mxu0 %v398
      %625 = vmatmul.f32.gmra.mxu0 %v378
      %v626 = vpop.f32.mrf.mxu0
      %v627 = vadd.f32 0.0, %v626
      %628 = vmatmul.f32.gmra.mxu0 %v381
      %v629 = vpop.f32.mrf.mxu0
      %v630 = vadd.f32 0.0, %v629
      %631 = vdwg.mxu0
      %632 = vmatpush.msra.mxu0 0.0
      %633 = vmatpush.msra.mxu0 0.0
      %634 = vmatpush.msra.mxu0 0.0
      %635 = vmatpush.msra.mxu0 0.0
      %636 = vmatpush.msra.mxu0 0.0
      %637 = vmatpush.msra.mxu0 0.0
      %638 = vmatpush.msra.mxu0 0.0
      %639 = vmatpush.msra.mxu0 0.0
      %640 = vmatpush.msra.mxu0 0.0
      %641 = vmatpush.msra.mxu0 0.0
      %642 = vmatpush.msra.mxu0 0.0
      %643 = vmatpush.msra.mxu0 0.0
      %644 = vmatpush.msra.mxu0 0.0
      %645 = vmatpush.msra.mxu0 0.0
      %646 = vmatpush.msra.mxu0 0.0
      %647 = vmatpush.msra.mxu0 %v400
      %648 = vmatmul.f32.gmra.mxu0 %v378
      %v649 = vpop.f32.mrf.mxu0
      %v650 = vadd.f32 0.0, %v649
      %651 = vmatmul.f32.gmra.mxu0 %v381
      %v652 = vpop.f32.mrf.mxu0
      %v653 = vadd.f32 0.0, %v652
      %654 = vdwg.mxu0
      %655 = vmatpush.msra.mxu0 0.0
      %656 = vmatpush.msra.mxu0 0.0
      %657 = vmatpush.msra.mxu0 0.0
      %658 = vmatpush.msra.mxu0 0.0
      %659 = vmatpush.msra.mxu0 0.0
      %660 = vmatpush.msra.mxu0 0.0
      %661 = vmatpush.msra.mxu0 0.0
      %662 = vmatpush.msra.mxu0 0.0
      %663 = vmatpush.msra.mxu0 0.0
      %664 = vmatpush.msra.mxu0 0.0
      %665 = vmatpush.msra.mxu0 0.0
      %666 = vmatpush.msra.mxu0 0.0
      %667 = vmatpush.msra.mxu0 0.0
      %668 = vmatpush.msra.mxu0 0.0
      %669 = vmatpush.msra.mxu0 0.0
      %670 = vmatpush.msra.mxu0 %v402
      %671 = vmatmul.f32.gmra.mxu0 %v378
      %v672 = vpop.f32.mrf.mxu0
      %v673 = vadd.f32 0.0, %v672
      %674 = vmatmul.f32.gmra.mxu0 %v381
      %v675 = vpop.f32.mrf.mxu0
      %v676 = vadd.f32 0.0, %v675
      %677 = vdwg.mxu0
      %678 = vmatpush.msra.mxu0 0.0
      %679 = vmatpush.msra.mxu0 0.0
      %680 = vmatpush.msra.mxu0 0.0
      %681 = vmatpush.msra.mxu0 0.0
      %682 = vmatpush.msra.mxu0 0.0
      %683 = vmatpush.msra.mxu0 0.0
      %684 = vmatpush.msra.mxu0 0.0
      %685 = vmatpush.msra.mxu0 0.0
      %686 = vmatpush.msra.mxu0 0.0
      %687 = vmatpush.msra.mxu0 0.0
      %688 = vmatpush.msra.mxu0 0.0
      %689 = vmatpush.msra.mxu0 0.0
      %690 = vmatpush.msra.mxu0 0.0
      %691 = vmatpush.msra.mxu0 0.0
      %692 = vmatpush.msra.mxu0 0.0
      %693 = vmatpush.msra.mxu0 %v404
      %694 = vmatmul.f32.gmra.mxu0 %v378
      %v695 = vpop.f32.mrf.mxu0
      %v696 = vadd.f32 0.0, %v695
      %697 = vmatmul.f32.gmra.mxu0 %v381
      %v698 = vpop.f32.mrf.mxu0
      %v699 = vadd.f32 0.0, %v698
      %700 = vdwg.mxu0
      %701 = vmatpush.msra.mxu0 0.0
      %702 = vmatpush.msra.mxu0 0.0
      %703 = vmatpush.msra.mxu0 0.0
      %704 = vmatpush.msra.mxu0 0.0
      %705 = vmatpush.msra.mxu0 0.0
      %706 = vmatpush.msra.mxu0 0.0
      %707 = vmatpush.msra.mxu0 0.0
      %708 = vmatpush.msra.mxu0 0.0
      %709 = vmatpush.msra.mxu0 0.0
      %710 = vmatpush.msra.mxu0 0.0
      %711 = vmatpush.msra.mxu0 0.0
      %712 = vmatpush.msra.mxu0 0.0
      %713 = vmatpush.msra.mxu0 0.0
      %714 = vmatpush.msra.mxu0 0.0
      %715 = vmatpush.msra.mxu0 0.0
      %716 = vmatpush.msra.mxu0 %v406
      %717 = vmatmul.f32.gmra.mxu0 %v378
      %v718 = vpop.f32.mrf.mxu0
      %v719 = vadd.f32 0.0, %v718
      %720 = vmatmul.f32.gmra.mxu0 %v381
      %v721 = vpop.f32.mrf.mxu0
      %v722 = vadd.f32 0.0, %v721
      %723 = vdwg.mxu0
      %724 = vmatpush.msra.mxu0 0.0
      %725 = vmatpush.msra.mxu0 0.0
      %726 = vmatpush.msra.mxu0 0.0
      %727 = vmatpush.msra.mxu0 0.0
      %728 = vmatpush.msra.mxu0 0.0
      %729 = vmatpush.msra.mxu0 0.0
      %730 = vmatpush.msra.mxu0 0.0
      %731 = vmatpush.msra.mxu0 0.0
      %732 = vmatpush.msra.mxu0 0.0
      %733 = vmatpush.msra.mxu0 0.0
      %734 = vmatpush.msra.mxu0 0.0
      %735 = vmatpush.msra.mxu0 0.0
      %736 = vmatpush.msra.mxu0 0.0
      %737 = vmatpush.msra.mxu0 0.0
      %738 = vmatpush.msra.mxu0 0.0
      %739 = vmatpush.msra.mxu0 %v408
      %740 = vmatmul.f32.gmra.mxu0 %v378
      %v741 = vpop.f32.mrf.mxu0
      %v742 = vadd.f32 0.0, %v741
      %743 = vmatmul.f32.gmra.mxu0 %v381
      %v744 = vpop.f32.mrf.mxu0
      %v745 = vadd.f32 0.0, %v744
      %746 = vdwg.mxu0
      %747 = vmatpush.msra.mxu0 0.0
      %748 = vmatpush.msra.mxu0 0.0
      %749 = vmatpush.msra.mxu0 0.0
      %750 = vmatpush.msra.mxu0 0.0
      %751 = vmatpush.msra.mxu0 0.0
      %752 = vmatpush.msra.mxu0 0.0
      %753 = vmatpush.msra.mxu0 0.0
      %754 = vmatpush.msra.mxu0 0.0
      %755 = vmatpush.msra.mxu0 0.0
      %756 = vmatpush.msra.mxu0 0.0
      %757 = vmatpush.msra.mxu0 0.0
      %758 = vmatpush.msra.mxu0 0.0
      %759 = vmatpush.msra.mxu0 0.0
      %760 = vmatpush.msra.mxu0 0.0
      %761 = vmatpush.msra.mxu0 0.0
      %762 = vmatpush.msra.mxu0 %v410
      %763 = vmatmul.f32.gmra.mxu0 %v378
      %v764 = vpop.f32.mrf.mxu0
      %v765 = vadd.f32 0.0, %v764
      %766 = vmatmul.f32.gmra.mxu0 %v381
      %v767 = vpop.f32.mrf.mxu0
      %v768 = vadd.f32 0.0, %v767
      %769 = vdwg.mxu0
      %770 = vmatpush.msra.mxu0 0.0
      %771 = vmatpush.msra.mxu0 0.0
      %772 = vmatpush.msra.mxu0 0.0
      %773 = vmatpush.msra.mxu0 0.0
      %774 = vmatpush.msra.mxu0 0.0
      %775 = vmatpush.msra.mxu0 0.0
      %776 = vmatpush.msra.mxu0 0.0
      %777 = vmatpush.msra.mxu0 0.0
      %778 = vmatpush.msra.mxu0 0.0
      %779 = vmatpush.msra.mxu0 0.0
      %780 = vmatpush.msra.mxu0 0.0
      %781 = vmatpush.msra.mxu0 0.0
      %782 = vmatpush.msra.mxu0 0.0
      %783 = vmatpush.msra.mxu0 0.0
      %784 = vmatpush.msra.mxu0 0.0
      %785 = vmatpush.msra.mxu0 %v412
      %786 = vmatmul.f32.gmra.mxu0 %v378
      %v787 = vpop.f32.mrf.mxu0
      %v788 = vadd.f32 0.0, %v787
      %789 = vmatmul.f32.gmra.mxu0 %v381
      %v790 = vpop.f32.mrf.mxu0
      %v791 = vadd.f32 0.0, %v790
      %792 = vdwg.mxu0
      %793 = vmatpush.msra.mxu0 0.0
      %794 = vmatpush.msra.mxu0 0.0
      %795 = vmatpush.msra.mxu0 0.0
      %796 = vmatpush.msra.mxu0 0.0
      %797 = vmatpush.msra.mxu0 0.0
      %798 = vmatpush.msra.mxu0 0.0
      %799 = vmatpush.msra.mxu0 0.0
      %800 = vmatpush.msra.mxu0 0.0
      %801 = vmatpush.msra.mxu0 0.0
      %802 = vmatpush.msra.mxu0 0.0
      %803 = vmatpush.msra.mxu0 0.0
      %804 = vmatpush.msra.mxu0 0.0
      %805 = vmatpush.msra.mxu0 0.0
      %806 = vmatpush.msra.mxu0 0.0
      %807 = vmatpush.msra.mxu0 0.0
      %808 = vmatpush.msra.mxu0 %v414
      %809 = vmatmul.f32.gmra.mxu0 %v378
      %v810 = vpop.f32.mrf.mxu0
      %v811 = vadd.f32 0.0, %v810
      %812 = vmatmul.f32.gmra.mxu0 %v381
      %v813 = vpop.f32.mrf.mxu0
      %v814 = vadd.f32 0.0, %v813
      %815 = vdwg.mxu0
      %816 = vmatpush.msra.mxu0 0.0
      %817 = vmatpush.msra.mxu0 0.0
      %818 = vmatpush.msra.mxu0 0.0
      %819 = vmatpush.msra.mxu0 0.0
      %820 = vmatpush.msra.mxu0 0.0
      %821 = vmatpush.msra.mxu0 0.0
      %822 = vmatpush.msra.mxu0 0.0
      %823 = vmatpush.msra.mxu0 0.0
      %824 = vmatpush.msra.mxu0 0.0
      %825 = vmatpush.msra.mxu0 0.0
      %826 = vmatpush.msra.mxu0 0.0
      %827 = vmatpush.msra.mxu0 0.0
      %828 = vmatpush.msra.mxu0 0.0
      %829 = vmatpush.msra.mxu0 0.0
      %830 = vmatpush.msra.mxu0 0.0
      %831 = vmatpush.msra.mxu0 %v416
      %832 = vmatmul.f32.gmra.mxu0 %v378
      %v833 = vpop.f32.mrf.mxu0
      %v834 = vadd.f32 0.0, %v833
      %835 = vmatmul.f32.gmra.mxu0 %v381
      %v836 = vpop.f32.mrf.mxu0
      %v837 = vadd.f32 0.0, %v836
      %838 = vdwg.mxu0
      %839 = vmatpush.msra.mxu0 0.0
      %840 = vmatpush.msra.mxu0 0.0
      %841 = vmatpush.msra.mxu0 0.0
      %842 = vmatpush.msra.mxu0 0.0
      %843 = vmatpush.msra.mxu0 0.0
      %844 = vmatpush.msra.mxu0 0.0
      %845 = vmatpush.msra.mxu0 0.0
      %846 = vmatpush.msra.mxu0 0.0
      %847 = vmatpush.msra.mxu0 0.0
      %848 = vmatpush.msra.mxu0 0.0
      %849 = vmatpush.msra.mxu0 0.0
      %850 = vmatpush.msra.mxu0 0.0
      %851 = vmatpush.msra.mxu0 0.0
      %852 = vmatpush.msra.mxu0 0.0
      %853 = vmatpush.msra.mxu0 0.0
      %854 = vmatpush.msra.mxu0 %v418
      %855 = vmatmul.f32.gmra.mxu0 %v378
      %v856 = vpop.f32.mrf.mxu0
      %v857 = vadd.f32 0.0, %v856
      %858 = vmatmul.f32.gmra.mxu0 %v381
      %v859 = vpop.f32.mrf.mxu0
      %v860 = vadd.f32 0.0, %v859
      %861 = vdwg.mxu0
      %862 = vmatpush.msra.mxu0 0.0
      %863 = vmatpush.msra.mxu0 0.0
      %864 = vmatpush.msra.mxu0 0.0
      %865 = vmatpush.msra.mxu0 0.0
      %866 = vmatpush.msra.mxu0 0.0
      %867 = vmatpush.msra.mxu0 0.0
      %868 = vmatpush.msra.mxu0 0.0
      %869 = vmatpush.msra.mxu0 0.0
      %870 = vmatpush.msra.mxu0 0.0
      %871 = vmatpush.msra.mxu0 0.0
      %872 = vmatpush.msra.mxu0 0.0
      %873 = vmatpush.msra.mxu0 0.0
      %874 = vmatpush.msra.mxu0 0.0
      %875 = vmatpush.msra.mxu0 0.0
      %876 = vmatpush.msra.mxu0 0.0
      %877 = vmatpush.msra.mxu0 %v420
      %878 = vmatmul.f32.gmra.mxu0 %v378
      %v879 = vpop.f32.mrf.mxu0
      %v880 = vadd.f32 0.0, %v879
      %881 = vmatmul.f32.gmra.mxu0 %v381
      %v882 = vpop.f32.mrf.mxu0
      %v883 = vadd.f32 0.0, %v882
      %884 = vdwg.mxu0
      %885 = vmatpush.msra.mxu0 0.0
      %886 = vmatpush.msra.mxu0 0.0
      %887 = vmatpush.msra.mxu0 0.0
      %888 = vmatpush.msra.mxu0 0.0
      %889 = vmatpush.msra.mxu0 0.0
      %890 = vmatpush.msra.mxu0 0.0
      %891 = vmatpush.msra.mxu0 0.0
      %892 = vmatpush.msra.mxu0 0.0
      %893 = vmatpush.msra.mxu0 0.0
      %894 = vmatpush.msra.mxu0 0.0
      %895 = vmatpush.msra.mxu0 0.0
      %896 = vmatpush.msra.mxu0 0.0
      %897 = vmatpush.msra.mxu0 0.0
      %898 = vmatpush.msra.mxu0 0.0
      %899 = vmatpush.msra.mxu0 0.0
      %900 = vmatpush.msra.mxu0 %v422
      %901 = vmatmul.f32.gmra.mxu0 %v378
      %v902 = vpop.f32.mrf.mxu0
      %v903 = vadd.f32 0.0, %v902
      %904 = vmatmul.f32.gmra.mxu0 %v381
      %v905 = vpop.f32.mrf.mxu0
      %v906 = vadd.f32 0.0, %v905
      %907 = vdwg.mxu0
      %908 = vmatpush.msra.mxu0 0.0
      %909 = vmatpush.msra.mxu0 0.0
      %910 = vmatpush.msra.mxu0 0.0
      %911 = vmatpush.msra.mxu0 0.0
      %912 = vmatpush.msra.mxu0 0.0
      %913 = vmatpush.msra.mxu0 0.0
      %914 = vmatpush.msra.mxu0 0.0
      %915 = vmatpush.msra.mxu0 0.0
      %916 = vmatpush.msra.mxu0 0.0
      %917 = vmatpush.msra.mxu0 0.0
      %918 = vmatpush.msra.mxu0 0.0
      %919 = vmatpush.msra.mxu0 0.0
      %920 = vmatpush.msra.mxu0 0.0
      %921 = vmatpush.msra.mxu0 0.0
      %922 = vmatpush.msra.mxu0 0.0
      %923 = vmatpush.msra.mxu0 %v424
      %924 = vmatmul.f32.gmra.mxu0 %v378
      %v925 = vpop.f32.mrf.mxu0
      %v926 = vadd.f32 0.0, %v925
      %927 = vmatmul.f32.gmra.mxu0 %v381
      %v928 = vpop.f32.mrf.mxu0
      %v929 = vadd.f32 0.0, %v928
      %930 = vdwg.mxu0
      %931 = vmatpush.msra.mxu0 0.0
      %932 = vmatpush.msra.mxu0 0.0
      %933 = vmatpush.msra.mxu0 0.0
      %934 = vmatpush.msra.mxu0 0.0
      %935 = vmatpush.msra.mxu0 0.0
      %936 = vmatpush.msra.mxu0 0.0
      %937 = vmatpush.msra.mxu0 0.0
      %938 = vmatpush.msra.mxu0 0.0
      %939 = vmatpush.msra.mxu0 0.0
      %940 = vmatpush.msra.mxu0 0.0
      %941 = vmatpush.msra.mxu0 0.0
      %942 = vmatpush.msra.mxu0 0.0
      %943 = vmatpush.msra.mxu0 0.0
      %944 = vmatpush.msra.mxu0 0.0
      %945 = vmatpush.msra.mxu0 0.0
      %946 = vmatpush.msra.mxu0 %v426
      %947 = vmatmul.f32.gmra.mxu0 %v378
      %v948 = vpop.f32.mrf.mxu0
      %v949 = vadd.f32 0.0, %v948
      %950 = vmatmul.f32.gmra.mxu0 %v381
      %v951 = vpop.f32.mrf.mxu0
      %v952 = vadd.f32 0.0, %v951
      %953 = vdwg.mxu0
      %954 = vmatpush.msra.mxu0 0.0
      %955 = vmatpush.msra.mxu0 0.0
      %956 = vmatpush.msra.mxu0 0.0
      %957 = vmatpush.msra.mxu0 0.0
      %958 = vmatpush.msra.mxu0 0.0
      %959 = vmatpush.msra.mxu0 0.0
      %960 = vmatpush.msra.mxu0 0.0
      %961 = vmatpush.msra.mxu0 0.0
      %962 = vmatpush.msra.mxu0 0.0
      %963 = vmatpush.msra.mxu0 0.0
      %964 = vmatpush.msra.mxu0 0.0
      %965 = vmatpush.msra.mxu0 0.0
      %966 = vmatpush.msra.mxu0 0.0
      %967 = vmatpush.msra.mxu0 0.0
      %968 = vmatpush.msra.mxu0 0.0
      %969 = vmatpush.msra.mxu0 %v428
      %970 = vmatmul.f32.gmra.mxu0 %v378
      %v971 = vpop.f32.mrf.mxu0
      %v972 = vadd.f32 0.0, %v971
      %973 = vmatmul.f32.gmra.mxu0 %v381
      %v974 = vpop.f32.mrf.mxu0
      %v975 = vadd.f32 0.0, %v974
      %976 = vdwg.mxu0
      %977 = vmatpush.msra.mxu0 0.0
      %978 = vmatpush.msra.mxu0 0.0
      %979 = vmatpush.msra.mxu0 0.0
      %980 = vmatpush.msra.mxu0 0.0
      %981 = vmatpush.msra.mxu0 0.0
      %982 = vmatpush.msra.mxu0 0.0
      %983 = vmatpush.msra.mxu0 0.0
      %984 = vmatpush.msra.mxu0 0.0
      %985 = vmatpush.msra.mxu0 0.0
      %986 = vmatpush.msra.mxu0 0.0
      %987 = vmatpush.msra.mxu0 0.0
      %988 = vmatpush.msra.mxu0 0.0
      %989 = vmatpush.msra.mxu0 0.0
      %990 = vmatpush.msra.mxu0 0.0
      %991 = vmatpush.msra.mxu0 0.0
      %992 = vmatpush.msra.mxu0 %v430
      %993 = vmatmul.f32.gmra.mxu0 %v378
      %v994 = vpop.f32.mrf.mxu0
      %v995 = vadd.f32 0.0, %v994
      %996 = vmatmul.f32.gmra.mxu0 %v381
      %v997 = vpop.f32.mrf.mxu0
      %v998 = vadd.f32 0.0, %v997
      %999 = vdwg.mxu0
      %1000 = vmatpush.msra.mxu0 0.0
      %1001 = vmatpush.msra.mxu0 0.0
      %1002 = vmatpush.msra.mxu0 0.0
      %1003 = vmatpush.msra.mxu0 0.0
      %1004 = vmatpush.msra.mxu0 0.0
      %1005 = vmatpush.msra.mxu0 0.0
      %1006 = vmatpush.msra.mxu0 0.0
      %1007 = vmatpush.msra.mxu0 0.0
      %1008 = vmatpush.msra.mxu0 0.0
      %1009 = vmatpush.msra.mxu0 0.0
      %1010 = vmatpush.msra.mxu0 0.0
      %1011 = vmatpush.msra.mxu0 0.0
      %1012 = vmatpush.msra.mxu0 0.0
      %1013 = vmatpush.msra.mxu0 0.0
      %1014 = vmatpush.msra.mxu0 0.0
      %1015 = vmatpush.msra.mxu0 %v432
      %1016 = vmatmul.f32.gmra.mxu0 %v378
      %v1017 = vpop.f32.mrf.mxu0
      %v1018 = vadd.f32 0.0, %v1017
      %1019 = vmatmul.f32.gmra.mxu0 %v381
      %v1020 = vpop.f32.mrf.mxu0
      %v1021 = vadd.f32 0.0, %v1020
      %1022 = vdwg.mxu0
      %1023 = vmatpush.msra.mxu0 0.0
      %1024 = vmatpush.msra.mxu0 0.0
      %1025 = vmatpush.msra.mxu0 0.0
      %1026 = vmatpush.msra.mxu0 0.0
      %1027 = vmatpush.msra.mxu0 0.0
      %1028 = vmatpush.msra.mxu0 0.0
      %1029 = vmatpush.msra.mxu0 0.0
      %1030 = vmatpush.msra.mxu0 0.0
      %1031 = vmatpush.msra.mxu0 0.0
      %1032 = vmatpush.msra.mxu0 0.0
      %1033 = vmatpush.msra.mxu0 0.0
      %1034 = vmatpush.msra.mxu0 0.0
      %1035 = vmatpush.msra.mxu0 0.0
      %1036 = vmatpush.msra.mxu0 0.0
      %1037 = vmatpush.msra.mxu0 0.0
      %1038 = vmatpush.msra.mxu0 %v434
      %1039 = vmatmul.f32.gmra.mxu0 %v378
      %v1040 = vpop.f32.mrf.mxu0
      %v1041 = vadd.f32 0.0, %v1040
      %1042 = vmatmul.f32.gmra.mxu0 %v381
      %v1043 = vpop.f32.mrf.mxu0
      %v1044 = vadd.f32 0.0, %v1043
      %1045 = vdwg.mxu0
      %1046 = vmatpush.msra.mxu0 0.0
      %1047 = vmatpush.msra.mxu0 0.0
      %1048 = vmatpush.msra.mxu0 0.0
      %1049 = vmatpush.msra.mxu0 0.0
      %1050 = vmatpush.msra.mxu0 0.0
      %1051 = vmatpush.msra.mxu0 0.0
      %1052 = vmatpush.msra.mxu0 0.0
      %1053 = vmatpush.msra.mxu0 0.0
      %1054 = vmatpush.msra.mxu0 0.0
      %1055 = vmatpush.msra.mxu0 0.0
      %1056 = vmatpush.msra.mxu0 0.0
      %1057 = vmatpush.msra.mxu0 0.0
      %1058 = vmatpush.msra.mxu0 0.0
      %1059 = vmatpush.msra.mxu0 0.0
      %1060 = vmatpush.msra.mxu0 0.0
      %1061 = vmatpush.msra.mxu0 %v436
      %1062 = vmatmul.f32.gmra.mxu0 %v378
      %v1063 = vpop.f32.mrf.mxu0
      %v1064 = vadd.f32 0.0, %v1063
      %1065 = vmatmul.f32.gmra.mxu0 %v381
      %v1066 = vpop.f32.mrf.mxu0
      %v1067 = vadd.f32 0.0, %v1066
      %1068 = vdwg.mxu0
      %1069 = vmatpush.msra.mxu0 0.0
      %1070 = vmatpush.msra.mxu0 0.0
      %1071 = vmatpush.msra.mxu0 0.0
      %1072 = vmatpush.msra.mxu0 0.0
      %1073 = vmatpush.msra.mxu0 0.0
      %1074 = vmatpush.msra.mxu0 0.0
      %1075 = vmatpush.msra.mxu0 0.0
      %1076 = vmatpush.msra.mxu0 0.0
      %1077 = vmatpush.msra.mxu0 0.0
      %1078 = vmatpush.msra.mxu0 0.0
      %1079 = vmatpush.msra.mxu0 0.0
      %1080 = vmatpush.msra.mxu0 0.0
      %1081 = vmatpush.msra.mxu0 0.0
      %1082 = vmatpush.msra.mxu0 0.0
      %1083 = vmatpush.msra.mxu0 0.0
      %1084 = vmatpush.msra.mxu0 %v438
      %1085 = vmatmul.f32.gmra.mxu0 %v378
      %v1086 = vpop.f32.mrf.mxu0
      %v1087 = vadd.f32 0.0, %v1086
      %1088 = vmatmul.f32.gmra.mxu0 %v381
      %v1089 = vpop.f32.mrf.mxu0
      %v1090 = vadd.f32 0.0, %v1089
      %1091 = vdwg.mxu0
      %1092 = vmatpush.msra.mxu0 0.0
      %1093 = vmatpush.msra.mxu0 0.0
      %1094 = vmatpush.msra.mxu0 0.0
      %1095 = vmatpush.msra.mxu0 0.0
      %1096 = vmatpush.msra.mxu0 0.0
      %1097 = vmatpush.msra.mxu0 0.0
      %1098 = vmatpush.msra.mxu0 0.0
      %1099 = vmatpush.msra.mxu0 0.0
      %1100 = vmatpush.msra.mxu0 0.0
      %1101 = vmatpush.msra.mxu0 0.0
      %1102 = vmatpush.msra.mxu0 0.0
      %1103 = vmatpush.msra.mxu0 0.0
      %1104 = vmatpush.msra.mxu0 0.0
      %1105 = vmatpush.msra.mxu0 0.0
      %1106 = vmatpush.msra.mxu0 0.0
      %1107 = vmatpush.msra.mxu0 %v440
      %1108 = vmatmul.f32.gmra.mxu0 %v378
      %v1109 = vpop.f32.mrf.mxu0
      %v1110 = vadd.f32 0.0, %v1109
      %1111 = vmatmul.f32.gmra.mxu0 %v381
      %v1112 = vpop.f32.mrf.mxu0
      %v1113 = vadd.f32 0.0, %v1112
      %1114 = vdwg.mxu0
      %1115 = vmatpush.msra.mxu0 0.0
      %1116 = vmatpush.msra.mxu0 0.0
      %1117 = vmatpush.msra.mxu0 0.0
      %1118 = vmatpush.msra.mxu0 0.0
      %1119 = vmatpush.msra.mxu0 0.0
      %1120 = vmatpush.msra.mxu0 0.0
      %1121 = vmatpush.msra.mxu0 0.0
      %1122 = vmatpush.msra.mxu0 0.0
      %1123 = vmatpush.msra.mxu0 0.0
      %1124 = vmatpush.msra.mxu0 0.0
      %1125 = vmatpush.msra.mxu0 0.0
      %1126 = vmatpush.msra.mxu0 0.0
      %1127 = vmatpush.msra.mxu0 0.0
      %1128 = vmatpush.msra.mxu0 0.0
      %1129 = vmatpush.msra.mxu0 0.0
      %1130 = vmatpush.msra.mxu0 %v442
      %1131 = vmatmul.f32.gmra.mxu0 %v378
      %v1132 = vpop.f32.mrf.mxu0
      %v1133 = vadd.f32 0.0, %v1132
      %1134 = vmatmul.f32.gmra.mxu0 %v381
      %v1135 = vpop.f32.mrf.mxu0
      %v1136 = vadd.f32 0.0, %v1135
      %1137 = vdwg.mxu0
      %1138 = vmatpush.msra.mxu0 0.0
      %1139 = vmatpush.msra.mxu0 0.0
      %1140 = vmatpush.msra.mxu0 0.0
      %1141 = vmatpush.msra.mxu0 0.0
      %1142 = vmatpush.msra.mxu0 0.0
      %1143 = vmatpush.msra.mxu0 0.0
      %1144 = vmatpush.msra.mxu0 0.0
      %1145 = vmatpush.msra.mxu0 0.0
      %1146 = vmatpush.msra.mxu0 0.0
      %1147 = vmatpush.msra.mxu0 0.0
      %1148 = vmatpush.msra.mxu0 0.0
      %1149 = vmatpush.msra.mxu0 0.0
      %1150 = vmatpush.msra.mxu0 0.0
      %1151 = vmatpush.msra.mxu0 0.0
      %1152 = vmatpush.msra.mxu0 0.0
      %1153 = vmatpush.msra.mxu0 %v444
      %1154 = vmatmul.f32.gmra.mxu0 %v378
      %v1155 = vpop.f32.mrf.mxu0
      %v1156 = vadd.f32 0.0, %v1155
      %1157 = vmatmul.f32.gmra.mxu0 %v381
      %v1158 = vpop.f32.mrf.mxu0
      %v1159 = vadd.f32 0.0, %v1158
      %1160 = vdwg.mxu0
      %1161 = vmatpush.msra.mxu0 0.0
      %1162 = vmatpush.msra.mxu0 0.0
      %1163 = vmatpush.msra.mxu0 0.0
      %1164 = vmatpush.msra.mxu0 0.0
      %1165 = vmatpush.msra.mxu0 0.0
      %1166 = vmatpush.msra.mxu0 0.0
      %1167 = vmatpush.msra.mxu0 0.0
      %1168 = vmatpush.msra.mxu0 0.0
      %1169 = vmatpush.msra.mxu0 0.0
      %1170 = vmatpush.msra.mxu0 0.0
      %1171 = vmatpush.msra.mxu0 0.0
      %1172 = vmatpush.msra.mxu0 0.0
      %1173 = vmatpush.msra.mxu0 0.0
      %1174 = vmatpush.msra.mxu0 0.0
      %1175 = vmatpush.msra.mxu0 0.0
      %1176 = vmatpush.msra.mxu0 %v446
      %1177 = vmatmul.f32.gmra.mxu0 %v378
      %v1178 = vpop.f32.mrf.mxu0
      %v1179 = vadd.f32 0.0, %v1178
      %1180 = vmatmul.f32.gmra.mxu0 %v381
      %v1181 = vpop.f32.mrf.mxu0
      %v1182 = vadd.f32 0.0, %v1181
      %1183 = vdwg.mxu0
      %v1184 = vld [vmem:[%s2] sm:$0xff]
      %v1185 = vld [vmem:[%s2 + $0x8] sm:$0xff]
      %1187 = vset.pattern.permute.xlu0 0
      %1188 = vperm.xlu0 %1187, %v1184
      %v1189 = vpop.permute.xlu0 %1188
      %1192 = vset.pattern.permute.xlu0 0
      %1193 = vperm.xlu0 %1192, %v1185
      %v1194 = vpop.permute.xlu0 %1193
      %v1196 = vmul.f32 %v466, %v1189
      %v1197 = vmul.f32 %v489, %v1189
      %v1198 = vmul.f32 %v512, %v1189
      %v1199 = vmul.f32 %v535, %v1189
      %v1200 = vmul.f32 %v558, %v1189
      %v1201 = vmul.f32 %v581, %v1189
      %v1202 = vmul.f32 %v604, %v1189
      %v1203 = vmul.f32 %v627, %v1189
      %v1204 = vmul.f32 %v650, %v1189
      %v1205 = vmul.f32 %v673, %v1189
      %v1206 = vmul.f32 %v696, %v1189
      %v1207 = vmul.f32 %v719, %v1189
      %v1208 = vmul.f32 %v742, %v1189
      %v1209 = vmul.f32 %v765, %v1189
      %v1210 = vmul.f32 %v788, %v1189
      %v1211 = vmul.f32 %v811, %v1189
      %v1212 = vmul.f32 %v834, %v1189
      %v1213 = vmul.f32 %v857, %v1189
      %v1214 = vmul.f32 %v880, %v1189
      %v1215 = vmul.f32 %v903, %v1189
      %v1216 = vmul.f32 %v926, %v1189
      %v1217 = vmul.f32 %v949, %v1189
      %v1218 = vmul.f32 %v972, %v1189
      %v1219 = vmul.f32 %v995, %v1189
      %v1220 = vmul.f32 %v1018, %v1189
      %v1221 = vmul.f32 %v1041, %v1189
      %v1222 = vmul.f32 %v1064, %v1189
      %v1223 = vmul.f32 %v1087, %v1189
      %v1224 = vmul.f32 %v1110, %v1189
      %v1225 = vmul.f32 %v1133, %v1189
      %v1226 = vmul.f32 %v1156, %v1189
      %v1227 = vmul.f32 %v1179, %v1189
      %v1228 = vmul.f32 %v469, %v1194
      %v1229 = vmul.f32 %v492, %v1194
      %v1230 = vmul.f32 %v515, %v1194
      %v1231 = vmul.f32 %v538, %v1194
      %v1232 = vmul.f32 %v561, %v1194
      %v1233 = vmul.f32 %v584, %v1194
      %v1234 = vmul.f32 %v607, %v1194
      %v1235 = vmul.f32 %v630, %v1194
      %v1236 = vmul.f32 %v653, %v1194
      %v1237 = vmul.f32 %v676, %v1194
      %v1238 = vmul.f32 %v699, %v1194
      %v1239 = vmul.f32 %v722, %v1194
      %v1240 = vmul.f32 %v745, %v1194
      %v1241 = vmul.f32 %v768, %v1194
      %v1242 = vmul.f32 %v791, %v1194
      %v1243 = vmul.f32 %v814, %v1194
      %v1244 = vmul.f32 %v837, %v1194
      %v1245 = vmul.f32 %v860, %v1194
      %v1246 = vmul.f32 %v883, %v1194
      %v1247 = vmul.f32 %v906, %v1194
      %v1248 = vmul.f32 %v929, %v1194
      %v1249 = vmul.f32 %v952, %v1194
      %v1250 = vmul.f32 %v975, %v1194
      %v1251 = vmul.f32 %v998, %v1194
      %v1252 = vmul.f32 %v1021, %v1194
      %v1253 = vmul.f32 %v1044, %v1194
      %v1254 = vmul.f32 %v1067, %v1194
      %v1255 = vmul.f32 %v1090, %v1194
      %v1256 = vmul.f32 %v1113, %v1194
      %v1257 = vmul.f32 %v1136, %v1194
      %v1258 = vmul.f32 %v1159, %v1194
      %v1259 = vmul.f32 %v1182, %v1194
      %v1260 = vld [vmem:[%s3] sm:$0xff]
      %v1261 = vld [vmem:[%s3 + $0x8] sm:$0xff]
      %1263 = vset.pattern.permute.xlu0 0
      %1264 = vperm.xlu0 %1263, %v1260
      %v1265 = vpop.permute.xlu0 %1264
      %1268 = vset.pattern.permute.xlu0 0
      %1269 = vperm.xlu0 %1268, %v1261
      %v1270 = vpop.permute.xlu0 %1269
      %v1272 = vadd.f32 %v1196, %v1265
      %v1273 = vadd.f32 %v1197, %v1265
      %v1274 = vadd.f32 %v1198, %v1265
      %v1275 = vadd.f32 %v1199, %v1265
      %v1276 = vadd.f32 %v1200, %v1265
      %v1277 = vadd.f32 %v1201, %v1265
      %v1278 = vadd.f32 %v1202, %v1265
      %v1279 = vadd.f32 %v1203, %v1265
      %v1280 = vadd.f32 %v1204, %v1265
      %v1281 = vadd.f32 %v1205, %v1265
      %v1282 = vadd.f32 %v1206, %v1265
      %v1283 = vadd.f32 %v1207, %v1265
      %v1284 = vadd.f32 %v1208, %v1265
      %v1285 = vadd.f32 %v1209, %v1265
      %v1286 = vadd.f32 %v1210, %v1265
      %v1287 = vadd.f32 %v1211, %v1265
      %v1288 = vadd.f32 %v1212, %v1265
      %v1289 = vadd.f32 %v1213, %v1265
      %v1290 = vadd.f32 %v1214, %v1265
      %v1291 = vadd.f32 %v1215, %v1265
      %v1292 = vadd.f32 %v1216, %v1265
      %v1293 = vadd.f32 %v1217, %v1265
      %v1294 = vadd.f32 %v1218, %v1265
      %v1295 = vadd.f32 %v1219, %v1265
      %v1296 = vadd.f32 %v1220, %v1265
      %v1297 = vadd.f32 %v1221, %v1265
      %v1298 = vadd.f32 %v1222, %v1265
      %v1299 = vadd.f32 %v1223, %v1265
      %v1300 = vadd.f32 %v1224, %v1265
      %v1301 = vadd.f32 %v1225, %v1265
      %v1302 = vadd.f32 %v1226, %v1265
      %v1303 = vadd.f32 %v1227, %v1265
      %v1304 = vadd.f32 %v1228, %v1270
      %v1305 = vadd.f32 %v1229, %v1270
      %v1306 = vadd.f32 %v1230, %v1270
      %v1307 = vadd.f32 %v1231, %v1270
      %v1308 = vadd.f32 %v1232, %v1270
      %v1309 = vadd.f32 %v1233, %v1270
      %v1310 = vadd.f32 %v1234, %v1270
      %v1311 = vadd.f32 %v1235, %v1270
      %v1312 = vadd.f32 %v1236, %v1270
      %v1313 = vadd.f32 %v1237, %v1270
      %v1314 = vadd.f32 %v1238, %v1270
      %v1315 = vadd.f32 %v1239, %v1270
      %v1316 = vadd.f32 %v1240, %v1270
      %v1317 = vadd.f32 %v1241, %v1270
      %v1318 = vadd.f32 %v1242, %v1270
      %v1319 = vadd.f32 %v1243, %v1270
      %v1320 = vadd.f32 %v1244, %v1270
      %v1321 = vadd.f32 %v1245, %v1270
      %v1322 = vadd.f32 %v1246, %v1270
      %v1323 = vadd.f32 %v1247, %v1270
      %v1324 = vadd.f32 %v1248, %v1270
      %v1325 = vadd.f32 %v1249, %v1270
      %v1326 = vadd.f32 %v1250, %v1270
      %v1327 = vadd.f32 %v1251, %v1270
      %v1328 = vadd.f32 %v1252, %v1270
      %v1329 = vadd.f32 %v1253, %v1270
      %v1330 = vadd.f32 %v1254, %v1270
      %v1331 = vadd.f32 %v1255, %v1270
      %v1332 = vadd.f32 %v1256, %v1270
      %v1333 = vadd.f32 %v1257, %v1270
      %v1334 = vadd.f32 %v1258, %v1270
      %v1335 = vadd.f32 %v1259, %v1270
      %vm1336 = vcmp.ge.f32.partialorder %v1272, 0.0
      %vm1337 = vcmp.ge.f32.partialorder %v1273, 0.0
      %vm1338 = vcmp.ge.f32.partialorder %v1274, 0.0
      %vm1339 = vcmp.ge.f32.partialorder %v1275, 0.0
      %vm1340 = vcmp.ge.f32.partialorder %v1276, 0.0
      %vm1341 = vcmp.ge.f32.partialorder %v1277, 0.0
      %vm1342 = vcmp.ge.f32.partialorder %v1278, 0.0
      %vm1343 = vcmp.ge.f32.partialorder %v1279, 0.0
      %vm1344 = vcmp.ge.f32.partialorder %v1280, 0.0
      %vm1345 = vcmp.ge.f32.partialorder %v1281, 0.0
      %vm1346 = vcmp.ge.f32.partialorder %v1282, 0.0
      %vm1347 = vcmp.ge.f32.partialorder %v1283, 0.0
      %vm1348 = vcmp.ge.f32.partialorder %v1284, 0.0
      %vm1349 = vcmp.ge.f32.partialorder %v1285, 0.0
      %vm1350 = vcmp.ge.f32.partialorder %v1286, 0.0
      %vm1351 = vcmp.ge.f32.partialorder %v1287, 0.0
      %vm1352 = vcmp.ge.f32.partialorder %v1288, 0.0
      %vm1353 = vcmp.ge.f32.partialorder %v1289, 0.0
      %vm1354 = vcmp.ge.f32.partialorder %v1290, 0.0
      %vm1355 = vcmp.ge.f32.partialorder %v1291, 0.0
      %vm1356 = vcmp.ge.f32.partialorder %v1292, 0.0
      %vm1357 = vcmp.ge.f32.partialorder %v1293, 0.0
      %vm1358 = vcmp.ge.f32.partialorder %v1294, 0.0
      %vm1359 = vcmp.ge.f32.partialorder %v1295, 0.0
      %vm1360 = vcmp.ge.f32.partialorder %v1296, 0.0
      %vm1361 = vcmp.ge.f32.partialorder %v1297, 0.0
      %vm1362 = vcmp.ge.f32.partialorder %v1298, 0.0
      %vm1363 = vcmp.ge.f32.partialorder %v1299, 0.0
      %vm1364 = vcmp.ge.f32.partialorder %v1300, 0.0
      %vm1365 = vcmp.ge.f32.partialorder %v1301, 0.0
      %vm1366 = vcmp.ge.f32.partialorder %v1302, 0.0
      %vm1367 = vcmp.ge.f32.partialorder %v1303, 0.0
      %vm1368 = vcmp.ge.f32.partialorder %v1304, 0.0
      %vm1369 = vcmp.ge.f32.partialorder %v1305, 0.0
      %vm1370 = vcmp.ge.f32.partialorder %v1306, 0.0
      %vm1371 = vcmp.ge.f32.partialorder %v1307, 0.0
      %vm1372 = vcmp.ge.f32.partialorder %v1308, 0.0
      %vm1373 = vcmp.ge.f32.partialorder %v1309, 0.0
      %vm1374 = vcmp.ge.f32.partialorder %v1310, 0.0
      %vm1375 = vcmp.ge.f32.partialorder %v1311, 0.0
      %vm1376 = vcmp.ge.f32.partialorder %v1312, 0.0
      %vm1377 = vcmp.ge.f32.partialorder %v1313, 0.0
      %vm1378 = vcmp.ge.f32.partialorder %v1314, 0.0
      %vm1379 = vcmp.ge.f32.partialorder %v1315, 0.0
      %vm1380 = vcmp.ge.f32.partialorder %v1316, 0.0
      %vm1381 = vcmp.ge.f32.partialorder %v1317, 0.0
      %vm1382 = vcmp.ge.f32.partialorder %v1318, 0.0
      %vm1383 = vcmp.ge.f32.partialorder %v1319, 0.0
      %vm1384 = vcmp.ge.f32.partialorder %v1320, 0.0
      %vm1385 = vcmp.ge.f32.partialorder %v1321, 0.0
      %vm1386 = vcmp.ge.f32.partialorder %v1322, 0.0
      %vm1387 = vcmp.ge.f32.partialorder %v1323, 0.0
      %vm1388 = vcmp.ge.f32.partialorder %v1324, 0.0
      %vm1389 = vcmp.ge.f32.partialorder %v1325, 0.0
      %vm1390 = vcmp.ge.f32.partialorder %v1326, 0.0
      %vm1391 = vcmp.ge.f32.partialorder %v1327, 0.0
      %vm1392 = vcmp.ge.f32.partialorder %v1328, 0.0
      %vm1393 = vcmp.ge.f32.partialorder %v1329, 0.0
      %vm1394 = vcmp.ge.f32.partialorder %v1330, 0.0
      %vm1395 = vcmp.ge.f32.partialorder %v1331, 0.0
      %vm1396 = vcmp.ge.f32.partialorder %v1332, 0.0
      %vm1397 = vcmp.ge.f32.partialorder %v1333, 0.0
      %vm1398 = vcmp.ge.f32.partialorder %v1334, 0.0
      %vm1399 = vcmp.ge.f32.partialorder %v1335, 0.0
      %v1400 = vmul.f32 %v1272, 0.2
      %v1401 = vmul.f32 %v1273, 0.2
      %v1402 = vmul.f32 %v1274, 0.2
      %v1403 = vmul.f32 %v1275, 0.2
      %v1404 = vmul.f32 %v1276, 0.2
      %v1405 = vmul.f32 %v1277, 0.2
      %v1406 = vmul.f32 %v1278, 0.2
      %v1407 = vmul.f32 %v1279, 0.2
      %v1408 = vmul.f32 %v1280, 0.2
      %v1409 = vmul.f32 %v1281, 0.2
      %v1410 = vmul.f32 %v1282, 0.2
      %v1411 = vmul.f32 %v1283, 0.2
      %v1412 = vmul.f32 %v1284, 0.2
      %v1413 = vmul.f32 %v1285, 0.2
      %v1414 = vmul.f32 %v1286, 0.2
      %v1415 = vmul.f32 %v1287, 0.2
      %v1416 = vmul.f32 %v1288, 0.2
      %v1417 = vmul.f32 %v1289, 0.2
      %v1418 = vmul.f32 %v1290, 0.2
      %v1419 = vmul.f32 %v1291, 0.2
      %v1420 = vmul.f32 %v1292, 0.2
      %v1421 = vmul.f32 %v1293, 0.2
      %v1422 = vmul.f32 %v1294, 0.2
      %v1423 = vmul.f32 %v1295, 0.2
      %v1424 = vmul.f32 %v1296, 0.2
      %v1425 = vmul.f32 %v1297, 0.2
      %v1426 = vmul.f32 %v1298, 0.2
      %v1427 = vmul.f32 %v1299, 0.2
      %v1428 = vmul.f32 %v1300, 0.2
      %v1429 = vmul.f32 %v1301, 0.2
      %v1430 = vmul.f32 %v1302, 0.2
      %v1431 = vmul.f32 %v1303, 0.2
      %v1432 = vmul.f32 %v1304, 0.2
      %v1433 = vmul.f32 %v1305, 0.2
      %v1434 = vmul.f32 %v1306, 0.2
      %v1435 = vmul.f32 %v1307, 0.2
      %v1436 = vmul.f32 %v1308, 0.2
      %v1437 = vmul.f32 %v1309, 0.2
      %v1438 = vmul.f32 %v1310, 0.2
      %v1439 = vmul.f32 %v1311, 0.2
      %v1440 = vmul.f32 %v1312, 0.2
      %v1441 = vmul.f32 %v1313, 0.2
      %v1442 = vmul.f32 %v1314, 0.2
      %v1443 = vmul.f32 %v1315, 0.2
      %v1444 = vmul.f32 %v1316, 0.2
      %v1445 = vmul.f32 %v1317, 0.2
      %v1446 = vmul.f32 %v1318, 0.2
      %v1447 = vmul.f32 %v1319, 0.2
      %v1448 = vmul.f32 %v1320, 0.2
      %v1449 = vmul.f32 %v1321, 0.2
      %v1450 = vmul.f32 %v1322, 0.2
      %v1451 = vmul.f32 %v1323, 0.2
      %v1452 = vmul.f32 %v1324, 0.2
      %v1453 = vmul.f32 %v1325, 0.2
      %v1454 = vmul.f32 %v1326, 0.2
      %v1455 = vmul.f32 %v1327, 0.2
      %v1456 = vmul.f32 %v1328, 0.2
      %v1457 = vmul.f32 %v1329, 0.2
      %v1458 = vmul.f32 %v1330, 0.2
      %v1459 = vmul.f32 %v1331, 0.2
      %v1460 = vmul.f32 %v1332, 0.2
      %v1461 = vmul.f32 %v1333, 0.2
      %v1462 = vmul.f32 %v1334, 0.2
      %v1463 = vmul.f32 %v1335, 0.2
      %v1464 = vsel %vm1336, %v1272, %v1400
      %v1465 = vsel %vm1337, %v1273, %v1401
      %v1466 = vsel %vm1338, %v1274, %v1402
      %v1467 = vsel %vm1339, %v1275, %v1403
      %v1468 = vsel %vm1340, %v1276, %v1404
      %v1469 = vsel %vm1341, %v1277, %v1405
      %v1470 = vsel %vm1342, %v1278, %v1406
      %v1471 = vsel %vm1343, %v1279, %v1407
      %v1472 = vsel %vm1344, %v1280, %v1408
      %v1473 = vsel %vm1345, %v1281, %v1409
      %v1474 = vsel %vm1346, %v1282, %v1410
      %v1475 = vsel %vm1347, %v1283, %v1411
      %v1476 = vsel %vm1348, %v1284, %v1412
      %v1477 = vsel %vm1349, %v1285, %v1413
      %v1478 = vsel %vm1350, %v1286, %v1414
      %v1479 = vsel %vm1351, %v1287, %v1415
      %v1480 = vsel %vm1352, %v1288, %v1416
      %v1481 = vsel %vm1353, %v1289, %v1417
      %v1482 = vsel %vm1354, %v1290, %v1418
      %v1483 = vsel %vm1355, %v1291, %v1419
      %v1484 = vsel %vm1356, %v1292, %v1420
      %v1485 = vsel %vm1357, %v1293, %v1421
      %v1486 = vsel %vm1358, %v1294, %v1422
      %v1487 = vsel %vm1359, %v1295, %v1423
      %v1488 = vsel %vm1360, %v1296, %v1424
      %v1489 = vsel %vm1361, %v1297, %v1425
      %v1490 = vsel %vm1362, %v1298, %v1426
      %v1491 = vsel %vm1363, %v1299, %v1427
      %v1492 = vsel %vm1364, %v1300, %v1428
      %v1493 = vsel %vm1365, %v1301, %v1429
      %v1494 = vsel %vm1366, %v1302, %v1430
      %v1495 = vsel %vm1367, %v1303, %v1431
      %v1496 = vsel %vm1368, %v1304, %v1432
      %v1497 = vsel %vm1369, %v1305, %v1433
      %v1498 = vsel %vm1370, %v1306, %v1434
      %v1499 = vsel %vm1371, %v1307, %v1435
      %v1500 = vsel %vm1372, %v1308, %v1436
      %v1501 = vsel %vm1373, %v1309, %v1437
      %v1502 = vsel %vm1374, %v1310, %v1438
      %v1503 = vsel %vm1375, %v1311, %v1439
      %v1504 = vsel %vm1376, %v1312, %v1440
      %v1505 = vsel %vm1377, %v1313, %v1441
      %v1506 = vsel %vm1378, %v1314, %v1442
      %v1507 = vsel %vm1379, %v1315, %v1443
      %v1508 = vsel %vm1380, %v1316, %v1444
      %v1509 = vsel %vm1381, %v1317, %v1445
      %v1510 = vsel %vm1382, %v1318, %v1446
      %v1511 = vsel %vm1383, %v1319, %v1447
      %v1512 = vsel %vm1384, %v1320, %v1448
      %v1513 = vsel %vm1385, %v1321, %v1449
      %v1514 = vsel %vm1386, %v1322, %v1450
      %v1515 = vsel %vm1387, %v1323, %v1451
      %v1516 = vsel %vm1388, %v1324, %v1452
      %v1517 = vsel %vm1389, %v1325, %v1453
      %v1518 = vsel %vm1390, %v1326, %v1454
      %v1519 = vsel %vm1391, %v1327, %v1455
      %v1520 = vsel %vm1392, %v1328, %v1456
      %v1521 = vsel %vm1393, %v1329, %v1457
      %v1522 = vsel %vm1394, %v1330, %v1458
      %v1523 = vsel %vm1395, %v1331, %v1459
      %v1524 = vsel %vm1396, %v1332, %v1460
      %v1525 = vsel %vm1397, %v1333, %v1461
      %v1526 = vsel %vm1398, %v1334, %v1462
      %v1527 = vsel %vm1399, %v1335, %v1463
      %v1528 = vld [vmem:[%s4] sm:$0x7]
      %v1529 = vld [vmem:[%s5] sm:$0x7]
      %1531 = vset.pattern.permute.xlu0 0
      %1532 = vperm.xlu0 %1531, %v1529
      %v1533 = vpop.permute.xlu0 %1532
      %vm1535 = vcmask 130048
      %v1537 = vsel %vm1535, %v1528, 0
      %1539 = vmatpush.msra.mxu0 0.0
      %1540 = vmatpush.msra.mxu0 0.0
      %1541 = vmatpush.msra.mxu0 0.0
      %1542 = vmatpush.msra.mxu0 0.0
      %1543 = vmatpush.msra.mxu0 0.0
      %1544 = vmatpush.msra.mxu0 0.0
      %1545 = vmatpush.msra.mxu0 0.0
      %1546 = vmatpush.msra.mxu0 0.0
      %1547 = vmatpush.msra.mxu0 0.0
      %1548 = vmatpush.msra.mxu0 0.0
      %1549 = vmatpush.msra.mxu0 0.0
      %1550 = vmatpush.msra.mxu0 0.0
      %1551 = vmatpush.msra.mxu0 0.0
      %1552 = vmatpush.msra.mxu0 0.0
      %1553 = vmatpush.msra.mxu0 %v1496
      %1554 = vmatpush.msra.mxu0 %v1464
      %1555 = vmatmul.f32.gmra.mxu0 %v1537
      %v1556 = vpop.f32.mrf.mxu0
      %v1557 = vadd.f32 %v1533, %v1556
      %1558 = vdwg.mxu0
      %1559 = vmatpush.msra.mxu0 0.0
      %1560 = vmatpush.msra.mxu0 0.0
      %1561 = vmatpush.msra.mxu0 0.0
      %1562 = vmatpush.msra.mxu0 0.0
      %1563 = vmatpush.msra.mxu0 0.0
      %1564 = vmatpush.msra.mxu0 0.0
      %1565 = vmatpush.msra.mxu0 0.0
      %1566 = vmatpush.msra.mxu0 0.0
      %1567 = vmatpush.msra.mxu0 0.0
      %1568 = vmatpush.msra.mxu0 0.0
      %1569 = vmatpush.msra.mxu0 0.0
      %1570 = vmatpush.msra.mxu0 0.0
      %1571 = vmatpush.msra.mxu0 0.0
      %1572 = vmatpush.msra.mxu0 0.0
      %1573 = vmatpush.msra.mxu0 %v1497
      %1574 = vmatpush.msra.mxu0 %v1465
      %1575 = vmatmul.f32.gmra.mxu0 %v1537
      %v1576 = vpop.f32.mrf.mxu0
      %v1577 = vadd.f32 %v1533, %v1576
      %1578 = vdwg.mxu0
      %1579 = vmatpush.msra.mxu0 0.0
      %1580 = vmatpush.msra.mxu0 0.0
      %1581 = vmatpush.msra.mxu0 0.0
      %1582 = vmatpush.msra.mxu0 0.0
      %1583 = vmatpush.msra.mxu0 0.0
      %1584 = vmatpush.msra.mxu0 0.0
      %1585 = vmatpush.msra.mxu0 0.0
      %1586 = vmatpush.msra.mxu0 0.0
      %1587 = vmatpush.msra.mxu0 0.0
      %1588 = vmatpush.msra.mxu0 0.0
      %1589 = vmatpush.msra.mxu0 0.0
      %1590 = vmatpush.msra.mxu0 0.0
      %1591 = vmatpush.msra.mxu0 0.0
      %1592 = vmatpush.msra.mxu0 0.0
      %1593 = vmatpush.msra.mxu0 %v1498
      %1594 = vmatpush.msra.mxu0 %v1466
      %1595 = vmatmul.f32.gmra.mxu0 %v1537
      %v1596 = vpop.f32.mrf.mxu0
      %v1597 = vadd.f32 %v1533, %v1596
      %1598 = vdwg.mxu0
      %1599 = vmatpush.msra.mxu0 0.0
      %1600 = vmatpush.msra.mxu0 0.0
      %1601 = vmatpush.msra.mxu0 0.0
      %1602 = vmatpush.msra.mxu0 0.0
      %1603 = vmatpush.msra.mxu0 0.0
      %1604 = vmatpush.msra.mxu0 0.0
      %1605 = vmatpush.msra.mxu0 0.0
      %1606 = vmatpush.msra.mxu0 0.0
      %1607 = vmatpush.msra.mxu0 0.0
      %1608 = vmatpush.msra.mxu0 0.0
      %1609 = vmatpush.msra.mxu0 0.0
      %1610 = vmatpush.msra.mxu0 0.0
      %1611 = vmatpush.msra.mxu0 0.0
      %1612 = vmatpush.msra.mxu0 0.0
      %1613 = vmatpush.msra.mxu0 %v1499
      %1614 = vmatpush.msra.mxu0 %v1467
      %1615 = vmatmul.f32.gmra.mxu0 %v1537
      %v1616 = vpop.f32.mrf.mxu0
      %v1617 = vadd.f32 %v1533, %v1616
      %1618 = vdwg.mxu0
      %1619 = vmatpush.msra.mxu0 0.0
      %1620 = vmatpush.msra.mxu0 0.0
      %1621 = vmatpush.msra.mxu0 0.0
      %1622 = vmatpush.msra.mxu0 0.0
      %1623 = vmatpush.msra.mxu0 0.0
      %1624 = vmatpush.msra.mxu0 0.0
      %1625 = vmatpush.msra.mxu0 0.0
      %1626 = vmatpush.msra.mxu0 0.0
      %1627 = vmatpush.msra.mxu0 0.0
      %1628 = vmatpush.msra.mxu0 0.0
      %1629 = vmatpush.msra.mxu0 0.0
      %1630 = vmatpush.msra.mxu0 0.0
      %1631 = vmatpush.msra.mxu0 0.0
      %1632 = vmatpush.msra.mxu0 0.0
      %1633 = vmatpush.msra.mxu0 %v1500
      %1634 = vmatpush.msra.mxu0 %v1468
      %1635 = vmatmul.f32.gmra.mxu0 %v1537
      %v1636 = vpop.f32.mrf.mxu0
      %v1637 = vadd.f32 %v1533, %v1636
      %1638 = vdwg.mxu0
      %1639 = vmatpush.msra.mxu0 0.0
      %1640 = vmatpush.msra.mxu0 0.0
      %1641 = vmatpush.msra.mxu0 0.0
      %1642 = vmatpush.msra.mxu0 0.0
      %1643 = vmatpush.msra.mxu0 0.0
      %1644 = vmatpush.msra.mxu0 0.0
      %1645 = vmatpush.msra.mxu0 0.0
      %1646 = vmatpush.msra.mxu0 0.0
      %1647 = vmatpush.msra.mxu0 0.0
      %1648 = vmatpush.msra.mxu0 0.0
      %1649 = vmatpush.msra.mxu0 0.0
      %1650 = vmatpush.msra.mxu0 0.0
      %1651 = vmatpush.msra.mxu0 0.0
      %1652 = vmatpush.msra.mxu0 0.0
      %1653 = vmatpush.msra.mxu0 %v1501
      %1654 = vmatpush.msra.mxu0 %v1469
      %1655 = vmatmul.f32.gmra.mxu0 %v1537
      %v1656 = vpop.f32.mrf.mxu0
      %v1657 = vadd.f32 %v1533, %v1656
      %1658 = vdwg.mxu0
      %1659 = vmatpush.msra.mxu0 0.0
      %1660 = vmatpush.msra.mxu0 0.0
      %1661 = vmatpush.msra.mxu0 0.0
      %1662 = vmatpush.msra.mxu0 0.0
      %1663 = vmatpush.msra.mxu0 0.0
      %1664 = vmatpush.msra.mxu0 0.0
      %1665 = vmatpush.msra.mxu0 0.0
      %1666 = vmatpush.msra.mxu0 0.0
      %1667 = vmatpush.msra.mxu0 0.0
      %1668 = vmatpush.msra.mxu0 0.0
      %1669 = vmatpush.msra.mxu0 0.0
      %1670 = vmatpush.msra.mxu0 0.0
      %1671 = vmatpush.msra.mxu0 0.0
      %1672 = vmatpush.msra.mxu0 0.0
      %1673 = vmatpush.msra.mxu0 %v1502
      %1674 = vmatpush.msra.mxu0 %v1470
      %1675 = vmatmul.f32.gmra.mxu0 %v1537
      %v1676 = vpop.f32.mrf.mxu0
      %v1677 = vadd.f32 %v1533, %v1676
      %1678 = vdwg.mxu0
      %1679 = vmatpush.msra.mxu0 0.0
      %1680 = vmatpush.msra.mxu0 0.0
      %1681 = vmatpush.msra.mxu0 0.0
      %1682 = vmatpush.msra.mxu0 0.0
      %1683 = vmatpush.msra.mxu0 0.0
      %1684 = vmatpush.msra.mxu0 0.0
      %1685 = vmatpush.msra.mxu0 0.0
      %1686 = vmatpush.msra.mxu0 0.0
      %1687 = vmatpush.msra.mxu0 0.0
      %1688 = vmatpush.msra.mxu0 0.0
      %1689 = vmatpush.msra.mxu0 0.0
      %1690 = vmatpush.msra.mxu0 0.0
      %1691 = vmatpush.msra.mxu0 0.0
      %1692 = vmatpush.msra.mxu0 0.0
      %1693 = vmatpush.msra.mxu0 %v1503
      %1694 = vmatpush.msra.mxu0 %v1471
      %1695 = vmatmul.f32.gmra.mxu0 %v1537
      %v1696 = vpop.f32.mrf.mxu0
      %v1697 = vadd.f32 %v1533, %v1696
      %1698 = vdwg.mxu0
      %1699 = vmatpush.msra.mxu0 0.0
      %1700 = vmatpush.msra.mxu0 0.0
      %1701 = vmatpush.msra.mxu0 0.0
      %1702 = vmatpush.msra.mxu0 0.0
      %1703 = vmatpush.msra.mxu0 0.0
      %1704 = vmatpush.msra.mxu0 0.0
      %1705 = vmatpush.msra.mxu0 0.0
      %1706 = vmatpush.msra.mxu0 0.0
      %1707 = vmatpush.msra.mxu0 0.0
      %1708 = vmatpush.msra.mxu0 0.0
      %1709 = vmatpush.msra.mxu0 0.0
      %1710 = vmatpush.msra.mxu0 0.0
      %1711 = vmatpush.msra.mxu0 0.0
      %1712 = vmatpush.msra.mxu0 0.0
      %1713 = vmatpush.msra.mxu0 %v1504
      %1714 = vmatpush.msra.mxu0 %v1472
      %1715 = vmatmul.f32.gmra.mxu0 %v1537
      %v1716 = vpop.f32.mrf.mxu0
      %v1717 = vadd.f32 %v1533, %v1716
      %1718 = vdwg.mxu0
      %1719 = vmatpush.msra.mxu0 0.0
      %1720 = vmatpush.msra.mxu0 0.0
      %1721 = vmatpush.msra.mxu0 0.0
      %1722 = vmatpush.msra.mxu0 0.0
      %1723 = vmatpush.msra.mxu0 0.0
      %1724 = vmatpush.msra.mxu0 0.0
      %1725 = vmatpush.msra.mxu0 0.0
      %1726 = vmatpush.msra.mxu0 0.0
      %1727 = vmatpush.msra.mxu0 0.0
      %1728 = vmatpush.msra.mxu0 0.0
      %1729 = vmatpush.msra.mxu0 0.0
      %1730 = vmatpush.msra.mxu0 0.0
      %1731 = vmatpush.msra.mxu0 0.0
      %1732 = vmatpush.msra.mxu0 0.0
      %1733 = vmatpush.msra.mxu0 %v1505
      %1734 = vmatpush.msra.mxu0 %v1473
      %1735 = vmatmul.f32.gmra.mxu0 %v1537
      %v1736 = vpop.f32.mrf.mxu0
      %v1737 = vadd.f32 %v1533, %v1736
      %1738 = vdwg.mxu0
      %1739 = vmatpush.msra.mxu0 0.0
      %1740 = vmatpush.msra.mxu0 0.0
      %1741 = vmatpush.msra.mxu0 0.0
      %1742 = vmatpush.msra.mxu0 0.0
      %1743 = vmatpush.msra.mxu0 0.0
      %1744 = vmatpush.msra.mxu0 0.0
      %1745 = vmatpush.msra.mxu0 0.0
      %1746 = vmatpush.msra.mxu0 0.0
      %1747 = vmatpush.msra.mxu0 0.0
      %1748 = vmatpush.msra.mxu0 0.0
      %1749 = vmatpush.msra.mxu0 0.0
      %1750 = vmatpush.msra.mxu0 0.0
      %1751 = vmatpush.msra.mxu0 0.0
      %1752 = vmatpush.msra.mxu0 0.0
      %1753 = vmatpush.msra.mxu0 %v1506
      %1754 = vmatpush.msra.mxu0 %v1474
      %1755 = vmatmul.f32.gmra.mxu0 %v1537
      %v1756 = vpop.f32.mrf.mxu0
      %v1757 = vadd.f32 %v1533, %v1756
      %1758 = vdwg.mxu0
      %1759 = vmatpush.msra.mxu0 0.0
      %1760 = vmatpush.msra.mxu0 0.0
      %1761 = vmatpush.msra.mxu0 0.0
      %1762 = vmatpush.msra.mxu0 0.0
      %1763 = vmatpush.msra.mxu0 0.0
      %1764 = vmatpush.msra.mxu0 0.0
      %1765 = vmatpush.msra.mxu0 0.0
      %1766 = vmatpush.msra.mxu0 0.0
      %1767 = vmatpush.msra.mxu0 0.0
      %1768 = vmatpush.msra.mxu0 0.0
      %1769 = vmatpush.msra.mxu0 0.0
      %1770 = vmatpush.msra.mxu0 0.0
      %1771 = vmatpush.msra.mxu0 0.0
      %1772 = vmatpush.msra.mxu0 0.0
      %1773 = vmatpush.msra.mxu0 %v1507
      %1774 = vmatpush.msra.mxu0 %v1475
      %1775 = vmatmul.f32.gmra.mxu0 %v1537
      %v1776 = vpop.f32.mrf.mxu0
      %v1777 = vadd.f32 %v1533, %v1776
      %1778 = vdwg.mxu0
      %1779 = vmatpush.msra.mxu0 0.0
      %1780 = vmatpush.msra.mxu0 0.0
      %1781 = vmatpush.msra.mxu0 0.0
      %1782 = vmatpush.msra.mxu0 0.0
      %1783 = vmatpush.msra.mxu0 0.0
      %1784 = vmatpush.msra.mxu0 0.0
      %1785 = vmatpush.msra.mxu0 0.0
      %1786 = vmatpush.msra.mxu0 0.0
      %1787 = vmatpush.msra.mxu0 0.0
      %1788 = vmatpush.msra.mxu0 0.0
      %1789 = vmatpush.msra.mxu0 0.0
      %1790 = vmatpush.msra.mxu0 0.0
      %1791 = vmatpush.msra.mxu0 0.0
      %1792 = vmatpush.msra.mxu0 0.0
      %1793 = vmatpush.msra.mxu0 %v1508
      %1794 = vmatpush.msra.mxu0 %v1476
      %1795 = vmatmul.f32.gmra.mxu0 %v1537
      %v1796 = vpop.f32.mrf.mxu0
      %v1797 = vadd.f32 %v1533, %v1796
      %1798 = vdwg.mxu0
      %1799 = vmatpush.msra.mxu0 0.0
      %1800 = vmatpush.msra.mxu0 0.0
      %1801 = vmatpush.msra.mxu0 0.0
      %1802 = vmatpush.msra.mxu0 0.0
      %1803 = vmatpush.msra.mxu0 0.0
      %1804 = vmatpush.msra.mxu0 0.0
      %1805 = vmatpush.msra.mxu0 0.0
      %1806 = vmatpush.msra.mxu0 0.0
      %1807 = vmatpush.msra.mxu0 0.0
      %1808 = vmatpush.msra.mxu0 0.0
      %1809 = vmatpush.msra.mxu0 0.0
      %1810 = vmatpush.msra.mxu0 0.0
      %1811 = vmatpush.msra.mxu0 0.0
      %1812 = vmatpush.msra.mxu0 0.0
      %1813 = vmatpush.msra.mxu0 %v1509
      %1814 = vmatpush.msra.mxu0 %v1477
      %1815 = vmatmul.f32.gmra.mxu0 %v1537
      %v1816 = vpop.f32.mrf.mxu0
      %v1817 = vadd.f32 %v1533, %v1816
      %1818 = vdwg.mxu0
      %1819 = vmatpush.msra.mxu0 0.0
      %1820 = vmatpush.msra.mxu0 0.0
      %1821 = vmatpush.msra.mxu0 0.0
      %1822 = vmatpush.msra.mxu0 0.0
      %1823 = vmatpush.msra.mxu0 0.0
      %1824 = vmatpush.msra.mxu0 0.0
      %1825 = vmatpush.msra.mxu0 0.0
      %1826 = vmatpush.msra.mxu0 0.0
      %1827 = vmatpush.msra.mxu0 0.0
      %1828 = vmatpush.msra.mxu0 0.0
      %1829 = vmatpush.msra.mxu0 0.0
      %1830 = vmatpush.msra.mxu0 0.0
      %1831 = vmatpush.msra.mxu0 0.0
      %1832 = vmatpush.msra.mxu0 0.0
      %1833 = vmatpush.msra.mxu0 %v1510
      %1834 = vmatpush.msra.mxu0 %v1478
      %1835 = vmatmul.f32.gmra.mxu0 %v1537
      %v1836 = vpop.f32.mrf.mxu0
      %v1837 = vadd.f32 %v1533, %v1836
      %1838 = vdwg.mxu0
      %1839 = vmatpush.msra.mxu0 0.0
      %1840 = vmatpush.msra.mxu0 0.0
      %1841 = vmatpush.msra.mxu0 0.0
      %1842 = vmatpush.msra.mxu0 0.0
      %1843 = vmatpush.msra.mxu0 0.0
      %1844 = vmatpush.msra.mxu0 0.0
      %1845 = vmatpush.msra.mxu0 0.0
      %1846 = vmatpush.msra.mxu0 0.0
      %1847 = vmatpush.msra.mxu0 0.0
      %1848 = vmatpush.msra.mxu0 0.0
      %1849 = vmatpush.msra.mxu0 0.0
      %1850 = vmatpush.msra.mxu0 0.0
      %1851 = vmatpush.msra.mxu0 0.0
      %1852 = vmatpush.msra.mxu0 0.0
      %1853 = vmatpush.msra.mxu0 %v1511
      %1854 = vmatpush.msra.mxu0 %v1479
      %1855 = vmatmul.f32.gmra.mxu0 %v1537
      %v1856 = vpop.f32.mrf.mxu0
      %v1857 = vadd.f32 %v1533, %v1856
      %1858 = vdwg.mxu0
      %1859 = vmatpush.msra.mxu0 0.0
      %1860 = vmatpush.msra.mxu0 0.0
      %1861 = vmatpush.msra.mxu0 0.0
      %1862 = vmatpush.msra.mxu0 0.0
      %1863 = vmatpush.msra.mxu0 0.0
      %1864 = vmatpush.msra.mxu0 0.0
      %1865 = vmatpush.msra.mxu0 0.0
      %1866 = vmatpush.msra.mxu0 0.0
      %1867 = vmatpush.msra.mxu0 0.0
      %1868 = vmatpush.msra.mxu0 0.0
      %1869 = vmatpush.msra.mxu0 0.0
      %1870 = vmatpush.msra.mxu0 0.0
      %1871 = vmatpush.msra.mxu0 0.0
      %1872 = vmatpush.msra.mxu0 0.0
      %1873 = vmatpush.msra.mxu0 %v1512
      %1874 = vmatpush.msra.mxu0 %v1480
      %1875 = vmatmul.f32.gmra.mxu0 %v1537
      %v1876 = vpop.f32.mrf.mxu0
      %v1877 = vadd.f32 %v1533, %v1876
      %1878 = vdwg.mxu0
      %1879 = vmatpush.msra.mxu0 0.0
      %1880 = vmatpush.msra.mxu0 0.0
      %1881 = vmatpush.msra.mxu0 0.0
      %1882 = vmatpush.msra.mxu0 0.0
      %1883 = vmatpush.msra.mxu0 0.0
      %1884 = vmatpush.msra.mxu0 0.0
      %1885 = vmatpush.msra.mxu0 0.0
      %1886 = vmatpush.msra.mxu0 0.0
      %1887 = vmatpush.msra.mxu0 0.0
      %1888 = vmatpush.msra.mxu0 0.0
      %1889 = vmatpush.msra.mxu0 0.0
      %1890 = vmatpush.msra.mxu0 0.0
      %1891 = vmatpush.msra.mxu0 0.0
      %1892 = vmatpush.msra.mxu0 0.0
      %1893 = vmatpush.msra.mxu0 %v1513
      %1894 = vmatpush.msra.mxu0 %v1481
      %1895 = vmatmul.f32.gmra.mxu0 %v1537
      %v1896 = vpop.f32.mrf.mxu0
      %v1897 = vadd.f32 %v1533, %v1896
      %1898 = vdwg.mxu0
      %1899 = vmatpush.msra.mxu0 0.0
      %1900 = vmatpush.msra.mxu0 0.0
      %1901 = vmatpush.msra.mxu0 0.0
      %1902 = vmatpush.msra.mxu0 0.0
      %1903 = vmatpush.msra.mxu0 0.0
      %1904 = vmatpush.msra.mxu0 0.0
      %1905 = vmatpush.msra.mxu0 0.0
      %1906 = vmatpush.msra.mxu0 0.0
      %1907 = vmatpush.msra.mxu0 0.0
      %1908 = vmatpush.msra.mxu0 0.0
      %1909 = vmatpush.msra.mxu0 0.0
      %1910 = vmatpush.msra.mxu0 0.0
      %1911 = vmatpush.msra.mxu0 0.0
      %1912 = vmatpush.msra.mxu0 0.0
      %1913 = vmatpush.msra.mxu0 %v1514
      %1914 = vmatpush.msra.mxu0 %v1482
      %1915 = vmatmul.f32.gmra.mxu0 %v1537
      %v1916 = vpop.f32.mrf.mxu0
      %v1917 = vadd.f32 %v1533, %v1916
      %1918 = vdwg.mxu0
      %1919 = vmatpush.msra.mxu0 0.0
      %1920 = vmatpush.msra.mxu0 0.0
      %1921 = vmatpush.msra.mxu0 0.0
      %1922 = vmatpush.msra.mxu0 0.0
      %1923 = vmatpush.msra.mxu0 0.0
      %1924 = vmatpush.msra.mxu0 0.0
      %1925 = vmatpush.msra.mxu0 0.0
      %1926 = vmatpush.msra.mxu0 0.0
      %1927 = vmatpush.msra.mxu0 0.0
      %1928 = vmatpush.msra.mxu0 0.0
      %1929 = vmatpush.msra.mxu0 0.0
      %1930 = vmatpush.msra.mxu0 0.0
      %1931 = vmatpush.msra.mxu0 0.0
      %1932 = vmatpush.msra.mxu0 0.0
      %1933 = vmatpush.msra.mxu0 %v1515
      %1934 = vmatpush.msra.mxu0 %v1483
      %1935 = vmatmul.f32.gmra.mxu0 %v1537
      %v1936 = vpop.f32.mrf.mxu0
      %v1937 = vadd.f32 %v1533, %v1936
      %1938 = vdwg.mxu0
      %1939 = vmatpush.msra.mxu0 0.0
      %1940 = vmatpush.msra.mxu0 0.0
      %1941 = vmatpush.msra.mxu0 0.0
      %1942 = vmatpush.msra.mxu0 0.0
      %1943 = vmatpush.msra.mxu0 0.0
      %1944 = vmatpush.msra.mxu0 0.0
      %1945 = vmatpush.msra.mxu0 0.0
      %1946 = vmatpush.msra.mxu0 0.0
      %1947 = vmatpush.msra.mxu0 0.0
      %1948 = vmatpush.msra.mxu0 0.0
      %1949 = vmatpush.msra.mxu0 0.0
      %1950 = vmatpush.msra.mxu0 0.0
      %1951 = vmatpush.msra.mxu0 0.0
      %1952 = vmatpush.msra.mxu0 0.0
      %1953 = vmatpush.msra.mxu0 %v1516
      %1954 = vmatpush.msra.mxu0 %v1484
      %1955 = vmatmul.f32.gmra.mxu0 %v1537
      %v1956 = vpop.f32.mrf.mxu0
      %v1957 = vadd.f32 %v1533, %v1956
      %1958 = vdwg.mxu0
      %1959 = vmatpush.msra.mxu0 0.0
      %1960 = vmatpush.msra.mxu0 0.0
      %1961 = vmatpush.msra.mxu0 0.0
      %1962 = vmatpush.msra.mxu0 0.0
      %1963 = vmatpush.msra.mxu0 0.0
      %1964 = vmatpush.msra.mxu0 0.0
      %1965 = vmatpush.msra.mxu0 0.0
      %1966 = vmatpush.msra.mxu0 0.0
      %1967 = vmatpush.msra.mxu0 0.0
      %1968 = vmatpush.msra.mxu0 0.0
      %1969 = vmatpush.msra.mxu0 0.0
      %1970 = vmatpush.msra.mxu0 0.0
      %1971 = vmatpush.msra.mxu0 0.0
      %1972 = vmatpush.msra.mxu0 0.0
      %1973 = vmatpush.msra.mxu0 %v1517
      %1974 = vmatpush.msra.mxu0 %v1485
      %1975 = vmatmul.f32.gmra.mxu0 %v1537
      %v1976 = vpop.f32.mrf.mxu0
      %v1977 = vadd.f32 %v1533, %v1976
      %1978 = vdwg.mxu0
      %1979 = vmatpush.msra.mxu0 0.0
      %1980 = vmatpush.msra.mxu0 0.0
      %1981 = vmatpush.msra.mxu0 0.0
      %1982 = vmatpush.msra.mxu0 0.0
      %1983 = vmatpush.msra.mxu0 0.0
      %1984 = vmatpush.msra.mxu0 0.0
      %1985 = vmatpush.msra.mxu0 0.0
      %1986 = vmatpush.msra.mxu0 0.0
      %1987 = vmatpush.msra.mxu0 0.0
      %1988 = vmatpush.msra.mxu0 0.0
      %1989 = vmatpush.msra.mxu0 0.0
      %1990 = vmatpush.msra.mxu0 0.0
      %1991 = vmatpush.msra.mxu0 0.0
      %1992 = vmatpush.msra.mxu0 0.0
      %1993 = vmatpush.msra.mxu0 %v1518
      %1994 = vmatpush.msra.mxu0 %v1486
      %1995 = vmatmul.f32.gmra.mxu0 %v1537
      %v1996 = vpop.f32.mrf.mxu0
      %v1997 = vadd.f32 %v1533, %v1996
      %1998 = vdwg.mxu0
      %1999 = vmatpush.msra.mxu0 0.0
      %2000 = vmatpush.msra.mxu0 0.0
      %2001 = vmatpush.msra.mxu0 0.0
      %2002 = vmatpush.msra.mxu0 0.0
      %2003 = vmatpush.msra.mxu0 0.0
      %2004 = vmatpush.msra.mxu0 0.0
      %2005 = vmatpush.msra.mxu0 0.0
      %2006 = vmatpush.msra.mxu0 0.0
      %2007 = vmatpush.msra.mxu0 0.0
      %2008 = vmatpush.msra.mxu0 0.0
      %2009 = vmatpush.msra.mxu0 0.0
      %2010 = vmatpush.msra.mxu0 0.0
      %2011 = vmatpush.msra.mxu0 0.0
      %2012 = vmatpush.msra.mxu0 0.0
      %2013 = vmatpush.msra.mxu0 %v1519
      %2014 = vmatpush.msra.mxu0 %v1487
      %2015 = vmatmul.f32.gmra.mxu0 %v1537
      %v2016 = vpop.f32.mrf.mxu0
      %v2017 = vadd.f32 %v1533, %v2016
      %2018 = vdwg.mxu0
      %2019 = vmatpush.msra.mxu0 0.0
      %2020 = vmatpush.msra.mxu0 0.0
      %2021 = vmatpush.msra.mxu0 0.0
      %2022 = vmatpush.msra.mxu0 0.0
      %2023 = vmatpush.msra.mxu0 0.0
      %2024 = vmatpush.msra.mxu0 0.0
      %2025 = vmatpush.msra.mxu0 0.0
      %2026 = vmatpush.msra.mxu0 0.0
      %2027 = vmatpush.msra.mxu0 0.0
      %2028 = vmatpush.msra.mxu0 0.0
      %2029 = vmatpush.msra.mxu0 0.0
      %2030 = vmatpush.msra.mxu0 0.0
      %2031 = vmatpush.msra.mxu0 0.0
      %2032 = vmatpush.msra.mxu0 0.0
      %2033 = vmatpush.msra.mxu0 %v1520
      %2034 = vmatpush.msra.mxu0 %v1488
      %2035 = vmatmul.f32.gmra.mxu0 %v1537
      %v2036 = vpop.f32.mrf.mxu0
      %v2037 = vadd.f32 %v1533, %v2036
      %2038 = vdwg.mxu0
      %2039 = vmatpush.msra.mxu0 0.0
      %2040 = vmatpush.msra.mxu0 0.0
      %2041 = vmatpush.msra.mxu0 0.0
      %2042 = vmatpush.msra.mxu0 0.0
      %2043 = vmatpush.msra.mxu0 0.0
      %2044 = vmatpush.msra.mxu0 0.0
      %2045 = vmatpush.msra.mxu0 0.0
      %2046 = vmatpush.msra.mxu0 0.0
      %2047 = vmatpush.msra.mxu0 0.0
      %2048 = vmatpush.msra.mxu0 0.0
      %2049 = vmatpush.msra.mxu0 0.0
      %2050 = vmatpush.msra.mxu0 0.0
      %2051 = vmatpush.msra.mxu0 0.0
      %2052 = vmatpush.msra.mxu0 0.0
      %2053 = vmatpush.msra.mxu0 %v1521
      %2054 = vmatpush.msra.mxu0 %v1489
      %2055 = vmatmul.f32.gmra.mxu0 %v1537
      %v2056 = vpop.f32.mrf.mxu0
      %v2057 = vadd.f32 %v1533, %v2056
      %2058 = vdwg.mxu0
      %2059 = vmatpush.msra.mxu0 0.0
      %2060 = vmatpush.msra.mxu0 0.0
      %2061 = vmatpush.msra.mxu0 0.0
      %2062 = vmatpush.msra.mxu0 0.0
      %2063 = vmatpush.msra.mxu0 0.0
      %2064 = vmatpush.msra.mxu0 0.0
      %2065 = vmatpush.msra.mxu0 0.0
      %2066 = vmatpush.msra.mxu0 0.0
      %2067 = vmatpush.msra.mxu0 0.0
      %2068 = vmatpush.msra.mxu0 0.0
      %2069 = vmatpush.msra.mxu0 0.0
      %2070 = vmatpush.msra.mxu0 0.0
      %2071 = vmatpush.msra.mxu0 0.0
      %2072 = vmatpush.msra.mxu0 0.0
      %2073 = vmatpush.msra.mxu0 %v1522
      %2074 = vmatpush.msra.mxu0 %v1490
      %2075 = vmatmul.f32.gmra.mxu0 %v1537
      %v2076 = vpop.f32.mrf.mxu0
      %v2077 = vadd.f32 %v1533, %v2076
      %2078 = vdwg.mxu0
      %2079 = vmatpush.msra.mxu0 0.0
      %2080 = vmatpush.msra.mxu0 0.0
      %2081 = vmatpush.msra.mxu0 0.0
      %2082 = vmatpush.msra.mxu0 0.0
      %2083 = vmatpush.msra.mxu0 0.0
      %2084 = vmatpush.msra.mxu0 0.0
      %2085 = vmatpush.msra.mxu0 0.0
      %2086 = vmatpush.msra.mxu0 0.0
      %2087 = vmatpush.msra.mxu0 0.0
      %2088 = vmatpush.msra.mxu0 0.0
      %2089 = vmatpush.msra.mxu0 0.0
      %2090 = vmatpush.msra.mxu0 0.0
      %2091 = vmatpush.msra.mxu0 0.0
      %2092 = vmatpush.msra.mxu0 0.0
      %2093 = vmatpush.msra.mxu0 %v1523
      %2094 = vmatpush.msra.mxu0 %v1491
      %2095 = vmatmul.f32.gmra.mxu0 %v1537
      %v2096 = vpop.f32.mrf.mxu0
      %v2097 = vadd.f32 %v1533, %v2096
      %2098 = vdwg.mxu0
      %2099 = vmatpush.msra.mxu0 0.0
      %2100 = vmatpush.msra.mxu0 0.0
      %2101 = vmatpush.msra.mxu0 0.0
      %2102 = vmatpush.msra.mxu0 0.0
      %2103 = vmatpush.msra.mxu0 0.0
      %2104 = vmatpush.msra.mxu0 0.0
      %2105 = vmatpush.msra.mxu0 0.0
      %2106 = vmatpush.msra.mxu0 0.0
      %2107 = vmatpush.msra.mxu0 0.0
      %2108 = vmatpush.msra.mxu0 0.0
      %2109 = vmatpush.msra.mxu0 0.0
      %2110 = vmatpush.msra.mxu0 0.0
      %2111 = vmatpush.msra.mxu0 0.0
      %2112 = vmatpush.msra.mxu0 0.0
      %2113 = vmatpush.msra.mxu0 %v1524
      %2114 = vmatpush.msra.mxu0 %v1492
      %2115 = vmatmul.f32.gmra.mxu0 %v1537
      %v2116 = vpop.f32.mrf.mxu0
      %v2117 = vadd.f32 %v1533, %v2116
      %2118 = vdwg.mxu0
      %2119 = vmatpush.msra.mxu0 0.0
      %2120 = vmatpush.msra.mxu0 0.0
      %2121 = vmatpush.msra.mxu0 0.0
      %2122 = vmatpush.msra.mxu0 0.0
      %2123 = vmatpush.msra.mxu0 0.0
      %2124 = vmatpush.msra.mxu0 0.0
      %2125 = vmatpush.msra.mxu0 0.0
      %2126 = vmatpush.msra.mxu0 0.0
      %2127 = vmatpush.msra.mxu0 0.0
      %2128 = vmatpush.msra.mxu0 0.0
      %2129 = vmatpush.msra.mxu0 0.0
      %2130 = vmatpush.msra.mxu0 0.0
      %2131 = vmatpush.msra.mxu0 0.0
      %2132 = vmatpush.msra.mxu0 0.0
      %2133 = vmatpush.msra.mxu0 %v1525
      %2134 = vmatpush.msra.mxu0 %v1493
      %2135 = vmatmul.f32.gmra.mxu0 %v1537
      %v2136 = vpop.f32.mrf.mxu0
      %v2137 = vadd.f32 %v1533, %v2136
      %2138 = vdwg.mxu0
      %2139 = vmatpush.msra.mxu0 0.0
      %2140 = vmatpush.msra.mxu0 0.0
      %2141 = vmatpush.msra.mxu0 0.0
      %2142 = vmatpush.msra.mxu0 0.0
      %2143 = vmatpush.msra.mxu0 0.0
      %2144 = vmatpush.msra.mxu0 0.0
      %2145 = vmatpush.msra.mxu0 0.0
      %2146 = vmatpush.msra.mxu0 0.0
      %2147 = vmatpush.msra.mxu0 0.0
      %2148 = vmatpush.msra.mxu0 0.0
      %2149 = vmatpush.msra.mxu0 0.0
      %2150 = vmatpush.msra.mxu0 0.0
      %2151 = vmatpush.msra.mxu0 0.0
      %2152 = vmatpush.msra.mxu0 0.0
      %2153 = vmatpush.msra.mxu0 %v1526
      %2154 = vmatpush.msra.mxu0 %v1494
      %2155 = vmatmul.f32.gmra.mxu0 %v1537
      %v2156 = vpop.f32.mrf.mxu0
      %v2157 = vadd.f32 %v1533, %v2156
      %2158 = vdwg.mxu0
      %2159 = vmatpush.msra.mxu0 0.0
      %2160 = vmatpush.msra.mxu0 0.0
      %2161 = vmatpush.msra.mxu0 0.0
      %2162 = vmatpush.msra.mxu0 0.0
      %2163 = vmatpush.msra.mxu0 0.0
      %2164 = vmatpush.msra.mxu0 0.0
      %2165 = vmatpush.msra.mxu0 0.0
      %2166 = vmatpush.msra.mxu0 0.0
      %2167 = vmatpush.msra.mxu0 0.0
      %2168 = vmatpush.msra.mxu0 0.0
      %2169 = vmatpush.msra.mxu0 0.0
      %2170 = vmatpush.msra.mxu0 0.0
      %2171 = vmatpush.msra.mxu0 0.0
      %2172 = vmatpush.msra.mxu0 0.0
      %2173 = vmatpush.msra.mxu0 %v1527
      %2174 = vmatpush.msra.mxu0 %v1495
      %2175 = vmatmul.f32.gmra.mxu0 %v1537
      %v2176 = vpop.f32.mrf.mxu0
      %v2177 = vadd.f32 %v1533, %v2176
      %2178 = vdwg.mxu0
      %v2211 = vrot.slane %v1577, 4
      %v2212 = vrot.slane %v1617, 4
      %v2213 = vrot.slane %v1657, 4
      %v2214 = vrot.slane %v1697, 4
      %v2215 = vrot.slane %v1737, 4
      %v2216 = vrot.slane %v1777, 4
      %v2217 = vrot.slane %v1817, 4
      %v2218 = vrot.slane %v1857, 4
      %v2219 = vrot.slane %v1897, 4
      %v2220 = vrot.slane %v1937, 4
      %v2221 = vrot.slane %v1977, 4
      %v2222 = vrot.slane %v2017, 4
      %v2223 = vrot.slane %v2057, 4
      %v2224 = vrot.slane %v2097, 4
      %v2225 = vrot.slane %v2137, 4
      %v2226 = vrot.slane %v2177, 4
      %vm2227 = vcmask 1043456
      %v2228 = vsel %vm2227, %v1557, %v2211
      %v2229 = vsel %vm2227, %v1597, %v2212
      %v2230 = vsel %vm2227, %v1637, %v2213
      %v2231 = vsel %vm2227, %v1677, %v2214
      %v2232 = vsel %vm2227, %v1717, %v2215
      %v2233 = vsel %vm2227, %v1757, %v2216
      %v2234 = vsel %vm2227, %v1797, %v2217
      %v2235 = vsel %vm2227, %v1837, %v2218
      %v2236 = vsel %vm2227, %v1877, %v2219
      %v2237 = vsel %vm2227, %v1917, %v2220
      %v2238 = vsel %vm2227, %v1957, %v2221
      %v2239 = vsel %vm2227, %v1997, %v2222
      %v2240 = vsel %vm2227, %v2037, %v2223
      %v2241 = vsel %vm2227, %v2077, %v2224
      %v2242 = vsel %vm2227, %v2117, %v2225
      %v2243 = vsel %vm2227, %v2157, %v2226
      %2260 = vst [vmem:[%s289] sm:$0x77] %v2228
      %2261 = vst [vmem:[%s289 + $0x8] sm:$0x77] %v2229
      %2262 = vst [vmem:[%s289 + $0x10] sm:$0x77] %v2230
      %2263 = vst [vmem:[%s289 + $0x18] sm:$0x77] %v2231
      %2264 = vst [vmem:[%s289 + $0x20] sm:$0x77] %v2232
      %2265 = vst [vmem:[%s289 + $0x28] sm:$0x77] %v2233
      %2266 = vst [vmem:[%s289 + $0x30] sm:$0x77] %v2234
      %2267 = vst [vmem:[%s289 + $0x38] sm:$0x77] %v2235
      %2268 = vst [vmem:[%s289 + $0x40] sm:$0x77] %v2236
      %2269 = vst [vmem:[%s289 + $0x48] sm:$0x77] %v2237
      %2270 = vst [vmem:[%s289 + $0x50] sm:$0x77] %v2238
      %2271 = vst [vmem:[%s289 + $0x58] sm:$0x77] %v2239
      %2272 = vst [vmem:[%s289 + $0x60] sm:$0x77] %v2240
      %2273 = vst [vmem:[%s289 + $0x68] sm:$0x77] %v2241
      %2274 = vst [vmem:[%s289 + $0x70] sm:$0x77] %v2242
      %2275 = vst [vmem:[%s289 + $0x78] sm:$0x77] %v2243
      %s2276 = smul.u32 32, %s22
      %p2277 = scmp.lt.s32.totalorder %s21, 1
      %s2278 = scalar_select %p2277, %s21, 1
      %p2279 = scmp.lt.s32.totalorder %s2276, 31
      %s2280 = scalar_select %p2279, %s2276, 31
      %s2281 = smul.addr %s2278, 32
      %s2282 = sadd.s32 %s2280, %s2281
      %s2283 = smul.addr %s2282, 4
      %s2284 = scalar_lea.vmem %s6, %s2283
      // Predicated region
      $region45: #{dgf_forward.6} parent=43 // pred_check
        %p2285 = pneg %p182
      $region46: #{dgf_forward.6} parent=43 // pred_check_branch
        %2287 = sbr.rel (%p2285) target = $region48
      $region47: #{dgf_forward.6} parent=43 // pred_region
        %s2288 = smul.u32 32, %s22
      $region48: #{dgf_forward.6} parent=43 // pred_fallthru
        _
    $region44: #{dgf_forward.6} parent=5 // pred_fallthru
      _
    %p2289 = scmp.le.s32.totalorder 2, %s12
    // Predicated region
    $region49: #{dgf_forward.6} parent=5 // pred_check
      %p2290 = pneg %p2289
    $region50: #{dgf_forward.6} parent=5 // pred_check_branch
      %2292 = sbr.rel (%p2290) target = $region52
    $region51: #{dgf_forward.6} parent=5 // pred_region
      %s2293 = ssub.s32 %s12, 2
      // Predicated region
      $region53: #{dgf_forward.6} parent=51 // pred_check
        %p2294 = pneg %p188
      $region54: #{dgf_forward.6} parent=51 // pred_check_branch
        %2296 = sbr.rel (%p2294) target = $region56
      $region55: #{dgf_forward.6} parent=51 // pred_region
        %s2297 = smul.u32 32, %s24
        %p2298 = scmp.lt.s32.totalorder %s23, 1
        %s2299 = scalar_select %p2298, %s23, 1
        %p2300 = scmp.lt.s32.totalorder %s2297, 31
        %s2301 = scalar_select %p2300, %s2297, 31
        %s2302 = smul.addr %s2299, 32
        %s2303 = sadd.s32 %s2301, %s2302
        %s2304 = smul.addr %s2303, 4
        %s2305 = scalar_lea.vmem %s6, %s2304
      $region56: #{dgf_forward.6} parent=51 // pred_fallthru
        _
    $region52: #{dgf_forward.6} parent=5 // pred_fallthru
      _
  $region6: #{dgf_forward.6} parent=0 // loop_footer
    %s16 = sadd.s32 1, %s12
  $region7: #{dgf_forward.6} parent=0 // loop_footer_branch
    %11 = sbr.rel target = $region3
  $region8: #{dgf_forward.6} parent=0 // loop_exit
    _

</llo_original>
